<compile_context>
chip_gen: v5e
topology: v5e:2x2
jax: 0.10.0
libtpu: 0.0.40
codegen_flags: <defaults>
</compile_context>

<pallas_src>
import functools

import jax
import jax.numpy as jnp
from jax.experimental import pallas as pl
from jax.experimental.pallas import tpu as pltpu


def round_up(x, m):
    return (x + m - 1) // m * m


def num_parallel_blocks():
    """2 when the chip exposes 2 TensorCores per device (v7x); else 1.

    On single-TC parts (v5e/v6e) extra 'parallel' grid blocks only add the
    ~0.35 us per-step fixed overhead, so collapse to one block there.
    """
    try:
        kind = jax.devices()[0].device_kind.lower()
    except Exception:
        return 1
    return 2 if ("v7" in kind or "7x" in kind) else 1


def pick_tm(M, min_blocks, bytes_per_row, budget_bytes=6 << 20):
    """Pick a tile height: at least `min_blocks` grid blocks, 8-aligned,
    dividing M, and keeping the double-buffered per-tile (A row + out row)
    footprint under `budget_bytes` (fits v5e's 16 MiB default scoped VMEM)."""
    cands = [M // nb for nb in range(min_blocks, M + 1)
             if M % nb == 0 and (M // nb) % 8 == 0]
    for tm in cands:                       # descending tile size
        if 2 * tm * bytes_per_row <= budget_bytes:
            return tm
    return cands[-1] if cands else M


# ----------------------------------------------------------------------------
# Pallas kernels
# ----------------------------------------------------------------------------
def matmul_bias_kernel(a_ref, b_ref, bias_ref, o_ref, *, apply_relu):
    """Single-K matmul: one MXU dot, fused bias (+ReLU), one store (no RMW)."""
    acc = jnp.dot(a_ref[...], b_ref[...], preferred_element_type=jnp.float32)
    acc = acc + bias_ref[...]
    if apply_relu:
        acc = jnp.maximum(acc, 0.0)
    o_ref[...] = acc.astype(o_ref.dtype)


def maxpool_kernel(x_ref, o_ref, *, c):
    """2x2 max-pool on a (tb, 2, ow, 2*c) block -> (tb, ow, c).

    Axis 1 holds the vertical pair; the last dim interleaves [left|right]
    pixels (c lanes each), so the pool is pure elementwise VPU maximums.
    # TODO(synk): at 224x224, keep stores lane-dense (pltpu.roll horizontal max)
    #             or fold the pool into the conv epilogue.
    """
    x = x_ref[...]                                       # (tb, 2, ow, 2c)
    m = jnp.maximum(x[:, 0], x[:, 1])                    # vertical max (tb, ow, 2c)
    o_ref[...] = jnp.maximum(m[:, :, :c], m[:, :, c:])   # horizontal max


def fc_fused_kernel(h_ref, w1_ref, b1_ref, w2_ref, b2_ref, o_ref):
    """fc1 -> fc2 fused; the fc1 output never leaves VMEM.

    No ReLU between fc1 and fc2 (matches the reference module's forward).
    """
    h1 = jnp.dot(h_ref[...], w1_ref[...], preferred_element_type=jnp.float32)
    h1 = (h1 + b1_ref[...]).astype(jnp.bfloat16)
    o_ref[...] = (
        jnp.dot(h1, w2_ref[...], preferred_element_type=jnp.float32) + b2_ref[...]
    )


# ----------------------------------------------------------------------------
# Wrappers
# ----------------------------------------------------------------------------
def matmul_bias(a, w, bias, *, tm, relu, out_dtype):
    """(M,K) bf16 @ (K,N) bf16 + bias(1,N) f32 -> (M,N) out_dtype.  K untiled."""
    M, K = a.shape
    Kw, N = w.shape
    assert K == Kw and M % tm == 0, (M, K, Kw, tm)
    return pl.pallas_call(
        functools.partial(matmul_bias_kernel, apply_relu=relu),
        out_shape=jax.ShapeDtypeStruct((M, N), out_dtype),
        grid=(M // tm,),
        in_specs=[
            pl.BlockSpec((tm, K), lambda i: (i, 0)),
            pl.BlockSpec((K, N), lambda i: (0, 0)),
            pl.BlockSpec((1, N), lambda i: (0, 0)),
        ],
        out_specs=pl.BlockSpec((tm, N), lambda i: (i, 0)),
        compiler_params=pltpu.CompilerParams(dimension_semantics=("parallel",)),
    )(a, w, bias)


def im2col(x_nhwc, kh, kw, pad, k_pad=None):
    """Extract kh x kw patches (plain-JAX glue, bf16). Returns (M, K[p]), oh, ow."""
    x = x_nhwc.astype(jnp.bfloat16)
    if pad:
        x = jnp.pad(x, ((0, 0), (pad, pad), (pad, pad), (0, 0)))
    N, H, W, C = x.shape
    oh, ow = H - kh + 1, W - kw + 1
    patches = [x[:, i:i + oh, j:j + ow, :] for i in range(kh) for j in range(kw)]
    p = jnp.stack(patches, axis=3).reshape(N * oh * ow, kh * kw * C)
    K = kh * kw * C
    if k_pad is not None and k_pad > K:
        p = jnp.pad(p, ((0, 0), (0, k_pad - K)))   # zero rows in weight match
    return p, oh, ow


def conv2d(x_nhwc, w2, bias, *, kh, kw, pad, min_blocks, relu=True):
    """Conv2d (stride 1) via im2col + Pallas matmul; emits bf16 activations."""
    Kp, OC = w2.shape
    patches, oh, ow = im2col(x_nhwc, kh, kw, pad, k_pad=Kp)
    M = patches.shape[0]
    bytes_per_row = (Kp + OC) * 2                    # bf16 A row + bf16 out row
    tm = pick_tm(M, min_blocks, bytes_per_row)
    y = matmul_bias(patches, w2, bias, tm=tm, relu=relu, out_dtype=jnp.bfloat16)
    return y.reshape(x_nhwc.shape[0], oh, ow, OC)


def maxpool2x2(x_nhwc, nb):
    """MaxPool2d(kernel=2, stride=2) as an elementwise Pallas kernel (bf16)."""
    N, H, W, C = x_nhwc.shape
    oh, ow = H // 2, W // 2
    R = N * oh
    # (N,H,W,C) -> (N*oh, 2, ow, 2*C): pure row-major reshape, no data movement.
    x4 = x_nhwc.reshape(R, 2, ow, 2 * C)
    if R % nb:
        nb = 1
    tb = R // nb
    y = pl.pallas_call(
        functools.partial(maxpool_kernel, c=C),
        out_shape=jax.ShapeDtypeStruct((R, ow, C), x_nhwc.dtype),
        grid=(nb,),
        in_specs=[pl.BlockSpec((tb, 2, ow, 2 * C), lambda r: (r, 0, 0, 0))],
        out_specs=pl.BlockSpec((tb, ow, C), lambda r: (r, 0, 0)),
        compiler_params=pltpu.CompilerParams(dimension_semantics=("parallel",)),
    )(x4)
    return y.reshape(N, oh, ow, C)


def fc1_fc2_fused(h, w1, b1, w2, b2):
    """fc1 -> fc2 in one pallas_call; ~4.3 MB resident VMEM, single grid step."""
    M = h.shape[0]
    N2 = w2.shape[1]
    return pl.pallas_call(
        fc_fused_kernel,
        out_shape=jax.ShapeDtypeStruct((M, N2), jnp.float32),
    )(h, w1, b1, w2, b2)


# ----------------------------------------------------------------------------
# Parameters
# ----------------------------------------------------------------------------
def init_raw_params(key, flat_features):
    """Parameters in the PyTorch layouts (what a checkpoint would hold)."""
    ks = jax.random.split(key, 8)
    s = 0.05
    return {
        "conv1_w": jax.random.normal(ks[0], (64, 3, 3, 3), jnp.float32) * s,
        "conv1_b": jax.random.normal(ks[1], (64,), jnp.float32) * s,
        "conv2_w": jax.random.normal(ks[2], (128, 64, 5, 5), jnp.float32) * s,
        "conv2_b": jax.random.normal(ks[3], (128,), jnp.float32) * s,
        # PyTorch Linear weight layout: (out_features, in_features)
        "fc1_w": jax.random.normal(ks[4], (1000, flat_features), jnp.float32) * s,
        "fc1_b": jax.random.normal(ks[5], (1000,), jnp.float32) * s,
        "fc2_w": jax.random.normal(ks[6], (10, 1000), jnp.float32) * s,
        "fc2_b": jax.random.normal(ks[7], (10,), jnp.float32) * s,
    }


def prepare_params(raw):
    """One-time conversion to kernel-friendly layouts (transposed, padded, bf16)."""
    def conv_w(w, k_pad=None):
        oc, ic, kh, kw = w.shape
        k = kh * kw * ic
        w2 = jnp.transpose(w, (2, 3, 1, 0)).reshape(k, oc)   # match patch order
        if k_pad is not None and k_pad > k:
            w2 = jnp.pad(w2, ((0, k_pad - k), (0, 0)))
        return w2.astype(jnp.bfloat16)

    def fc_w(w, kp, np_):
        o, i = w.shape
        return jnp.pad(w.T, ((0, kp - i), (0, np_ - o))).astype(jnp.bfloat16)

    def bias2d(b, np_=None):
        if np_ is not None:
            b = jnp.pad(b, (0, np_ - b.shape[0]))
        return b.reshape(1, -1).astype(jnp.float32)

    fc1_in = raw["fc1_w"].shape[1]                   # multiple of 128 here
    return {
        "conv1_w": conv_w(raw["conv1_w"], k_pad=128),              # (128, 64)
        "conv1_b": bias2d(raw["conv1_b"]),                         # (1, 64)
        "conv2_w": conv_w(raw["conv2_w"]),                         # (1600, 128)
        "conv2_b": bias2d(raw["conv2_b"]),                         # (1, 128)
        "fc1_w": fc_w(raw["fc1_w"], round_up(fc1_in, 128), 1024),  # (2048, 1024)
        "fc1_b": bias2d(raw["fc1_b"], 1024),                       # (1, 1024)
        "fc2_w": fc_w(raw["fc2_w"], 1024, 128),                    # (1024, 128)
        "fc2_b": bias2d(raw["fc2_b"], 128),                        # (1, 128)
    }


# ----------------------------------------------------------------------------
# Model
# ----------------------------------------------------------------------------
def cnn_forward(params, x_nchw, *, nb):
    n = x_nchw.shape[0]
    # NCHW -> NHWC for the conv/pool stages
    h = jnp.transpose(x_nchw, (0, 2, 3, 1))
    h = conv2d(h, params["conv1_w"], params["conv1_b"],
               kh=3, kw=3, pad=1, min_blocks=nb, relu=True)
    h = maxpool2x2(h, nb)
    h = conv2d(h, params["conv2_w"], params["conv2_b"],
               kh=5, kw=5, pad=0, min_blocks=nb, relu=True)
    h = maxpool2x2(h, nb)

    # flatten in PyTorch NCHW order
    h = jnp.transpose(h, (0, 3, 1, 2)).reshape(n, -1)
    # TODO(synk): nn.Dropout() -> eval-mode identity (no RNG mask).

    mp = round_up(n, 8)
    h = jnp.pad(h, ((0, mp - n), (0, 0)))            # already bf16
    out = fc1_fc2_fused(h, params["fc1_w"], params["fc1_b"],
                        params["fc2_w"], params["fc2_b"])
    return out[:n, :10]


if __name__ == "__main__":
    key = jax.random.PRNGKey(0)
    k_x, k_p = jax.random.split(key)

    # Small input consistent with the architecture: 2 x 3 x 24 x 24
    # -> conv1(3x3,pad1): 24 -> pool: 12 -> conv2(5x5): 8 -> pool: 4
    # -> flat = 128 * 4 * 4 = 2048
    N, C, H, W = 2, 3, 24, 24
    x = jax.random.normal(k_x, (N, C, H, W), jnp.float32)

    flat_features = 128 * ((((H // 2) - 4) // 2) ** 2)
    raw = init_raw_params(k_p, flat_features)
    params = prepare_params(raw)         # one-time layout/pad/bf16 conversion

    fwd = jax.jit(functools.partial(cnn_forward, nb=num_parallel_blocks()))
    out = jax.block_until_ready(fwd(params, x))

    assert out.shape == (N, 10), out.shape
    assert bool(jnp.all(jnp.isfinite(out)))
    print("KERNEL_OK")
</pallas_src>

<mosaic_0001>
module attributes {stable_mosaic.version = 11 : i64} {
  func.func @matmul_bias_kernel(%arg0: i32, %arg1: memref<1152x128xbf16, #tpu.memory_space<vmem>>, %arg2: memref<128x64xbf16, #tpu.memory_space<vmem>>, %arg3: memref<1x64xf32, #tpu.memory_space<vmem>>, %arg4: memref<1152x64xbf16, #tpu.memory_space<vmem>>) attributes {dimension_semantics = [#tpu.dimension_semantics<parallel>], iteration_bounds = array<i64: 1>, scalar_prefetch = 0 : i64, scratch_operands = 0 : i64, tpu.core_type = #tpu.core_type<tc>, window_params = [{transform_indices = @transform_0, window_bounds = array<i64: 1152, 128>}, {pipeline_mode = #tpu.pipeline_mode<synchronous>, transform_indices = @transform_1, window_bounds = array<i64: 128, 64>}, {pipeline_mode = #tpu.pipeline_mode<synchronous>, transform_indices = @transform_2, window_bounds = array<i64: 1, 64>}, {transform_indices = @transform_3, window_bounds = array<i64: 1152, 64>}]} {
    %c0 = arith.constant 0 : index
    %c0_0 = arith.constant 0 : index
    %0 = vector.load %arg1[%c0, %c0_0] : memref<1152x128xbf16, #tpu.memory_space<vmem>>, vector<1152x128xbf16>
    %c0_1 = arith.constant 0 : index
    %c0_2 = arith.constant 0 : index
    %1 = vector.load %arg2[%c0_1, %c0_2] : memref<128x64xbf16, #tpu.memory_space<vmem>>, vector<128x64xbf16>
    %cst = arith.constant dense<0.000000e+00> : vector<1152x64xf32>
    %2 = tpu.matmul %0, %1, %cst {dimension_numbers = #tpu.dot_dimension_numbers<[1], [0], [0], [1], [0, 0, 1, 1], [], []>} : vector<1152x128xbf16>, vector<128x64xbf16>, vector<1152x64xf32> -> vector<1152x64xf32>
    %c0_3 = arith.constant 0 : index
    %c0_4 = arith.constant 0 : index
    %3 = vector.load %arg3[%c0_3, %c0_4] : memref<1x64xf32, #tpu.memory_space<vmem>>, vector<1x64xf32>
    %4 = vector.broadcast %3 : vector<1x64xf32> to vector<1152x64xf32>
    %5 = arith.addf %2, %4 : vector<1152x64xf32>
    %cst_5 = arith.constant 0.000000e+00 : f32
    %6 = vector.broadcast %cst_5 : f32 to vector<1152x64xf32>
    %7 = arith.maximumf %5, %6 : vector<1152x64xf32>
    %8 = arith.truncf %7 : vector<1152x64xf32> to vector<1152x64xbf16>
    %c0_6 = arith.constant 0 : index
    %c0_7 = arith.constant 0 : index
    %9 = vector.load %arg4[%c0_6, %c0_7] : memref<1152x64xbf16, #tpu.memory_space<vmem>>, vector<1152x64xbf16>
    tpu.vector_store %arg4[%c0_6, %c0_7], %8 {strides = array<i32>} : memref<1152x64xbf16, #tpu.memory_space<vmem>>, vector<1152x64xbf16>,
    return
  }
  func.func @transform_0(%arg0: i32) -> (i32, i32) {
    %c0_i32 = arith.constant 0 : i32
    %c0_i32_0 = arith.constant 0 : i32
    return %arg0, %c0_i32 : i32, i32
  }
  func.func @transform_1(%arg0: i32) -> (i32, i32) {
    %c0_i32 = arith.constant 0 : i32
    %c0_i32_0 = arith.constant 0 : i32
    %c0_i32_1 = arith.constant 0 : i32
    return %c0_i32, %c0_i32_0 : i32, i32
  }
  func.func @transform_2(%arg0: i32) -> (i32, i32) {
    %c0_i32 = arith.constant 0 : i32
    %c0_i32_0 = arith.constant 0 : i32
    %c0_i32_1 = arith.constant 0 : i32
    return %c0_i32, %c0_i32_0 : i32, i32
  }
  func.func @transform_3(%arg0: i32) -> (i32, i32) {
    %c0_i32 = arith.constant 0 : i32
    %c0_i32_0 = arith.constant 0 : i32
    return %arg0, %c0_i32 : i32, i32
  }
}

module attributes {stable_mosaic.version = 11 : i64} {
  func.func @maxpool_kernel(%arg0: i32, %arg1: memref<24x2x12x128xbf16, #tpu.memory_space<vmem>>, %arg2: memref<24x12x64xbf16, #tpu.memory_space<vmem>>) attributes {dimension_semantics = [#tpu.dimension_semantics<parallel>], iteration_bounds = array<i64: 1>, scalar_prefetch = 0 : i64, scratch_operands = 0 : i64, tpu.core_type = #tpu.core_type<tc>, window_params = [{transform_indices = @transform_0, window_bounds = array<i64: 24, 2, 12, 128>}, {transform_indices = @transform_1, window_bounds = array<i64: 24, 12, 64>}]} {
    %c0 = arith.constant 0 : index
    %c0_0 = arith.constant 0 : index
    %c0_1 = arith.constant 0 : index
    %c0_2 = arith.constant 0 : index
    %0 = vector.load %arg1[%c0, %c0_0, %c0_1, %c0_2] : memref<24x2x12x128xbf16, #tpu.memory_space<vmem>>, vector<24x2x12x128xbf16>
    %1 = vector.extract_strided_slice %0 {offsets = [0, 0, 0, 0], sizes = [24, 1, 12, 128], strides = [1, 1, 1, 1]} : vector<24x2x12x128xbf16> to vector<24x1x12x128xbf16>
    %2 = vector.shape_cast %1 : vector<24x1x12x128xbf16> to vector<24x12x128xbf16>
    %3 = vector.extract_strided_slice %0 {offsets = [0, 1, 0, 0], sizes = [24, 1, 12, 128], strides = [1, 1, 1, 1]} : vector<24x2x12x128xbf16> to vector<24x1x12x128xbf16>
    %4 = vector.shape_cast %3 : vector<24x1x12x128xbf16> to vector<24x12x128xbf16>
    %5 = arith.maximumf %2, %4 : vector<24x12x128xbf16>
    %6 = vector.extract_strided_slice %5 {offsets = [0, 0, 0], sizes = [24, 12, 64], strides = [1, 1, 1]} : vector<24x12x128xbf16> to vector<24x12x64xbf16>
    %7 = vector.extract_strided_slice %5 {offsets = [0, 0, 64], sizes = [24, 12, 64], strides = [1, 1, 1]} : vector<24x12x128xbf16> to vector<24x12x64xbf16>
    %8 = arith.maximumf %6, %7 : vector<24x12x64xbf16>
    %c0_3 = arith.constant 0 : index
    %c0_4 = arith.constant 0 : index
    %c0_5 = arith.constant 0 : index
    %9 = vector.load %arg2[%c0_3, %c0_4, %c0_5] : memref<24x12x64xbf16, #tpu.memory_space<vmem>>, vector<24x12x64xbf16>
    tpu.vector_store %arg2[%c0_3, %c0_4, %c0_5], %8 {strides = array<i32>} : memref<24x12x64xbf16, #tpu.memory_space<vmem>>, vector<24x12x64xbf16>,
    return
  }
  func.func @transform_0(%arg0: i32) -> (i32, i32, i32, i32) {
    %c0_i32 = arith.constant 0 : i32
    %c0_i32_0 = arith.constant 0 : i32
    %c0_i32_1 = arith.constant 0 : i32
    %c0_i32_2 = arith.constant 0 : i32
    return %arg0, %c0_i32, %c0_i32_0, %c0_i32_1 : i32, i32, i32, i32
  }
  func.func @transform_1(%arg0: i32) -> (i32, i32, i32) {
    %c0_i32 = arith.constant 0 : i32
    %c0_i32_0 = arith.constant 0 : i32
    %c0_i32_1 = arith.constant 0 : i32
    return %arg0, %c0_i32, %c0_i32_0 : i32, i32, i32
  }
}

module attributes {stable_mosaic.version = 11 : i64} {
  func.func @maxpool_kernel(%arg0: i32, %arg1: memref<8x2x4x256xbf16, #tpu.memory_space<vmem>>, %arg2: memref<8x4x128xbf16, #tpu.memory_space<vmem>>) attributes {dimension_semantics = [#tpu.dimension_semantics<parallel>], iteration_bounds = array<i64: 1>, scalar_prefetch = 0 : i64, scratch_operands = 0 : i64, tpu.core_type = #tpu.core_type<tc>, window_params = [{transform_indices = @transform_0, window_bounds = array<i64: 8, 2, 4, 256>}, {transform_indices = @transform_1, window_bounds = array<i64: 8, 4, 128>}]} {
    %c0 = arith.constant 0 : index
    %c0_0 = arith.constant 0 : index
    %c0_1 = arith.constant 0 : index
    %c0_2 = arith.constant 0 : index
    %0 = vector.load %arg1[%c0, %c0_0, %c0_1, %c0_2] : memref<8x2x4x256xbf16, #tpu.memory_space<vmem>>, vector<8x2x4x256xbf16>
    %1 = vector.extract_strided_slice %0 {offsets = [0, 0, 0, 0], sizes = [8, 1, 4, 256], strides = [1, 1, 1, 1]} : vector<8x2x4x256xbf16> to vector<8x1x4x256xbf16>
    %2 = vector.shape_cast %1 : vector<8x1x4x256xbf16> to vector<8x4x256xbf16>
    %3 = vector.extract_strided_slice %0 {offsets = [0, 1, 0, 0], sizes = [8, 1, 4, 256], strides = [1, 1, 1, 1]} : vector<8x2x4x256xbf16> to vector<8x1x4x256xbf16>
    %4 = vector.shape_cast %3 : vector<8x1x4x256xbf16> to vector<8x4x256xbf16>
    %5 = arith.maximumf %2, %4 : vector<8x4x256xbf16>
    %6 = vector.extract_strided_slice %5 {offsets = [0, 0, 0], sizes = [8, 4, 128], strides = [1, 1, 1]} : vector<8x4x256xbf16> to vector<8x4x128xbf16>
    %7 = vector.extract_strided_slice %5 {offsets = [0, 0, 128], sizes = [8, 4, 128], strides = [1, 1, 1]} : vector<8x4x256xbf16> to vector<8x4x128xbf16>
    %8 = arith.maximumf %6, %7 : vector<8x4x128xbf16>
    %c0_3 = arith.constant 0 : index
    %c0_4 = arith.constant 0 : index
    %c0_5 = arith.constant 0 : index
    %9 = vector.load %arg2[%c0_3, %c0_4, %c0_5] : memref<8x4x128xbf16, #tpu.memory_space<vmem>>, vector<8x4x128xbf16>
    tpu.vector_store %arg2[%c0_3, %c0_4, %c0_5], %8 {strides = array<i32>} : memref<8x4x128xbf16, #tpu.memory_space<vmem>>, vector<8x4x128xbf16>,
    return
  }
  func.func @transform_0(%arg0: i32) -> (i32, i32, i32, i32) {
    %c0_i32 = arith.constant 0 : i32
    %c0_i32_0 = arith.constant 0 : i32
    %c0_i32_1 = arith.constant 0 : i32
    %c0_i32_2 = arith.constant 0 : i32
    return %arg0, %c0_i32, %c0_i32_0, %c0_i32_1 : i32, i32, i32, i32
  }
  func.func @transform_1(%arg0: i32) -> (i32, i32, i32) {
    %c0_i32 = arith.constant 0 : i32
    %c0_i32_0 = arith.constant 0 : i32
    %c0_i32_1 = arith.constant 0 : i32
    return %arg0, %c0_i32, %c0_i32_0 : i32, i32, i32
  }
}

module attributes {stable_mosaic.version = 11 : i64} {
  func.func @matmul_bias_kernel(%arg0: i32, %arg1: memref<128x1600xbf16, #tpu.memory_space<vmem>>, %arg2: memref<1600x128xbf16, #tpu.memory_space<vmem>>, %arg3: memref<1x128xf32, #tpu.memory_space<vmem>>, %arg4: memref<128x128xbf16, #tpu.memory_space<vmem>>) attributes {dimension_semantics = [#tpu.dimension_semantics<parallel>], iteration_bounds = array<i64: 1>, scalar_prefetch = 0 : i64, scratch_operands = 0 : i64, tpu.core_type = #tpu.core_type<tc>, window_params = [{transform_indices = @transform_0, window_bounds = array<i64: 128, 1600>}, {pipeline_mode = #tpu.pipeline_mode<synchronous>, transform_indices = @transform_1, window_bounds = array<i64: 1600, 128>}, {pipeline_mode = #tpu.pipeline_mode<synchronous>, transform_indices = @transform_2, window_bounds = array<i64: 1, 128>}, {transform_indices = @transform_3, window_bounds = array<i64: 128, 128>}]} {
    %c0 = arith.constant 0 : index
    %c0_0 = arith.constant 0 : index
    %0 = vector.load %arg1[%c0, %c0_0] : memref<128x1600xbf16, #tpu.memory_space<vmem>>, vector<128x1600xbf16>
    %c0_1 = arith.constant 0 : index
    %c0_2 = arith.constant 0 : index
    %1 = vector.load %arg2[%c0_1, %c0_2] : memref<1600x128xbf16, #tpu.memory_space<vmem>>, vector<1600x128xbf16>
    %cst = arith.constant dense<0.000000e+00> : vector<128x128xf32>
    %2 = tpu.matmul %0, %1, %cst {dimension_numbers = #tpu.dot_dimension_numbers<[1], [0], [0], [1], [0, 0, 1, 1], [], []>} : vector<128x1600xbf16>, vector<1600x128xbf16>, vector<128x128xf32> -> vector<128x128xf32>
    %c0_3 = arith.constant 0 : index
    %c0_4 = arith.constant 0 : index
    %3 = vector.load %arg3[%c0_3, %c0_4] : memref<1x128xf32, #tpu.memory_space<vmem>>, vector<1x128xf32>
    %4 = vector.broadcast %3 : vector<1x128xf32> to vector<128x128xf32>
    %5 = arith.addf %2, %4 : vector<128x128xf32>
    %cst_5 = arith.constant 0.000000e+00 : f32
    %6 = vector.broadcast %cst_5 : f32 to vector<128x128xf32>
    %7 = arith.maximumf %5, %6 : vector<128x128xf32>
    %8 = arith.truncf %7 : vector<128x128xf32> to vector<128x128xbf16>
    %c0_6 = arith.constant 0 : index
    %c0_7 = arith.constant 0 : index
    %9 = vector.load %arg4[%c0_6, %c0_7] : memref<128x128xbf16, #tpu.memory_space<vmem>>, vector<128x128xbf16>
    tpu.vector_store %arg4[%c0_6, %c0_7], %8 {strides = array<i32>} : memref<128x128xbf16, #tpu.memory_space<vmem>>, vector<128x128xbf16>,
    return
  }
  func.func @transform_0(%arg0: i32) -> (i32, i32) {
    %c0_i32 = arith.constant 0 : i32
    %c0_i32_0 = arith.constant 0 : i32
    return %arg0, %c0_i32 : i32, i32
  }
  func.func @transform_1(%arg0: i32) -> (i32, i32) {
    %c0_i32 = arith.constant 0 : i32
    %c0_i32_0 = arith.constant 0 : i32
    %c0_i32_1 = arith.constant 0 : i32
    return %c0_i32, %c0_i32_0 : i32, i32
  }
  func.func @transform_2(%arg0: i32) -> (i32, i32) {
    %c0_i32 = arith.constant 0 : i32
    %c0_i32_0 = arith.constant 0 : i32
    %c0_i32_1 = arith.constant 0 : i32
    return %c0_i32, %c0_i32_0 : i32, i32
  }
  func.func @transform_3(%arg0: i32) -> (i32, i32) {
    %c0_i32 = arith.constant 0 : i32
    %c0_i32_0 = arith.constant 0 : i32
    return %arg0, %c0_i32 : i32, i32
  }
}

module attributes {stable_mosaic.version = 11 : i64} {
  func.func @fc_fused_kernel(%arg0: memref<8x2048xbf16, #tpu.memory_space<vmem>>, %arg1: memref<2048x1024xbf16, #tpu.memory_space<vmem>>, %arg2: memref<1x1024xf32, #tpu.memory_space<vmem>>, %arg3: memref<1024x128xbf16, #tpu.memory_space<vmem>>, %arg4: memref<1x128xf32, #tpu.memory_space<vmem>>, %arg5: memref<8x128xf32, #tpu.memory_space<vmem>>) attributes {dimension_semantics = [], scalar_prefetch = 0 : i64, scratch_operands = 0 : i64, tpu.core_type = #tpu.core_type<tc>} {
    %c0 = arith.constant 0 : index
    %c0_0 = arith.constant 0 : index
    %0 = vector.load %arg0[%c0, %c0_0] : memref<8x2048xbf16, #tpu.memory_space<vmem>>, vector<8x2048xbf16>
    %c0_1 = arith.constant 0 : index
    %c0_2 = arith.constant 0 : index
    %1 = vector.load %arg1[%c0_1, %c0_2] : memref<2048x1024xbf16, #tpu.memory_space<vmem>>, vector<2048x1024xbf16>
    %cst = arith.constant dense<0.000000e+00> : vector<8x1024xf32>
    %2 = tpu.matmul %0, %1, %cst {dimension_numbers = #tpu.dot_dimension_numbers<[1], [0], [0], [1], [0, 0, 1, 1], [], []>} : vector<8x2048xbf16>, vector<2048x1024xbf16>, vector<8x1024xf32> -> vector<8x1024xf32>
    %c0_3 = arith.constant 0 : index
    %c0_4 = arith.constant 0 : index
    %3 = vector.load %arg2[%c0_3, %c0_4] : memref<1x1024xf32, #tpu.memory_space<vmem>>, vector<1x1024xf32>
    %4 = vector.broadcast %3 : vector<1x1024xf32> to vector<8x1024xf32>
    %5 = arith.addf %2, %4 : vector<8x1024xf32>
    %6 = arith.truncf %5 : vector<8x1024xf32> to vector<8x1024xbf16>
    %c0_5 = arith.constant 0 : index
    %c0_6 = arith.constant 0 : index
    %7 = vector.load %arg3[%c0_5, %c0_6] : memref<1024x128xbf16, #tpu.memory_space<vmem>>, vector<1024x128xbf16>
    %cst_7 = arith.constant dense<0.000000e+00> : vector<8x128xf32>
    %8 = tpu.matmul %6, %7, %cst_7 {dimension_numbers = #tpu.dot_dimension_numbers<[1], [0], [0], [1], [0, 0, 1, 1], [], []>} : vector<8x1024xbf16>, vector<1024x128xbf16>, vector<8x128xf32> -> vector<8x128xf32>
    %c0_8 = arith.constant 0 : index
    %c0_9 = arith.constant 0 : index
    %9 = vector.load %arg4[%c0_8, %c0_9] : memref<1x128xf32, #tpu.memory_space<vmem>>, vector<1x128xf32>
    %10 = vector.broadcast %9 : vector<1x128xf32> to vector<8x128xf32>
    %11 = arith.addf %8, %10 : vector<8x128xf32>
    %c0_10 = arith.constant 0 : index
    %c0_11 = arith.constant 0 : index
    %12 = vector.load %arg5[%c0_10, %c0_11] : memref<8x128xf32, #tpu.memory_space<vmem>>, vector<8x128xf32>
    tpu.vector_store %arg5[%c0_10, %c0_11], %11 {strides = array<i32>} : memref<8x128xf32, #tpu.memory_space<vmem>>, vector<8x128xf32>,
    return
  }
}

</mosaic_0001>

<llo_original>
// kernel: cnn_forward.6
$region0: #{cnn_forward.6}
  #allocation0 [shape = 'u32[]', space=smem, size = 0x4, offset = 0x4, fixed_abs, tag = 'smem constant byte address 0x4 - core index']
  #allocation1 [shape = 'u32[72,128]{1,0:T(1,128)}', space=vmem, size = 0x9000, scoped, tag = 'internal scratch']
  %s0 = inlined_call_operand.vmem [shape: bf16[24,2,12,128], index: 0, kind: input, shape index: {}]
  %s1 = inlined_call_operand.vmem [shape: bf16[24,12,64], index: 1, kind: output, shape index: {}]
  %s2 = sld [smem:[#allocation0]]
  $region14: #{cnn_forward.6} parent=0
    _
  %s4 = ssub.s32 1, %s2
  %s5 = scalar_select 0, %s4, %s2
  // Predicated region
  $region2: #{cnn_forward.6} parent=0 // pred_check
    _
  $region3: #{cnn_forward.6} parent=0 // pred_check_branch
    %7 = sbr.rel (0) target = $region5
  $region4: #{cnn_forward.6} parent=0 // pred_region
    _
  $region5: #{cnn_forward.6} parent=0 // pred_fallthru
    _
  %v8 = vld [vmem:[%s0] sm:$0xf]
  %v9 = vld [vmem:[%s0 + $0x4] sm:$0x3]
  %v10 = vld [vmem:[%s0 + $0x8] sm:$0xf]
  %v11 = vld [vmem:[%s0 + $0xc] sm:$0x3]
  %v12 = vld [vmem:[%s0 + $0x10] sm:$0xf]
  %v13 = vld [vmem:[%s0 + $0x14] sm:$0x3]
  %v14 = vld [vmem:[%s0 + $0x18] sm:$0xf]
  %v15 = vld [vmem:[%s0 + $0x1c] sm:$0x3]
  %v16 = vld [vmem:[%s0 + $0x20] sm:$0xf]
  %v17 = vld [vmem:[%s0 + $0x24] sm:$0x3]
  %v18 = vld [vmem:[%s0 + $0x28] sm:$0xf]
  %v19 = vld [vmem:[%s0 + $0x2c] sm:$0x3]
  %v20 = vld [vmem:[%s0 + $0x30] sm:$0xf]
  %v21 = vld [vmem:[%s0 + $0x34] sm:$0x3]
  %v22 = vld [vmem:[%s0 + $0x38] sm:$0xf]
  %v23 = vld [vmem:[%s0 + $0x3c] sm:$0x3]
  %v24 = vld [vmem:[%s0 + $0x40] sm:$0xf]
  %v25 = vld [vmem:[%s0 + $0x44] sm:$0x3]
  %v26 = vld [vmem:[%s0 + $0x48] sm:$0xf]
  %v27 = vld [vmem:[%s0 + $0x4c] sm:$0x3]
  %v28 = vld [vmem:[%s0 + $0x50] sm:$0xf]
  %v29 = vld [vmem:[%s0 + $0x54] sm:$0x3]
  %v30 = vld [vmem:[%s0 + $0x58] sm:$0xf]
  %v31 = vld [vmem:[%s0 + $0x5c] sm:$0x3]
  %v32 = vld [vmem:[%s0 + $0x60] sm:$0xf]
  %v33 = vld [vmem:[%s0 + $0x64] sm:$0x3]
  %v34 = vld [vmem:[%s0 + $0x68] sm:$0xf]
  %v35 = vld [vmem:[%s0 + $0x6c] sm:$0x3]
  %v36 = vld [vmem:[%s0 + $0x70] sm:$0xf]
  %v37 = vld [vmem:[%s0 + $0x74] sm:$0x3]
  %v38 = vld [vmem:[%s0 + $0x78] sm:$0xf]
  %v39 = vld [vmem:[%s0 + $0x7c] sm:$0x3]
  %v40 = vld [vmem:[%s0 + $0x80] sm:$0xf]
  %v41 = vld [vmem:[%s0 + $0x84] sm:$0x3]
  %v42 = vld [vmem:[%s0 + $0x88] sm:$0xf]
  %v43 = vld [vmem:[%s0 + $0x8c] sm:$0x3]
  %v44 = vld [vmem:[%s0 + $0x90] sm:$0xf]
  %v45 = vld [vmem:[%s0 + $0x94] sm:$0x3]
  %v46 = vld [vmem:[%s0 + $0x98] sm:$0xf]
  %v47 = vld [vmem:[%s0 + $0x9c] sm:$0x3]
  %v48 = vld [vmem:[%s0 + $0xa0] sm:$0xf]
  %v49 = vld [vmem:[%s0 + $0xa4] sm:$0x3]
  %v50 = vld [vmem:[%s0 + $0xa8] sm:$0xf]
  %v51 = vld [vmem:[%s0 + $0xac] sm:$0x3]
  %v52 = vld [vmem:[%s0 + $0xb0] sm:$0xf]
  %v53 = vld [vmem:[%s0 + $0xb4] sm:$0x3]
  %v54 = vld [vmem:[%s0 + $0xb8] sm:$0xf]
  %v55 = vld [vmem:[%s0 + $0xbc] sm:$0x3]
  %v56 = vld [vmem:[%s0 + $0xc0] sm:$0xf]
  %v57 = vld [vmem:[%s0 + $0xc4] sm:$0x3]
  %v58 = vld [vmem:[%s0 + $0xc8] sm:$0xf]
  %v59 = vld [vmem:[%s0 + $0xcc] sm:$0x3]
  %v60 = vld [vmem:[%s0 + $0xd0] sm:$0xf]
  %v61 = vld [vmem:[%s0 + $0xd4] sm:$0x3]
  %v62 = vld [vmem:[%s0 + $0xd8] sm:$0xf]
  %v63 = vld [vmem:[%s0 + $0xdc] sm:$0x3]
  %v64 = vld [vmem:[%s0 + $0xe0] sm:$0xf]
  %v65 = vld [vmem:[%s0 + $0xe4] sm:$0x3]
  %v66 = vld [vmem:[%s0 + $0xe8] sm:$0xf]
  %v67 = vld [vmem:[%s0 + $0xec] sm:$0x3]
  %v68 = vld [vmem:[%s0 + $0xf0] sm:$0xf]
  %v69 = vld [vmem:[%s0 + $0xf4] sm:$0x3]
  %v70 = vld [vmem:[%s0 + $0xf8] sm:$0xf]
  %v71 = vld [vmem:[%s0 + $0xfc] sm:$0x3]
  %v72 = vld [vmem:[%s0 + $0x100] sm:$0xf]
  %v73 = vld [vmem:[%s0 + $0x104] sm:$0x3]
  %v74 = vld [vmem:[%s0 + $0x108] sm:$0xf]
  %v75 = vld [vmem:[%s0 + $0x10c] sm:$0x3]
  %v76 = vld [vmem:[%s0 + $0x110] sm:$0xf]
  %v77 = vld [vmem:[%s0 + $0x114] sm:$0x3]
  %v78 = vld [vmem:[%s0 + $0x118] sm:$0xf]
  %v79 = vld [vmem:[%s0 + $0x11c] sm:$0x3]
  %v80 = vld [vmem:[%s0 + $0x120] sm:$0xf]
  %v81 = vld [vmem:[%s0 + $0x124] sm:$0x3]
  %v82 = vld [vmem:[%s0 + $0x128] sm:$0xf]
  %v83 = vld [vmem:[%s0 + $0x12c] sm:$0x3]
  %v84 = vld [vmem:[%s0 + $0x130] sm:$0xf]
  %v85 = vld [vmem:[%s0 + $0x134] sm:$0x3]
  %v86 = vld [vmem:[%s0 + $0x138] sm:$0xf]
  %v87 = vld [vmem:[%s0 + $0x13c] sm:$0x3]
  %v88 = vld [vmem:[%s0 + $0x140] sm:$0xf]
  %v89 = vld [vmem:[%s0 + $0x144] sm:$0x3]
  %v90 = vld [vmem:[%s0 + $0x148] sm:$0xf]
  %v91 = vld [vmem:[%s0 + $0x14c] sm:$0x3]
  %v92 = vld [vmem:[%s0 + $0x150] sm:$0xf]
  %v93 = vld [vmem:[%s0 + $0x154] sm:$0x3]
  %v94 = vld [vmem:[%s0 + $0x158] sm:$0xf]
  %v95 = vld [vmem:[%s0 + $0x15c] sm:$0x3]
  %v96 = vld [vmem:[%s0 + $0x160] sm:$0xf]
  %v97 = vld [vmem:[%s0 + $0x164] sm:$0x3]
  %v98 = vld [vmem:[%s0 + $0x168] sm:$0xf]
  %v99 = vld [vmem:[%s0 + $0x16c] sm:$0x3]
  %v100 = vld [vmem:[%s0 + $0x170] sm:$0xf]
  %v101 = vld [vmem:[%s0 + $0x174] sm:$0x3]
  %v102 = vld [vmem:[%s0 + $0x178] sm:$0xf]
  %v103 = vld [vmem:[%s0 + $0x17c] sm:$0x3]
  %v104 = vunpack.c.l.bf16 %v8
  %v105 = vunpack.c.l.bf16 %v9
  %v106 = vunpack.c.l.bf16 %v12
  %v107 = vunpack.c.l.bf16 %v13
  %v108 = vunpack.c.l.bf16 %v16
  %v109 = vunpack.c.l.bf16 %v17
  %v110 = vunpack.c.l.bf16 %v20
  %v111 = vunpack.c.l.bf16 %v21
  %v112 = vunpack.c.l.bf16 %v24
  %v113 = vunpack.c.l.bf16 %v25
  %v114 = vunpack.c.l.bf16 %v28
  %v115 = vunpack.c.l.bf16 %v29
  %v116 = vunpack.c.l.bf16 %v32
  %v117 = vunpack.c.l.bf16 %v33
  %v118 = vunpack.c.l.bf16 %v36
  %v119 = vunpack.c.l.bf16 %v37
  %v120 = vunpack.c.l.bf16 %v40
  %v121 = vunpack.c.l.bf16 %v41
  %v122 = vunpack.c.l.bf16 %v44
  %v123 = vunpack.c.l.bf16 %v45
  %v124 = vunpack.c.l.bf16 %v48
  %v125 = vunpack.c.l.bf16 %v49
  %v126 = vunpack.c.l.bf16 %v52
  %v127 = vunpack.c.l.bf16 %v53
  %v128 = vunpack.c.l.bf16 %v56
  %v129 = vunpack.c.l.bf16 %v57
  %v130 = vunpack.c.l.bf16 %v60
  %v131 = vunpack.c.l.bf16 %v61
  %v132 = vunpack.c.l.bf16 %v64
  %v133 = vunpack.c.l.bf16 %v65
  %v134 = vunpack.c.l.bf16 %v68
  %v135 = vunpack.c.l.bf16 %v69
  %v136 = vunpack.c.l.bf16 %v72
  %v137 = vunpack.c.l.bf16 %v73
  %v138 = vunpack.c.l.bf16 %v76
  %v139 = vunpack.c.l.bf16 %v77
  %v140 = vunpack.c.l.bf16 %v80
  %v141 = vunpack.c.l.bf16 %v81
  %v142 = vunpack.c.l.bf16 %v84
  %v143 = vunpack.c.l.bf16 %v85
  %v144 = vunpack.c.l.bf16 %v88
  %v145 = vunpack.c.l.bf16 %v89
  %v146 = vunpack.c.l.bf16 %v92
  %v147 = vunpack.c.l.bf16 %v93
  %v148 = vunpack.c.l.bf16 %v96
  %v149 = vunpack.c.l.bf16 %v97
  %v150 = vunpack.c.l.bf16 %v100
  %v151 = vunpack.c.l.bf16 %v101
  %v152 = vunpack.c.l.bf16 %v10
  %v153 = vunpack.c.l.bf16 %v11
  %v154 = vunpack.c.l.bf16 %v14
  %v155 = vunpack.c.l.bf16 %v15
  %v156 = vunpack.c.l.bf16 %v18
  %v157 = vunpack.c.l.bf16 %v19
  %v158 = vunpack.c.l.bf16 %v22
  %v159 = vunpack.c.l.bf16 %v23
  %v160 = vunpack.c.l.bf16 %v26
  %v161 = vunpack.c.l.bf16 %v27
  %v162 = vunpack.c.l.bf16 %v30
  %v163 = vunpack.c.l.bf16 %v31
  %v164 = vunpack.c.l.bf16 %v34
  %v165 = vunpack.c.l.bf16 %v35
  %v166 = vunpack.c.l.bf16 %v38
  %v167 = vunpack.c.l.bf16 %v39
  %v168 = vunpack.c.l.bf16 %v42
  %v169 = vunpack.c.l.bf16 %v43
  %v170 = vunpack.c.l.bf16 %v46
  %v171 = vunpack.c.l.bf16 %v47
  %v172 = vunpack.c.l.bf16 %v50
  %v173 = vunpack.c.l.bf16 %v51
  %v174 = vunpack.c.l.bf16 %v54
  %v175 = vunpack.c.l.bf16 %v55
  %v176 = vunpack.c.l.bf16 %v58
  %v177 = vunpack.c.l.bf16 %v59
  %v178 = vunpack.c.l.bf16 %v62
  %v179 = vunpack.c.l.bf16 %v63
  %v180 = vunpack.c.l.bf16 %v66
  %v181 = vunpack.c.l.bf16 %v67
  %v182 = vunpack.c.l.bf16 %v70
  %v183 = vunpack.c.l.bf16 %v71
  %v184 = vunpack.c.l.bf16 %v74
  %v185 = vunpack.c.l.bf16 %v75
  %v186 = vunpack.c.l.bf16 %v78
  %v187 = vunpack.c.l.bf16 %v79
  %v188 = vunpack.c.l.bf16 %v82
  %v189 = vunpack.c.l.bf16 %v83
  %v190 = vunpack.c.l.bf16 %v86
  %v191 = vunpack.c.l.bf16 %v87
  %v192 = vunpack.c.l.bf16 %v90
  %v193 = vunpack.c.l.bf16 %v91
  %v194 = vunpack.c.l.bf16 %v94
  %v195 = vunpack.c.l.bf16 %v95
  %v196 = vunpack.c.l.bf16 %v98
  %v197 = vunpack.c.l.bf16 %v99
  %v198 = vunpack.c.l.bf16 %v102
  %v199 = vunpack.c.l.bf16 %v103
  %v200 = vmax.f32 %v104, %v152
  %v201 = vmax.f32 %v105, %v153
  %v202 = vmax.f32 %v106, %v154
  %v203 = vmax.f32 %v107, %v155
  %v204 = vmax.f32 %v108, %v156
  %v205 = vmax.f32 %v109, %v157
  %v206 = vmax.f32 %v110, %v158
  %v207 = vmax.f32 %v111, %v159
  %v208 = vmax.f32 %v112, %v160
  %v209 = vmax.f32 %v113, %v161
  %v210 = vmax.f32 %v114, %v162
  %v211 = vmax.f32 %v115, %v163
  %v212 = vmax.f32 %v116, %v164
  %v213 = vmax.f32 %v117, %v165
  %v214 = vmax.f32 %v118, %v166
  %v215 = vmax.f32 %v119, %v167
  %v216 = vmax.f32 %v120, %v168
  %v217 = vmax.f32 %v121, %v169
  %v218 = vmax.f32 %v122, %v170
  %v219 = vmax.f32 %v123, %v171
  %v220 = vmax.f32 %v124, %v172
  %v221 = vmax.f32 %v125, %v173
  %v222 = vmax.f32 %v126, %v174
  %v223 = vmax.f32 %v127, %v175
  %v224 = vmax.f32 %v128, %v176
  %v225 = vmax.f32 %v129, %v177
  %v226 = vmax.f32 %v130, %v178
  %v227 = vmax.f32 %v131, %v179
  %v228 = vmax.f32 %v132, %v180
  %v229 = vmax.f32 %v133, %v181
  %v230 = vmax.f32 %v134, %v182
  %v231 = vmax.f32 %v135, %v183
  %v232 = vmax.f32 %v136, %v184
  %v233 = vmax.f32 %v137, %v185
  %v234 = vmax.f32 %v138, %v186
  %v235 = vmax.f32 %v139, %v187
  %v236 = vmax.f32 %v140, %v188
  %v237 = vmax.f32 %v141, %v189
  %v238 = vmax.f32 %v142, %v190
  %v239 = vmax.f32 %v143, %v191
  %v240 = vmax.f32 %v144, %v192
  %v241 = vmax.f32 %v145, %v193
  %v242 = vmax.f32 %v146, %v194
  %v243 = vmax.f32 %v147, %v195
  %v244 = vmax.f32 %v148, %v196
  %v245 = vmax.f32 %v149, %v197
  %v246 = vmax.f32 %v150, %v198
  %v247 = vmax.f32 %v151, %v199
  %v248 = vpack.c.bf16 %v200, %v200
  %v249 = vpack.c.bf16 %v201, %v201
  %v250 = vpack.c.bf16 %v202, %v202
  %v251 = vpack.c.bf16 %v203, %v203
  %v252 = vpack.c.bf16 %v204, %v204
  %v253 = vpack.c.bf16 %v205, %v205
  %v254 = vpack.c.bf16 %v206, %v206
  %v255 = vpack.c.bf16 %v207, %v207
  %v256 = vpack.c.bf16 %v208, %v208
  %v257 = vpack.c.bf16 %v209, %v209
  %v258 = vpack.c.bf16 %v210, %v210
  %v259 = vpack.c.bf16 %v211, %v211
  %v260 = vpack.c.bf16 %v212, %v212
  %v261 = vpack.c.bf16 %v213, %v213
  %v262 = vpack.c.bf16 %v214, %v214
  %v263 = vpack.c.bf16 %v215, %v215
  %v264 = vpack.c.bf16 %v216, %v216
  %v265 = vpack.c.bf16 %v217, %v217
  %v266 = vpack.c.bf16 %v218, %v218
  %v267 = vpack.c.bf16 %v219, %v219
  %v268 = vpack.c.bf16 %v220, %v220
  %v269 = vpack.c.bf16 %v221, %v221
  %v270 = vpack.c.bf16 %v222, %v222
  %v271 = vpack.c.bf16 %v223, %v223
  %v272 = vpack.c.bf16 %v224, %v224
  %v273 = vpack.c.bf16 %v225, %v225
  %v274 = vpack.c.bf16 %v226, %v226
  %v275 = vpack.c.bf16 %v227, %v227
  %v276 = vpack.c.bf16 %v228, %v228
  %v277 = vpack.c.bf16 %v229, %v229
  %v278 = vpack.c.bf16 %v230, %v230
  %v279 = vpack.c.bf16 %v231, %v231
  %v280 = vpack.c.bf16 %v232, %v232
  %v281 = vpack.c.bf16 %v233, %v233
  %v282 = vpack.c.bf16 %v234, %v234
  %v283 = vpack.c.bf16 %v235, %v235
  %v284 = vpack.c.bf16 %v236, %v236
  %v285 = vpack.c.bf16 %v237, %v237
  %v286 = vpack.c.bf16 %v238, %v238
  %v287 = vpack.c.bf16 %v239, %v239
  %v288 = vpack.c.bf16 %v240, %v240
  %v289 = vpack.c.bf16 %v241, %v241
  %v290 = vpack.c.bf16 %v242, %v242
  %v291 = vpack.c.bf16 %v243, %v243
  %v292 = vpack.c.bf16 %v244, %v244
  %v293 = vpack.c.bf16 %v245, %v245
  %v294 = vpack.c.bf16 %v246, %v246
  %v295 = vpack.c.bf16 %v247, %v247
  %v296 = vunpack.c.l.bf16 %v248
  %v297 = vunpack.c.l.bf16 %v249
  %v298 = vunpack.c.l.bf16 %v250
  %v299 = vunpack.c.l.bf16 %v251
  %v300 = vunpack.c.l.bf16 %v252
  %v301 = vunpack.c.l.bf16 %v253
  %v302 = vunpack.c.l.bf16 %v254
  %v303 = vunpack.c.l.bf16 %v255
  %v304 = vunpack.c.l.bf16 %v256
  %v305 = vunpack.c.l.bf16 %v257
  %v306 = vunpack.c.l.bf16 %v258
  %v307 = vunpack.c.l.bf16 %v259
  %v308 = vunpack.c.l.bf16 %v260
  %v309 = vunpack.c.l.bf16 %v261
  %v310 = vunpack.c.l.bf16 %v262
  %v311 = vunpack.c.l.bf16 %v263
  %v312 = vunpack.c.l.bf16 %v264
  %v313 = vunpack.c.l.bf16 %v265
  %v314 = vunpack.c.l.bf16 %v266
  %v315 = vunpack.c.l.bf16 %v267
  %v316 = vunpack.c.l.bf16 %v268
  %v317 = vunpack.c.l.bf16 %v269
  %v318 = vunpack.c.l.bf16 %v270
  %v319 = vunpack.c.l.bf16 %v271
  %v320 = vunpack.c.l.bf16 %v272
  %v321 = vunpack.c.l.bf16 %v273
  %v322 = vunpack.c.l.bf16 %v274
  %v323 = vunpack.c.l.bf16 %v275
  %v324 = vunpack.c.l.bf16 %v276
  %v325 = vunpack.c.l.bf16 %v277
  %v326 = vunpack.c.l.bf16 %v278
  %v327 = vunpack.c.l.bf16 %v279
  %v328 = vunpack.c.l.bf16 %v280
  %v329 = vunpack.c.l.bf16 %v281
  %v330 = vunpack.c.l.bf16 %v282
  %v331 = vunpack.c.l.bf16 %v283
  %v332 = vunpack.c.l.bf16 %v284
  %v333 = vunpack.c.l.bf16 %v285
  %v334 = vunpack.c.l.bf16 %v286
  %v335 = vunpack.c.l.bf16 %v287
  %v336 = vunpack.c.l.bf16 %v288
  %v337 = vunpack.c.l.bf16 %v289
  %v338 = vunpack.c.l.bf16 %v290
  %v339 = vunpack.c.l.bf16 %v291
  %v340 = vunpack.c.l.bf16 %v292
  %v341 = vunpack.c.l.bf16 %v293
  %v342 = vunpack.c.l.bf16 %v294
  %v343 = vunpack.c.l.bf16 %v295
  %392 = vrot.lane.b32.xlu0 %v296, 64
  %v393 = vpop.permute.xlu0 %392
  %394 = vrot.lane.b32.xlu0 %v297, 64
  %v395 = vpop.permute.xlu0 %394
  %396 = vrot.lane.b32.xlu0 %v298, 64
  %v397 = vpop.permute.xlu0 %396
  %398 = vrot.lane.b32.xlu0 %v299, 64
  %v399 = vpop.permute.xlu0 %398
  %400 = vrot.lane.b32.xlu0 %v300, 64
  %v401 = vpop.permute.xlu0 %400
  %402 = vrot.lane.b32.xlu0 %v301, 64
  %v403 = vpop.permute.xlu0 %402
  %404 = vrot.lane.b32.xlu0 %v302, 64
  %v405 = vpop.permute.xlu0 %404
  %406 = vrot.lane.b32.xlu0 %v303, 64
  %v407 = vpop.permute.xlu0 %406
  %408 = vrot.lane.b32.xlu0 %v304, 64
  %v409 = vpop.permute.xlu0 %408
  %410 = vrot.lane.b32.xlu0 %v305, 64
  %v411 = vpop.permute.xlu0 %410
  %412 = vrot.lane.b32.xlu0 %v306, 64
  %v413 = vpop.permute.xlu0 %412
  %414 = vrot.lane.b32.xlu0 %v307, 64
  %v415 = vpop.permute.xlu0 %414
  %416 = vrot.lane.b32.xlu0 %v308, 64
  %v417 = vpop.permute.xlu0 %416
  %418 = vrot.lane.b32.xlu0 %v309, 64
  %v419 = vpop.permute.xlu0 %418
  %420 = vrot.lane.b32.xlu0 %v310, 64
  %v421 = vpop.permute.xlu0 %420
  %422 = vrot.lane.b32.xlu0 %v311, 64
  %v423 = vpop.permute.xlu0 %422
  %424 = vrot.lane.b32.xlu0 %v312, 64
  %v425 = vpop.permute.xlu0 %424
  %426 = vrot.lane.b32.xlu0 %v313, 64
  %v427 = vpop.permute.xlu0 %426
  %428 = vrot.lane.b32.xlu0 %v314, 64
  %v429 = vpop.permute.xlu0 %428
  %430 = vrot.lane.b32.xlu0 %v315, 64
  %v431 = vpop.permute.xlu0 %430
  %432 = vrot.lane.b32.xlu0 %v316, 64
  %v433 = vpop.permute.xlu0 %432
  %434 = vrot.lane.b32.xlu0 %v317, 64
  %v435 = vpop.permute.xlu0 %434
  %436 = vrot.lane.b32.xlu0 %v318, 64
  %v437 = vpop.permute.xlu0 %436
  %438 = vrot.lane.b32.xlu0 %v319, 64
  %v439 = vpop.permute.xlu0 %438
  %440 = vrot.lane.b32.xlu0 %v320, 64
  %v441 = vpop.permute.xlu0 %440
  %442 = vrot.lane.b32.xlu0 %v321, 64
  %v443 = vpop.permute.xlu0 %442
  %444 = vrot.lane.b32.xlu0 %v322, 64
  %v445 = vpop.permute.xlu0 %444
  %446 = vrot.lane.b32.xlu0 %v323, 64
  %v447 = vpop.permute.xlu0 %446
  %448 = vrot.lane.b32.xlu0 %v324, 64
  %v449 = vpop.permute.xlu0 %448
  %450 = vrot.lane.b32.xlu0 %v325, 64
  %v451 = vpop.permute.xlu0 %450
  %452 = vrot.lane.b32.xlu0 %v326, 64
  %v453 = vpop.permute.xlu0 %452
  %454 = vrot.lane.b32.xlu0 %v327, 64
  %v455 = vpop.permute.xlu0 %454
  %456 = vrot.lane.b32.xlu0 %v328, 64
  %v457 = vpop.permute.xlu0 %456
  %458 = vrot.lane.b32.xlu0 %v329, 64
  %v459 = vpop.permute.xlu0 %458
  %460 = vrot.lane.b32.xlu0 %v330, 64
  %v461 = vpop.permute.xlu0 %460
  %462 = vrot.lane.b32.xlu0 %v331, 64
  %v463 = vpop.permute.xlu0 %462
  %464 = vrot.lane.b32.xlu0 %v332, 64
  %v465 = vpop.permute.xlu0 %464
  %466 = vrot.lane.b32.xlu0 %v333, 64
  %v467 = vpop.permute.xlu0 %466
  %468 = vrot.lane.b32.xlu0 %v334, 64
  %v469 = vpop.permute.xlu0 %468
  %470 = vrot.lane.b32.xlu0 %v335, 64
  %v471 = vpop.permute.xlu0 %470
  %472 = vrot.lane.b32.xlu0 %v336, 64
  %v473 = vpop.permute.xlu0 %472
  %474 = vrot.lane.b32.xlu0 %v337, 64
  %v475 = vpop.permute.xlu0 %474
  %476 = vrot.lane.b32.xlu0 %v338, 64
  %v477 = vpop.permute.xlu0 %476
  %478 = vrot.lane.b32.xlu0 %v339, 64
  %v479 = vpop.permute.xlu0 %478
  %480 = vrot.lane.b32.xlu0 %v340, 64
  %v481 = vpop.permute.xlu0 %480
  %482 = vrot.lane.b32.xlu0 %v341, 64
  %v483 = vpop.permute.xlu0 %482
  %484 = vrot.lane.b32.xlu0 %v342, 64
  %v485 = vpop.permute.xlu0 %484
  %486 = vrot.lane.b32.xlu0 %v343, 64
  %v487 = vpop.permute.xlu0 %486
  %v536 = vmax.f32 %v296, %v393
  %v537 = vmax.f32 %v297, %v395
  %v538 = vmax.f32 %v298, %v397
  %v539 = vmax.f32 %v299, %v399
  %v540 = vmax.f32 %v300, %v401
  %v541 = vmax.f32 %v301, %v403
  %v542 = vmax.f32 %v302, %v405
  %v543 = vmax.f32 %v303, %v407
  %v544 = vmax.f32 %v304, %v409
  %v545 = vmax.f32 %v305, %v411
  %v546 = vmax.f32 %v306, %v413
  %v547 = vmax.f32 %v307, %v415
  %v548 = vmax.f32 %v308, %v417
  %v549 = vmax.f32 %v309, %v419
  %v550 = vmax.f32 %v310, %v421
  %v551 = vmax.f32 %v311, %v423
  %v552 = vmax.f32 %v312, %v425
  %v553 = vmax.f32 %v313, %v427
  %v554 = vmax.f32 %v314, %v429
  %v555 = vmax.f32 %v315, %v431
  %v556 = vmax.f32 %v316, %v433
  %v557 = vmax.f32 %v317, %v435
  %v558 = vmax.f32 %v318, %v437
  %v559 = vmax.f32 %v319, %v439
  %v560 = vmax.f32 %v320, %v441
  %v561 = vmax.f32 %v321, %v443
  %v562 = vmax.f32 %v322, %v445
  %v563 = vmax.f32 %v323, %v447
  %v564 = vmax.f32 %v324, %v449
  %v565 = vmax.f32 %v325, %v451
  %v566 = vmax.f32 %v326, %v453
  %v567 = vmax.f32 %v327, %v455
  %v568 = vmax.f32 %v328, %v457
  %v569 = vmax.f32 %v329, %v459
  %v570 = vmax.f32 %v330, %v461
  %v571 = vmax.f32 %v331, %v463
  %v572 = vmax.f32 %v332, %v465
  %v573 = vmax.f32 %v333, %v467
  %v574 = vmax.f32 %v334, %v469
  %v575 = vmax.f32 %v335, %v471
  %v576 = vmax.f32 %v336, %v473
  %v577 = vmax.f32 %v337, %v475
  %v578 = vmax.f32 %v338, %v477
  %v579 = vmax.f32 %v339, %v479
  %v580 = vmax.f32 %v340, %v481
  %v581 = vmax.f32 %v341, %v483
  %v582 = vmax.f32 %v342, %v485
  %v583 = vmax.f32 %v343, %v487
  %v584 = vpack.c.bf16 %v536, %v536
  %v585 = vpack.c.bf16 %v537, %v537
  %v586 = vpack.c.bf16 %v538, %v538
  %v587 = vpack.c.bf16 %v539, %v539
  %v588 = vpack.c.bf16 %v540, %v540
  %v589 = vpack.c.bf16 %v541, %v541
  %v590 = vpack.c.bf16 %v542, %v542
  %v591 = vpack.c.bf16 %v543, %v543
  %v592 = vpack.c.bf16 %v544, %v544
  %v593 = vpack.c.bf16 %v545, %v545
  %v594 = vpack.c.bf16 %v546, %v546
  %v595 = vpack.c.bf16 %v547, %v547
  %v596 = vpack.c.bf16 %v548, %v548
  %v597 = vpack.c.bf16 %v549, %v549
  %v598 = vpack.c.bf16 %v550, %v550
  %v599 = vpack.c.bf16 %v551, %v551
  %v600 = vpack.c.bf16 %v552, %v552
  %v601 = vpack.c.bf16 %v553, %v553
  %v602 = vpack.c.bf16 %v554, %v554
  %v603 = vpack.c.bf16 %v555, %v555
  %v604 = vpack.c.bf16 %v556, %v556
  %v605 = vpack.c.bf16 %v557, %v557
  %v606 = vpack.c.bf16 %v558, %v558
  %v607 = vpack.c.bf16 %v559, %v559
  %v608 = vpack.c.bf16 %v560, %v560
  %v609 = vpack.c.bf16 %v561, %v561
  %v610 = vpack.c.bf16 %v562, %v562
  %v611 = vpack.c.bf16 %v563, %v563
  %v612 = vpack.c.bf16 %v564, %v564
  %v613 = vpack.c.bf16 %v565, %v565
  %v614 = vpack.c.bf16 %v566, %v566
  %v615 = vpack.c.bf16 %v567, %v567
  %v616 = vpack.c.bf16 %v568, %v568
  %v617 = vpack.c.bf16 %v569, %v569
  %v618 = vpack.c.bf16 %v570, %v570
  %v619 = vpack.c.bf16 %v571, %v571
  %v620 = vpack.c.bf16 %v572, %v572
  %v621 = vpack.c.bf16 %v573, %v573
  %v622 = vpack.c.bf16 %v574, %v574
  %v623 = vpack.c.bf16 %v575, %v575
  %v624 = vpack.c.bf16 %v576, %v576
  %v625 = vpack.c.bf16 %v577, %v577
  %v626 = vpack.c.bf16 %v578, %v578
  %v627 = vpack.c.bf16 %v579, %v579
  %v628 = vpack.c.bf16 %v580, %v580
  %v629 = vpack.c.bf16 %v581, %v581
  %v630 = vpack.c.bf16 %v582, %v582
  %v631 = vpack.c.bf16 %v583, %v583
  %vm632 = vcmask 519168
  %633 = vst.msk [vmem:[%s1] sm:$0xf] %vm632, %v584
  %vm634 = vcmask 517120
  %635 = vst.msk [vmem:[%s1 + $0x4] sm:$0x3] %vm634, %v585
  %636 = vst.msk [vmem:[%s1 + $0x8] sm:$0xf] %vm632, %v586
  %637 = vst.msk [vmem:[%s1 + $0xc] sm:$0x3] %vm634, %v587
  %638 = vst.msk [vmem:[%s1 + $0x10] sm:$0xf] %vm632, %v588
  %639 = vst.msk [vmem:[%s1 + $0x14] sm:$0x3] %vm634, %v589
  %640 = vst.msk [vmem:[%s1 + $0x18] sm:$0xf] %vm632, %v590
  %641 = vst.msk [vmem:[%s1 + $0x1c] sm:$0x3] %vm634, %v591
  %642 = vst.msk [vmem:[%s1 + $0x20] sm:$0xf] %vm632, %v592
  %643 = vst.msk [vmem:[%s1 + $0x24] sm:$0x3] %vm634, %v593
  %644 = vst.msk [vmem:[%s1 + $0x28] sm:$0xf] %vm632, %v594
  %645 = vst.msk [vmem:[%s1 + $0x2c] sm:$0x3] %vm634, %v595
  %646 = vst.msk [vmem:[%s1 + $0x30] sm:$0xf] %vm632, %v596
  %647 = vst.msk [vmem:[%s1 + $0x34] sm:$0x3] %vm634, %v597
  %648 = vst.msk [vmem:[%s1 + $0x38] sm:$0xf] %vm632, %v598
  %649 = vst.msk [vmem:[%s1 + $0x3c] sm:$0x3] %vm634, %v599
  %650 = vst.msk [vmem:[%s1 + $0x40] sm:$0xf] %vm632, %v600
  %651 = vst.msk [vmem:[%s1 + $0x44] sm:$0x3] %vm634, %v601
  %652 = vst.msk [vmem:[%s1 + $0x48] sm:$0xf] %vm632, %v602
  %653 = vst.msk [vmem:[%s1 + $0x4c] sm:$0x3] %vm634, %v603
  %654 = vst.msk [vmem:[%s1 + $0x50] sm:$0xf] %vm632, %v604
  %655 = vst.msk [vmem:[%s1 + $0x54] sm:$0x3] %vm634, %v605
  %656 = vst.msk [vmem:[%s1 + $0x58] sm:$0xf] %vm632, %v606
  %657 = vst.msk [vmem:[%s1 + $0x5c] sm:$0x3] %vm634, %v607
  %658 = vst.msk [vmem:[%s1 + $0x60] sm:$0xf] %vm632, %v608
  %659 = vst.msk [vmem:[%s1 + $0x64] sm:$0x3] %vm634, %v609
  %660 = vst.msk [vmem:[%s1 + $0x68] sm:$0xf] %vm632, %v610
  %661 = vst.msk [vmem:[%s1 + $0x6c] sm:$0x3] %vm634, %v611
  %662 = vst.msk [vmem:[%s1 + $0x70] sm:$0xf] %vm632, %v612
  %663 = vst.msk [vmem:[%s1 + $0x74] sm:$0x3] %vm634, %v613
  %664 = vst.msk [vmem:[%s1 + $0x78] sm:$0xf] %vm632, %v614
  %665 = vst.msk [vmem:[%s1 + $0x7c] sm:$0x3] %vm634, %v615
  %666 = vst.msk [vmem:[%s1 + $0x80] sm:$0xf] %vm632, %v616
  %667 = vst.msk [vmem:[%s1 + $0x84] sm:$0x3] %vm634, %v617
  %668 = vst.msk [vmem:[%s1 + $0x88] sm:$0xf] %vm632, %v618
  %669 = vst.msk [vmem:[%s1 + $0x8c] sm:$0x3] %vm634, %v619
  %670 = vst.msk [vmem:[%s1 + $0x90] sm:$0xf] %vm632, %v620
  %671 = vst.msk [vmem:[%s1 + $0x94] sm:$0x3] %vm634, %v621
  %672 = vst.msk [vmem:[%s1 + $0x98] sm:$0xf] %vm632, %v622
  %673 = vst.msk [vmem:[%s1 + $0x9c] sm:$0x3] %vm634, %v623
  %674 = vst.msk [vmem:[%s1 + $0xa0] sm:$0xf] %vm632, %v624
  %675 = vst.msk [vmem:[%s1 + $0xa4] sm:$0x3] %vm634, %v625
  %676 = vst.msk [vmem:[%s1 + $0xa8] sm:$0xf] %vm632, %v626
  %677 = vst.msk [vmem:[%s1 + $0xac] sm:$0x3] %vm634, %v627
  %678 = vst.msk [vmem:[%s1 + $0xb0] sm:$0xf] %vm632, %v628
  %679 = vst.msk [vmem:[%s1 + $0xb4] sm:$0x3] %vm634, %v629
  %680 = vst.msk [vmem:[%s1 + $0xb8] sm:$0xf] %vm632, %v630
  %681 = vst.msk [vmem:[%s1 + $0xbc] sm:$0x3] %vm634, %v631
  // Predicated region
  $region6: #{cnn_forward.6} parent=0 // pred_check
    _
  $region7: #{cnn_forward.6} parent=0 // pred_check_branch
    %683 = sbr.rel (0) target = $region9
  $region8: #{cnn_forward.6} parent=0 // pred_region
    _
  $region9: #{cnn_forward.6} parent=0 // pred_fallthru
    _
  // Predicated region
  $region10: #{cnn_forward.6} parent=0 // pred_check
    _
  $region11: #{cnn_forward.6} parent=0 // pred_check_branch
    %685 = sbr.rel (0) target = $region13
  $region12: #{cnn_forward.6} parent=0 // pred_region
    _
  $region13: #{cnn_forward.6} parent=0 // pred_fallthru
    _

// kernel: cnn_forward.5
$region0: #{cnn_forward.5}
  #allocation0 [shape = 'u32[]', space=smem, size = 0x4, offset = 0x4, fixed_abs, tag = 'smem constant byte address 0x4 - core index']
  #allocation1 [shape = 'u32[72,128]{1,0:T(1,128)}', space=vmem, size = 0x9000, scoped, tag = 'internal scratch']
  %s0 = inlined_call_operand.vmem [shape: bf16[1152,128], index: 0, kind: input, shape index: {}]
  %s1 = inlined_call_operand.vmem [shape: bf16[128,64], index: 1, kind: input, shape index: {}]
  %s2 = inlined_call_operand.hbm [shape: f32[1,64], index: 2, kind: input, shape index: {}]
  %s3 = inlined_call_operand.vmem [shape: bf16[1152,64], index: 3, kind: output, shape index: {}]
  %s4 = sld [smem:[#allocation0]]
  $region26: #{cnn_forward.5} parent=0
    _
  %s6 = ssub.s32 1, %s4
  %s7 = scalar_select 0, %s6, %s4
  $region1: #{cnn_forward.5} parent=0
    #allocation2 [shape = 'u8[512]{0}', space=vmem, size = 0x400, scoped, tag = 'input window, operand 2, single buffered']
    #allocation3 [shape = 's32[1]{0}', space=sflag, size = 0x4, scoped, tag = 'scoped memory for cnn_forward.5']
    %8 = vsyncpa [#allocation3], 0
    // Predicated region
    $region2: #{cnn_forward.5} parent=1 // pred_check
      _
    $region3: #{cnn_forward.5} parent=1 // pred_check_branch
      %10 = sbr.rel (0) target = $region5
    $region4: #{cnn_forward.5} parent=1 // pred_region
      _
    $region5: #{cnn_forward.5} parent=1 // pred_fallthru
      _
    // Predicated region
    $region6: #{cnn_forward.5} parent=1 // pred_check
      _
    $region7: #{cnn_forward.5} parent=1 // pred_check_branch
      %12 = sbr.rel (0) target = $region9
    $region8: #{cnn_forward.5} parent=1 // pred_region
      _
    $region9: #{cnn_forward.5} parent=1 // pred_fallthru
      _
    // Predicated region
    $region10: #{cnn_forward.5} parent=1 // pred_check
      _
    $region11: #{cnn_forward.5} parent=1 // pred_check_branch
      %14 = sbr.rel (0) target = $region13
    $region12: #{cnn_forward.5} parent=1 // pred_region
      %16 = vsyncadd [#allocation3], 0
      %s18 = sshll.u32 %s2, 4
      %s19 = int_to_ptr.hbm [resolvable:$true] %s18
      %s20 = sshll.u32 [#allocation2], 4
      %s21 = int_to_ptr.vmem [resolvable:$true] %s20
      %23 = dma.hbm_to_vmem [thread:$0]  %s19, 16, %s21, [#allocation3]
    $region13: #{cnn_forward.5} parent=1 // pred_fallthru
      _
    // Predicated region
    $region14: #{cnn_forward.5} parent=1 // pred_check
      _
    $region15: #{cnn_forward.5} parent=1 // pred_check_branch
      %25 = sbr.rel (0) target = $region17
    $region16: #{cnn_forward.5} parent=1 // pred_region
      %27 = dma.done [#allocation3], 16
    $region17: #{cnn_forward.5} parent=1 // pred_fallthru
      _
    %v28 = vld [vmem:[%s0] sm:$0xf]
    %v29 = vld [vmem:[%s0 + $0x4] sm:$0xf]
    %v30 = vld [vmem:[%s0 + $0x8] sm:$0xf]
    %v31 = vld [vmem:[%s0 + $0xc] sm:$0xf]
    %v32 = vld [vmem:[%s0 + $0x10] sm:$0xf]
    %v33 = vld [vmem:[%s0 + $0x14] sm:$0xf]
    %v34 = vld [vmem:[%s0 + $0x18] sm:$0xf]
    %v35 = vld [vmem:[%s0 + $0x1c] sm:$0xf]
    %v36 = vld [vmem:[%s0 + $0x20] sm:$0xf]
    %v37 = vld [vmem:[%s0 + $0x24] sm:$0xf]
    %v38 = vld [vmem:[%s0 + $0x28] sm:$0xf]
    %v39 = vld [vmem:[%s0 + $0x2c] sm:$0xf]
    %v40 = vld [vmem:[%s0 + $0x30] sm:$0xf]
    %v41 = vld [vmem:[%s0 + $0x34] sm:$0xf]
    %v42 = vld [vmem:[%s0 + $0x38] sm:$0xf]
    %v43 = vld [vmem:[%s0 + $0x3c] sm:$0xf]
    %v44 = vld [vmem:[%s0 + $0x40] sm:$0xf]
    %v45 = vld [vmem:[%s0 + $0x44] sm:$0xf]
    %v46 = vld [vmem:[%s0 + $0x48] sm:$0xf]
    %v47 = vld [vmem:[%s0 + $0x4c] sm:$0xf]
    %v48 = vld [vmem:[%s0 + $0x50] sm:$0xf]
    %v49 = vld [vmem:[%s0 + $0x54] sm:$0xf]
    %v50 = vld [vmem:[%s0 + $0x58] sm:$0xf]
    %v51 = vld [vmem:[%s0 + $0x5c] sm:$0xf]
    %v52 = vld [vmem:[%s0 + $0x60] sm:$0xf]
    %v53 = vld [vmem:[%s0 + $0x64] sm:$0xf]
    %v54 = vld [vmem:[%s0 + $0x68] sm:$0xf]
    %v55 = vld [vmem:[%s0 + $0x6c] sm:$0xf]
    %v56 = vld [vmem:[%s0 + $0x70] sm:$0xf]
    %v57 = vld [vmem:[%s0 + $0x74] sm:$0xf]
    %v58 = vld [vmem:[%s0 + $0x78] sm:$0xf]
    %v59 = vld [vmem:[%s0 + $0x7c] sm:$0xf]
    %v60 = vld [vmem:[%s0 + $0x80] sm:$0xf]
    %v61 = vld [vmem:[%s0 + $0x84] sm:$0xf]
    %v62 = vld [vmem:[%s0 + $0x88] sm:$0xf]
    %v63 = vld [vmem:[%s0 + $0x8c] sm:$0xf]
    %v64 = vld [vmem:[%s0 + $0x90] sm:$0xf]
    %v65 = vld [vmem:[%s0 + $0x94] sm:$0xf]
    %v66 = vld [vmem:[%s0 + $0x98] sm:$0xf]
    %v67 = vld [vmem:[%s0 + $0x9c] sm:$0xf]
    %v68 = vld [vmem:[%s0 + $0xa0] sm:$0xf]
    %v69 = vld [vmem:[%s0 + $0xa4] sm:$0xf]
    %v70 = vld [vmem:[%s0 + $0xa8] sm:$0xf]
    %v71 = vld [vmem:[%s0 + $0xac] sm:$0xf]
    %v72 = vld [vmem:[%s0 + $0xb0] sm:$0xf]
    %v73 = vld [vmem:[%s0 + $0xb4] sm:$0xf]
    %v74 = vld [vmem:[%s0 + $0xb8] sm:$0xf]
    %v75 = vld [vmem:[%s0 + $0xbc] sm:$0xf]
    %v76 = vld [vmem:[%s0 + $0xc0] sm:$0xf]
    %v77 = vld [vmem:[%s0 + $0xc4] sm:$0xf]
    %v78 = vld [vmem:[%s0 + $0xc8] sm:$0xf]
    %v79 = vld [vmem:[%s0 + $0xcc] sm:$0xf]
    %v80 = vld [vmem:[%s0 + $0xd0] sm:$0xf]
    %v81 = vld [vmem:[%s0 + $0xd4] sm:$0xf]
    %v82 = vld [vmem:[%s0 + $0xd8] sm:$0xf]
    %v83 = vld [vmem:[%s0 + $0xdc] sm:$0xf]
    %v84 = vld [vmem:[%s0 + $0xe0] sm:$0xf]
    %v85 = vld [vmem:[%s0 + $0xe4] sm:$0xf]
    %v86 = vld [vmem:[%s0 + $0xe8] sm:$0xf]
    %v87 = vld [vmem:[%s0 + $0xec] sm:$0xf]
    %v88 = vld [vmem:[%s0 + $0xf0] sm:$0xf]
    %v89 = vld [vmem:[%s0 + $0xf4] sm:$0xf]
    %v90 = vld [vmem:[%s0 + $0xf8] sm:$0xf]
    %v91 = vld [vmem:[%s0 + $0xfc] sm:$0xf]
    %v92 = vld [vmem:[%s0 + $0x100] sm:$0xf]
    %v93 = vld [vmem:[%s0 + $0x104] sm:$0xf]
    %v94 = vld [vmem:[%s0 + $0x108] sm:$0xf]
    %v95 = vld [vmem:[%s0 + $0x10c] sm:$0xf]
    %v96 = vld [vmem:[%s0 + $0x110] sm:$0xf]
    %v97 = vld [vmem:[%s0 + $0x114] sm:$0xf]
    %v98 = vld [vmem:[%s0 + $0x118] sm:$0xf]
    %v99 = vld [vmem:[%s0 + $0x11c] sm:$0xf]
    %v100 = vld [vmem:[%s0 + $0x120] sm:$0xf]
    %v101 = vld [vmem:[%s0 + $0x124] sm:$0xf]
    %v102 = vld [vmem:[%s0 + $0x128] sm:$0xf]
    %v103 = vld [vmem:[%s0 + $0x12c] sm:$0xf]
    %v104 = vld [vmem:[%s0 + $0x130] sm:$0xf]
    %v105 = vld [vmem:[%s0 + $0x134] sm:$0xf]
    %v106 = vld [vmem:[%s0 + $0x138] sm:$0xf]
    %v107 = vld [vmem:[%s0 + $0x13c] sm:$0xf]
    %v108 = vld [vmem:[%s0 + $0x140] sm:$0xf]
    %v109 = vld [vmem:[%s0 + $0x144] sm:$0xf]
    %v110 = vld [vmem:[%s0 + $0x148] sm:$0xf]
    %v111 = vld [vmem:[%s0 + $0x14c] sm:$0xf]
    %v112 = vld [vmem:[%s0 + $0x150] sm:$0xf]
    %v113 = vld [vmem:[%s0 + $0x154] sm:$0xf]
    %v114 = vld [vmem:[%s0 + $0x158] sm:$0xf]
    %v115 = vld [vmem:[%s0 + $0x15c] sm:$0xf]
    %v116 = vld [vmem:[%s0 + $0x160] sm:$0xf]
    %v117 = vld [vmem:[%s0 + $0x164] sm:$0xf]
    %v118 = vld [vmem:[%s0 + $0x168] sm:$0xf]
    %v119 = vld [vmem:[%s0 + $0x16c] sm:$0xf]
    %v120 = vld [vmem:[%s0 + $0x170] sm:$0xf]
    %v121 = vld [vmem:[%s0 + $0x174] sm:$0xf]
    %v122 = vld [vmem:[%s0 + $0x178] sm:$0xf]
    %v123 = vld [vmem:[%s0 + $0x17c] sm:$0xf]
    %v124 = vld [vmem:[%s0 + $0x180] sm:$0xf]
    %v125 = vld [vmem:[%s0 + $0x184] sm:$0xf]
    %v126 = vld [vmem:[%s0 + $0x188] sm:$0xf]
    %v127 = vld [vmem:[%s0 + $0x18c] sm:$0xf]
    %v128 = vld [vmem:[%s0 + $0x190] sm:$0xf]
    %v129 = vld [vmem:[%s0 + $0x194] sm:$0xf]
    %v130 = vld [vmem:[%s0 + $0x198] sm:$0xf]
    %v131 = vld [vmem:[%s0 + $0x19c] sm:$0xf]
    %v132 = vld [vmem:[%s0 + $0x1a0] sm:$0xf]
    %v133 = vld [vmem:[%s0 + $0x1a4] sm:$0xf]
    %v134 = vld [vmem:[%s0 + $0x1a8] sm:$0xf]
    %v135 = vld [vmem:[%s0 + $0x1ac] sm:$0xf]
    %v136 = vld [vmem:[%s0 + $0x1b0] sm:$0xf]
    %v137 = vld [vmem:[%s0 + $0x1b4] sm:$0xf]
    %v138 = vld [vmem:[%s0 + $0x1b8] sm:$0xf]
    %v139 = vld [vmem:[%s0 + $0x1bc] sm:$0xf]
    %v140 = vld [vmem:[%s0 + $0x1c0] sm:$0xf]
    %v141 = vld [vmem:[%s0 + $0x1c4] sm:$0xf]
    %v142 = vld [vmem:[%s0 + $0x1c8] sm:$0xf]
    %v143 = vld [vmem:[%s0 + $0x1cc] sm:$0xf]
    %v144 = vld [vmem:[%s0 + $0x1d0] sm:$0xf]
    %v145 = vld [vmem:[%s0 + $0x1d4] sm:$0xf]
    %v146 = vld [vmem:[%s0 + $0x1d8] sm:$0xf]
    %v147 = vld [vmem:[%s0 + $0x1dc] sm:$0xf]
    %v148 = vld [vmem:[%s0 + $0x1e0] sm:$0xf]
    %v149 = vld [vmem:[%s0 + $0x1e4] sm:$0xf]
    %v150 = vld [vmem:[%s0 + $0x1e8] sm:$0xf]
    %v151 = vld [vmem:[%s0 + $0x1ec] sm:$0xf]
    %v152 = vld [vmem:[%s0 + $0x1f0] sm:$0xf]
    %v153 = vld [vmem:[%s0 + $0x1f4] sm:$0xf]
    %v154 = vld [vmem:[%s0 + $0x1f8] sm:$0xf]
    %v155 = vld [vmem:[%s0 + $0x1fc] sm:$0xf]
    %v156 = vld [vmem:[%s0 + $0x200] sm:$0xf]
    %v157 = vld [vmem:[%s0 + $0x204] sm:$0xf]
    %v158 = vld [vmem:[%s0 + $0x208] sm:$0xf]
    %v159 = vld [vmem:[%s0 + $0x20c] sm:$0xf]
    %v160 = vld [vmem:[%s0 + $0x210] sm:$0xf]
    %v161 = vld [vmem:[%s0 + $0x214] sm:$0xf]
    %v162 = vld [vmem:[%s0 + $0x218] sm:$0xf]
    %v163 = vld [vmem:[%s0 + $0x21c] sm:$0xf]
    %v164 = vld [vmem:[%s0 + $0x220] sm:$0xf]
    %v165 = vld [vmem:[%s0 + $0x224] sm:$0xf]
    %v166 = vld [vmem:[%s0 + $0x228] sm:$0xf]
    %v167 = vld [vmem:[%s0 + $0x22c] sm:$0xf]
    %v168 = vld [vmem:[%s0 + $0x230] sm:$0xf]
    %v169 = vld [vmem:[%s0 + $0x234] sm:$0xf]
    %v170 = vld [vmem:[%s0 + $0x238] sm:$0xf]
    %v171 = vld [vmem:[%s0 + $0x23c] sm:$0xf]
    %v172 = vld [vmem:[%s1] sm:$0xf]
    %v173 = vld [vmem:[%s1 + $0x4] sm:$0xf]
    %v174 = vld [vmem:[%s1 + $0x8] sm:$0xf]
    %v175 = vld [vmem:[%s1 + $0xc] sm:$0xf]
    %v176 = vld [vmem:[%s1 + $0x10] sm:$0xf]
    %v177 = vld [vmem:[%s1 + $0x14] sm:$0xf]
    %v178 = vld [vmem:[%s1 + $0x18] sm:$0xf]
    %v179 = vld [vmem:[%s1 + $0x1c] sm:$0xf]
    %v180 = vld [vmem:[%s1 + $0x20] sm:$0xf]
    %v181 = vld [vmem:[%s1 + $0x24] sm:$0xf]
    %v182 = vld [vmem:[%s1 + $0x28] sm:$0xf]
    %v183 = vld [vmem:[%s1 + $0x2c] sm:$0xf]
    %v184 = vld [vmem:[%s1 + $0x30] sm:$0xf]
    %v185 = vld [vmem:[%s1 + $0x34] sm:$0xf]
    %v186 = vld [vmem:[%s1 + $0x38] sm:$0xf]
    %v187 = vld [vmem:[%s1 + $0x3c] sm:$0xf]
    %v188 = vld [vmem:[#allocation2] sm:$0x1]
    %v190 = vperm.slane %v188, 0
    %v336 = vunpack.c.l.b16 %v28
    %v337 = vunpack.c.l.b16 %v29
    %v338 = vunpack.c.l.b16 %v30
    %v339 = vunpack.c.l.b16 %v31
    %v340 = vunpack.c.l.b16 %v32
    %v341 = vunpack.c.l.b16 %v33
    %v342 = vunpack.c.l.b16 %v34
    %v343 = vunpack.c.l.b16 %v35
    %v344 = vunpack.c.l.b16 %v36
    %v345 = vunpack.c.l.b16 %v37
    %v346 = vunpack.c.l.b16 %v38
    %v347 = vunpack.c.l.b16 %v39
    %v348 = vunpack.c.l.b16 %v40
    %v349 = vunpack.c.l.b16 %v41
    %v350 = vunpack.c.l.b16 %v42
    %v351 = vunpack.c.l.b16 %v43
    %v352 = vunpack.c.l.b16 %v44
    %v353 = vunpack.c.l.b16 %v45
    %v354 = vunpack.c.l.b16 %v46
    %v355 = vunpack.c.l.b16 %v47
    %v356 = vunpack.c.l.b16 %v48
    %v357 = vunpack.c.l.b16 %v49
    %v358 = vunpack.c.l.b16 %v50
    %v359 = vunpack.c.l.b16 %v51
    %v360 = vunpack.c.l.b16 %v52
    %v361 = vunpack.c.l.b16 %v53
    %v362 = vunpack.c.l.b16 %v54
    %v363 = vunpack.c.l.b16 %v55
    %v364 = vunpack.c.l.b16 %v56
    %v365 = vunpack.c.l.b16 %v57
    %v366 = vunpack.c.l.b16 %v58
    %v367 = vunpack.c.l.b16 %v59
    %v368 = vunpack.c.l.b16 %v60
    %v369 = vunpack.c.l.b16 %v61
    %v370 = vunpack.c.l.b16 %v62
    %v371 = vunpack.c.l.b16 %v63
    %v372 = vunpack.c.l.b16 %v64
    %v373 = vunpack.c.l.b16 %v65
    %v374 = vunpack.c.l.b16 %v66
    %v375 = vunpack.c.l.b16 %v67
    %v376 = vunpack.c.l.b16 %v68
    %v377 = vunpack.c.l.b16 %v69
    %v378 = vunpack.c.l.b16 %v70
    %v379 = vunpack.c.l.b16 %v71
    %v380 = vunpack.c.l.b16 %v72
    %v381 = vunpack.c.l.b16 %v73
    %v382 = vunpack.c.l.b16 %v74
    %v383 = vunpack.c.l.b16 %v75
    %v384 = vunpack.c.l.b16 %v76
    %v385 = vunpack.c.l.b16 %v77
    %v386 = vunpack.c.l.b16 %v78
    %v387 = vunpack.c.l.b16 %v79
    %v388 = vunpack.c.l.b16 %v80
    %v389 = vunpack.c.l.b16 %v81
    %v390 = vunpack.c.l.b16 %v82
    %v391 = vunpack.c.l.b16 %v83
    %v392 = vunpack.c.l.b16 %v84
    %v393 = vunpack.c.l.b16 %v85
    %v394 = vunpack.c.l.b16 %v86
    %v395 = vunpack.c.l.b16 %v87
    %v396 = vunpack.c.l.b16 %v88
    %v397 = vunpack.c.l.b16 %v89
    %v398 = vunpack.c.l.b16 %v90
    %v399 = vunpack.c.l.b16 %v91
    %v400 = vunpack.c.l.b16 %v92
    %v401 = vunpack.c.l.b16 %v93
    %v402 = vunpack.c.l.b16 %v94
    %v403 = vunpack.c.l.b16 %v95
    %v404 = vunpack.c.l.b16 %v96
    %v405 = vunpack.c.l.b16 %v97
    %v406 = vunpack.c.l.b16 %v98
    %v407 = vunpack.c.l.b16 %v99
    %v408 = vunpack.c.l.b16 %v100
    %v409 = vunpack.c.l.b16 %v101
    %v410 = vunpack.c.l.b16 %v102
    %v411 = vunpack.c.l.b16 %v103
    %v412 = vunpack.c.l.b16 %v104
    %v413 = vunpack.c.l.b16 %v105
    %v414 = vunpack.c.l.b16 %v106
    %v415 = vunpack.c.l.b16 %v107
    %v416 = vunpack.c.l.b16 %v108
    %v417 = vunpack.c.l.b16 %v109
    %v418 = vunpack.c.l.b16 %v110
    %v419 = vunpack.c.l.b16 %v111
    %v420 = vunpack.c.l.b16 %v112
    %v421 = vunpack.c.l.b16 %v113
    %v422 = vunpack.c.l.b16 %v114
    %v423 = vunpack.c.l.b16 %v115
    %v424 = vunpack.c.l.b16 %v116
    %v425 = vunpack.c.l.b16 %v117
    %v426 = vunpack.c.l.b16 %v118
    %v427 = vunpack.c.l.b16 %v119
    %v428 = vunpack.c.l.b16 %v120
    %v429 = vunpack.c.l.b16 %v121
    %v430 = vunpack.c.l.b16 %v122
    %v431 = vunpack.c.l.b16 %v123
    %v432 = vunpack.c.l.b16 %v124
    %v433 = vunpack.c.l.b16 %v125
    %v434 = vunpack.c.l.b16 %v126
    %v435 = vunpack.c.l.b16 %v127
    %v436 = vunpack.c.l.b16 %v128
    %v437 = vunpack.c.l.b16 %v129
    %v438 = vunpack.c.l.b16 %v130
    %v439 = vunpack.c.l.b16 %v131
    %v440 = vunpack.c.l.b16 %v132
    %v441 = vunpack.c.l.b16 %v133
    %v442 = vunpack.c.l.b16 %v134
    %v443 = vunpack.c.l.b16 %v135
    %v444 = vunpack.c.l.b16 %v136
    %v445 = vunpack.c.l.b16 %v137
    %v446 = vunpack.c.l.b16 %v138
    %v447 = vunpack.c.l.b16 %v139
    %v448 = vunpack.c.l.b16 %v140
    %v449 = vunpack.c.l.b16 %v141
    %v450 = vunpack.c.l.b16 %v142
    %v451 = vunpack.c.l.b16 %v143
    %v452 = vunpack.c.l.b16 %v144
    %v453 = vunpack.c.l.b16 %v145
    %v454 = vunpack.c.l.b16 %v146
    %v455 = vunpack.c.l.b16 %v147
    %v456 = vunpack.c.l.b16 %v148
    %v457 = vunpack.c.l.b16 %v149
    %v458 = vunpack.c.l.b16 %v150
    %v459 = vunpack.c.l.b16 %v151
    %v460 = vunpack.c.l.b16 %v152
    %v461 = vunpack.c.l.b16 %v153
    %v462 = vunpack.c.l.b16 %v154
    %v463 = vunpack.c.l.b16 %v155
    %v464 = vunpack.c.l.b16 %v156
    %v465 = vunpack.c.l.b16 %v157
    %v466 = vunpack.c.l.b16 %v158
    %v467 = vunpack.c.l.b16 %v159
    %v468 = vunpack.c.l.b16 %v160
    %v469 = vunpack.c.l.b16 %v161
    %v470 = vunpack.c.l.b16 %v162
    %v471 = vunpack.c.l.b16 %v163
    %v472 = vunpack.c.l.b16 %v164
    %v473 = vunpack.c.l.b16 %v165
    %v474 = vunpack.c.l.b16 %v166
    %v475 = vunpack.c.l.b16 %v167
    %v476 = vunpack.c.l.b16 %v168
    %v477 = vunpack.c.l.b16 %v169
    %v478 = vunpack.c.l.b16 %v170
    %v479 = vunpack.c.l.b16 %v171
    %v480 = vpack.c.b16 %v337, %v336
    %v481 = vpack.c.b16 %v339, %v338
    %v482 = vpack.c.b16 %v341, %v340
    %v483 = vpack.c.b16 %v343, %v342
    %v484 = vpack.c.b16 %v345, %v344
    %v485 = vpack.c.b16 %v347, %v346
    %v486 = vpack.c.b16 %v349, %v348
    %v487 = vpack.c.b16 %v351, %v350
    %v488 = vpack.c.b16 %v353, %v352
    %v489 = vpack.c.b16 %v355, %v354
    %v490 = vpack.c.b16 %v357, %v356
    %v491 = vpack.c.b16 %v359, %v358
    %v492 = vpack.c.b16 %v361, %v360
    %v493 = vpack.c.b16 %v363, %v362
    %v494 = vpack.c.b16 %v365, %v364
    %v495 = vpack.c.b16 %v367, %v366
    %v496 = vpack.c.b16 %v369, %v368
    %v497 = vpack.c.b16 %v371, %v370
    %v498 = vpack.c.b16 %v373, %v372
    %v499 = vpack.c.b16 %v375, %v374
    %v500 = vpack.c.b16 %v377, %v376
    %v501 = vpack.c.b16 %v379, %v378
    %v502 = vpack.c.b16 %v381, %v380
    %v503 = vpack.c.b16 %v383, %v382
    %v504 = vpack.c.b16 %v385, %v384
    %v505 = vpack.c.b16 %v387, %v386
    %v506 = vpack.c.b16 %v389, %v388
    %v507 = vpack.c.b16 %v391, %v390
    %v508 = vpack.c.b16 %v393, %v392
    %v509 = vpack.c.b16 %v395, %v394
    %v510 = vpack.c.b16 %v397, %v396
    %v511 = vpack.c.b16 %v399, %v398
    %v512 = vpack.c.b16 %v401, %v400
    %v513 = vpack.c.b16 %v403, %v402
    %v514 = vpack.c.b16 %v405, %v404
    %v515 = vpack.c.b16 %v407, %v406
    %v516 = vpack.c.b16 %v409, %v408
    %v517 = vpack.c.b16 %v411, %v410
    %v518 = vpack.c.b16 %v413, %v412
    %v519 = vpack.c.b16 %v415, %v414
    %v520 = vpack.c.b16 %v417, %v416
    %v521 = vpack.c.b16 %v419, %v418
    %v522 = vpack.c.b16 %v421, %v420
    %v523 = vpack.c.b16 %v423, %v422
    %v524 = vpack.c.b16 %v425, %v424
    %v525 = vpack.c.b16 %v427, %v426
    %v526 = vpack.c.b16 %v429, %v428
    %v527 = vpack.c.b16 %v431, %v430
    %v528 = vpack.c.b16 %v433, %v432
    %v529 = vpack.c.b16 %v435, %v434
    %v530 = vpack.c.b16 %v437, %v436
    %v531 = vpack.c.b16 %v439, %v438
    %v532 = vpack.c.b16 %v441, %v440
    %v533 = vpack.c.b16 %v443, %v442
    %v534 = vpack.c.b16 %v445, %v444
    %v535 = vpack.c.b16 %v447, %v446
    %v536 = vpack.c.b16 %v449, %v448
    %v537 = vpack.c.b16 %v451, %v450
    %v538 = vpack.c.b16 %v453, %v452
    %v539 = vpack.c.b16 %v455, %v454
    %v540 = vpack.c.b16 %v457, %v456
    %v541 = vpack.c.b16 %v459, %v458
    %v542 = vpack.c.b16 %v461, %v460
    %v543 = vpack.c.b16 %v463, %v462
    %v544 = vpack.c.b16 %v465, %v464
    %v545 = vpack.c.b16 %v467, %v466
    %v546 = vpack.c.b16 %v469, %v468
    %v547 = vpack.c.b16 %v471, %v470
    %v548 = vpack.c.b16 %v473, %v472
    %v549 = vpack.c.b16 %v475, %v474
    %v550 = vpack.c.b16 %v477, %v476
    %v551 = vpack.c.b16 %v479, %v478
    %v640 = vunpack.c.l.b16 %v172
    %v641 = vunpack.c.l.b16 %v173
    %v642 = vunpack.c.l.b16 %v174
    %v643 = vunpack.c.l.b16 %v175
    %v644 = vunpack.c.l.b16 %v176
    %v645 = vunpack.c.l.b16 %v177
    %v646 = vunpack.c.l.b16 %v178
    %v647 = vunpack.c.l.b16 %v179
    %v648 = vunpack.c.l.b16 %v180
    %v649 = vunpack.c.l.b16 %v181
    %v650 = vunpack.c.l.b16 %v182
    %v651 = vunpack.c.l.b16 %v183
    %v652 = vunpack.c.l.b16 %v184
    %v653 = vunpack.c.l.b16 %v185
    %v654 = vunpack.c.l.b16 %v186
    %v655 = vunpack.c.l.b16 %v187
    %v656 = vpack.c.b16 %v641, %v640
    %v657 = vpack.c.b16 %v643, %v642
    %v658 = vpack.c.b16 %v645, %v644
    %v659 = vpack.c.b16 %v647, %v646
    %v660 = vpack.c.b16 %v649, %v648
    %v661 = vpack.c.b16 %v651, %v650
    %v662 = vpack.c.b16 %v653, %v652
    %v663 = vpack.c.b16 %v655, %v654
    %672 = vmatpush.bf16.msra.mxu0 %v663
    %673 = vmatpush.bf16.msra.mxu0 %v662
    %674 = vmatpush.bf16.msra.mxu0 %v661
    %675 = vmatpush.bf16.msra.mxu0 %v660
    %676 = vmatpush.bf16.msra.mxu0 %v659
    %677 = vmatpush.bf16.msra.mxu0 %v658
    %678 = vmatpush.bf16.msra.mxu0 %v657
    %679 = vmatpush.bf16.msra.mxu0 %v656
    %680 = vmatmul.bf16.gmra.mxu0 %v480
    %v681 = vpop.f32.mrf.mxu0
    %v682 = vadd.f32 %v190, %v681
    %v683 = vpop.f32.mrf.mxu0
    %v684 = vadd.f32 %v190, %v683
    %685 = vmatmul.bf16.gmra.mxu0 %v481
    %v686 = vpop.f32.mrf.mxu0
    %v687 = vadd.f32 %v190, %v686
    %v688 = vpop.f32.mrf.mxu0
    %v689 = vadd.f32 %v190, %v688
    %690 = vmatmul.bf16.gmra.mxu0 %v482
    %v691 = vpop.f32.mrf.mxu0
    %v692 = vadd.f32 %v190, %v691
    %v693 = vpop.f32.mrf.mxu0
    %v694 = vadd.f32 %v190, %v693
    %695 = vmatmul.bf16.gmra.mxu0 %v483
    %v696 = vpop.f32.mrf.mxu0
    %v697 = vadd.f32 %v190, %v696
    %v698 = vpop.f32.mrf.mxu0
    %v699 = vadd.f32 %v190, %v698
    %700 = vmatmul.bf16.gmra.mxu0 %v484
    %v701 = vpop.f32.mrf.mxu0
    %v702 = vadd.f32 %v190, %v701
    %v703 = vpop.f32.mrf.mxu0
    %v704 = vadd.f32 %v190, %v703
    %705 = vmatmul.bf16.gmra.mxu0 %v485
    %v706 = vpop.f32.mrf.mxu0
    %v707 = vadd.f32 %v190, %v706
    %v708 = vpop.f32.mrf.mxu0
    %v709 = vadd.f32 %v190, %v708
    %710 = vmatmul.bf16.gmra.mxu0 %v486
    %v711 = vpop.f32.mrf.mxu0
    %v712 = vadd.f32 %v190, %v711
    %v713 = vpop.f32.mrf.mxu0
    %v714 = vadd.f32 %v190, %v713
    %715 = vmatmul.bf16.gmra.mxu0 %v487
    %v716 = vpop.f32.mrf.mxu0
    %v717 = vadd.f32 %v190, %v716
    %v718 = vpop.f32.mrf.mxu0
    %v719 = vadd.f32 %v190, %v718
    %720 = vmatmul.bf16.gmra.mxu0 %v488
    %v721 = vpop.f32.mrf.mxu0
    %v722 = vadd.f32 %v190, %v721
    %v723 = vpop.f32.mrf.mxu0
    %v724 = vadd.f32 %v190, %v723
    %725 = vmatmul.bf16.gmra.mxu0 %v489
    %v726 = vpop.f32.mrf.mxu0
    %v727 = vadd.f32 %v190, %v726
    %v728 = vpop.f32.mrf.mxu0
    %v729 = vadd.f32 %v190, %v728
    %730 = vmatmul.bf16.gmra.mxu0 %v490
    %v731 = vpop.f32.mrf.mxu0
    %v732 = vadd.f32 %v190, %v731
    %v733 = vpop.f32.mrf.mxu0
    %v734 = vadd.f32 %v190, %v733
    %735 = vmatmul.bf16.gmra.mxu0 %v491
    %v736 = vpop.f32.mrf.mxu0
    %v737 = vadd.f32 %v190, %v736
    %v738 = vpop.f32.mrf.mxu0
    %v739 = vadd.f32 %v190, %v738
    %740 = vmatmul.bf16.gmra.mxu0 %v492
    %v741 = vpop.f32.mrf.mxu0
    %v742 = vadd.f32 %v190, %v741
    %v743 = vpop.f32.mrf.mxu0
    %v744 = vadd.f32 %v190, %v743
    %745 = vmatmul.bf16.gmra.mxu0 %v493
    %v746 = vpop.f32.mrf.mxu0
    %v747 = vadd.f32 %v190, %v746
    %v748 = vpop.f32.mrf.mxu0
    %v749 = vadd.f32 %v190, %v748
    %750 = vmatmul.bf16.gmra.mxu0 %v494
    %v751 = vpop.f32.mrf.mxu0
    %v752 = vadd.f32 %v190, %v751
    %v753 = vpop.f32.mrf.mxu0
    %v754 = vadd.f32 %v190, %v753
    %755 = vmatmul.bf16.gmra.mxu0 %v495
    %v756 = vpop.f32.mrf.mxu0
    %v757 = vadd.f32 %v190, %v756
    %v758 = vpop.f32.mrf.mxu0
    %v759 = vadd.f32 %v190, %v758
    %760 = vmatmul.bf16.gmra.mxu0 %v496
    %v761 = vpop.f32.mrf.mxu0
    %v762 = vadd.f32 %v190, %v761
    %v763 = vpop.f32.mrf.mxu0
    %v764 = vadd.f32 %v190, %v763
    %765 = vmatmul.bf16.gmra.mxu0 %v497
    %v766 = vpop.f32.mrf.mxu0
    %v767 = vadd.f32 %v190, %v766
    %v768 = vpop.f32.mrf.mxu0
    %v769 = vadd.f32 %v190, %v768
    %770 = vmatmul.bf16.gmra.mxu0 %v498
    %v771 = vpop.f32.mrf.mxu0
    %v772 = vadd.f32 %v190, %v771
    %v773 = vpop.f32.mrf.mxu0
    %v774 = vadd.f32 %v190, %v773
    %775 = vmatmul.bf16.gmra.mxu0 %v499
    %v776 = vpop.f32.mrf.mxu0
    %v777 = vadd.f32 %v190, %v776
    %v778 = vpop.f32.mrf.mxu0
    %v779 = vadd.f32 %v190, %v778
    %780 = vmatmul.bf16.gmra.mxu0 %v500
    %v781 = vpop.f32.mrf.mxu0
    %v782 = vadd.f32 %v190, %v781
    %v783 = vpop.f32.mrf.mxu0
    %v784 = vadd.f32 %v190, %v783
    %785 = vmatmul.bf16.gmra.mxu0 %v501
    %v786 = vpop.f32.mrf.mxu0
    %v787 = vadd.f32 %v190, %v786
    %v788 = vpop.f32.mrf.mxu0
    %v789 = vadd.f32 %v190, %v788
    %790 = vmatmul.bf16.gmra.mxu0 %v502
    %v791 = vpop.f32.mrf.mxu0
    %v792 = vadd.f32 %v190, %v791
    %v793 = vpop.f32.mrf.mxu0
    %v794 = vadd.f32 %v190, %v793
    %795 = vmatmul.bf16.gmra.mxu0 %v503
    %v796 = vpop.f32.mrf.mxu0
    %v797 = vadd.f32 %v190, %v796
    %v798 = vpop.f32.mrf.mxu0
    %v799 = vadd.f32 %v190, %v798
    %800 = vmatmul.bf16.gmra.mxu0 %v504
    %v801 = vpop.f32.mrf.mxu0
    %v802 = vadd.f32 %v190, %v801
    %v803 = vpop.f32.mrf.mxu0
    %v804 = vadd.f32 %v190, %v803
    %805 = vmatmul.bf16.gmra.mxu0 %v505
    %v806 = vpop.f32.mrf.mxu0
    %v807 = vadd.f32 %v190, %v806
    %v808 = vpop.f32.mrf.mxu0
    %v809 = vadd.f32 %v190, %v808
    %810 = vmatmul.bf16.gmra.mxu0 %v506
    %v811 = vpop.f32.mrf.mxu0
    %v812 = vadd.f32 %v190, %v811
    %v813 = vpop.f32.mrf.mxu0
    %v814 = vadd.f32 %v190, %v813
    %815 = vmatmul.bf16.gmra.mxu0 %v507
    %v816 = vpop.f32.mrf.mxu0
    %v817 = vadd.f32 %v190, %v816
    %v818 = vpop.f32.mrf.mxu0
    %v819 = vadd.f32 %v190, %v818
    %820 = vmatmul.bf16.gmra.mxu0 %v508
    %v821 = vpop.f32.mrf.mxu0
    %v822 = vadd.f32 %v190, %v821
    %v823 = vpop.f32.mrf.mxu0
    %v824 = vadd.f32 %v190, %v823
    %825 = vmatmul.bf16.gmra.mxu0 %v509
    %v826 = vpop.f32.mrf.mxu0
    %v827 = vadd.f32 %v190, %v826
    %v828 = vpop.f32.mrf.mxu0
    %v829 = vadd.f32 %v190, %v828
    %830 = vmatmul.bf16.gmra.mxu0 %v510
    %v831 = vpop.f32.mrf.mxu0
    %v832 = vadd.f32 %v190, %v831
    %v833 = vpop.f32.mrf.mxu0
    %v834 = vadd.f32 %v190, %v833
    %835 = vmatmul.bf16.gmra.mxu0 %v511
    %v836 = vpop.f32.mrf.mxu0
    %v837 = vadd.f32 %v190, %v836
    %v838 = vpop.f32.mrf.mxu0
    %v839 = vadd.f32 %v190, %v838
    %840 = vmatmul.bf16.gmra.mxu0 %v512
    %v841 = vpop.f32.mrf.mxu0
    %v842 = vadd.f32 %v190, %v841
    %v843 = vpop.f32.mrf.mxu0
    %v844 = vadd.f32 %v190, %v843
    %845 = vmatmul.bf16.gmra.mxu0 %v513
    %v846 = vpop.f32.mrf.mxu0
    %v847 = vadd.f32 %v190, %v846
    %v848 = vpop.f32.mrf.mxu0
    %v849 = vadd.f32 %v190, %v848
    %850 = vmatmul.bf16.gmra.mxu0 %v514
    %v851 = vpop.f32.mrf.mxu0
    %v852 = vadd.f32 %v190, %v851
    %v853 = vpop.f32.mrf.mxu0
    %v854 = vadd.f32 %v190, %v853
    %855 = vmatmul.bf16.gmra.mxu0 %v515
    %v856 = vpop.f32.mrf.mxu0
    %v857 = vadd.f32 %v190, %v856
    %v858 = vpop.f32.mrf.mxu0
    %v859 = vadd.f32 %v190, %v858
    %860 = vmatmul.bf16.gmra.mxu0 %v516
    %v861 = vpop.f32.mrf.mxu0
    %v862 = vadd.f32 %v190, %v861
    %v863 = vpop.f32.mrf.mxu0
    %v864 = vadd.f32 %v190, %v863
    %865 = vmatmul.bf16.gmra.mxu0 %v517
    %v866 = vpop.f32.mrf.mxu0
    %v867 = vadd.f32 %v190, %v866
    %v868 = vpop.f32.mrf.mxu0
    %v869 = vadd.f32 %v190, %v868
    %870 = vmatmul.bf16.gmra.mxu0 %v518
    %v871 = vpop.f32.mrf.mxu0
    %v872 = vadd.f32 %v190, %v871
    %v873 = vpop.f32.mrf.mxu0
    %v874 = vadd.f32 %v190, %v873
    %875 = vmatmul.bf16.gmra.mxu0 %v519
    %v876 = vpop.f32.mrf.mxu0
    %v877 = vadd.f32 %v190, %v876
    %v878 = vpop.f32.mrf.mxu0
    %v879 = vadd.f32 %v190, %v878
    %880 = vmatmul.bf16.gmra.mxu0 %v520
    %v881 = vpop.f32.mrf.mxu0
    %v882 = vadd.f32 %v190, %v881
    %v883 = vpop.f32.mrf.mxu0
    %v884 = vadd.f32 %v190, %v883
    %885 = vmatmul.bf16.gmra.mxu0 %v521
    %v886 = vpop.f32.mrf.mxu0
    %v887 = vadd.f32 %v190, %v886
    %v888 = vpop.f32.mrf.mxu0
    %v889 = vadd.f32 %v190, %v888
    %890 = vmatmul.bf16.gmra.mxu0 %v522
    %v891 = vpop.f32.mrf.mxu0
    %v892 = vadd.f32 %v190, %v891
    %v893 = vpop.f32.mrf.mxu0
    %v894 = vadd.f32 %v190, %v893
    %895 = vmatmul.bf16.gmra.mxu0 %v523
    %v896 = vpop.f32.mrf.mxu0
    %v897 = vadd.f32 %v190, %v896
    %v898 = vpop.f32.mrf.mxu0
    %v899 = vadd.f32 %v190, %v898
    %900 = vmatmul.bf16.gmra.mxu0 %v524
    %v901 = vpop.f32.mrf.mxu0
    %v902 = vadd.f32 %v190, %v901
    %v903 = vpop.f32.mrf.mxu0
    %v904 = vadd.f32 %v190, %v903
    %905 = vmatmul.bf16.gmra.mxu0 %v525
    %v906 = vpop.f32.mrf.mxu0
    %v907 = vadd.f32 %v190, %v906
    %v908 = vpop.f32.mrf.mxu0
    %v909 = vadd.f32 %v190, %v908
    %910 = vmatmul.bf16.gmra.mxu0 %v526
    %v911 = vpop.f32.mrf.mxu0
    %v912 = vadd.f32 %v190, %v911
    %v913 = vpop.f32.mrf.mxu0
    %v914 = vadd.f32 %v190, %v913
    %915 = vmatmul.bf16.gmra.mxu0 %v527
    %v916 = vpop.f32.mrf.mxu0
    %v917 = vadd.f32 %v190, %v916
    %v918 = vpop.f32.mrf.mxu0
    %v919 = vadd.f32 %v190, %v918
    %920 = vmatmul.bf16.gmra.mxu0 %v528
    %v921 = vpop.f32.mrf.mxu0
    %v922 = vadd.f32 %v190, %v921
    %v923 = vpop.f32.mrf.mxu0
    %v924 = vadd.f32 %v190, %v923
    %925 = vmatmul.bf16.gmra.mxu0 %v529
    %v926 = vpop.f32.mrf.mxu0
    %v927 = vadd.f32 %v190, %v926
    %v928 = vpop.f32.mrf.mxu0
    %v929 = vadd.f32 %v190, %v928
    %930 = vmatmul.bf16.gmra.mxu0 %v530
    %v931 = vpop.f32.mrf.mxu0
    %v932 = vadd.f32 %v190, %v931
    %v933 = vpop.f32.mrf.mxu0
    %v934 = vadd.f32 %v190, %v933
    %935 = vmatmul.bf16.gmra.mxu0 %v531
    %v936 = vpop.f32.mrf.mxu0
    %v937 = vadd.f32 %v190, %v936
    %v938 = vpop.f32.mrf.mxu0
    %v939 = vadd.f32 %v190, %v938
    %940 = vmatmul.bf16.gmra.mxu0 %v532
    %v941 = vpop.f32.mrf.mxu0
    %v942 = vadd.f32 %v190, %v941
    %v943 = vpop.f32.mrf.mxu0
    %v944 = vadd.f32 %v190, %v943
    %945 = vmatmul.bf16.gmra.mxu0 %v533
    %v946 = vpop.f32.mrf.mxu0
    %v947 = vadd.f32 %v190, %v946
    %v948 = vpop.f32.mrf.mxu0
    %v949 = vadd.f32 %v190, %v948
    %950 = vmatmul.bf16.gmra.mxu0 %v534
    %v951 = vpop.f32.mrf.mxu0
    %v952 = vadd.f32 %v190, %v951
    %v953 = vpop.f32.mrf.mxu0
    %v954 = vadd.f32 %v190, %v953
    %955 = vmatmul.bf16.gmra.mxu0 %v535
    %v956 = vpop.f32.mrf.mxu0
    %v957 = vadd.f32 %v190, %v956
    %v958 = vpop.f32.mrf.mxu0
    %v959 = vadd.f32 %v190, %v958
    %960 = vmatmul.bf16.gmra.mxu0 %v536
    %v961 = vpop.f32.mrf.mxu0
    %v962 = vadd.f32 %v190, %v961
    %v963 = vpop.f32.mrf.mxu0
    %v964 = vadd.f32 %v190, %v963
    %965 = vmatmul.bf16.gmra.mxu0 %v537
    %v966 = vpop.f32.mrf.mxu0
    %v967 = vadd.f32 %v190, %v966
    %v968 = vpop.f32.mrf.mxu0
    %v969 = vadd.f32 %v190, %v968
    %970 = vmatmul.bf16.gmra.mxu0 %v538
    %v971 = vpop.f32.mrf.mxu0
    %v972 = vadd.f32 %v190, %v971
    %v973 = vpop.f32.mrf.mxu0
    %v974 = vadd.f32 %v190, %v973
    %975 = vmatmul.bf16.gmra.mxu0 %v539
    %v976 = vpop.f32.mrf.mxu0
    %v977 = vadd.f32 %v190, %v976
    %v978 = vpop.f32.mrf.mxu0
    %v979 = vadd.f32 %v190, %v978
    %980 = vmatmul.bf16.gmra.mxu0 %v540
    %v981 = vpop.f32.mrf.mxu0
    %v982 = vadd.f32 %v190, %v981
    %v983 = vpop.f32.mrf.mxu0
    %v984 = vadd.f32 %v190, %v983
    %985 = vmatmul.bf16.gmra.mxu0 %v541
    %v986 = vpop.f32.mrf.mxu0
    %v987 = vadd.f32 %v190, %v986
    %v988 = vpop.f32.mrf.mxu0
    %v989 = vadd.f32 %v190, %v988
    %990 = vmatmul.bf16.gmra.mxu0 %v542
    %v991 = vpop.f32.mrf.mxu0
    %v992 = vadd.f32 %v190, %v991
    %v993 = vpop.f32.mrf.mxu0
    %v994 = vadd.f32 %v190, %v993
    %995 = vmatmul.bf16.gmra.mxu0 %v543
    %v996 = vpop.f32.mrf.mxu0
    %v997 = vadd.f32 %v190, %v996
    %v998 = vpop.f32.mrf.mxu0
    %v999 = vadd.f32 %v190, %v998
    %1000 = vmatmul.bf16.gmra.mxu0 %v544
    %v1001 = vpop.f32.mrf.mxu0
    %v1002 = vadd.f32 %v190, %v1001
    %v1003 = vpop.f32.mrf.mxu0
    %v1004 = vadd.f32 %v190, %v1003
    %1005 = vmatmul.bf16.gmra.mxu0 %v545
    %v1006 = vpop.f32.mrf.mxu0
    %v1007 = vadd.f32 %v190, %v1006
    %v1008 = vpop.f32.mrf.mxu0
    %v1009 = vadd.f32 %v190, %v1008
    %1010 = vmatmul.bf16.gmra.mxu0 %v546
    %v1011 = vpop.f32.mrf.mxu0
    %v1012 = vadd.f32 %v190, %v1011
    %v1013 = vpop.f32.mrf.mxu0
    %v1014 = vadd.f32 %v190, %v1013
    %1015 = vmatmul.bf16.gmra.mxu0 %v547
    %v1016 = vpop.f32.mrf.mxu0
    %v1017 = vadd.f32 %v190, %v1016
    %v1018 = vpop.f32.mrf.mxu0
    %v1019 = vadd.f32 %v190, %v1018
    %1020 = vmatmul.bf16.gmra.mxu0 %v548
    %v1021 = vpop.f32.mrf.mxu0
    %v1022 = vadd.f32 %v190, %v1021
    %v1023 = vpop.f32.mrf.mxu0
    %v1024 = vadd.f32 %v190, %v1023
    %1025 = vmatmul.bf16.gmra.mxu0 %v549
    %v1026 = vpop.f32.mrf.mxu0
    %v1027 = vadd.f32 %v190, %v1026
    %v1028 = vpop.f32.mrf.mxu0
    %v1029 = vadd.f32 %v190, %v1028
    %1030 = vmatmul.bf16.gmra.mxu0 %v550
    %v1031 = vpop.f32.mrf.mxu0
    %v1032 = vadd.f32 %v190, %v1031
    %v1033 = vpop.f32.mrf.mxu0
    %v1034 = vadd.f32 %v190, %v1033
    %1035 = vmatmul.bf16.gmra.mxu0 %v551
    %v1036 = vpop.f32.mrf.mxu0
    %v1037 = vadd.f32 %v190, %v1036
    %v1038 = vpop.f32.mrf.mxu0
    %v1039 = vadd.f32 %v190, %v1038
    %1040 = vdwg.mxu0
    %v1041 = vmax.f32 %v682, 0.0
    %v1042 = vmax.f32 %v684, 0.0
    %v1043 = vmax.f32 %v687, 0.0
    %v1044 = vmax.f32 %v689, 0.0
    %v1045 = vmax.f32 %v692, 0.0
    %v1046 = vmax.f32 %v694, 0.0
    %v1047 = vmax.f32 %v697, 0.0
    %v1048 = vmax.f32 %v699, 0.0
    %v1049 = vmax.f32 %v702, 0.0
    %v1050 = vmax.f32 %v704, 0.0
    %v1051 = vmax.f32 %v707, 0.0
    %v1052 = vmax.f32 %v709, 0.0
    %v1053 = vmax.f32 %v712, 0.0
    %v1054 = vmax.f32 %v714, 0.0
    %v1055 = vmax.f32 %v717, 0.0
    %v1056 = vmax.f32 %v719, 0.0
    %v1057 = vmax.f32 %v722, 0.0
    %v1058 = vmax.f32 %v724, 0.0
    %v1059 = vmax.f32 %v727, 0.0
    %v1060 = vmax.f32 %v729, 0.0
    %v1061 = vmax.f32 %v732, 0.0
    %v1062 = vmax.f32 %v734, 0.0
    %v1063 = vmax.f32 %v737, 0.0
    %v1064 = vmax.f32 %v739, 0.0
    %v1065 = vmax.f32 %v742, 0.0
    %v1066 = vmax.f32 %v744, 0.0
    %v1067 = vmax.f32 %v747, 0.0
    %v1068 = vmax.f32 %v749, 0.0
    %v1069 = vmax.f32 %v752, 0.0
    %v1070 = vmax.f32 %v754, 0.0
    %v1071 = vmax.f32 %v757, 0.0
    %v1072 = vmax.f32 %v759, 0.0
    %v1073 = vmax.f32 %v762, 0.0
    %v1074 = vmax.f32 %v764, 0.0
    %v1075 = vmax.f32 %v767, 0.0
    %v1076 = vmax.f32 %v769, 0.0
    %v1077 = vmax.f32 %v772, 0.0
    %v1078 = vmax.f32 %v774, 0.0
    %v1079 = vmax.f32 %v777, 0.0
    %v1080 = vmax.f32 %v779, 0.0
    %v1081 = vmax.f32 %v782, 0.0
    %v1082 = vmax.f32 %v784, 0.0
    %v1083 = vmax.f32 %v787, 0.0
    %v1084 = vmax.f32 %v789, 0.0
    %v1085 = vmax.f32 %v792, 0.0
    %v1086 = vmax.f32 %v794, 0.0
    %v1087 = vmax.f32 %v797, 0.0
    %v1088 = vmax.f32 %v799, 0.0
    %v1089 = vmax.f32 %v802, 0.0
    %v1090 = vmax.f32 %v804, 0.0
    %v1091 = vmax.f32 %v807, 0.0
    %v1092 = vmax.f32 %v809, 0.0
    %v1093 = vmax.f32 %v812, 0.0
    %v1094 = vmax.f32 %v814, 0.0
    %v1095 = vmax.f32 %v817, 0.0
    %v1096 = vmax.f32 %v819, 0.0
    %v1097 = vmax.f32 %v822, 0.0
    %v1098 = vmax.f32 %v824, 0.0
    %v1099 = vmax.f32 %v827, 0.0
    %v1100 = vmax.f32 %v829, 0.0
    %v1101 = vmax.f32 %v832, 0.0
    %v1102 = vmax.f32 %v834, 0.0
    %v1103 = vmax.f32 %v837, 0.0
    %v1104 = vmax.f32 %v839, 0.0
    %v1105 = vmax.f32 %v842, 0.0
    %v1106 = vmax.f32 %v844, 0.0
    %v1107 = vmax.f32 %v847, 0.0
    %v1108 = vmax.f32 %v849, 0.0
    %v1109 = vmax.f32 %v852, 0.0
    %v1110 = vmax.f32 %v854, 0.0
    %v1111 = vmax.f32 %v857, 0.0
    %v1112 = vmax.f32 %v859, 0.0
    %v1113 = vmax.f32 %v862, 0.0
    %v1114 = vmax.f32 %v864, 0.0
    %v1115 = vmax.f32 %v867, 0.0
    %v1116 = vmax.f32 %v869, 0.0
    %v1117 = vmax.f32 %v872, 0.0
    %v1118 = vmax.f32 %v874, 0.0
    %v1119 = vmax.f32 %v877, 0.0
    %v1120 = vmax.f32 %v879, 0.0
    %v1121 = vmax.f32 %v882, 0.0
    %v1122 = vmax.f32 %v884, 0.0
    %v1123 = vmax.f32 %v887, 0.0
    %v1124 = vmax.f32 %v889, 0.0
    %v1125 = vmax.f32 %v892, 0.0
    %v1126 = vmax.f32 %v894, 0.0
    %v1127 = vmax.f32 %v897, 0.0
    %v1128 = vmax.f32 %v899, 0.0
    %v1129 = vmax.f32 %v902, 0.0
    %v1130 = vmax.f32 %v904, 0.0
    %v1131 = vmax.f32 %v907, 0.0
    %v1132 = vmax.f32 %v909, 0.0
    %v1133 = vmax.f32 %v912, 0.0
    %v1134 = vmax.f32 %v914, 0.0
    %v1135 = vmax.f32 %v917, 0.0
    %v1136 = vmax.f32 %v919, 0.0
    %v1137 = vmax.f32 %v922, 0.0
    %v1138 = vmax.f32 %v924, 0.0
    %v1139 = vmax.f32 %v927, 0.0
    %v1140 = vmax.f32 %v929, 0.0
    %v1141 = vmax.f32 %v932, 0.0
    %v1142 = vmax.f32 %v934, 0.0
    %v1143 = vmax.f32 %v937, 0.0
    %v1144 = vmax.f32 %v939, 0.0
    %v1145 = vmax.f32 %v942, 0.0
    %v1146 = vmax.f32 %v944, 0.0
    %v1147 = vmax.f32 %v947, 0.0
    %v1148 = vmax.f32 %v949, 0.0
    %v1149 = vmax.f32 %v952, 0.0
    %v1150 = vmax.f32 %v954, 0.0
    %v1151 = vmax.f32 %v957, 0.0
    %v1152 = vmax.f32 %v959, 0.0
    %v1153 = vmax.f32 %v962, 0.0
    %v1154 = vmax.f32 %v964, 0.0
    %v1155 = vmax.f32 %v967, 0.0
    %v1156 = vmax.f32 %v969, 0.0
    %v1157 = vmax.f32 %v972, 0.0
    %v1158 = vmax.f32 %v974, 0.0
    %v1159 = vmax.f32 %v977, 0.0
    %v1160 = vmax.f32 %v979, 0.0
    %v1161 = vmax.f32 %v982, 0.0
    %v1162 = vmax.f32 %v984, 0.0
    %v1163 = vmax.f32 %v987, 0.0
    %v1164 = vmax.f32 %v989, 0.0
    %v1165 = vmax.f32 %v992, 0.0
    %v1166 = vmax.f32 %v994, 0.0
    %v1167 = vmax.f32 %v997, 0.0
    %v1168 = vmax.f32 %v999, 0.0
    %v1169 = vmax.f32 %v1002, 0.0
    %v1170 = vmax.f32 %v1004, 0.0
    %v1171 = vmax.f32 %v1007, 0.0
    %v1172 = vmax.f32 %v1009, 0.0
    %v1173 = vmax.f32 %v1012, 0.0
    %v1174 = vmax.f32 %v1014, 0.0
    %v1175 = vmax.f32 %v1017, 0.0
    %v1176 = vmax.f32 %v1019, 0.0
    %v1177 = vmax.f32 %v1022, 0.0
    %v1178 = vmax.f32 %v1024, 0.0
    %v1179 = vmax.f32 %v1027, 0.0
    %v1180 = vmax.f32 %v1029, 0.0
    %v1181 = vmax.f32 %v1032, 0.0
    %v1182 = vmax.f32 %v1034, 0.0
    %v1183 = vmax.f32 %v1037, 0.0
    %v1184 = vmax.f32 %v1039, 0.0
    %v1185 = vpack.c.bf16 %v1041, %v1041
    %v1186 = vpack.c.bf16 %v1042, %v1042
    %v1187 = vpack.c.bf16 %v1043, %v1043
    %v1188 = vpack.c.bf16 %v1044, %v1044
    %v1189 = vpack.c.bf16 %v1045, %v1045
    %v1190 = vpack.c.bf16 %v1046, %v1046
    %v1191 = vpack.c.bf16 %v1047, %v1047
    %v1192 = vpack.c.bf16 %v1048, %v1048
    %v1193 = vpack.c.bf16 %v1049, %v1049
    %v1194 = vpack.c.bf16 %v1050, %v1050
    %v1195 = vpack.c.bf16 %v1051, %v1051
    %v1196 = vpack.c.bf16 %v1052, %v1052
    %v1197 = vpack.c.bf16 %v1053, %v1053
    %v1198 = vpack.c.bf16 %v1054, %v1054
    %v1199 = vpack.c.bf16 %v1055, %v1055
    %v1200 = vpack.c.bf16 %v1056, %v1056
    %v1201 = vpack.c.bf16 %v1057, %v1057
    %v1202 = vpack.c.bf16 %v1058, %v1058
    %v1203 = vpack.c.bf16 %v1059, %v1059
    %v1204 = vpack.c.bf16 %v1060, %v1060
    %v1205 = vpack.c.bf16 %v1061, %v1061
    %v1206 = vpack.c.bf16 %v1062, %v1062
    %v1207 = vpack.c.bf16 %v1063, %v1063
    %v1208 = vpack.c.bf16 %v1064, %v1064
    %v1209 = vpack.c.bf16 %v1065, %v1065
    %v1210 = vpack.c.bf16 %v1066, %v1066
    %v1211 = vpack.c.bf16 %v1067, %v1067
    %v1212 = vpack.c.bf16 %v1068, %v1068
    %v1213 = vpack.c.bf16 %v1069, %v1069
    %v1214 = vpack.c.bf16 %v1070, %v1070
    %v1215 = vpack.c.bf16 %v1071, %v1071
    %v1216 = vpack.c.bf16 %v1072, %v1072
    %v1217 = vpack.c.bf16 %v1073, %v1073
    %v1218 = vpack.c.bf16 %v1074, %v1074
    %v1219 = vpack.c.bf16 %v1075, %v1075
    %v1220 = vpack.c.bf16 %v1076, %v1076
    %v1221 = vpack.c.bf16 %v1077, %v1077
    %v1222 = vpack.c.bf16 %v1078, %v1078
    %v1223 = vpack.c.bf16 %v1079, %v1079
    %v1224 = vpack.c.bf16 %v1080, %v1080
    %v1225 = vpack.c.bf16 %v1081, %v1081
    %v1226 = vpack.c.bf16 %v1082, %v1082
    %v1227 = vpack.c.bf16 %v1083, %v1083
    %v1228 = vpack.c.bf16 %v1084, %v1084
    %v1229 = vpack.c.bf16 %v1085, %v1085
    %v1230 = vpack.c.bf16 %v1086, %v1086
    %v1231 = vpack.c.bf16 %v1087, %v1087
    %v1232 = vpack.c.bf16 %v1088, %v1088
    %v1233 = vpack.c.bf16 %v1089, %v1089
    %v1234 = vpack.c.bf16 %v1090, %v1090
    %v1235 = vpack.c.bf16 %v1091, %v1091
    %v1236 = vpack.c.bf16 %v1092, %v1092
    %v1237 = vpack.c.bf16 %v1093, %v1093
    %v1238 = vpack.c.bf16 %v1094, %v1094
    %v1239 = vpack.c.bf16 %v1095, %v1095
    %v1240 = vpack.c.bf16 %v1096, %v1096
    %v1241 = vpack.c.bf16 %v1097, %v1097
    %v1242 = vpack.c.bf16 %v1098, %v1098
    %v1243 = vpack.c.bf16 %v1099, %v1099
    %v1244 = vpack.c.bf16 %v1100, %v1100
    %v1245 = vpack.c.bf16 %v1101, %v1101
    %v1246 = vpack.c.bf16 %v1102, %v1102
    %v1247 = vpack.c.bf16 %v1103, %v1103
    %v1248 = vpack.c.bf16 %v1104, %v1104
    %v1249 = vpack.c.bf16 %v1105, %v1105
    %v1250 = vpack.c.bf16 %v1106, %v1106
    %v1251 = vpack.c.bf16 %v1107, %v1107
    %v1252 = vpack.c.bf16 %v1108, %v1108
    %v1253 = vpack.c.bf16 %v1109, %v1109
    %v1254 = vpack.c.bf16 %v1110, %v1110
    %v1255 = vpack.c.bf16 %v1111, %v1111
    %v1256 = vpack.c.bf16 %v1112, %v1112
    %v1257 = vpack.c.bf16 %v1113, %v1113
    %v1258 = vpack.c.bf16 %v1114, %v1114
    %v1259 = vpack.c.bf16 %v1115, %v1115
    %v1260 = vpack.c.bf16 %v1116, %v1116
    %v1261 = vpack.c.bf16 %v1117, %v1117
    %v1262 = vpack.c.bf16 %v1118, %v1118
    %v1263 = vpack.c.bf16 %v1119, %v1119
    %v1264 = vpack.c.bf16 %v1120, %v1120
    %v1265 = vpack.c.bf16 %v1121, %v1121
    %v1266 = vpack.c.bf16 %v1122, %v1122
    %v1267 = vpack.c.bf16 %v1123, %v1123
    %v1268 = vpack.c.bf16 %v1124, %v1124
    %v1269 = vpack.c.bf16 %v1125, %v1125
    %v1270 = vpack.c.bf16 %v1126, %v1126
    %v1271 = vpack.c.bf16 %v1127, %v1127
    %v1272 = vpack.c.bf16 %v1128, %v1128
    %v1273 = vpack.c.bf16 %v1129, %v1129
    %v1274 = vpack.c.bf16 %v1130, %v1130
    %v1275 = vpack.c.bf16 %v1131, %v1131
    %v1276 = vpack.c.bf16 %v1132, %v1132
    %v1277 = vpack.c.bf16 %v1133, %v1133
    %v1278 = vpack.c.bf16 %v1134, %v1134
    %v1279 = vpack.c.bf16 %v1135, %v1135
    %v1280 = vpack.c.bf16 %v1136, %v1136
    %v1281 = vpack.c.bf16 %v1137, %v1137
    %v1282 = vpack.c.bf16 %v1138, %v1138
    %v1283 = vpack.c.bf16 %v1139, %v1139
    %v1284 = vpack.c.bf16 %v1140, %v1140
    %v1285 = vpack.c.bf16 %v1141, %v1141
    %v1286 = vpack.c.bf16 %v1142, %v1142
    %v1287 = vpack.c.bf16 %v1143, %v1143
    %v1288 = vpack.c.bf16 %v1144, %v1144
    %v1289 = vpack.c.bf16 %v1145, %v1145
    %v1290 = vpack.c.bf16 %v1146, %v1146
    %v1291 = vpack.c.bf16 %v1147, %v1147
    %v1292 = vpack.c.bf16 %v1148, %v1148
    %v1293 = vpack.c.bf16 %v1149, %v1149
    %v1294 = vpack.c.bf16 %v1150, %v1150
    %v1295 = vpack.c.bf16 %v1151, %v1151
    %v1296 = vpack.c.bf16 %v1152, %v1152
    %v1297 = vpack.c.bf16 %v1153, %v1153
    %v1298 = vpack.c.bf16 %v1154, %v1154
    %v1299 = vpack.c.bf16 %v1155, %v1155
    %v1300 = vpack.c.bf16 %v1156, %v1156
    %v1301 = vpack.c.bf16 %v1157, %v1157
    %v1302 = vpack.c.bf16 %v1158, %v1158
    %v1303 = vpack.c.bf16 %v1159, %v1159
    %v1304 = vpack.c.bf16 %v1160, %v1160
    %v1305 = vpack.c.bf16 %v1161, %v1161
    %v1306 = vpack.c.bf16 %v1162, %v1162
    %v1307 = vpack.c.bf16 %v1163, %v1163
    %v1308 = vpack.c.bf16 %v1164, %v1164
    %v1309 = vpack.c.bf16 %v1165, %v1165
    %v1310 = vpack.c.bf16 %v1166, %v1166
    %v1311 = vpack.c.bf16 %v1167, %v1167
    %v1312 = vpack.c.bf16 %v1168, %v1168
    %v1313 = vpack.c.bf16 %v1169, %v1169
    %v1314 = vpack.c.bf16 %v1170, %v1170
    %v1315 = vpack.c.bf16 %v1171, %v1171
    %v1316 = vpack.c.bf16 %v1172, %v1172
    %v1317 = vpack.c.bf16 %v1173, %v1173
    %v1318 = vpack.c.bf16 %v1174, %v1174
    %v1319 = vpack.c.bf16 %v1175, %v1175
    %v1320 = vpack.c.bf16 %v1176, %v1176
    %v1321 = vpack.c.bf16 %v1177, %v1177
    %v1322 = vpack.c.bf16 %v1178, %v1178
    %v1323 = vpack.c.bf16 %v1179, %v1179
    %v1324 = vpack.c.bf16 %v1180, %v1180
    %v1325 = vpack.c.bf16 %v1181, %v1181
    %v1326 = vpack.c.bf16 %v1182, %v1182
    %v1327 = vpack.c.bf16 %v1183, %v1183
    %v1328 = vpack.c.bf16 %v1184, %v1184
    %vm1329 = vcmask 519168
    %1330 = vst.msk [vmem:[%s3] sm:$0xf] %vm1329, %v1185
    %1331 = vst.msk [vmem:[%s3 + $0x4] sm:$0xf] %vm1329, %v1186
    %1332 = vst.msk [vmem:[%s3 + $0x8] sm:$0xf] %vm1329, %v1187
    %1333 = vst.msk [vmem:[%s3 + $0xc] sm:$0xf] %vm1329, %v1188
    %1334 = vst.msk [vmem:[%s3 + $0x10] sm:$0xf] %vm1329, %v1189
    %1335 = vst.msk [vmem:[%s3 + $0x14] sm:$0xf] %vm1329, %v1190
    %1336 = vst.msk [vmem:[%s3 + $0x18] sm:$0xf] %vm1329, %v1191
    %1337 = vst.msk [vmem:[%s3 + $0x1c] sm:$0xf] %vm1329, %v1192
    %1338 = vst.msk [vmem:[%s3 + $0x20] sm:$0xf] %vm1329, %v1193
    %1339 = vst.msk [vmem:[%s3 + $0x24] sm:$0xf] %vm1329, %v1194
    %1340 = vst.msk [vmem:[%s3 + $0x28] sm:$0xf] %vm1329, %v1195
    %1341 = vst.msk [vmem:[%s3 + $0x2c] sm:$0xf] %vm1329, %v1196
    %1342 = vst.msk [vmem:[%s3 + $0x30] sm:$0xf] %vm1329, %v1197
    %1343 = vst.msk [vmem:[%s3 + $0x34] sm:$0xf] %vm1329, %v1198
    %1344 = vst.msk [vmem:[%s3 + $0x38] sm:$0xf] %vm1329, %v1199
    %1345 = vst.msk [vmem:[%s3 + $0x3c] sm:$0xf] %vm1329, %v1200
    %1346 = vst.msk [vmem:[%s3 + $0x40] sm:$0xf] %vm1329, %v1201
    %1347 = vst.msk [vmem:[%s3 + $0x44] sm:$0xf] %vm1329, %v1202
    %1348 = vst.msk [vmem:[%s3 + $0x48] sm:$0xf] %vm1329, %v1203
    %1349 = vst.msk [vmem:[%s3 + $0x4c] sm:$0xf] %vm1329, %v1204
    %1350 = vst.msk [vmem:[%s3 + $0x50] sm:$0xf] %vm1329, %v1205
    %1351 = vst.msk [vmem:[%s3 + $0x54] sm:$0xf] %vm1329, %v1206
    %1352 = vst.msk [vmem:[%s3 + $0x58] sm:$0xf] %vm1329, %v1207
    %1353 = vst.msk [vmem:[%s3 + $0x5c] sm:$0xf] %vm1329, %v1208
    %1354 = vst.msk [vmem:[%s3 + $0x60] sm:$0xf] %vm1329, %v1209
    %1355 = vst.msk [vmem:[%s3 + $0x64] sm:$0xf] %vm1329, %v1210
    %1356 = vst.msk [vmem:[%s3 + $0x68] sm:$0xf] %vm1329, %v1211
    %1357 = vst.msk [vmem:[%s3 + $0x6c] sm:$0xf] %vm1329, %v1212
    %1358 = vst.msk [vmem:[%s3 + $0x70] sm:$0xf] %vm1329, %v1213
    %1359 = vst.msk [vmem:[%s3 + $0x74] sm:$0xf] %vm1329, %v1214
    %1360 = vst.msk [vmem:[%s3 + $0x78] sm:$0xf] %vm1329, %v1215
    %1361 = vst.msk [vmem:[%s3 + $0x7c] sm:$0xf] %vm1329, %v1216
    %1362 = vst.msk [vmem:[%s3 + $0x80] sm:$0xf] %vm1329, %v1217
    %1363 = vst.msk [vmem:[%s3 + $0x84] sm:$0xf] %vm1329, %v1218
    %1364 = vst.msk [vmem:[%s3 + $0x88] sm:$0xf] %vm1329, %v1219
    %1365 = vst.msk [vmem:[%s3 + $0x8c] sm:$0xf] %vm1329, %v1220
    %1366 = vst.msk [vmem:[%s3 + $0x90] sm:$0xf] %vm1329, %v1221
    %1367 = vst.msk [vmem:[%s3 + $0x94] sm:$0xf] %vm1329, %v1222
    %1368 = vst.msk [vmem:[%s3 + $0x98] sm:$0xf] %vm1329, %v1223
    %1369 = vst.msk [vmem:[%s3 + $0x9c] sm:$0xf] %vm1329, %v1224
    %1370 = vst.msk [vmem:[%s3 + $0xa0] sm:$0xf] %vm1329, %v1225
    %1371 = vst.msk [vmem:[%s3 + $0xa4] sm:$0xf] %vm1329, %v1226
    %1372 = vst.msk [vmem:[%s3 + $0xa8] sm:$0xf] %vm1329, %v1227
    %1373 = vst.msk [vmem:[%s3 + $0xac] sm:$0xf] %vm1329, %v1228
    %1374 = vst.msk [vmem:[%s3 + $0xb0] sm:$0xf] %vm1329, %v1229
    %1375 = vst.msk [vmem:[%s3 + $0xb4] sm:$0xf] %vm1329, %v1230
    %1376 = vst.msk [vmem:[%s3 + $0xb8] sm:$0xf] %vm1329, %v1231
    %1377 = vst.msk [vmem:[%s3 + $0xbc] sm:$0xf] %vm1329, %v1232
    %1378 = vst.msk [vmem:[%s3 + $0xc0] sm:$0xf] %vm1329, %v1233
    %1379 = vst.msk [vmem:[%s3 + $0xc4] sm:$0xf] %vm1329, %v1234
    %1380 = vst.msk [vmem:[%s3 + $0xc8] sm:$0xf] %vm1329, %v1235
    %1381 = vst.msk [vmem:[%s3 + $0xcc] sm:$0xf] %vm1329, %v1236
    %1382 = vst.msk [vmem:[%s3 + $0xd0] sm:$0xf] %vm1329, %v1237
    %1383 = vst.msk [vmem:[%s3 + $0xd4] sm:$0xf] %vm1329, %v1238
    %1384 = vst.msk [vmem:[%s3 + $0xd8] sm:$0xf] %vm1329, %v1239
    %1385 = vst.msk [vmem:[%s3 + $0xdc] sm:$0xf] %vm1329, %v1240
    %1386 = vst.msk [vmem:[%s3 + $0xe0] sm:$0xf] %vm1329, %v1241
    %1387 = vst.msk [vmem:[%s3 + $0xe4] sm:$0xf] %vm1329, %v1242
    %1388 = vst.msk [vmem:[%s3 + $0xe8] sm:$0xf] %vm1329, %v1243
    %1389 = vst.msk [vmem:[%s3 + $0xec] sm:$0xf] %vm1329, %v1244
    %1390 = vst.msk [vmem:[%s3 + $0xf0] sm:$0xf] %vm1329, %v1245
    %1391 = vst.msk [vmem:[%s3 + $0xf4] sm:$0xf] %vm1329, %v1246
    %1392 = vst.msk [vmem:[%s3 + $0xf8] sm:$0xf] %vm1329, %v1247
    %1393 = vst.msk [vmem:[%s3 + $0xfc] sm:$0xf] %vm1329, %v1248
    %1394 = vst.msk [vmem:[%s3 + $0x100] sm:$0xf] %vm1329, %v1249
    %1395 = vst.msk [vmem:[%s3 + $0x104] sm:$0xf] %vm1329, %v1250
    %1396 = vst.msk [vmem:[%s3 + $0x108] sm:$0xf] %vm1329, %v1251
    %1397 = vst.msk [vmem:[%s3 + $0x10c] sm:$0xf] %vm1329, %v1252
    %1398 = vst.msk [vmem:[%s3 + $0x110] sm:$0xf] %vm1329, %v1253
    %1399 = vst.msk [vmem:[%s3 + $0x114] sm:$0xf] %vm1329, %v1254
    %1400 = vst.msk [vmem:[%s3 + $0x118] sm:$0xf] %vm1329, %v1255
    %1401 = vst.msk [vmem:[%s3 + $0x11c] sm:$0xf] %vm1329, %v1256
    %1402 = vst.msk [vmem:[%s3 + $0x120] sm:$0xf] %vm1329, %v1257
    %1403 = vst.msk [vmem:[%s3 + $0x124] sm:$0xf] %vm1329, %v1258
    %1404 = vst.msk [vmem:[%s3 + $0x128] sm:$0xf] %vm1329, %v1259
    %1405 = vst.msk [vmem:[%s3 + $0x12c] sm:$0xf] %vm1329, %v1260
    %1406 = vst.msk [vmem:[%s3 + $0x130] sm:$0xf] %vm1329, %v1261
    %1407 = vst.msk [vmem:[%s3 + $0x134] sm:$0xf] %vm1329, %v1262
    %1408 = vst.msk [vmem:[%s3 + $0x138] sm:$0xf] %vm1329, %v1263
    %1409 = vst.msk [vmem:[%s3 + $0x13c] sm:$0xf] %vm1329, %v1264
    %1410 = vst.msk [vmem:[%s3 + $0x140] sm:$0xf] %vm1329, %v1265
    %1411 = vst.msk [vmem:[%s3 + $0x144] sm:$0xf] %vm1329, %v1266
    %1412 = vst.msk [vmem:[%s3 + $0x148] sm:$0xf] %vm1329, %v1267
    %1413 = vst.msk [vmem:[%s3 + $0x14c] sm:$0xf] %vm1329, %v1268
    %1414 = vst.msk [vmem:[%s3 + $0x150] sm:$0xf] %vm1329, %v1269
    %1415 = vst.msk [vmem:[%s3 + $0x154] sm:$0xf] %vm1329, %v1270
    %1416 = vst.msk [vmem:[%s3 + $0x158] sm:$0xf] %vm1329, %v1271
    %1417 = vst.msk [vmem:[%s3 + $0x15c] sm:$0xf] %vm1329, %v1272
    %1418 = vst.msk [vmem:[%s3 + $0x160] sm:$0xf] %vm1329, %v1273
    %1419 = vst.msk [vmem:[%s3 + $0x164] sm:$0xf] %vm1329, %v1274
    %1420 = vst.msk [vmem:[%s3 + $0x168] sm:$0xf] %vm1329, %v1275
    %1421 = vst.msk [vmem:[%s3 + $0x16c] sm:$0xf] %vm1329, %v1276
    %1422 = vst.msk [vmem:[%s3 + $0x170] sm:$0xf] %vm1329, %v1277
    %1423 = vst.msk [vmem:[%s3 + $0x174] sm:$0xf] %vm1329, %v1278
    %1424 = vst.msk [vmem:[%s3 + $0x178] sm:$0xf] %vm1329, %v1279
    %1425 = vst.msk [vmem:[%s3 + $0x17c] sm:$0xf] %vm1329, %v1280
    %1426 = vst.msk [vmem:[%s3 + $0x180] sm:$0xf] %vm1329, %v1281
    %1427 = vst.msk [vmem:[%s3 + $0x184] sm:$0xf] %vm1329, %v1282
    %1428 = vst.msk [vmem:[%s3 + $0x188] sm:$0xf] %vm1329, %v1283
    %1429 = vst.msk [vmem:[%s3 + $0x18c] sm:$0xf] %vm1329, %v1284
    %1430 = vst.msk [vmem:[%s3 + $0x190] sm:$0xf] %vm1329, %v1285
    %1431 = vst.msk [vmem:[%s3 + $0x194] sm:$0xf] %vm1329, %v1286
    %1432 = vst.msk [vmem:[%s3 + $0x198] sm:$0xf] %vm1329, %v1287
    %1433 = vst.msk [vmem:[%s3 + $0x19c] sm:$0xf] %vm1329, %v1288
    %1434 = vst.msk [vmem:[%s3 + $0x1a0] sm:$0xf] %vm1329, %v1289
    %1435 = vst.msk [vmem:[%s3 + $0x1a4] sm:$0xf] %vm1329, %v1290
    %1436 = vst.msk [vmem:[%s3 + $0x1a8] sm:$0xf] %vm1329, %v1291
    %1437 = vst.msk [vmem:[%s3 + $0x1ac] sm:$0xf] %vm1329, %v1292
    %1438 = vst.msk [vmem:[%s3 + $0x1b0] sm:$0xf] %vm1329, %v1293
    %1439 = vst.msk [vmem:[%s3 + $0x1b4] sm:$0xf] %vm1329, %v1294
    %1440 = vst.msk [vmem:[%s3 + $0x1b8] sm:$0xf] %vm1329, %v1295
    %1441 = vst.msk [vmem:[%s3 + $0x1bc] sm:$0xf] %vm1329, %v1296
    %1442 = vst.msk [vmem:[%s3 + $0x1c0] sm:$0xf] %vm1329, %v1297
    %1443 = vst.msk [vmem:[%s3 + $0x1c4] sm:$0xf] %vm1329, %v1298
    %1444 = vst.msk [vmem:[%s3 + $0x1c8] sm:$0xf] %vm1329, %v1299
    %1445 = vst.msk [vmem:[%s3 + $0x1cc] sm:$0xf] %vm1329, %v1300
    %1446 = vst.msk [vmem:[%s3 + $0x1d0] sm:$0xf] %vm1329, %v1301
    %1447 = vst.msk [vmem:[%s3 + $0x1d4] sm:$0xf] %vm1329, %v1302
    %1448 = vst.msk [vmem:[%s3 + $0x1d8] sm:$0xf] %vm1329, %v1303
    %1449 = vst.msk [vmem:[%s3 + $0x1dc] sm:$0xf] %vm1329, %v1304
    %1450 = vst.msk [vmem:[%s3 + $0x1e0] sm:$0xf] %vm1329, %v1305
    %1451 = vst.msk [vmem:[%s3 + $0x1e4] sm:$0xf] %vm1329, %v1306
    %1452 = vst.msk [vmem:[%s3 + $0x1e8] sm:$0xf] %vm1329, %v1307
    %1453 = vst.msk [vmem:[%s3 + $0x1ec] sm:$0xf] %vm1329, %v1308
    %1454 = vst.msk [vmem:[%s3 + $0x1f0] sm:$0xf] %vm1329, %v1309
    %1455 = vst.msk [vmem:[%s3 + $0x1f4] sm:$0xf] %vm1329, %v1310
    %1456 = vst.msk [vmem:[%s3 + $0x1f8] sm:$0xf] %vm1329, %v1311
    %1457 = vst.msk [vmem:[%s3 + $0x1fc] sm:$0xf] %vm1329, %v1312
    %1458 = vst.msk [vmem:[%s3 + $0x200] sm:$0xf] %vm1329, %v1313
    %1459 = vst.msk [vmem:[%s3 + $0x204] sm:$0xf] %vm1329, %v1314
    %1460 = vst.msk [vmem:[%s3 + $0x208] sm:$0xf] %vm1329, %v1315
    %1461 = vst.msk [vmem:[%s3 + $0x20c] sm:$0xf] %vm1329, %v1316
    %1462 = vst.msk [vmem:[%s3 + $0x210] sm:$0xf] %vm1329, %v1317
    %1463 = vst.msk [vmem:[%s3 + $0x214] sm:$0xf] %vm1329, %v1318
    %1464 = vst.msk [vmem:[%s3 + $0x218] sm:$0xf] %vm1329, %v1319
    %1465 = vst.msk [vmem:[%s3 + $0x21c] sm:$0xf] %vm1329, %v1320
    %1466 = vst.msk [vmem:[%s3 + $0x220] sm:$0xf] %vm1329, %v1321
    %1467 = vst.msk [vmem:[%s3 + $0x224] sm:$0xf] %vm1329, %v1322
    %1468 = vst.msk [vmem:[%s3 + $0x228] sm:$0xf] %vm1329, %v1323
    %1469 = vst.msk [vmem:[%s3 + $0x22c] sm:$0xf] %vm1329, %v1324
    %1470 = vst.msk [vmem:[%s3 + $0x230] sm:$0xf] %vm1329, %v1325
    %1471 = vst.msk [vmem:[%s3 + $0x234] sm:$0xf] %vm1329, %v1326
    %1472 = vst.msk [vmem:[%s3 + $0x238] sm:$0xf] %vm1329, %v1327
    %1473 = vst.msk [vmem:[%s3 + $0x23c] sm:$0xf] %vm1329, %v1328
    // Predicated region
    $region18: #{cnn_forward.5} parent=1 // pred_check
      _
    $region19: #{cnn_forward.5} parent=1 // pred_check_branch
      %1475 = sbr.rel (0) target = $region21
    $region20: #{cnn_forward.5} parent=1 // pred_region
      _
    $region21: #{cnn_forward.5} parent=1 // pred_fallthru
      _
    // Predicated region
    $region22: #{cnn_forward.5} parent=1 // pred_check
      _
    $region23: #{cnn_forward.5} parent=1 // pred_check_branch
      %1477 = sbr.rel (0) target = $region25
    $region24: #{cnn_forward.5} parent=1 // pred_region
      _
    $region25: #{cnn_forward.5} parent=1 // pred_fallthru
      _
    %1478 = vsyncpa [#allocation3], 1

// kernel: cnn_forward.8
$region0: #{cnn_forward.8}
  #allocation0 [shape = 'u32[]', space=smem, size = 0x4, offset = 0x4, fixed_abs, tag = 'smem constant byte address 0x4 - core index']
  #allocation1 [shape = 'u32[72,128]{1,0:T(1,128)}', space=vmem, size = 0x9000, scoped, tag = 'internal scratch']
  %s0 = inlined_call_operand.vmem [shape: bf16[8,2,4,256], index: 0, kind: input, shape index: {}]
  %s1 = inlined_call_operand.vmem [shape: bf16[8,4,128], index: 1, kind: output, shape index: {}]
  %s2 = sld [smem:[#allocation0]]
  $region14: #{cnn_forward.8} parent=0
    _
  %s4 = ssub.s32 1, %s2
  %s5 = scalar_select 0, %s4, %s2
  // Predicated region
  $region2: #{cnn_forward.8} parent=0 // pred_check
    _
  $region3: #{cnn_forward.8} parent=0 // pred_check_branch
    %7 = sbr.rel (0) target = $region5
  $region4: #{cnn_forward.8} parent=0 // pred_region
    _
  $region5: #{cnn_forward.8} parent=0 // pred_fallthru
    _
  %v8 = vld [vmem:[%s0] sm:$0xf]
  %v9 = vld [vmem:[%s0 + $0x4] sm:$0xf]
  %v10 = vld [vmem:[%s0 + $0x8] sm:$0xf]
  %v11 = vld [vmem:[%s0 + $0xc] sm:$0xf]
  %v12 = vld [vmem:[%s0 + $0x10] sm:$0xf]
  %v13 = vld [vmem:[%s0 + $0x14] sm:$0xf]
  %v14 = vld [vmem:[%s0 + $0x18] sm:$0xf]
  %v15 = vld [vmem:[%s0 + $0x1c] sm:$0xf]
  %v16 = vld [vmem:[%s0 + $0x20] sm:$0xf]
  %v17 = vld [vmem:[%s0 + $0x24] sm:$0xf]
  %v18 = vld [vmem:[%s0 + $0x28] sm:$0xf]
  %v19 = vld [vmem:[%s0 + $0x2c] sm:$0xf]
  %v20 = vld [vmem:[%s0 + $0x30] sm:$0xf]
  %v21 = vld [vmem:[%s0 + $0x34] sm:$0xf]
  %v22 = vld [vmem:[%s0 + $0x38] sm:$0xf]
  %v23 = vld [vmem:[%s0 + $0x3c] sm:$0xf]
  %v24 = vunpack.c.l.bf16 %v8
  %v25 = vunpack.c.l.bf16 %v10
  %v26 = vunpack.c.l.bf16 %v12
  %v27 = vunpack.c.l.bf16 %v14
  %v28 = vunpack.c.l.bf16 %v16
  %v29 = vunpack.c.l.bf16 %v18
  %v30 = vunpack.c.l.bf16 %v20
  %v31 = vunpack.c.l.bf16 %v22
  %v32 = vunpack.c.l.bf16 %v9
  %v33 = vunpack.c.l.bf16 %v11
  %v34 = vunpack.c.l.bf16 %v13
  %v35 = vunpack.c.l.bf16 %v15
  %v36 = vunpack.c.l.bf16 %v17
  %v37 = vunpack.c.l.bf16 %v19
  %v38 = vunpack.c.l.bf16 %v21
  %v39 = vunpack.c.l.bf16 %v23
  %v40 = vmax.f32 %v24, %v32
  %v41 = vmax.f32 %v25, %v33
  %v42 = vmax.f32 %v26, %v34
  %v43 = vmax.f32 %v27, %v35
  %v44 = vmax.f32 %v28, %v36
  %v45 = vmax.f32 %v29, %v37
  %v46 = vmax.f32 %v30, %v38
  %v47 = vmax.f32 %v31, %v39
  %56 = vst [vmem:[#allocation1] ss:$2 sm:$0xff] %v40
  %v57 = vld.sshfl [vmem:[#allocation1] sm:$0xff pattern:$0x75316420]
  %v58 = vld.sshfl [vmem:[#allocation1 + $0x8] sm:$0xff pattern:$0x75316420]
  %s59 = scalar_lea.vmem [#allocation1], 16
  %60 = vst [vmem:[%s59] ss:$2 sm:$0xff] %v41
  %v61 = vld.sshfl [vmem:[#allocation1 + $0x10] sm:$0xff pattern:$0x75316420]
  %v62 = vld.sshfl [vmem:[#allocation1 + $0x18] sm:$0xff pattern:$0x75316420]
  %s63 = scalar_lea.vmem [#allocation1], 32
  %64 = vst [vmem:[%s63] ss:$2 sm:$0xff] %v42
  %v65 = vld.sshfl [vmem:[#allocation1 + $0x20] sm:$0xff pattern:$0x75316420]
  %v66 = vld.sshfl [vmem:[#allocation1 + $0x28] sm:$0xff pattern:$0x75316420]
  %s67 = scalar_lea.vmem [#allocation1], 48
  %68 = vst [vmem:[%s67] ss:$2 sm:$0xff] %v43
  %v69 = vld.sshfl [vmem:[#allocation1 + $0x30] sm:$0xff pattern:$0x75316420]
  %v70 = vld.sshfl [vmem:[#allocation1 + $0x38] sm:$0xff pattern:$0x75316420]
  %71 = vst [vmem:[#allocation1] ss:$2 sm:$0xff] %v44
  %v72 = vld.sshfl [vmem:[#allocation1] sm:$0xff pattern:$0x75316420]
  %v73 = vld.sshfl [vmem:[#allocation1 + $0x8] sm:$0xff pattern:$0x75316420]
  %74 = vst [vmem:[%s59] ss:$2 sm:$0xff] %v45
  %v75 = vld.sshfl [vmem:[#allocation1 + $0x10] sm:$0xff pattern:$0x75316420]
  %v76 = vld.sshfl [vmem:[#allocation1 + $0x18] sm:$0xff pattern:$0x75316420]
  %77 = vst [vmem:[%s63] ss:$2 sm:$0xff] %v46
  %v78 = vld.sshfl [vmem:[#allocation1 + $0x20] sm:$0xff pattern:$0x75316420]
  %v79 = vld.sshfl [vmem:[#allocation1 + $0x28] sm:$0xff pattern:$0x75316420]
  %80 = vst [vmem:[%s67] ss:$2 sm:$0xff] %v47
  %v81 = vld.sshfl [vmem:[#allocation1 + $0x30] sm:$0xff pattern:$0x75316420]
  %v82 = vld.sshfl [vmem:[#allocation1 + $0x38] sm:$0xff pattern:$0x75316420]
  %v99 = vpack.c.bf16 %v58, %v57
  %v100 = vpack.c.bf16 %v62, %v61
  %v101 = vpack.c.bf16 %v66, %v65
  %v102 = vpack.c.bf16 %v70, %v69
  %v103 = vpack.c.bf16 %v73, %v72
  %v104 = vpack.c.bf16 %v76, %v75
  %v105 = vpack.c.bf16 %v79, %v78
  %v106 = vpack.c.bf16 %v82, %v81
  %v107 = vunpack.c.l.bf16 %v99
  %v108 = vunpack.c.l.bf16 %v100
  %v109 = vunpack.c.l.bf16 %v101
  %v110 = vunpack.c.l.bf16 %v102
  %v111 = vunpack.c.l.bf16 %v103
  %v112 = vunpack.c.l.bf16 %v104
  %v113 = vunpack.c.l.bf16 %v105
  %v114 = vunpack.c.l.bf16 %v106
  %v123 = vrot.slane %v99, 4
  %v124 = vrot.slane %v100, 4
  %v125 = vrot.slane %v101, 4
  %v126 = vrot.slane %v102, 4
  %v127 = vrot.slane %v103, 4
  %v128 = vrot.slane %v104, 4
  %v129 = vrot.slane %v105, 4
  %v130 = vrot.slane %v106, 4
  %v139 = vunpack.c.l.bf16 %v123
  %v140 = vunpack.c.l.bf16 %v124
  %v141 = vunpack.c.l.bf16 %v125
  %v142 = vunpack.c.l.bf16 %v126
  %v143 = vunpack.c.l.bf16 %v127
  %v144 = vunpack.c.l.bf16 %v128
  %v145 = vunpack.c.l.bf16 %v129
  %v146 = vunpack.c.l.bf16 %v130
  %v147 = vmax.f32 %v107, %v139
  %v148 = vmax.f32 %v108, %v140
  %v149 = vmax.f32 %v109, %v141
  %v150 = vmax.f32 %v110, %v142
  %v151 = vmax.f32 %v111, %v143
  %v152 = vmax.f32 %v112, %v144
  %v153 = vmax.f32 %v113, %v145
  %v154 = vmax.f32 %v114, %v146
  %v155 = vpack.c.bf16 %v147, %v147
  %v156 = vpack.c.bf16 %v148, %v148
  %v157 = vpack.c.bf16 %v149, %v149
  %v158 = vpack.c.bf16 %v150, %v150
  %v159 = vpack.c.bf16 %v151, %v151
  %v160 = vpack.c.bf16 %v152, %v152
  %v161 = vpack.c.bf16 %v153, %v153
  %v162 = vpack.c.bf16 %v154, %v154
  %163 = vst [vmem:[%s1] sm:$0x3] %v155
  %164 = vst [vmem:[%s1 + $0x2] sm:$0x3] %v156
  %165 = vst [vmem:[%s1 + $0x4] sm:$0x3] %v157
  %166 = vst [vmem:[%s1 + $0x6] sm:$0x3] %v158
  %167 = vst [vmem:[%s1 + $0x8] sm:$0x3] %v159
  %168 = vst [vmem:[%s1 + $0xa] sm:$0x3] %v160
  %169 = vst [vmem:[%s1 + $0xc] sm:$0x3] %v161
  %170 = vst [vmem:[%s1 + $0xe] sm:$0x3] %v162
  // Predicated region
  $region6: #{cnn_forward.8} parent=0 // pred_check
    _
  $region7: #{cnn_forward.8} parent=0 // pred_check_branch
    %172 = sbr.rel (0) target = $region9
  $region8: #{cnn_forward.8} parent=0 // pred_region
    _
  $region9: #{cnn_forward.8} parent=0 // pred_fallthru
    _
  // Predicated region
  $region10: #{cnn_forward.8} parent=0 // pred_check
    _
  $region11: #{cnn_forward.8} parent=0 // pred_check_branch
    %174 = sbr.rel (0) target = $region13
  $region12: #{cnn_forward.8} parent=0 // pred_region
    _
  $region13: #{cnn_forward.8} parent=0 // pred_fallthru
    _

// kernel: cnn_forward.7
$region0: #{cnn_forward.7}
  #allocation0 [shape = 'u32[]', space=smem, size = 0x4, offset = 0x4, fixed_abs, tag = 'smem constant byte address 0x4 - core index']
  #allocation1 [shape = 'u32[72,128]{1,0:T(1,128)}', space=vmem, size = 0x9000, scoped, tag = 'internal scratch']
  %s0 = inlined_call_operand.vmem [shape: bf16[128,1600], index: 0, kind: input, shape index: {}]
  %s1 = inlined_call_operand.vmem [shape: bf16[1600,128], index: 1, kind: input, shape index: {}]
  %s2 = inlined_call_operand.vmem [shape: f32[1,128], index: 2, kind: input, shape index: {}]
  %s3 = inlined_call_operand.vmem [shape: bf16[128,128], index: 3, kind: output, shape index: {}]
  %s4 = sld [smem:[#allocation0]]
  $region22: #{cnn_forward.7} parent=0
    _
  %s6 = ssub.s32 1, %s4
  %s7 = scalar_select 0, %s6, %s4
  // Predicated region
  $region2: #{cnn_forward.7} parent=0 // pred_check
    _
  $region3: #{cnn_forward.7} parent=0 // pred_check_branch
    %9 = sbr.rel (0) target = $region5
  $region4: #{cnn_forward.7} parent=0 // pred_region
    _
  $region5: #{cnn_forward.7} parent=0 // pred_fallthru
    _
  // Predicated region
  $region6: #{cnn_forward.7} parent=0 // pred_check
    _
  $region7: #{cnn_forward.7} parent=0 // pred_check_branch
    %11 = sbr.rel (0) target = $region9
  $region8: #{cnn_forward.7} parent=0 // pred_region
    _
  $region9: #{cnn_forward.7} parent=0 // pred_fallthru
    _
  // Predicated region
  $region10: #{cnn_forward.7} parent=0 // pred_check
    _
  $region11: #{cnn_forward.7} parent=0 // pred_check_branch
    %13 = sbr.rel (0) target = $region13
  $region12: #{cnn_forward.7} parent=0 // pred_region
    _
  $region13: #{cnn_forward.7} parent=0 // pred_fallthru
    _
  %v15 = vld [vmem:[%s0] sm:$0xff]
  %v16 = vld [vmem:[%s0 + $0x8] sm:$0xff]
  %v17 = vld [vmem:[%s0 + $0x10] sm:$0xff]
  %v18 = vld [vmem:[%s0 + $0x18] sm:$0xff]
  %v19 = vld [vmem:[%s0 + $0x20] sm:$0xff]
  %v20 = vld [vmem:[%s0 + $0x28] sm:$0xff]
  %v21 = vld [vmem:[%s0 + $0x30] sm:$0xf]
  %v22 = vld [vmem:[%s0 + $0x34] sm:$0xff]
  %v23 = vld [vmem:[%s0 + $0x3c] sm:$0xff]
  %v24 = vld [vmem:[%s0 + $0x44] sm:$0xff]
  %v25 = vld [vmem:[%s0 + $0x4c] sm:$0xff]
  %v26 = vld [vmem:[%s0 + $0x54] sm:$0xff]
  %v27 = vld [vmem:[%s0 + $0x5c] sm:$0xff]
  %v28 = vld [vmem:[%s0 + $0x64] sm:$0xf]
  %v29 = vld [vmem:[%s0 + $0x68] sm:$0xff]
  %v30 = vld [vmem:[%s0 + $0x70] sm:$0xff]
  %v31 = vld [vmem:[%s0 + $0x78] sm:$0xff]
  %v32 = vld [vmem:[%s0 + $0x80] sm:$0xff]
  %v33 = vld [vmem:[%s0 + $0x88] sm:$0xff]
  %v34 = vld [vmem:[%s0 + $0x90] sm:$0xff]
  %v35 = vld [vmem:[%s0 + $0x98] sm:$0xf]
  %v36 = vld [vmem:[%s0 + $0x9c] sm:$0xff]
  %v37 = vld [vmem:[%s0 + $0xa4] sm:$0xff]
  %v38 = vld [vmem:[%s0 + $0xac] sm:$0xff]
  %v39 = vld [vmem:[%s0 + $0xb4] sm:$0xff]
  %v40 = vld [vmem:[%s0 + $0xbc] sm:$0xff]
  %v41 = vld [vmem:[%s0 + $0xc4] sm:$0xff]
  %v42 = vld [vmem:[%s0 + $0xcc] sm:$0xf]
  %v43 = vld [vmem:[%s0 + $0xd0] sm:$0xff]
  %v44 = vld [vmem:[%s0 + $0xd8] sm:$0xff]
  %v45 = vld [vmem:[%s0 + $0xe0] sm:$0xff]
  %v46 = vld [vmem:[%s0 + $0xe8] sm:$0xff]
  %v47 = vld [vmem:[%s0 + $0xf0] sm:$0xff]
  %v48 = vld [vmem:[%s0 + $0xf8] sm:$0xff]
  %v49 = vld [vmem:[%s0 + $0x100] sm:$0xf]
  %v50 = vld [vmem:[%s0 + $0x104] sm:$0xff]
  %v51 = vld [vmem:[%s0 + $0x10c] sm:$0xff]
  %v52 = vld [vmem:[%s0 + $0x114] sm:$0xff]
  %v53 = vld [vmem:[%s0 + $0x11c] sm:$0xff]
  %v54 = vld [vmem:[%s0 + $0x124] sm:$0xff]
  %v55 = vld [vmem:[%s0 + $0x12c] sm:$0xff]
  %v56 = vld [vmem:[%s0 + $0x134] sm:$0xf]
  %v57 = vld [vmem:[%s0 + $0x138] sm:$0xff]
  %v58 = vld [vmem:[%s0 + $0x140] sm:$0xff]
  %v59 = vld [vmem:[%s0 + $0x148] sm:$0xff]
  %v60 = vld [vmem:[%s0 + $0x150] sm:$0xff]
  %v61 = vld [vmem:[%s0 + $0x158] sm:$0xff]
  %v62 = vld [vmem:[%s0 + $0x160] sm:$0xff]
  %v63 = vld [vmem:[%s0 + $0x168] sm:$0xf]
  %v64 = vld [vmem:[%s0 + $0x16c] sm:$0xff]
  %v65 = vld [vmem:[%s0 + $0x174] sm:$0xff]
  %v66 = vld [vmem:[%s0 + $0x17c] sm:$0xff]
  %v67 = vld [vmem:[%s0 + $0x184] sm:$0xff]
  %v68 = vld [vmem:[%s0 + $0x18c] sm:$0xff]
  %v69 = vld [vmem:[%s0 + $0x194] sm:$0xff]
  %v70 = vld [vmem:[%s0 + $0x19c] sm:$0xf]
  %v71 = vld [vmem:[%s0 + $0x1a0] sm:$0xff]
  %v72 = vld [vmem:[%s0 + $0x1a8] sm:$0xff]
  %v73 = vld [vmem:[%s0 + $0x1b0] sm:$0xff]
  %v74 = vld [vmem:[%s0 + $0x1b8] sm:$0xff]
  %v75 = vld [vmem:[%s0 + $0x1c0] sm:$0xff]
  %v76 = vld [vmem:[%s0 + $0x1c8] sm:$0xff]
  %v77 = vld [vmem:[%s0 + $0x1d0] sm:$0xf]
  %v78 = vld [vmem:[%s0 + $0x1d4] sm:$0xff]
  %v79 = vld [vmem:[%s0 + $0x1dc] sm:$0xff]
  %v80 = vld [vmem:[%s0 + $0x1e4] sm:$0xff]
  %v81 = vld [vmem:[%s0 + $0x1ec] sm:$0xff]
  %v82 = vld [vmem:[%s0 + $0x1f4] sm:$0xff]
  %v83 = vld [vmem:[%s0 + $0x1fc] sm:$0xff]
  %v84 = vld [vmem:[%s0 + $0x204] sm:$0xf]
  %v85 = vld [vmem:[%s0 + $0x208] sm:$0xff]
  %v86 = vld [vmem:[%s0 + $0x210] sm:$0xff]
  %v87 = vld [vmem:[%s0 + $0x218] sm:$0xff]
  %v88 = vld [vmem:[%s0 + $0x220] sm:$0xff]
  %v89 = vld [vmem:[%s0 + $0x228] sm:$0xff]
  %v90 = vld [vmem:[%s0 + $0x230] sm:$0xff]
  %v91 = vld [vmem:[%s0 + $0x238] sm:$0xf]
  %v92 = vld [vmem:[%s0 + $0x23c] sm:$0xff]
  %v93 = vld [vmem:[%s0 + $0x244] sm:$0xff]
  %v94 = vld [vmem:[%s0 + $0x24c] sm:$0xff]
  %v95 = vld [vmem:[%s0 + $0x254] sm:$0xff]
  %v96 = vld [vmem:[%s0 + $0x25c] sm:$0xff]
  %v97 = vld [vmem:[%s0 + $0x264] sm:$0xff]
  %v98 = vld [vmem:[%s0 + $0x26c] sm:$0xf]
  %v99 = vld [vmem:[%s0 + $0x270] sm:$0xff]
  %v100 = vld [vmem:[%s0 + $0x278] sm:$0xff]
  %v101 = vld [vmem:[%s0 + $0x280] sm:$0xff]
  %v102 = vld [vmem:[%s0 + $0x288] sm:$0xff]
  %v103 = vld [vmem:[%s0 + $0x290] sm:$0xff]
  %v104 = vld [vmem:[%s0 + $0x298] sm:$0xff]
  %v105 = vld [vmem:[%s0 + $0x2a0] sm:$0xf]
  %v106 = vld [vmem:[%s0 + $0x2a4] sm:$0xff]
  %v107 = vld [vmem:[%s0 + $0x2ac] sm:$0xff]
  %v108 = vld [vmem:[%s0 + $0x2b4] sm:$0xff]
  %v109 = vld [vmem:[%s0 + $0x2bc] sm:$0xff]
  %v110 = vld [vmem:[%s0 + $0x2c4] sm:$0xff]
  %v111 = vld [vmem:[%s0 + $0x2cc] sm:$0xff]
  %v112 = vld [vmem:[%s0 + $0x2d4] sm:$0xf]
  %v113 = vld [vmem:[%s0 + $0x2d8] sm:$0xff]
  %v114 = vld [vmem:[%s0 + $0x2e0] sm:$0xff]
  %v115 = vld [vmem:[%s0 + $0x2e8] sm:$0xff]
  %v116 = vld [vmem:[%s0 + $0x2f0] sm:$0xff]
  %v117 = vld [vmem:[%s0 + $0x2f8] sm:$0xff]
  %v118 = vld [vmem:[%s0 + $0x300] sm:$0xff]
  %v119 = vld [vmem:[%s0 + $0x308] sm:$0xf]
  %v120 = vld [vmem:[%s0 + $0x30c] sm:$0xff]
  %v121 = vld [vmem:[%s0 + $0x314] sm:$0xff]
  %v122 = vld [vmem:[%s0 + $0x31c] sm:$0xff]
  %v123 = vld [vmem:[%s0 + $0x324] sm:$0xff]
  %v124 = vld [vmem:[%s0 + $0x32c] sm:$0xff]
  %v125 = vld [vmem:[%s0 + $0x334] sm:$0xff]
  %v126 = vld [vmem:[%s0 + $0x33c] sm:$0xf]
  %v127 = vld [vmem:[%s1] sm:$0xf]
  %v128 = vld [vmem:[%s1 + $0x4] sm:$0xf]
  %v129 = vld [vmem:[%s1 + $0x8] sm:$0xf]
  %v130 = vld [vmem:[%s1 + $0xc] sm:$0xf]
  %v131 = vld [vmem:[%s1 + $0x10] sm:$0xf]
  %v132 = vld [vmem:[%s1 + $0x14] sm:$0xf]
  %v133 = vld [vmem:[%s1 + $0x18] sm:$0xf]
  %v134 = vld [vmem:[%s1 + $0x1c] sm:$0xf]
  %v135 = vld [vmem:[%s1 + $0x20] sm:$0xf]
  %v136 = vld [vmem:[%s1 + $0x24] sm:$0xf]
  %v137 = vld [vmem:[%s1 + $0x28] sm:$0xf]
  %v138 = vld [vmem:[%s1 + $0x2c] sm:$0xf]
  %v139 = vld [vmem:[%s1 + $0x30] sm:$0xf]
  %v140 = vld [vmem:[%s1 + $0x34] sm:$0xf]
  %v141 = vld [vmem:[%s1 + $0x38] sm:$0xf]
  %v142 = vld [vmem:[%s1 + $0x3c] sm:$0xf]
  %v143 = vld [vmem:[%s1 + $0x40] sm:$0xf]
  %v144 = vld [vmem:[%s1 + $0x44] sm:$0xf]
  %v145 = vld [vmem:[%s1 + $0x48] sm:$0xf]
  %v146 = vld [vmem:[%s1 + $0x4c] sm:$0xf]
  %v147 = vld [vmem:[%s1 + $0x50] sm:$0xf]
  %v148 = vld [vmem:[%s1 + $0x54] sm:$0xf]
  %v149 = vld [vmem:[%s1 + $0x58] sm:$0xf]
  %v150 = vld [vmem:[%s1 + $0x5c] sm:$0xf]
  %v151 = vld [vmem:[%s1 + $0x60] sm:$0xf]
  %v152 = vld [vmem:[%s1 + $0x64] sm:$0xf]
  %v153 = vld [vmem:[%s1 + $0x68] sm:$0xf]
  %v154 = vld [vmem:[%s1 + $0x6c] sm:$0xf]
  %v155 = vld [vmem:[%s1 + $0x70] sm:$0xf]
  %v156 = vld [vmem:[%s1 + $0x74] sm:$0xf]
  %v157 = vld [vmem:[%s1 + $0x78] sm:$0xf]
  %v158 = vld [vmem:[%s1 + $0x7c] sm:$0xf]
  %v159 = vld [vmem:[%s1 + $0x80] sm:$0xf]
  %v160 = vld [vmem:[%s1 + $0x84] sm:$0xf]
  %v161 = vld [vmem:[%s1 + $0x88] sm:$0xf]
  %v162 = vld [vmem:[%s1 + $0x8c] sm:$0xf]
  %v163 = vld [vmem:[%s1 + $0x90] sm:$0xf]
  %v164 = vld [vmem:[%s1 + $0x94] sm:$0xf]
  %v165 = vld [vmem:[%s1 + $0x98] sm:$0xf]
  %v166 = vld [vmem:[%s1 + $0x9c] sm:$0xf]
  %v167 = vld [vmem:[%s1 + $0xa0] sm:$0xf]
  %v168 = vld [vmem:[%s1 + $0xa4] sm:$0xf]
  %v169 = vld [vmem:[%s1 + $0xa8] sm:$0xf]
  %v170 = vld [vmem:[%s1 + $0xac] sm:$0xf]
  %v171 = vld [vmem:[%s1 + $0xb0] sm:$0xf]
  %v172 = vld [vmem:[%s1 + $0xb4] sm:$0xf]
  %v173 = vld [vmem:[%s1 + $0xb8] sm:$0xf]
  %v174 = vld [vmem:[%s1 + $0xbc] sm:$0xf]
  %v175 = vld [vmem:[%s1 + $0xc0] sm:$0xf]
  %v176 = vld [vmem:[%s1 + $0xc4] sm:$0xf]
  %v177 = vld [vmem:[%s1 + $0xc8] sm:$0xf]
  %v178 = vld [vmem:[%s1 + $0xcc] sm:$0xf]
  %v179 = vld [vmem:[%s1 + $0xd0] sm:$0xf]
  %v180 = vld [vmem:[%s1 + $0xd4] sm:$0xf]
  %v181 = vld [vmem:[%s1 + $0xd8] sm:$0xf]
  %v182 = vld [vmem:[%s1 + $0xdc] sm:$0xf]
  %v183 = vld [vmem:[%s1 + $0xe0] sm:$0xf]
  %v184 = vld [vmem:[%s1 + $0xe4] sm:$0xf]
  %v185 = vld [vmem:[%s1 + $0xe8] sm:$0xf]
  %v186 = vld [vmem:[%s1 + $0xec] sm:$0xf]
  %v187 = vld [vmem:[%s1 + $0xf0] sm:$0xf]
  %v188 = vld [vmem:[%s1 + $0xf4] sm:$0xf]
  %v189 = vld [vmem:[%s1 + $0xf8] sm:$0xf]
  %v190 = vld [vmem:[%s1 + $0xfc] sm:$0xf]
  %v191 = vld [vmem:[%s1 + $0x100] sm:$0xf]
  %v192 = vld [vmem:[%s1 + $0x104] sm:$0xf]
  %v193 = vld [vmem:[%s1 + $0x108] sm:$0xf]
  %v194 = vld [vmem:[%s1 + $0x10c] sm:$0xf]
  %v195 = vld [vmem:[%s1 + $0x110] sm:$0xf]
  %v196 = vld [vmem:[%s1 + $0x114] sm:$0xf]
  %v197 = vld [vmem:[%s1 + $0x118] sm:$0xf]
  %v198 = vld [vmem:[%s1 + $0x11c] sm:$0xf]
  %v199 = vld [vmem:[%s1 + $0x120] sm:$0xf]
  %v200 = vld [vmem:[%s1 + $0x124] sm:$0xf]
  %v201 = vld [vmem:[%s1 + $0x128] sm:$0xf]
  %v202 = vld [vmem:[%s1 + $0x12c] sm:$0xf]
  %v203 = vld [vmem:[%s1 + $0x130] sm:$0xf]
  %v204 = vld [vmem:[%s1 + $0x134] sm:$0xf]
  %v205 = vld [vmem:[%s1 + $0x138] sm:$0xf]
  %v206 = vld [vmem:[%s1 + $0x13c] sm:$0xf]
  %v207 = vld [vmem:[%s1 + $0x140] sm:$0xf]
  %v208 = vld [vmem:[%s1 + $0x144] sm:$0xf]
  %v209 = vld [vmem:[%s1 + $0x148] sm:$0xf]
  %v210 = vld [vmem:[%s1 + $0x14c] sm:$0xf]
  %v211 = vld [vmem:[%s1 + $0x150] sm:$0xf]
  %v212 = vld [vmem:[%s1 + $0x154] sm:$0xf]
  %v213 = vld [vmem:[%s1 + $0x158] sm:$0xf]
  %v214 = vld [vmem:[%s1 + $0x15c] sm:$0xf]
  %v215 = vld [vmem:[%s1 + $0x160] sm:$0xf]
  %v216 = vld [vmem:[%s1 + $0x164] sm:$0xf]
  %v217 = vld [vmem:[%s1 + $0x168] sm:$0xf]
  %v218 = vld [vmem:[%s1 + $0x16c] sm:$0xf]
  %v219 = vld [vmem:[%s1 + $0x170] sm:$0xf]
  %v220 = vld [vmem:[%s1 + $0x174] sm:$0xf]
  %v221 = vld [vmem:[%s1 + $0x178] sm:$0xf]
  %v222 = vld [vmem:[%s1 + $0x17c] sm:$0xf]
  %v223 = vld [vmem:[%s1 + $0x180] sm:$0xf]
  %v224 = vld [vmem:[%s1 + $0x184] sm:$0xf]
  %v225 = vld [vmem:[%s1 + $0x188] sm:$0xf]
  %v226 = vld [vmem:[%s1 + $0x18c] sm:$0xf]
  %v227 = vld [vmem:[%s1 + $0x190] sm:$0xf]
  %v228 = vld [vmem:[%s1 + $0x194] sm:$0xf]
  %v229 = vld [vmem:[%s1 + $0x198] sm:$0xf]
  %v230 = vld [vmem:[%s1 + $0x19c] sm:$0xf]
  %v231 = vld [vmem:[%s1 + $0x1a0] sm:$0xf]
  %v232 = vld [vmem:[%s1 + $0x1a4] sm:$0xf]
  %v233 = vld [vmem:[%s1 + $0x1a8] sm:$0xf]
  %v234 = vld [vmem:[%s1 + $0x1ac] sm:$0xf]
  %v235 = vld [vmem:[%s1 + $0x1b0] sm:$0xf]
  %v236 = vld [vmem:[%s1 + $0x1b4] sm:$0xf]
  %v237 = vld [vmem:[%s1 + $0x1b8] sm:$0xf]
  %v238 = vld [vmem:[%s1 + $0x1bc] sm:$0xf]
  %v239 = vld [vmem:[%s1 + $0x1c0] sm:$0xf]
  %v240 = vld [vmem:[%s1 + $0x1c4] sm:$0xf]
  %v241 = vld [vmem:[%s1 + $0x1c8] sm:$0xf]
  %v242 = vld [vmem:[%s1 + $0x1cc] sm:$0xf]
  %v243 = vld [vmem:[%s1 + $0x1d0] sm:$0xf]
  %v244 = vld [vmem:[%s1 + $0x1d4] sm:$0xf]
  %v245 = vld [vmem:[%s1 + $0x1d8] sm:$0xf]
  %v246 = vld [vmem:[%s1 + $0x1dc] sm:$0xf]
  %v247 = vld [vmem:[%s1 + $0x1e0] sm:$0xf]
  %v248 = vld [vmem:[%s1 + $0x1e4] sm:$0xf]
  %v249 = vld [vmem:[%s1 + $0x1e8] sm:$0xf]
  %v250 = vld [vmem:[%s1 + $0x1ec] sm:$0xf]
  %v251 = vld [vmem:[%s1 + $0x1f0] sm:$0xf]
  %v252 = vld [vmem:[%s1 + $0x1f4] sm:$0xf]
  %v253 = vld [vmem:[%s1 + $0x1f8] sm:$0xf]
  %v254 = vld [vmem:[%s1 + $0x1fc] sm:$0xf]
  %v255 = vld [vmem:[%s1 + $0x200] sm:$0xf]
  %v256 = vld [vmem:[%s1 + $0x204] sm:$0xf]
  %v257 = vld [vmem:[%s1 + $0x208] sm:$0xf]
  %v258 = vld [vmem:[%s1 + $0x20c] sm:$0xf]
  %v259 = vld [vmem:[%s1 + $0x210] sm:$0xf]
  %v260 = vld [vmem:[%s1 + $0x214] sm:$0xf]
  %v261 = vld [vmem:[%s1 + $0x218] sm:$0xf]
  %v262 = vld [vmem:[%s1 + $0x21c] sm:$0xf]
  %v263 = vld [vmem:[%s1 + $0x220] sm:$0xf]
  %v264 = vld [vmem:[%s1 + $0x224] sm:$0xf]
  %v265 = vld [vmem:[%s1 + $0x228] sm:$0xf]
  %v266 = vld [vmem:[%s1 + $0x22c] sm:$0xf]
  %v267 = vld [vmem:[%s1 + $0x230] sm:$0xf]
  %v268 = vld [vmem:[%s1 + $0x234] sm:$0xf]
  %v269 = vld [vmem:[%s1 + $0x238] sm:$0xf]
  %v270 = vld [vmem:[%s1 + $0x23c] sm:$0xf]
  %v271 = vld [vmem:[%s1 + $0x240] sm:$0xf]
  %v272 = vld [vmem:[%s1 + $0x244] sm:$0xf]
  %v273 = vld [vmem:[%s1 + $0x248] sm:$0xf]
  %v274 = vld [vmem:[%s1 + $0x24c] sm:$0xf]
  %v275 = vld [vmem:[%s1 + $0x250] sm:$0xf]
  %v276 = vld [vmem:[%s1 + $0x254] sm:$0xf]
  %v277 = vld [vmem:[%s1 + $0x258] sm:$0xf]
  %v278 = vld [vmem:[%s1 + $0x25c] sm:$0xf]
  %v279 = vld [vmem:[%s1 + $0x260] sm:$0xf]
  %v280 = vld [vmem:[%s1 + $0x264] sm:$0xf]
  %v281 = vld [vmem:[%s1 + $0x268] sm:$0xf]
  %v282 = vld [vmem:[%s1 + $0x26c] sm:$0xf]
  %v283 = vld [vmem:[%s1 + $0x270] sm:$0xf]
  %v284 = vld [vmem:[%s1 + $0x274] sm:$0xf]
  %v285 = vld [vmem:[%s1 + $0x278] sm:$0xf]
  %v286 = vld [vmem:[%s1 + $0x27c] sm:$0xf]
  %v287 = vld [vmem:[%s1 + $0x280] sm:$0xf]
  %v288 = vld [vmem:[%s1 + $0x284] sm:$0xf]
  %v289 = vld [vmem:[%s1 + $0x288] sm:$0xf]
  %v290 = vld [vmem:[%s1 + $0x28c] sm:$0xf]
  %v291 = vld [vmem:[%s1 + $0x290] sm:$0xf]
  %v292 = vld [vmem:[%s1 + $0x294] sm:$0xf]
  %v293 = vld [vmem:[%s1 + $0x298] sm:$0xf]
  %v294 = vld [vmem:[%s1 + $0x29c] sm:$0xf]
  %v295 = vld [vmem:[%s1 + $0x2a0] sm:$0xf]
  %v296 = vld [vmem:[%s1 + $0x2a4] sm:$0xf]
  %v297 = vld [vmem:[%s1 + $0x2a8] sm:$0xf]
  %v298 = vld [vmem:[%s1 + $0x2ac] sm:$0xf]
  %v299 = vld [vmem:[%s1 + $0x2b0] sm:$0xf]
  %v300 = vld [vmem:[%s1 + $0x2b4] sm:$0xf]
  %v301 = vld [vmem:[%s1 + $0x2b8] sm:$0xf]
  %v302 = vld [vmem:[%s1 + $0x2bc] sm:$0xf]
  %v303 = vld [vmem:[%s1 + $0x2c0] sm:$0xf]
  %v304 = vld [vmem:[%s1 + $0x2c4] sm:$0xf]
  %v305 = vld [vmem:[%s1 + $0x2c8] sm:$0xf]
  %v306 = vld [vmem:[%s1 + $0x2cc] sm:$0xf]
  %v307 = vld [vmem:[%s1 + $0x2d0] sm:$0xf]
  %v308 = vld [vmem:[%s1 + $0x2d4] sm:$0xf]
  %v309 = vld [vmem:[%s1 + $0x2d8] sm:$0xf]
  %v310 = vld [vmem:[%s1 + $0x2dc] sm:$0xf]
  %v311 = vld [vmem:[%s1 + $0x2e0] sm:$0xf]
  %v312 = vld [vmem:[%s1 + $0x2e4] sm:$0xf]
  %v313 = vld [vmem:[%s1 + $0x2e8] sm:$0xf]
  %v314 = vld [vmem:[%s1 + $0x2ec] sm:$0xf]
  %v315 = vld [vmem:[%s1 + $0x2f0] sm:$0xf]
  %v316 = vld [vmem:[%s1 + $0x2f4] sm:$0xf]
  %v317 = vld [vmem:[%s1 + $0x2f8] sm:$0xf]
  %v318 = vld [vmem:[%s1 + $0x2fc] sm:$0xf]
  %v319 = vld [vmem:[%s1 + $0x300] sm:$0xf]
  %v320 = vld [vmem:[%s1 + $0x304] sm:$0xf]
  %v321 = vld [vmem:[%s1 + $0x308] sm:$0xf]
  %v322 = vld [vmem:[%s1 + $0x30c] sm:$0xf]
  %v323 = vld [vmem:[%s1 + $0x310] sm:$0xf]
  %v324 = vld [vmem:[%s1 + $0x314] sm:$0xf]
  %v325 = vld [vmem:[%s1 + $0x318] sm:$0xf]
  %v326 = vld [vmem:[%s1 + $0x31c] sm:$0xf]
  %v327 = vld [vmem:[%s2] sm:$0x1]
  %v329 = vperm.slane %v327, 0
  %v443 = vunpack.c.l.b16 %v15
  %v444 = vunpack.c.h.b16 %v15
  %v445 = vunpack.c.l.b16 %v16
  %v446 = vunpack.c.h.b16 %v16
  %v447 = vunpack.c.l.b16 %v17
  %v448 = vunpack.c.h.b16 %v17
  %v449 = vunpack.c.l.b16 %v18
  %v450 = vunpack.c.h.b16 %v18
  %v451 = vunpack.c.l.b16 %v19
  %v452 = vunpack.c.h.b16 %v19
  %v453 = vunpack.c.l.b16 %v20
  %v454 = vunpack.c.h.b16 %v20
  %v455 = vunpack.c.l.b16 %v21
  %v456 = vunpack.c.l.b16 %v22
  %v457 = vunpack.c.h.b16 %v22
  %v458 = vunpack.c.l.b16 %v23
  %v459 = vunpack.c.h.b16 %v23
  %v460 = vunpack.c.l.b16 %v24
  %v461 = vunpack.c.h.b16 %v24
  %v462 = vunpack.c.l.b16 %v25
  %v463 = vunpack.c.h.b16 %v25
  %v464 = vunpack.c.l.b16 %v26
  %v465 = vunpack.c.h.b16 %v26
  %v466 = vunpack.c.l.b16 %v27
  %v467 = vunpack.c.h.b16 %v27
  %v468 = vunpack.c.l.b16 %v28
  %v469 = vunpack.c.l.b16 %v29
  %v470 = vunpack.c.h.b16 %v29
  %v471 = vunpack.c.l.b16 %v30
  %v472 = vunpack.c.h.b16 %v30
  %v473 = vunpack.c.l.b16 %v31
  %v474 = vunpack.c.h.b16 %v31
  %v475 = vunpack.c.l.b16 %v32
  %v476 = vunpack.c.h.b16 %v32
  %v477 = vunpack.c.l.b16 %v33
  %v478 = vunpack.c.h.b16 %v33
  %v479 = vunpack.c.l.b16 %v34
  %v480 = vunpack.c.h.b16 %v34
  %v481 = vunpack.c.l.b16 %v35
  %v482 = vunpack.c.l.b16 %v36
  %v483 = vunpack.c.h.b16 %v36
  %v484 = vunpack.c.l.b16 %v37
  %v485 = vunpack.c.h.b16 %v37
  %v486 = vunpack.c.l.b16 %v38
  %v487 = vunpack.c.h.b16 %v38
  %v488 = vunpack.c.l.b16 %v39
  %v489 = vunpack.c.h.b16 %v39
  %v490 = vunpack.c.l.b16 %v40
  %v491 = vunpack.c.h.b16 %v40
  %v492 = vunpack.c.l.b16 %v41
  %v493 = vunpack.c.h.b16 %v41
  %v494 = vunpack.c.l.b16 %v42
  %v495 = vunpack.c.l.b16 %v43
  %v496 = vunpack.c.h.b16 %v43
  %v497 = vunpack.c.l.b16 %v44
  %v498 = vunpack.c.h.b16 %v44
  %v499 = vunpack.c.l.b16 %v45
  %v500 = vunpack.c.h.b16 %v45
  %v501 = vunpack.c.l.b16 %v46
  %v502 = vunpack.c.h.b16 %v46
  %v503 = vunpack.c.l.b16 %v47
  %v504 = vunpack.c.h.b16 %v47
  %v505 = vunpack.c.l.b16 %v48
  %v506 = vunpack.c.h.b16 %v48
  %v507 = vunpack.c.l.b16 %v49
  %v508 = vunpack.c.l.b16 %v50
  %v509 = vunpack.c.h.b16 %v50
  %v510 = vunpack.c.l.b16 %v51
  %v511 = vunpack.c.h.b16 %v51
  %v512 = vunpack.c.l.b16 %v52
  %v513 = vunpack.c.h.b16 %v52
  %v514 = vunpack.c.l.b16 %v53
  %v515 = vunpack.c.h.b16 %v53
  %v516 = vunpack.c.l.b16 %v54
  %v517 = vunpack.c.h.b16 %v54
  %v518 = vunpack.c.l.b16 %v55
  %v519 = vunpack.c.h.b16 %v55
  %v520 = vunpack.c.l.b16 %v56
  %v521 = vunpack.c.l.b16 %v57
  %v522 = vunpack.c.h.b16 %v57
  %v523 = vunpack.c.l.b16 %v58
  %v524 = vunpack.c.h.b16 %v58
  %v525 = vunpack.c.l.b16 %v59
  %v526 = vunpack.c.h.b16 %v59
  %v527 = vunpack.c.l.b16 %v60
  %v528 = vunpack.c.h.b16 %v60
  %v529 = vunpack.c.l.b16 %v61
  %v530 = vunpack.c.h.b16 %v61
  %v531 = vunpack.c.l.b16 %v62
  %v532 = vunpack.c.h.b16 %v62
  %v533 = vunpack.c.l.b16 %v63
  %v534 = vunpack.c.l.b16 %v64
  %v535 = vunpack.c.h.b16 %v64
  %v536 = vunpack.c.l.b16 %v65
  %v537 = vunpack.c.h.b16 %v65
  %v538 = vunpack.c.l.b16 %v66
  %v539 = vunpack.c.h.b16 %v66
  %v540 = vunpack.c.l.b16 %v67
  %v541 = vunpack.c.h.b16 %v67
  %v542 = vunpack.c.l.b16 %v68
  %v543 = vunpack.c.h.b16 %v68
  %v544 = vunpack.c.l.b16 %v69
  %v545 = vunpack.c.h.b16 %v69
  %v546 = vunpack.c.l.b16 %v70
  %v547 = vunpack.c.l.b16 %v71
  %v548 = vunpack.c.h.b16 %v71
  %v549 = vunpack.c.l.b16 %v72
  %v550 = vunpack.c.h.b16 %v72
  %v551 = vunpack.c.l.b16 %v73
  %v552 = vunpack.c.h.b16 %v73
  %v553 = vunpack.c.l.b16 %v74
  %v554 = vunpack.c.h.b16 %v74
  %v555 = vunpack.c.l.b16 %v75
  %v556 = vunpack.c.h.b16 %v75
  %v557 = vunpack.c.l.b16 %v76
  %v558 = vunpack.c.h.b16 %v76
  %v559 = vunpack.c.l.b16 %v77
  %v560 = vunpack.c.l.b16 %v78
  %v561 = vunpack.c.h.b16 %v78
  %v562 = vunpack.c.l.b16 %v79
  %v563 = vunpack.c.h.b16 %v79
  %v564 = vunpack.c.l.b16 %v80
  %v565 = vunpack.c.h.b16 %v80
  %v566 = vunpack.c.l.b16 %v81
  %v567 = vunpack.c.h.b16 %v81
  %v568 = vunpack.c.l.b16 %v82
  %v569 = vunpack.c.h.b16 %v82
  %v570 = vunpack.c.l.b16 %v83
  %v571 = vunpack.c.h.b16 %v83
  %v572 = vunpack.c.l.b16 %v84
  %v573 = vunpack.c.l.b16 %v85
  %v574 = vunpack.c.h.b16 %v85
  %v575 = vunpack.c.l.b16 %v86
  %v576 = vunpack.c.h.b16 %v86
  %v577 = vunpack.c.l.b16 %v87
  %v578 = vunpack.c.h.b16 %v87
  %v579 = vunpack.c.l.b16 %v88
  %v580 = vunpack.c.h.b16 %v88
  %v581 = vunpack.c.l.b16 %v89
  %v582 = vunpack.c.h.b16 %v89
  %v583 = vunpack.c.l.b16 %v90
  %v584 = vunpack.c.h.b16 %v90
  %v585 = vunpack.c.l.b16 %v91
  %v586 = vunpack.c.l.b16 %v92
  %v587 = vunpack.c.h.b16 %v92
  %v588 = vunpack.c.l.b16 %v93
  %v589 = vunpack.c.h.b16 %v93
  %v590 = vunpack.c.l.b16 %v94
  %v591 = vunpack.c.h.b16 %v94
  %v592 = vunpack.c.l.b16 %v95
  %v593 = vunpack.c.h.b16 %v95
  %v594 = vunpack.c.l.b16 %v96
  %v595 = vunpack.c.h.b16 %v96
  %v596 = vunpack.c.l.b16 %v97
  %v597 = vunpack.c.h.b16 %v97
  %v598 = vunpack.c.l.b16 %v98
  %v599 = vunpack.c.l.b16 %v99
  %v600 = vunpack.c.h.b16 %v99
  %v601 = vunpack.c.l.b16 %v100
  %v602 = vunpack.c.h.b16 %v100
  %v603 = vunpack.c.l.b16 %v101
  %v604 = vunpack.c.h.b16 %v101
  %v605 = vunpack.c.l.b16 %v102
  %v606 = vunpack.c.h.b16 %v102
  %v607 = vunpack.c.l.b16 %v103
  %v608 = vunpack.c.h.b16 %v103
  %v609 = vunpack.c.l.b16 %v104
  %v610 = vunpack.c.h.b16 %v104
  %v611 = vunpack.c.l.b16 %v105
  %v612 = vunpack.c.l.b16 %v106
  %v613 = vunpack.c.h.b16 %v106
  %v614 = vunpack.c.l.b16 %v107
  %v615 = vunpack.c.h.b16 %v107
  %v616 = vunpack.c.l.b16 %v108
  %v617 = vunpack.c.h.b16 %v108
  %v618 = vunpack.c.l.b16 %v109
  %v619 = vunpack.c.h.b16 %v109
  %v620 = vunpack.c.l.b16 %v110
  %v621 = vunpack.c.h.b16 %v110
  %v622 = vunpack.c.l.b16 %v111
  %v623 = vunpack.c.h.b16 %v111
  %v624 = vunpack.c.l.b16 %v112
  %v625 = vunpack.c.l.b16 %v113
  %v626 = vunpack.c.h.b16 %v113
  %v627 = vunpack.c.l.b16 %v114
  %v628 = vunpack.c.h.b16 %v114
  %v629 = vunpack.c.l.b16 %v115
  %v630 = vunpack.c.h.b16 %v115
  %v631 = vunpack.c.l.b16 %v116
  %v632 = vunpack.c.h.b16 %v116
  %v633 = vunpack.c.l.b16 %v117
  %v634 = vunpack.c.h.b16 %v117
  %v635 = vunpack.c.l.b16 %v118
  %v636 = vunpack.c.h.b16 %v118
  %v637 = vunpack.c.l.b16 %v119
  %v638 = vunpack.c.l.b16 %v120
  %v639 = vunpack.c.h.b16 %v120
  %v640 = vunpack.c.l.b16 %v121
  %v641 = vunpack.c.h.b16 %v121
  %v642 = vunpack.c.l.b16 %v122
  %v643 = vunpack.c.h.b16 %v122
  %v644 = vunpack.c.l.b16 %v123
  %v645 = vunpack.c.h.b16 %v123
  %v646 = vunpack.c.l.b16 %v124
  %v647 = vunpack.c.h.b16 %v124
  %v648 = vunpack.c.l.b16 %v125
  %v649 = vunpack.c.h.b16 %v125
  %v650 = vunpack.c.l.b16 %v126
  %v651 = vpack.c.b16 %v456, %v443
  %v652 = vpack.c.b16 %v457, %v444
  %v653 = vpack.c.b16 %v458, %v445
  %v654 = vpack.c.b16 %v459, %v446
  %v655 = vpack.c.b16 %v460, %v447
  %v656 = vpack.c.b16 %v461, %v448
  %v657 = vpack.c.b16 %v462, %v449
  %v658 = vpack.c.b16 %v463, %v450
  %v659 = vpack.c.b16 %v464, %v451
  %v660 = vpack.c.b16 %v465, %v452
  %v661 = vpack.c.b16 %v466, %v453
  %v662 = vpack.c.b16 %v467, %v454
  %v663 = vpack.c.b16 %v468, %v455
  %v664 = vpack.c.b16 %v482, %v469
  %v665 = vpack.c.b16 %v483, %v470
  %v666 = vpack.c.b16 %v484, %v471
  %v667 = vpack.c.b16 %v485, %v472
  %v668 = vpack.c.b16 %v486, %v473
  %v669 = vpack.c.b16 %v487, %v474
  %v670 = vpack.c.b16 %v488, %v475
  %v671 = vpack.c.b16 %v489, %v476
  %v672 = vpack.c.b16 %v490, %v477
  %v673 = vpack.c.b16 %v491, %v478
  %v674 = vpack.c.b16 %v492, %v479
  %v675 = vpack.c.b16 %v493, %v480
  %v676 = vpack.c.b16 %v494, %v481
  %v677 = vpack.c.b16 %v508, %v495
  %v678 = vpack.c.b16 %v509, %v496
  %v679 = vpack.c.b16 %v510, %v497
  %v680 = vpack.c.b16 %v511, %v498
  %v681 = vpack.c.b16 %v512, %v499
  %v682 = vpack.c.b16 %v513, %v500
  %v683 = vpack.c.b16 %v514, %v501
  %v684 = vpack.c.b16 %v515, %v502
  %v685 = vpack.c.b16 %v516, %v503
  %v686 = vpack.c.b16 %v517, %v504
  %v687 = vpack.c.b16 %v518, %v505
  %v688 = vpack.c.b16 %v519, %v506
  %v689 = vpack.c.b16 %v520, %v507
  %v690 = vpack.c.b16 %v534, %v521
  %v691 = vpack.c.b16 %v535, %v522
  %v692 = vpack.c.b16 %v536, %v523
  %v693 = vpack.c.b16 %v537, %v524
  %v694 = vpack.c.b16 %v538, %v525
  %v695 = vpack.c.b16 %v539, %v526
  %v696 = vpack.c.b16 %v540, %v527
  %v697 = vpack.c.b16 %v541, %v528
  %v698 = vpack.c.b16 %v542, %v529
  %v699 = vpack.c.b16 %v543, %v530
  %v700 = vpack.c.b16 %v544, %v531
  %v701 = vpack.c.b16 %v545, %v532
  %v702 = vpack.c.b16 %v546, %v533
  %v703 = vpack.c.b16 %v560, %v547
  %v704 = vpack.c.b16 %v561, %v548
  %v705 = vpack.c.b16 %v562, %v549
  %v706 = vpack.c.b16 %v563, %v550
  %v707 = vpack.c.b16 %v564, %v551
  %v708 = vpack.c.b16 %v565, %v552
  %v709 = vpack.c.b16 %v566, %v553
  %v710 = vpack.c.b16 %v567, %v554
  %v711 = vpack.c.b16 %v568, %v555
  %v712 = vpack.c.b16 %v569, %v556
  %v713 = vpack.c.b16 %v570, %v557
  %v714 = vpack.c.b16 %v571, %v558
  %v715 = vpack.c.b16 %v572, %v559
  %v716 = vpack.c.b16 %v586, %v573
  %v717 = vpack.c.b16 %v587, %v574
  %v718 = vpack.c.b16 %v588, %v575
  %v719 = vpack.c.b16 %v589, %v576
  %v720 = vpack.c.b16 %v590, %v577
  %v721 = vpack.c.b16 %v591, %v578
  %v722 = vpack.c.b16 %v592, %v579
  %v723 = vpack.c.b16 %v593, %v580
  %v724 = vpack.c.b16 %v594, %v581
  %v725 = vpack.c.b16 %v595, %v582
  %v726 = vpack.c.b16 %v596, %v583
  %v727 = vpack.c.b16 %v597, %v584
  %v728 = vpack.c.b16 %v598, %v585
  %v729 = vpack.c.b16 %v612, %v599
  %v730 = vpack.c.b16 %v613, %v600
  %v731 = vpack.c.b16 %v614, %v601
  %v732 = vpack.c.b16 %v615, %v602
  %v733 = vpack.c.b16 %v616, %v603
  %v734 = vpack.c.b16 %v617, %v604
  %v735 = vpack.c.b16 %v618, %v605
  %v736 = vpack.c.b16 %v619, %v606
  %v737 = vpack.c.b16 %v620, %v607
  %v738 = vpack.c.b16 %v621, %v608
  %v739 = vpack.c.b16 %v622, %v609
  %v740 = vpack.c.b16 %v623, %v610
  %v741 = vpack.c.b16 %v624, %v611
  %v742 = vpack.c.b16 %v638, %v625
  %v743 = vpack.c.b16 %v639, %v626
  %v744 = vpack.c.b16 %v640, %v627
  %v745 = vpack.c.b16 %v641, %v628
  %v746 = vpack.c.b16 %v642, %v629
  %v747 = vpack.c.b16 %v643, %v630
  %v748 = vpack.c.b16 %v644, %v631
  %v749 = vpack.c.b16 %v645, %v632
  %v750 = vpack.c.b16 %v646, %v633
  %v751 = vpack.c.b16 %v647, %v634
  %v752 = vpack.c.b16 %v648, %v635
  %v753 = vpack.c.b16 %v649, %v636
  %v754 = vpack.c.b16 %v650, %v637
  %v1051 = vunpack.c.l.b16 %v127
  %v1052 = vunpack.c.l.b16 %v128
  %v1053 = vunpack.c.l.b16 %v129
  %v1054 = vunpack.c.l.b16 %v130
  %v1055 = vunpack.c.l.b16 %v131
  %v1056 = vunpack.c.l.b16 %v132
  %v1057 = vunpack.c.l.b16 %v133
  %v1058 = vunpack.c.l.b16 %v134
  %v1059 = vunpack.c.l.b16 %v135
  %v1060 = vunpack.c.l.b16 %v136
  %v1061 = vunpack.c.l.b16 %v137
  %v1062 = vunpack.c.l.b16 %v138
  %v1063 = vunpack.c.l.b16 %v139
  %v1064 = vunpack.c.l.b16 %v140
  %v1065 = vunpack.c.l.b16 %v141
  %v1066 = vunpack.c.l.b16 %v142
  %v1067 = vunpack.c.l.b16 %v143
  %v1068 = vunpack.c.l.b16 %v144
  %v1069 = vunpack.c.l.b16 %v145
  %v1070 = vunpack.c.l.b16 %v146
  %v1071 = vunpack.c.l.b16 %v147
  %v1072 = vunpack.c.l.b16 %v148
  %v1073 = vunpack.c.l.b16 %v149
  %v1074 = vunpack.c.l.b16 %v150
  %v1075 = vunpack.c.l.b16 %v151
  %v1076 = vunpack.c.l.b16 %v152
  %v1077 = vunpack.c.l.b16 %v153
  %v1078 = vunpack.c.l.b16 %v154
  %v1079 = vunpack.c.l.b16 %v155
  %v1080 = vunpack.c.l.b16 %v156
  %v1081 = vunpack.c.l.b16 %v157
  %v1082 = vunpack.c.l.b16 %v158
  %v1083 = vunpack.c.l.b16 %v159
  %v1084 = vunpack.c.l.b16 %v160
  %v1085 = vunpack.c.l.b16 %v161
  %v1086 = vunpack.c.l.b16 %v162
  %v1087 = vunpack.c.l.b16 %v163
  %v1088 = vunpack.c.l.b16 %v164
  %v1089 = vunpack.c.l.b16 %v165
  %v1090 = vunpack.c.l.b16 %v166
  %v1091 = vunpack.c.l.b16 %v167
  %v1092 = vunpack.c.l.b16 %v168
  %v1093 = vunpack.c.l.b16 %v169
  %v1094 = vunpack.c.l.b16 %v170
  %v1095 = vunpack.c.l.b16 %v171
  %v1096 = vunpack.c.l.b16 %v172
  %v1097 = vunpack.c.l.b16 %v173
  %v1098 = vunpack.c.l.b16 %v174
  %v1099 = vunpack.c.l.b16 %v175
  %v1100 = vunpack.c.l.b16 %v176
  %v1101 = vunpack.c.l.b16 %v177
  %v1102 = vunpack.c.l.b16 %v178
  %v1103 = vunpack.c.l.b16 %v179
  %v1104 = vunpack.c.l.b16 %v180
  %v1105 = vunpack.c.l.b16 %v181
  %v1106 = vunpack.c.l.b16 %v182
  %v1107 = vunpack.c.l.b16 %v183
  %v1108 = vunpack.c.l.b16 %v184
  %v1109 = vunpack.c.l.b16 %v185
  %v1110 = vunpack.c.l.b16 %v186
  %v1111 = vunpack.c.l.b16 %v187
  %v1112 = vunpack.c.l.b16 %v188
  %v1113 = vunpack.c.l.b16 %v189
  %v1114 = vunpack.c.l.b16 %v190
  %v1115 = vunpack.c.l.b16 %v191
  %v1116 = vunpack.c.l.b16 %v192
  %v1117 = vunpack.c.l.b16 %v193
  %v1118 = vunpack.c.l.b16 %v194
  %v1119 = vunpack.c.l.b16 %v195
  %v1120 = vunpack.c.l.b16 %v196
  %v1121 = vunpack.c.l.b16 %v197
  %v1122 = vunpack.c.l.b16 %v198
  %v1123 = vunpack.c.l.b16 %v199
  %v1124 = vunpack.c.l.b16 %v200
  %v1125 = vunpack.c.l.b16 %v201
  %v1126 = vunpack.c.l.b16 %v202
  %v1127 = vunpack.c.l.b16 %v203
  %v1128 = vunpack.c.l.b16 %v204
  %v1129 = vunpack.c.l.b16 %v205
  %v1130 = vunpack.c.l.b16 %v206
  %v1131 = vunpack.c.l.b16 %v207
  %v1132 = vunpack.c.l.b16 %v208
  %v1133 = vunpack.c.l.b16 %v209
  %v1134 = vunpack.c.l.b16 %v210
  %v1135 = vunpack.c.l.b16 %v211
  %v1136 = vunpack.c.l.b16 %v212
  %v1137 = vunpack.c.l.b16 %v213
  %v1138 = vunpack.c.l.b16 %v214
  %v1139 = vunpack.c.l.b16 %v215
  %v1140 = vunpack.c.l.b16 %v216
  %v1141 = vunpack.c.l.b16 %v217
  %v1142 = vunpack.c.l.b16 %v218
  %v1143 = vunpack.c.l.b16 %v219
  %v1144 = vunpack.c.l.b16 %v220
  %v1145 = vunpack.c.l.b16 %v221
  %v1146 = vunpack.c.l.b16 %v222
  %v1147 = vunpack.c.l.b16 %v223
  %v1148 = vunpack.c.l.b16 %v224
  %v1149 = vunpack.c.l.b16 %v225
  %v1150 = vunpack.c.l.b16 %v226
  %v1151 = vunpack.c.l.b16 %v227
  %v1152 = vunpack.c.l.b16 %v228
  %v1153 = vunpack.c.l.b16 %v229
  %v1154 = vunpack.c.l.b16 %v230
  %v1155 = vunpack.c.l.b16 %v231
  %v1156 = vunpack.c.l.b16 %v232
  %v1157 = vunpack.c.l.b16 %v233
  %v1158 = vunpack.c.l.b16 %v234
  %v1159 = vunpack.c.l.b16 %v235
  %v1160 = vunpack.c.l.b16 %v236
  %v1161 = vunpack.c.l.b16 %v237
  %v1162 = vunpack.c.l.b16 %v238
  %v1163 = vunpack.c.l.b16 %v239
  %v1164 = vunpack.c.l.b16 %v240
  %v1165 = vunpack.c.l.b16 %v241
  %v1166 = vunpack.c.l.b16 %v242
  %v1167 = vunpack.c.l.b16 %v243
  %v1168 = vunpack.c.l.b16 %v244
  %v1169 = vunpack.c.l.b16 %v245
  %v1170 = vunpack.c.l.b16 %v246
  %v1171 = vunpack.c.l.b16 %v247
  %v1172 = vunpack.c.l.b16 %v248
  %v1173 = vunpack.c.l.b16 %v249
  %v1174 = vunpack.c.l.b16 %v250
  %v1175 = vunpack.c.l.b16 %v251
  %v1176 = vunpack.c.l.b16 %v252
  %v1177 = vunpack.c.l.b16 %v253
  %v1178 = vunpack.c.l.b16 %v254
  %v1179 = vunpack.c.l.b16 %v255
  %v1180 = vunpack.c.l.b16 %v256
  %v1181 = vunpack.c.l.b16 %v257
  %v1182 = vunpack.c.l.b16 %v258
  %v1183 = vunpack.c.l.b16 %v259
  %v1184 = vunpack.c.l.b16 %v260
  %v1185 = vunpack.c.l.b16 %v261
  %v1186 = vunpack.c.l.b16 %v262
  %v1187 = vunpack.c.l.b16 %v263
  %v1188 = vunpack.c.l.b16 %v264
  %v1189 = vunpack.c.l.b16 %v265
  %v1190 = vunpack.c.l.b16 %v266
  %v1191 = vunpack.c.l.b16 %v267
  %v1192 = vunpack.c.l.b16 %v268
  %v1193 = vunpack.c.l.b16 %v269
  %v1194 = vunpack.c.l.b16 %v270
  %v1195 = vunpack.c.l.b16 %v271
  %v1196 = vunpack.c.l.b16 %v272
  %v1197 = vunpack.c.l.b16 %v273
  %v1198 = vunpack.c.l.b16 %v274
  %v1199 = vunpack.c.l.b16 %v275
  %v1200 = vunpack.c.l.b16 %v276
  %v1201 = vunpack.c.l.b16 %v277
  %v1202 = vunpack.c.l.b16 %v278
  %v1203 = vunpack.c.l.b16 %v279
  %v1204 = vunpack.c.l.b16 %v280
  %v1205 = vunpack.c.l.b16 %v281
  %v1206 = vunpack.c.l.b16 %v282
  %v1207 = vunpack.c.l.b16 %v283
  %v1208 = vunpack.c.l.b16 %v284
  %v1209 = vunpack.c.l.b16 %v285
  %v1210 = vunpack.c.l.b16 %v286
  %v1211 = vunpack.c.l.b16 %v287
  %v1212 = vunpack.c.l.b16 %v288
  %v1213 = vunpack.c.l.b16 %v289
  %v1214 = vunpack.c.l.b16 %v290
  %v1215 = vunpack.c.l.b16 %v291
  %v1216 = vunpack.c.l.b16 %v292
  %v1217 = vunpack.c.l.b16 %v293
  %v1218 = vunpack.c.l.b16 %v294
  %v1219 = vunpack.c.l.b16 %v295
  %v1220 = vunpack.c.l.b16 %v296
  %v1221 = vunpack.c.l.b16 %v297
  %v1222 = vunpack.c.l.b16 %v298
  %v1223 = vunpack.c.l.b16 %v299
  %v1224 = vunpack.c.l.b16 %v300
  %v1225 = vunpack.c.l.b16 %v301
  %v1226 = vunpack.c.l.b16 %v302
  %v1227 = vunpack.c.l.b16 %v303
  %v1228 = vunpack.c.l.b16 %v304
  %v1229 = vunpack.c.l.b16 %v305
  %v1230 = vunpack.c.l.b16 %v306
  %v1231 = vunpack.c.l.b16 %v307
  %v1232 = vunpack.c.l.b16 %v308
  %v1233 = vunpack.c.l.b16 %v309
  %v1234 = vunpack.c.l.b16 %v310
  %v1235 = vunpack.c.l.b16 %v311
  %v1236 = vunpack.c.l.b16 %v312
  %v1237 = vunpack.c.l.b16 %v313
  %v1238 = vunpack.c.l.b16 %v314
  %v1239 = vunpack.c.l.b16 %v315
  %v1240 = vunpack.c.l.b16 %v316
  %v1241 = vunpack.c.l.b16 %v317
  %v1242 = vunpack.c.l.b16 %v318
  %v1243 = vunpack.c.l.b16 %v319
  %v1244 = vunpack.c.l.b16 %v320
  %v1245 = vunpack.c.l.b16 %v321
  %v1246 = vunpack.c.l.b16 %v322
  %v1247 = vunpack.c.l.b16 %v323
  %v1248 = vunpack.c.l.b16 %v324
  %v1249 = vunpack.c.l.b16 %v325
  %v1250 = vunpack.c.l.b16 %v326
  %v1251 = vpack.c.b16 %v1052, %v1051
  %v1252 = vpack.c.b16 %v1054, %v1053
  %v1253 = vpack.c.b16 %v1056, %v1055
  %v1254 = vpack.c.b16 %v1058, %v1057
  %v1255 = vpack.c.b16 %v1060, %v1059
  %v1256 = vpack.c.b16 %v1062, %v1061
  %v1257 = vpack.c.b16 %v1064, %v1063
  %v1258 = vpack.c.b16 %v1066, %v1065
  %v1259 = vpack.c.b16 %v1068, %v1067
  %v1260 = vpack.c.b16 %v1070, %v1069
  %v1261 = vpack.c.b16 %v1072, %v1071
  %v1262 = vpack.c.b16 %v1074, %v1073
  %v1263 = vpack.c.b16 %v1076, %v1075
  %v1264 = vpack.c.b16 %v1078, %v1077
  %v1265 = vpack.c.b16 %v1080, %v1079
  %v1266 = vpack.c.b16 %v1082, %v1081
  %v1267 = vpack.c.b16 %v1084, %v1083
  %v1268 = vpack.c.b16 %v1086, %v1085
  %v1269 = vpack.c.b16 %v1088, %v1087
  %v1270 = vpack.c.b16 %v1090, %v1089
  %v1271 = vpack.c.b16 %v1092, %v1091
  %v1272 = vpack.c.b16 %v1094, %v1093
  %v1273 = vpack.c.b16 %v1096, %v1095
  %v1274 = vpack.c.b16 %v1098, %v1097
  %v1275 = vpack.c.b16 %v1100, %v1099
  %v1276 = vpack.c.b16 %v1102, %v1101
  %v1277 = vpack.c.b16 %v1104, %v1103
  %v1278 = vpack.c.b16 %v1106, %v1105
  %v1279 = vpack.c.b16 %v1108, %v1107
  %v1280 = vpack.c.b16 %v1110, %v1109
  %v1281 = vpack.c.b16 %v1112, %v1111
  %v1282 = vpack.c.b16 %v1114, %v1113
  %v1283 = vpack.c.b16 %v1116, %v1115
  %v1284 = vpack.c.b16 %v1118, %v1117
  %v1285 = vpack.c.b16 %v1120, %v1119
  %v1286 = vpack.c.b16 %v1122, %v1121
  %v1287 = vpack.c.b16 %v1124, %v1123
  %v1288 = vpack.c.b16 %v1126, %v1125
  %v1289 = vpack.c.b16 %v1128, %v1127
  %v1290 = vpack.c.b16 %v1130, %v1129
  %v1291 = vpack.c.b16 %v1132, %v1131
  %v1292 = vpack.c.b16 %v1134, %v1133
  %v1293 = vpack.c.b16 %v1136, %v1135
  %v1294 = vpack.c.b16 %v1138, %v1137
  %v1295 = vpack.c.b16 %v1140, %v1139
  %v1296 = vpack.c.b16 %v1142, %v1141
  %v1297 = vpack.c.b16 %v1144, %v1143
  %v1298 = vpack.c.b16 %v1146, %v1145
  %v1299 = vpack.c.b16 %v1148, %v1147
  %v1300 = vpack.c.b16 %v1150, %v1149
  %v1301 = vpack.c.b16 %v1152, %v1151
  %v1302 = vpack.c.b16 %v1154, %v1153
  %v1303 = vpack.c.b16 %v1156, %v1155
  %v1304 = vpack.c.b16 %v1158, %v1157
  %v1305 = vpack.c.b16 %v1160, %v1159
  %v1306 = vpack.c.b16 %v1162, %v1161
  %v1307 = vpack.c.b16 %v1164, %v1163
  %v1308 = vpack.c.b16 %v1166, %v1165
  %v1309 = vpack.c.b16 %v1168, %v1167
  %v1310 = vpack.c.b16 %v1170, %v1169
  %v1311 = vpack.c.b16 %v1172, %v1171
  %v1312 = vpack.c.b16 %v1174, %v1173
  %v1313 = vpack.c.b16 %v1176, %v1175
  %v1314 = vpack.c.b16 %v1178, %v1177
  %v1315 = vpack.c.b16 %v1180, %v1179
  %v1316 = vpack.c.b16 %v1182, %v1181
  %v1317 = vpack.c.b16 %v1184, %v1183
  %v1318 = vpack.c.b16 %v1186, %v1185
  %v1319 = vpack.c.b16 %v1188, %v1187
  %v1320 = vpack.c.b16 %v1190, %v1189
  %v1321 = vpack.c.b16 %v1192, %v1191
  %v1322 = vpack.c.b16 %v1194, %v1193
  %v1323 = vpack.c.b16 %v1196, %v1195
  %v1324 = vpack.c.b16 %v1198, %v1197
  %v1325 = vpack.c.b16 %v1200, %v1199
  %v1326 = vpack.c.b16 %v1202, %v1201
  %v1327 = vpack.c.b16 %v1204, %v1203
  %v1328 = vpack.c.b16 %v1206, %v1205
  %v1329 = vpack.c.b16 %v1208, %v1207
  %v1330 = vpack.c.b16 %v1210, %v1209
  %v1331 = vpack.c.b16 %v1212, %v1211
  %v1332 = vpack.c.b16 %v1214, %v1213
  %v1333 = vpack.c.b16 %v1216, %v1215
  %v1334 = vpack.c.b16 %v1218, %v1217
  %v1335 = vpack.c.b16 %v1220, %v1219
  %v1336 = vpack.c.b16 %v1222, %v1221
  %v1337 = vpack.c.b16 %v1224, %v1223
  %v1338 = vpack.c.b16 %v1226, %v1225
  %v1339 = vpack.c.b16 %v1228, %v1227
  %v1340 = vpack.c.b16 %v1230, %v1229
  %v1341 = vpack.c.b16 %v1232, %v1231
  %v1342 = vpack.c.b16 %v1234, %v1233
  %v1343 = vpack.c.b16 %v1236, %v1235
  %v1344 = vpack.c.b16 %v1238, %v1237
  %v1345 = vpack.c.b16 %v1240, %v1239
  %v1346 = vpack.c.b16 %v1242, %v1241
  %v1347 = vpack.c.b16 %v1244, %v1243
  %v1348 = vpack.c.b16 %v1246, %v1245
  %v1349 = vpack.c.b16 %v1248, %v1247
  %v1350 = vpack.c.b16 %v1250, %v1249
  %vm1451 = vcmask 523264
  %v1453 = vsel %vm1451, %v663, 0
  %v1456 = vsel %vm1451, %v676, 0
  %v1459 = vsel %vm1451, %v689, 0
  %v1462 = vsel %vm1451, %v702, 0
  %v1465 = vsel %vm1451, %v715, 0
  %v1468 = vsel %vm1451, %v728, 0
  %v1471 = vsel %vm1451, %v741, 0
  %v1474 = vsel %vm1451, %v754, 0
  %1476 = vmatpush.bf16.msra.mxu0 %v1258
  %1477 = vmatpush.bf16.msra.mxu0 %v1257
  %1478 = vmatpush.bf16.msra.mxu0 %v1256
  %1479 = vmatpush.bf16.msra.mxu0 %v1255
  %1480 = vmatpush.bf16.msra.mxu0 %v1254
  %1481 = vmatpush.bf16.msra.mxu0 %v1253
  %1482 = vmatpush.bf16.msra.mxu0 %v1252
  %1483 = vmatpush.bf16.msra.mxu0 %v1251
  %1484 = vmatmul.bf16.gmra.mxu0 %v651
  %v1485 = vpop.f32.mrf.mxu0
  %v1486 = vadd.f32 %v329, %v1485
  %v1487 = vpop.f32.mrf.mxu0
  %v1488 = vadd.f32 %v329, %v1487
  %1489 = vmatmul.bf16.gmra.mxu0 %v664
  %v1490 = vpop.f32.mrf.mxu0
  %v1491 = vadd.f32 %v329, %v1490
  %v1492 = vpop.f32.mrf.mxu0
  %v1493 = vadd.f32 %v329, %v1492
  %1494 = vmatmul.bf16.gmra.mxu0 %v677
  %v1495 = vpop.f32.mrf.mxu0
  %v1496 = vadd.f32 %v329, %v1495
  %v1497 = vpop.f32.mrf.mxu0
  %v1498 = vadd.f32 %v329, %v1497
  %1499 = vmatmul.bf16.gmra.mxu0 %v690
  %v1500 = vpop.f32.mrf.mxu0
  %v1501 = vadd.f32 %v329, %v1500
  %v1502 = vpop.f32.mrf.mxu0
  %v1503 = vadd.f32 %v329, %v1502
  %1504 = vmatmul.bf16.gmra.mxu0 %v703
  %v1505 = vpop.f32.mrf.mxu0
  %v1506 = vadd.f32 %v329, %v1505
  %v1507 = vpop.f32.mrf.mxu0
  %v1508 = vadd.f32 %v329, %v1507
  %1509 = vmatmul.bf16.gmra.mxu0 %v716
  %v1510 = vpop.f32.mrf.mxu0
  %v1511 = vadd.f32 %v329, %v1510
  %v1512 = vpop.f32.mrf.mxu0
  %v1513 = vadd.f32 %v329, %v1512
  %1514 = vmatmul.bf16.gmra.mxu0 %v729
  %v1515 = vpop.f32.mrf.mxu0
  %v1516 = vadd.f32 %v329, %v1515
  %v1517 = vpop.f32.mrf.mxu0
  %v1518 = vadd.f32 %v329, %v1517
  %1519 = vmatmul.bf16.gmra.mxu0 %v742
  %v1520 = vpop.f32.mrf.mxu0
  %v1521 = vadd.f32 %v329, %v1520
  %v1522 = vpop.f32.mrf.mxu0
  %v1523 = vadd.f32 %v329, %v1522
  %1524 = vdwg.mxu0
  %1525 = vmatpush.bf16.msra.mxu0 %v1266
  %1526 = vmatpush.bf16.msra.mxu0 %v1265
  %1527 = vmatpush.bf16.msra.mxu0 %v1264
  %1528 = vmatpush.bf16.msra.mxu0 %v1263
  %1529 = vmatpush.bf16.msra.mxu0 %v1262
  %1530 = vmatpush.bf16.msra.mxu0 %v1261
  %1531 = vmatpush.bf16.msra.mxu0 %v1260
  %1532 = vmatpush.bf16.msra.mxu0 %v1259
  %1533 = vmatmul.bf16.gmra.mxu0 %v652
  %v1534 = vpop.f32.mrf.mxu0
  %v1535 = vadd.f32 %v1486, %v1534
  %v1536 = vpop.f32.mrf.mxu0
  %v1537 = vadd.f32 %v1488, %v1536
  %1538 = vmatmul.bf16.gmra.mxu0 %v665
  %v1539 = vpop.f32.mrf.mxu0
  %v1540 = vadd.f32 %v1491, %v1539
  %v1541 = vpop.f32.mrf.mxu0
  %v1542 = vadd.f32 %v1493, %v1541
  %1543 = vmatmul.bf16.gmra.mxu0 %v678
  %v1544 = vpop.f32.mrf.mxu0
  %v1545 = vadd.f32 %v1496, %v1544
  %v1546 = vpop.f32.mrf.mxu0
  %v1547 = vadd.f32 %v1498, %v1546
  %1548 = vmatmul.bf16.gmra.mxu0 %v691
  %v1549 = vpop.f32.mrf.mxu0
  %v1550 = vadd.f32 %v1501, %v1549
  %v1551 = vpop.f32.mrf.mxu0
  %v1552 = vadd.f32 %v1503, %v1551
  %1553 = vmatmul.bf16.gmra.mxu0 %v704
  %v1554 = vpop.f32.mrf.mxu0
  %v1555 = vadd.f32 %v1506, %v1554
  %v1556 = vpop.f32.mrf.mxu0
  %v1557 = vadd.f32 %v1508, %v1556
  %1558 = vmatmul.bf16.gmra.mxu0 %v717
  %v1559 = vpop.f32.mrf.mxu0
  %v1560 = vadd.f32 %v1511, %v1559
  %v1561 = vpop.f32.mrf.mxu0
  %v1562 = vadd.f32 %v1513, %v1561
  %1563 = vmatmul.bf16.gmra.mxu0 %v730
  %v1564 = vpop.f32.mrf.mxu0
  %v1565 = vadd.f32 %v1516, %v1564
  %v1566 = vpop.f32.mrf.mxu0
  %v1567 = vadd.f32 %v1518, %v1566
  %1568 = vmatmul.bf16.gmra.mxu0 %v743
  %v1569 = vpop.f32.mrf.mxu0
  %v1570 = vadd.f32 %v1521, %v1569
  %v1571 = vpop.f32.mrf.mxu0
  %v1572 = vadd.f32 %v1523, %v1571
  %1573 = vdwg.mxu0
  %1574 = vmatpush.bf16.msra.mxu0 %v1274
  %1575 = vmatpush.bf16.msra.mxu0 %v1273
  %1576 = vmatpush.bf16.msra.mxu0 %v1272
  %1577 = vmatpush.bf16.msra.mxu0 %v1271
  %1578 = vmatpush.bf16.msra.mxu0 %v1270
  %1579 = vmatpush.bf16.msra.mxu0 %v1269
  %1580 = vmatpush.bf16.msra.mxu0 %v1268
  %1581 = vmatpush.bf16.msra.mxu0 %v1267
  %1582 = vmatmul.bf16.gmra.mxu0 %v653
  %v1583 = vpop.f32.mrf.mxu0
  %v1584 = vadd.f32 %v1535, %v1583
  %v1585 = vpop.f32.mrf.mxu0
  %v1586 = vadd.f32 %v1537, %v1585
  %1587 = vmatmul.bf16.gmra.mxu0 %v666
  %v1588 = vpop.f32.mrf.mxu0
  %v1589 = vadd.f32 %v1540, %v1588
  %v1590 = vpop.f32.mrf.mxu0
  %v1591 = vadd.f32 %v1542, %v1590
  %1592 = vmatmul.bf16.gmra.mxu0 %v679
  %v1593 = vpop.f32.mrf.mxu0
  %v1594 = vadd.f32 %v1545, %v1593
  %v1595 = vpop.f32.mrf.mxu0
  %v1596 = vadd.f32 %v1547, %v1595
  %1597 = vmatmul.bf16.gmra.mxu0 %v692
  %v1598 = vpop.f32.mrf.mxu0
  %v1599 = vadd.f32 %v1550, %v1598
  %v1600 = vpop.f32.mrf.mxu0
  %v1601 = vadd.f32 %v1552, %v1600
  %1602 = vmatmul.bf16.gmra.mxu0 %v705
  %v1603 = vpop.f32.mrf.mxu0
  %v1604 = vadd.f32 %v1555, %v1603
  %v1605 = vpop.f32.mrf.mxu0
  %v1606 = vadd.f32 %v1557, %v1605
  %1607 = vmatmul.bf16.gmra.mxu0 %v718
  %v1608 = vpop.f32.mrf.mxu0
  %v1609 = vadd.f32 %v1560, %v1608
  %v1610 = vpop.f32.mrf.mxu0
  %v1611 = vadd.f32 %v1562, %v1610
  %1612 = vmatmul.bf16.gmra.mxu0 %v731
  %v1613 = vpop.f32.mrf.mxu0
  %v1614 = vadd.f32 %v1565, %v1613
  %v1615 = vpop.f32.mrf.mxu0
  %v1616 = vadd.f32 %v1567, %v1615
  %1617 = vmatmul.bf16.gmra.mxu0 %v744
  %v1618 = vpop.f32.mrf.mxu0
  %v1619 = vadd.f32 %v1570, %v1618
  %v1620 = vpop.f32.mrf.mxu0
  %v1621 = vadd.f32 %v1572, %v1620
  %1622 = vdwg.mxu0
  %1623 = vmatpush.bf16.msra.mxu0 %v1282
  %1624 = vmatpush.bf16.msra.mxu0 %v1281
  %1625 = vmatpush.bf16.msra.mxu0 %v1280
  %1626 = vmatpush.bf16.msra.mxu0 %v1279
  %1627 = vmatpush.bf16.msra.mxu0 %v1278
  %1628 = vmatpush.bf16.msra.mxu0 %v1277
  %1629 = vmatpush.bf16.msra.mxu0 %v1276
  %1630 = vmatpush.bf16.msra.mxu0 %v1275
  %1631 = vmatmul.bf16.gmra.mxu0 %v654
  %v1632 = vpop.f32.mrf.mxu0
  %v1633 = vadd.f32 %v1584, %v1632
  %v1634 = vpop.f32.mrf.mxu0
  %v1635 = vadd.f32 %v1586, %v1634
  %1636 = vmatmul.bf16.gmra.mxu0 %v667
  %v1637 = vpop.f32.mrf.mxu0
  %v1638 = vadd.f32 %v1589, %v1637
  %v1639 = vpop.f32.mrf.mxu0
  %v1640 = vadd.f32 %v1591, %v1639
  %1641 = vmatmul.bf16.gmra.mxu0 %v680
  %v1642 = vpop.f32.mrf.mxu0
  %v1643 = vadd.f32 %v1594, %v1642
  %v1644 = vpop.f32.mrf.mxu0
  %v1645 = vadd.f32 %v1596, %v1644
  %1646 = vmatmul.bf16.gmra.mxu0 %v693
  %v1647 = vpop.f32.mrf.mxu0
  %v1648 = vadd.f32 %v1599, %v1647
  %v1649 = vpop.f32.mrf.mxu0
  %v1650 = vadd.f32 %v1601, %v1649
  %1651 = vmatmul.bf16.gmra.mxu0 %v706
  %v1652 = vpop.f32.mrf.mxu0
  %v1653 = vadd.f32 %v1604, %v1652
  %v1654 = vpop.f32.mrf.mxu0
  %v1655 = vadd.f32 %v1606, %v1654
  %1656 = vmatmul.bf16.gmra.mxu0 %v719
  %v1657 = vpop.f32.mrf.mxu0
  %v1658 = vadd.f32 %v1609, %v1657
  %v1659 = vpop.f32.mrf.mxu0
  %v1660 = vadd.f32 %v1611, %v1659
  %1661 = vmatmul.bf16.gmra.mxu0 %v732
  %v1662 = vpop.f32.mrf.mxu0
  %v1663 = vadd.f32 %v1614, %v1662
  %v1664 = vpop.f32.mrf.mxu0
  %v1665 = vadd.f32 %v1616, %v1664
  %1666 = vmatmul.bf16.gmra.mxu0 %v745
  %v1667 = vpop.f32.mrf.mxu0
  %v1668 = vadd.f32 %v1619, %v1667
  %v1669 = vpop.f32.mrf.mxu0
  %v1670 = vadd.f32 %v1621, %v1669
  %1671 = vdwg.mxu0
  %1672 = vmatpush.bf16.msra.mxu0 %v1290
  %1673 = vmatpush.bf16.msra.mxu0 %v1289
  %1674 = vmatpush.bf16.msra.mxu0 %v1288
  %1675 = vmatpush.bf16.msra.mxu0 %v1287
  %1676 = vmatpush.bf16.msra.mxu0 %v1286
  %1677 = vmatpush.bf16.msra.mxu0 %v1285
  %1678 = vmatpush.bf16.msra.mxu0 %v1284
  %1679 = vmatpush.bf16.msra.mxu0 %v1283
  %1680 = vmatmul.bf16.gmra.mxu0 %v655
  %v1681 = vpop.f32.mrf.mxu0
  %v1682 = vadd.f32 %v1633, %v1681
  %v1683 = vpop.f32.mrf.mxu0
  %v1684 = vadd.f32 %v1635, %v1683
  %1685 = vmatmul.bf16.gmra.mxu0 %v668
  %v1686 = vpop.f32.mrf.mxu0
  %v1687 = vadd.f32 %v1638, %v1686
  %v1688 = vpop.f32.mrf.mxu0
  %v1689 = vadd.f32 %v1640, %v1688
  %1690 = vmatmul.bf16.gmra.mxu0 %v681
  %v1691 = vpop.f32.mrf.mxu0
  %v1692 = vadd.f32 %v1643, %v1691
  %v1693 = vpop.f32.mrf.mxu0
  %v1694 = vadd.f32 %v1645, %v1693
  %1695 = vmatmul.bf16.gmra.mxu0 %v694
  %v1696 = vpop.f32.mrf.mxu0
  %v1697 = vadd.f32 %v1648, %v1696
  %v1698 = vpop.f32.mrf.mxu0
  %v1699 = vadd.f32 %v1650, %v1698
  %1700 = vmatmul.bf16.gmra.mxu0 %v707
  %v1701 = vpop.f32.mrf.mxu0
  %v1702 = vadd.f32 %v1653, %v1701
  %v1703 = vpop.f32.mrf.mxu0
  %v1704 = vadd.f32 %v1655, %v1703
  %1705 = vmatmul.bf16.gmra.mxu0 %v720
  %v1706 = vpop.f32.mrf.mxu0
  %v1707 = vadd.f32 %v1658, %v1706
  %v1708 = vpop.f32.mrf.mxu0
  %v1709 = vadd.f32 %v1660, %v1708
  %1710 = vmatmul.bf16.gmra.mxu0 %v733
  %v1711 = vpop.f32.mrf.mxu0
  %v1712 = vadd.f32 %v1663, %v1711
  %v1713 = vpop.f32.mrf.mxu0
  %v1714 = vadd.f32 %v1665, %v1713
  %1715 = vmatmul.bf16.gmra.mxu0 %v746
  %v1716 = vpop.f32.mrf.mxu0
  %v1717 = vadd.f32 %v1668, %v1716
  %v1718 = vpop.f32.mrf.mxu0
  %v1719 = vadd.f32 %v1670, %v1718
  %1720 = vdwg.mxu0
  %1721 = vmatpush.bf16.msra.mxu0 %v1298
  %1722 = vmatpush.bf16.msra.mxu0 %v1297
  %1723 = vmatpush.bf16.msra.mxu0 %v1296
  %1724 = vmatpush.bf16.msra.mxu0 %v1295
  %1725 = vmatpush.bf16.msra.mxu0 %v1294
  %1726 = vmatpush.bf16.msra.mxu0 %v1293
  %1727 = vmatpush.bf16.msra.mxu0 %v1292
  %1728 = vmatpush.bf16.msra.mxu0 %v1291
  %1729 = vmatmul.bf16.gmra.mxu0 %v656
  %v1730 = vpop.f32.mrf.mxu0
  %v1731 = vadd.f32 %v1682, %v1730
  %v1732 = vpop.f32.mrf.mxu0
  %v1733 = vadd.f32 %v1684, %v1732
  %1734 = vmatmul.bf16.gmra.mxu0 %v669
  %v1735 = vpop.f32.mrf.mxu0
  %v1736 = vadd.f32 %v1687, %v1735
  %v1737 = vpop.f32.mrf.mxu0
  %v1738 = vadd.f32 %v1689, %v1737
  %1739 = vmatmul.bf16.gmra.mxu0 %v682
  %v1740 = vpop.f32.mrf.mxu0
  %v1741 = vadd.f32 %v1692, %v1740
  %v1742 = vpop.f32.mrf.mxu0
  %v1743 = vadd.f32 %v1694, %v1742
  %1744 = vmatmul.bf16.gmra.mxu0 %v695
  %v1745 = vpop.f32.mrf.mxu0
  %v1746 = vadd.f32 %v1697, %v1745
  %v1747 = vpop.f32.mrf.mxu0
  %v1748 = vadd.f32 %v1699, %v1747
  %1749 = vmatmul.bf16.gmra.mxu0 %v708
  %v1750 = vpop.f32.mrf.mxu0
  %v1751 = vadd.f32 %v1702, %v1750
  %v1752 = vpop.f32.mrf.mxu0
  %v1753 = vadd.f32 %v1704, %v1752
  %1754 = vmatmul.bf16.gmra.mxu0 %v721
  %v1755 = vpop.f32.mrf.mxu0
  %v1756 = vadd.f32 %v1707, %v1755
  %v1757 = vpop.f32.mrf.mxu0
  %v1758 = vadd.f32 %v1709, %v1757
  %1759 = vmatmul.bf16.gmra.mxu0 %v734
  %v1760 = vpop.f32.mrf.mxu0
  %v1761 = vadd.f32 %v1712, %v1760
  %v1762 = vpop.f32.mrf.mxu0
  %v1763 = vadd.f32 %v1714, %v1762
  %1764 = vmatmul.bf16.gmra.mxu0 %v747
  %v1765 = vpop.f32.mrf.mxu0
  %v1766 = vadd.f32 %v1717, %v1765
  %v1767 = vpop.f32.mrf.mxu0
  %v1768 = vadd.f32 %v1719, %v1767
  %1769 = vdwg.mxu0
  %1770 = vmatpush.bf16.msra.mxu0 %v1306
  %1771 = vmatpush.bf16.msra.mxu0 %v1305
  %1772 = vmatpush.bf16.msra.mxu0 %v1304
  %1773 = vmatpush.bf16.msra.mxu0 %v1303
  %1774 = vmatpush.bf16.msra.mxu0 %v1302
  %1775 = vmatpush.bf16.msra.mxu0 %v1301
  %1776 = vmatpush.bf16.msra.mxu0 %v1300
  %1777 = vmatpush.bf16.msra.mxu0 %v1299
  %1778 = vmatmul.bf16.gmra.mxu0 %v657
  %v1779 = vpop.f32.mrf.mxu0
  %v1780 = vadd.f32 %v1731, %v1779
  %v1781 = vpop.f32.mrf.mxu0
  %v1782 = vadd.f32 %v1733, %v1781
  %1783 = vmatmul.bf16.gmra.mxu0 %v670
  %v1784 = vpop.f32.mrf.mxu0
  %v1785 = vadd.f32 %v1736, %v1784
  %v1786 = vpop.f32.mrf.mxu0
  %v1787 = vadd.f32 %v1738, %v1786
  %1788 = vmatmul.bf16.gmra.mxu0 %v683
  %v1789 = vpop.f32.mrf.mxu0
  %v1790 = vadd.f32 %v1741, %v1789
  %v1791 = vpop.f32.mrf.mxu0
  %v1792 = vadd.f32 %v1743, %v1791
  %1793 = vmatmul.bf16.gmra.mxu0 %v696
  %v1794 = vpop.f32.mrf.mxu0
  %v1795 = vadd.f32 %v1746, %v1794
  %v1796 = vpop.f32.mrf.mxu0
  %v1797 = vadd.f32 %v1748, %v1796
  %1798 = vmatmul.bf16.gmra.mxu0 %v709
  %v1799 = vpop.f32.mrf.mxu0
  %v1800 = vadd.f32 %v1751, %v1799
  %v1801 = vpop.f32.mrf.mxu0
  %v1802 = vadd.f32 %v1753, %v1801
  %1803 = vmatmul.bf16.gmra.mxu0 %v722
  %v1804 = vpop.f32.mrf.mxu0
  %v1805 = vadd.f32 %v1756, %v1804
  %v1806 = vpop.f32.mrf.mxu0
  %v1807 = vadd.f32 %v1758, %v1806
  %1808 = vmatmul.bf16.gmra.mxu0 %v735
  %v1809 = vpop.f32.mrf.mxu0
  %v1810 = vadd.f32 %v1761, %v1809
  %v1811 = vpop.f32.mrf.mxu0
  %v1812 = vadd.f32 %v1763, %v1811
  %1813 = vmatmul.bf16.gmra.mxu0 %v748
  %v1814 = vpop.f32.mrf.mxu0
  %v1815 = vadd.f32 %v1766, %v1814
  %v1816 = vpop.f32.mrf.mxu0
  %v1817 = vadd.f32 %v1768, %v1816
  %1818 = vdwg.mxu0
  %1819 = vmatpush.bf16.msra.mxu0 %v1314
  %1820 = vmatpush.bf16.msra.mxu0 %v1313
  %1821 = vmatpush.bf16.msra.mxu0 %v1312
  %1822 = vmatpush.bf16.msra.mxu0 %v1311
  %1823 = vmatpush.bf16.msra.mxu0 %v1310
  %1824 = vmatpush.bf16.msra.mxu0 %v1309
  %1825 = vmatpush.bf16.msra.mxu0 %v1308
  %1826 = vmatpush.bf16.msra.mxu0 %v1307
  %1827 = vmatmul.bf16.gmra.mxu0 %v658
  %v1828 = vpop.f32.mrf.mxu0
  %v1829 = vadd.f32 %v1780, %v1828
  %v1830 = vpop.f32.mrf.mxu0
  %v1831 = vadd.f32 %v1782, %v1830
  %1832 = vmatmul.bf16.gmra.mxu0 %v671
  %v1833 = vpop.f32.mrf.mxu0
  %v1834 = vadd.f32 %v1785, %v1833
  %v1835 = vpop.f32.mrf.mxu0
  %v1836 = vadd.f32 %v1787, %v1835
  %1837 = vmatmul.bf16.gmra.mxu0 %v684
  %v1838 = vpop.f32.mrf.mxu0
  %v1839 = vadd.f32 %v1790, %v1838
  %v1840 = vpop.f32.mrf.mxu0
  %v1841 = vadd.f32 %v1792, %v1840
  %1842 = vmatmul.bf16.gmra.mxu0 %v697
  %v1843 = vpop.f32.mrf.mxu0
  %v1844 = vadd.f32 %v1795, %v1843
  %v1845 = vpop.f32.mrf.mxu0
  %v1846 = vadd.f32 %v1797, %v1845
  %1847 = vmatmul.bf16.gmra.mxu0 %v710
  %v1848 = vpop.f32.mrf.mxu0
  %v1849 = vadd.f32 %v1800, %v1848
  %v1850 = vpop.f32.mrf.mxu0
  %v1851 = vadd.f32 %v1802, %v1850
  %1852 = vmatmul.bf16.gmra.mxu0 %v723
  %v1853 = vpop.f32.mrf.mxu0
  %v1854 = vadd.f32 %v1805, %v1853
  %v1855 = vpop.f32.mrf.mxu0
  %v1856 = vadd.f32 %v1807, %v1855
  %1857 = vmatmul.bf16.gmra.mxu0 %v736
  %v1858 = vpop.f32.mrf.mxu0
  %v1859 = vadd.f32 %v1810, %v1858
  %v1860 = vpop.f32.mrf.mxu0
  %v1861 = vadd.f32 %v1812, %v1860
  %1862 = vmatmul.bf16.gmra.mxu0 %v749
  %v1863 = vpop.f32.mrf.mxu0
  %v1864 = vadd.f32 %v1815, %v1863
  %v1865 = vpop.f32.mrf.mxu0
  %v1866 = vadd.f32 %v1817, %v1865
  %1867 = vdwg.mxu0
  %1868 = vmatpush.bf16.msra.mxu0 %v1322
  %1869 = vmatpush.bf16.msra.mxu0 %v1321
  %1870 = vmatpush.bf16.msra.mxu0 %v1320
  %1871 = vmatpush.bf16.msra.mxu0 %v1319
  %1872 = vmatpush.bf16.msra.mxu0 %v1318
  %1873 = vmatpush.bf16.msra.mxu0 %v1317
  %1874 = vmatpush.bf16.msra.mxu0 %v1316
  %1875 = vmatpush.bf16.msra.mxu0 %v1315
  %1876 = vmatmul.bf16.gmra.mxu0 %v659
  %v1877 = vpop.f32.mrf.mxu0
  %v1878 = vadd.f32 %v1829, %v1877
  %v1879 = vpop.f32.mrf.mxu0
  %v1880 = vadd.f32 %v1831, %v1879
  %1881 = vmatmul.bf16.gmra.mxu0 %v672
  %v1882 = vpop.f32.mrf.mxu0
  %v1883 = vadd.f32 %v1834, %v1882
  %v1884 = vpop.f32.mrf.mxu0
  %v1885 = vadd.f32 %v1836, %v1884
  %1886 = vmatmul.bf16.gmra.mxu0 %v685
  %v1887 = vpop.f32.mrf.mxu0
  %v1888 = vadd.f32 %v1839, %v1887
  %v1889 = vpop.f32.mrf.mxu0
  %v1890 = vadd.f32 %v1841, %v1889
  %1891 = vmatmul.bf16.gmra.mxu0 %v698
  %v1892 = vpop.f32.mrf.mxu0
  %v1893 = vadd.f32 %v1844, %v1892
  %v1894 = vpop.f32.mrf.mxu0
  %v1895 = vadd.f32 %v1846, %v1894
  %1896 = vmatmul.bf16.gmra.mxu0 %v711
  %v1897 = vpop.f32.mrf.mxu0
  %v1898 = vadd.f32 %v1849, %v1897
  %v1899 = vpop.f32.mrf.mxu0
  %v1900 = vadd.f32 %v1851, %v1899
  %1901 = vmatmul.bf16.gmra.mxu0 %v724
  %v1902 = vpop.f32.mrf.mxu0
  %v1903 = vadd.f32 %v1854, %v1902
  %v1904 = vpop.f32.mrf.mxu0
  %v1905 = vadd.f32 %v1856, %v1904
  %1906 = vmatmul.bf16.gmra.mxu0 %v737
  %v1907 = vpop.f32.mrf.mxu0
  %v1908 = vadd.f32 %v1859, %v1907
  %v1909 = vpop.f32.mrf.mxu0
  %v1910 = vadd.f32 %v1861, %v1909
  %1911 = vmatmul.bf16.gmra.mxu0 %v750
  %v1912 = vpop.f32.mrf.mxu0
  %v1913 = vadd.f32 %v1864, %v1912
  %v1914 = vpop.f32.mrf.mxu0
  %v1915 = vadd.f32 %v1866, %v1914
  %1916 = vdwg.mxu0
  %1917 = vmatpush.bf16.msra.mxu0 %v1330
  %1918 = vmatpush.bf16.msra.mxu0 %v1329
  %1919 = vmatpush.bf16.msra.mxu0 %v1328
  %1920 = vmatpush.bf16.msra.mxu0 %v1327
  %1921 = vmatpush.bf16.msra.mxu0 %v1326
  %1922 = vmatpush.bf16.msra.mxu0 %v1325
  %1923 = vmatpush.bf16.msra.mxu0 %v1324
  %1924 = vmatpush.bf16.msra.mxu0 %v1323
  %1925 = vmatmul.bf16.gmra.mxu0 %v660
  %v1926 = vpop.f32.mrf.mxu0
  %v1927 = vadd.f32 %v1878, %v1926
  %v1928 = vpop.f32.mrf.mxu0
  %v1929 = vadd.f32 %v1880, %v1928
  %1930 = vmatmul.bf16.gmra.mxu0 %v673
  %v1931 = vpop.f32.mrf.mxu0
  %v1932 = vadd.f32 %v1883, %v1931
  %v1933 = vpop.f32.mrf.mxu0
  %v1934 = vadd.f32 %v1885, %v1933
  %1935 = vmatmul.bf16.gmra.mxu0 %v686
  %v1936 = vpop.f32.mrf.mxu0
  %v1937 = vadd.f32 %v1888, %v1936
  %v1938 = vpop.f32.mrf.mxu0
  %v1939 = vadd.f32 %v1890, %v1938
  %1940 = vmatmul.bf16.gmra.mxu0 %v699
  %v1941 = vpop.f32.mrf.mxu0
  %v1942 = vadd.f32 %v1893, %v1941
  %v1943 = vpop.f32.mrf.mxu0
  %v1944 = vadd.f32 %v1895, %v1943
  %1945 = vmatmul.bf16.gmra.mxu0 %v712
  %v1946 = vpop.f32.mrf.mxu0
  %v1947 = vadd.f32 %v1898, %v1946
  %v1948 = vpop.f32.mrf.mxu0
  %v1949 = vadd.f32 %v1900, %v1948
  %1950 = vmatmul.bf16.gmra.mxu0 %v725
  %v1951 = vpop.f32.mrf.mxu0
  %v1952 = vadd.f32 %v1903, %v1951
  %v1953 = vpop.f32.mrf.mxu0
  %v1954 = vadd.f32 %v1905, %v1953
  %1955 = vmatmul.bf16.gmra.mxu0 %v738
  %v1956 = vpop.f32.mrf.mxu0
  %v1957 = vadd.f32 %v1908, %v1956
  %v1958 = vpop.f32.mrf.mxu0
  %v1959 = vadd.f32 %v1910, %v1958
  %1960 = vmatmul.bf16.gmra.mxu0 %v751
  %v1961 = vpop.f32.mrf.mxu0
  %v1962 = vadd.f32 %v1913, %v1961
  %v1963 = vpop.f32.mrf.mxu0
  %v1964 = vadd.f32 %v1915, %v1963
  %1965 = vdwg.mxu0
  %1966 = vmatpush.bf16.msra.mxu0 %v1338
  %1967 = vmatpush.bf16.msra.mxu0 %v1337
  %1968 = vmatpush.bf16.msra.mxu0 %v1336
  %1969 = vmatpush.bf16.msra.mxu0 %v1335
  %1970 = vmatpush.bf16.msra.mxu0 %v1334
  %1971 = vmatpush.bf16.msra.mxu0 %v1333
  %1972 = vmatpush.bf16.msra.mxu0 %v1332
  %1973 = vmatpush.bf16.msra.mxu0 %v1331
  %1974 = vmatmul.bf16.gmra.mxu0 %v661
  %v1975 = vpop.f32.mrf.mxu0
  %v1976 = vadd.f32 %v1927, %v1975
  %v1977 = vpop.f32.mrf.mxu0
  %v1978 = vadd.f32 %v1929, %v1977
  %1979 = vmatmul.bf16.gmra.mxu0 %v674
  %v1980 = vpop.f32.mrf.mxu0
  %v1981 = vadd.f32 %v1932, %v1980
  %v1982 = vpop.f32.mrf.mxu0
  %v1983 = vadd.f32 %v1934, %v1982
  %1984 = vmatmul.bf16.gmra.mxu0 %v687
  %v1985 = vpop.f32.mrf.mxu0
  %v1986 = vadd.f32 %v1937, %v1985
  %v1987 = vpop.f32.mrf.mxu0
  %v1988 = vadd.f32 %v1939, %v1987
  %1989 = vmatmul.bf16.gmra.mxu0 %v700
  %v1990 = vpop.f32.mrf.mxu0
  %v1991 = vadd.f32 %v1942, %v1990
  %v1992 = vpop.f32.mrf.mxu0
  %v1993 = vadd.f32 %v1944, %v1992
  %1994 = vmatmul.bf16.gmra.mxu0 %v713
  %v1995 = vpop.f32.mrf.mxu0
  %v1996 = vadd.f32 %v1947, %v1995
  %v1997 = vpop.f32.mrf.mxu0
  %v1998 = vadd.f32 %v1949, %v1997
  %1999 = vmatmul.bf16.gmra.mxu0 %v726
  %v2000 = vpop.f32.mrf.mxu0
  %v2001 = vadd.f32 %v1952, %v2000
  %v2002 = vpop.f32.mrf.mxu0
  %v2003 = vadd.f32 %v1954, %v2002
  %2004 = vmatmul.bf16.gmra.mxu0 %v739
  %v2005 = vpop.f32.mrf.mxu0
  %v2006 = vadd.f32 %v1957, %v2005
  %v2007 = vpop.f32.mrf.mxu0
  %v2008 = vadd.f32 %v1959, %v2007
  %2009 = vmatmul.bf16.gmra.mxu0 %v752
  %v2010 = vpop.f32.mrf.mxu0
  %v2011 = vadd.f32 %v1962, %v2010
  %v2012 = vpop.f32.mrf.mxu0
  %v2013 = vadd.f32 %v1964, %v2012
  %2014 = vdwg.mxu0
  %2015 = vmatpush.bf16.msra.mxu0 %v1346
  %2016 = vmatpush.bf16.msra.mxu0 %v1345
  %2017 = vmatpush.bf16.msra.mxu0 %v1344
  %2018 = vmatpush.bf16.msra.mxu0 %v1343
  %2019 = vmatpush.bf16.msra.mxu0 %v1342
  %2020 = vmatpush.bf16.msra.mxu0 %v1341
  %2021 = vmatpush.bf16.msra.mxu0 %v1340
  %2022 = vmatpush.bf16.msra.mxu0 %v1339
  %2023 = vmatmul.bf16.gmra.mxu0 %v662
  %v2024 = vpop.f32.mrf.mxu0
  %v2025 = vadd.f32 %v1976, %v2024
  %v2026 = vpop.f32.mrf.mxu0
  %v2027 = vadd.f32 %v1978, %v2026
  %2028 = vmatmul.bf16.gmra.mxu0 %v675
  %v2029 = vpop.f32.mrf.mxu0
  %v2030 = vadd.f32 %v1981, %v2029
  %v2031 = vpop.f32.mrf.mxu0
  %v2032 = vadd.f32 %v1983, %v2031
  %2033 = vmatmul.bf16.gmra.mxu0 %v688
  %v2034 = vpop.f32.mrf.mxu0
  %v2035 = vadd.f32 %v1986, %v2034
  %v2036 = vpop.f32.mrf.mxu0
  %v2037 = vadd.f32 %v1988, %v2036
  %2038 = vmatmul.bf16.gmra.mxu0 %v701
  %v2039 = vpop.f32.mrf.mxu0
  %v2040 = vadd.f32 %v1991, %v2039
  %v2041 = vpop.f32.mrf.mxu0
  %v2042 = vadd.f32 %v1993, %v2041
  %2043 = vmatmul.bf16.gmra.mxu0 %v714
  %v2044 = vpop.f32.mrf.mxu0
  %v2045 = vadd.f32 %v1996, %v2044
  %v2046 = vpop.f32.mrf.mxu0
  %v2047 = vadd.f32 %v1998, %v2046
  %2048 = vmatmul.bf16.gmra.mxu0 %v727
  %v2049 = vpop.f32.mrf.mxu0
  %v2050 = vadd.f32 %v2001, %v2049
  %v2051 = vpop.f32.mrf.mxu0
  %v2052 = vadd.f32 %v2003, %v2051
  %2053 = vmatmul.bf16.gmra.mxu0 %v740
  %v2054 = vpop.f32.mrf.mxu0
  %v2055 = vadd.f32 %v2006, %v2054
  %v2056 = vpop.f32.mrf.mxu0
  %v2057 = vadd.f32 %v2008, %v2056
  %2058 = vmatmul.bf16.gmra.mxu0 %v753
  %v2059 = vpop.f32.mrf.mxu0
  %v2060 = vadd.f32 %v2011, %v2059
  %v2061 = vpop.f32.mrf.mxu0
  %v2062 = vadd.f32 %v2013, %v2061
  %2063 = vdwg.mxu0
  %2064 = vmatpush.bf16.msra.mxu0 0
  %2065 = vmatpush.bf16.msra.mxu0 0
  %2066 = vmatpush.bf16.msra.mxu0 0
  %2067 = vmatpush.bf16.msra.mxu0 0
  %2068 = vmatpush.bf16.msra.mxu0 %v1350
  %2069 = vmatpush.bf16.msra.mxu0 %v1349
  %2070 = vmatpush.bf16.msra.mxu0 %v1348
  %2071 = vmatpush.bf16.msra.mxu0 %v1347
  %2072 = vmatmul.bf16.gmra.mxu0 %v1453
  %v2073 = vpop.f32.mrf.mxu0
  %v2074 = vadd.f32 %v2025, %v2073
  %v2075 = vpop.f32.mrf.mxu0
  %v2076 = vadd.f32 %v2027, %v2075
  %2077 = vmatmul.bf16.gmra.mxu0 %v1456
  %v2078 = vpop.f32.mrf.mxu0
  %v2079 = vadd.f32 %v2030, %v2078
  %v2080 = vpop.f32.mrf.mxu0
  %v2081 = vadd.f32 %v2032, %v2080
  %2082 = vmatmul.bf16.gmra.mxu0 %v1459
  %v2083 = vpop.f32.mrf.mxu0
  %v2084 = vadd.f32 %v2035, %v2083
  %v2085 = vpop.f32.mrf.mxu0
  %v2086 = vadd.f32 %v2037, %v2085
  %2087 = vmatmul.bf16.gmra.mxu0 %v1462
  %v2088 = vpop.f32.mrf.mxu0
  %v2089 = vadd.f32 %v2040, %v2088
  %v2090 = vpop.f32.mrf.mxu0
  %v2091 = vadd.f32 %v2042, %v2090
  %2092 = vmatmul.bf16.gmra.mxu0 %v1465
  %v2093 = vpop.f32.mrf.mxu0
  %v2094 = vadd.f32 %v2045, %v2093
  %v2095 = vpop.f32.mrf.mxu0
  %v2096 = vadd.f32 %v2047, %v2095
  %2097 = vmatmul.bf16.gmra.mxu0 %v1468
  %v2098 = vpop.f32.mrf.mxu0
  %v2099 = vadd.f32 %v2050, %v2098
  %v2100 = vpop.f32.mrf.mxu0
  %v2101 = vadd.f32 %v2052, %v2100
  %2102 = vmatmul.bf16.gmra.mxu0 %v1471
  %v2103 = vpop.f32.mrf.mxu0
  %v2104 = vadd.f32 %v2055, %v2103
  %v2105 = vpop.f32.mrf.mxu0
  %v2106 = vadd.f32 %v2057, %v2105
  %2107 = vmatmul.bf16.gmra.mxu0 %v1474
  %v2108 = vpop.f32.mrf.mxu0
  %v2109 = vadd.f32 %v2060, %v2108
  %v2110 = vpop.f32.mrf.mxu0
  %v2111 = vadd.f32 %v2062, %v2110
  %2112 = vdwg.mxu0
  %v2113 = vmax.f32 %v2074, 0.0
  %v2114 = vmax.f32 %v2076, 0.0
  %v2115 = vmax.f32 %v2079, 0.0
  %v2116 = vmax.f32 %v2081, 0.0
  %v2117 = vmax.f32 %v2084, 0.0
  %v2118 = vmax.f32 %v2086, 0.0
  %v2119 = vmax.f32 %v2089, 0.0
  %v2120 = vmax.f32 %v2091, 0.0
  %v2121 = vmax.f32 %v2094, 0.0
  %v2122 = vmax.f32 %v2096, 0.0
  %v2123 = vmax.f32 %v2099, 0.0
  %v2124 = vmax.f32 %v2101, 0.0
  %v2125 = vmax.f32 %v2104, 0.0
  %v2126 = vmax.f32 %v2106, 0.0
  %v2127 = vmax.f32 %v2109, 0.0
  %v2128 = vmax.f32 %v2111, 0.0
  %v2129 = vpack.c.bf16 %v2113, %v2113
  %v2130 = vpack.c.bf16 %v2114, %v2114
  %v2131 = vpack.c.bf16 %v2115, %v2115
  %v2132 = vpack.c.bf16 %v2116, %v2116
  %v2133 = vpack.c.bf16 %v2117, %v2117
  %v2134 = vpack.c.bf16 %v2118, %v2118
  %v2135 = vpack.c.bf16 %v2119, %v2119
  %v2136 = vpack.c.bf16 %v2120, %v2120
  %v2137 = vpack.c.bf16 %v2121, %v2121
  %v2138 = vpack.c.bf16 %v2122, %v2122
  %v2139 = vpack.c.bf16 %v2123, %v2123
  %v2140 = vpack.c.bf16 %v2124, %v2124
  %v2141 = vpack.c.bf16 %v2125, %v2125
  %v2142 = vpack.c.bf16 %v2126, %v2126
  %v2143 = vpack.c.bf16 %v2127, %v2127
  %v2144 = vpack.c.bf16 %v2128, %v2128
  %2145 = vst [vmem:[%s3] sm:$0xf] %v2129
  %2146 = vst [vmem:[%s3 + $0x4] sm:$0xf] %v2130
  %2147 = vst [vmem:[%s3 + $0x8] sm:$0xf] %v2131
  %2148 = vst [vmem:[%s3 + $0xc] sm:$0xf] %v2132
  %2149 = vst [vmem:[%s3 + $0x10] sm:$0xf] %v2133
  %2150 = vst [vmem:[%s3 + $0x14] sm:$0xf] %v2134
  %2151 = vst [vmem:[%s3 + $0x18] sm:$0xf] %v2135
  %2152 = vst [vmem:[%s3 + $0x1c] sm:$0xf] %v2136
  %2153 = vst [vmem:[%s3 + $0x20] sm:$0xf] %v2137
  %2154 = vst [vmem:[%s3 + $0x24] sm:$0xf] %v2138
  %2155 = vst [vmem:[%s3 + $0x28] sm:$0xf] %v2139
  %2156 = vst [vmem:[%s3 + $0x2c] sm:$0xf] %v2140
  %2157 = vst [vmem:[%s3 + $0x30] sm:$0xf] %v2141
  %2158 = vst [vmem:[%s3 + $0x34] sm:$0xf] %v2142
  %2159 = vst [vmem:[%s3 + $0x38] sm:$0xf] %v2143
  %2160 = vst [vmem:[%s3 + $0x3c] sm:$0xf] %v2144
  // Predicated region
  $region14: #{cnn_forward.7} parent=0 // pred_check
    _
  $region15: #{cnn_forward.7} parent=0 // pred_check_branch
    %2162 = sbr.rel (0) target = $region17
  $region16: #{cnn_forward.7} parent=0 // pred_region
    _
  $region17: #{cnn_forward.7} parent=0 // pred_fallthru
    _
  // Predicated region
  $region18: #{cnn_forward.7} parent=0 // pred_check
    _
  $region19: #{cnn_forward.7} parent=0 // pred_check_branch
    %2164 = sbr.rel (0) target = $region21
  $region20: #{cnn_forward.7} parent=0 // pred_region
    _
  $region21: #{cnn_forward.7} parent=0 // pred_fallthru
    _

// kernel: cnn_forward.9
$region0: #{cnn_forward.9}
  #allocation0 [shape = 'u32[]', space=smem, size = 0x4, offset = 0x4, fixed_abs, tag = 'smem constant byte address 0x4 - core index']
  #allocation1 [shape = 'u32[72,128]{1,0:T(1,128)}', space=vmem, size = 0x9000, scoped, tag = 'internal scratch']
  %s0 = inlined_call_operand.vmem [shape: bf16[8,2048], index: 0, kind: input, shape index: {}]
  %s1 = inlined_call_operand.vmem [shape: bf16[2048,1024], index: 1, kind: input, shape index: {}]
  %s2 = inlined_call_operand.vmem [shape: f32[1,1024], index: 2, kind: input, shape index: {}]
  %s3 = inlined_call_operand.vmem [shape: bf16[1024,128], index: 3, kind: input, shape index: {}]
  %s4 = inlined_call_operand.vmem [shape: f32[1,128], index: 4, kind: input, shape index: {}]
  %s5 = inlined_call_operand.vmem [shape: f32[8,128], index: 5, kind: output, shape index: {}]
  %s6 = sld [smem:[#allocation0]]
  $region30: #{cnn_forward.9} parent=0
    _
  %s8 = ssub.s32 1, %s6
  %s9 = scalar_select 0, %s8, %s6
  // Predicated region
  $region2: #{cnn_forward.9} parent=0 // pred_check
    _
  $region3: #{cnn_forward.9} parent=0 // pred_check_branch
    %11 = sbr.rel (0) target = $region5
  $region4: #{cnn_forward.9} parent=0 // pred_region
    _
  $region5: #{cnn_forward.9} parent=0 // pred_fallthru
    _
  // Predicated region
  $region6: #{cnn_forward.9} parent=0 // pred_check
    _
  $region7: #{cnn_forward.9} parent=0 // pred_check_branch
    %13 = sbr.rel (0) target = $region9
  $region8: #{cnn_forward.9} parent=0 // pred_region
    _
  $region9: #{cnn_forward.9} parent=0 // pred_fallthru
    _
  // Predicated region
  $region10: #{cnn_forward.9} parent=0 // pred_check
    _
  $region11: #{cnn_forward.9} parent=0 // pred_check_branch
    %15 = sbr.rel (0) target = $region13
  $region12: #{cnn_forward.9} parent=0 // pred_region
    _
  $region13: #{cnn_forward.9} parent=0 // pred_fallthru
    _
  // Predicated region
  $region14: #{cnn_forward.9} parent=0 // pred_check
    _
  $region15: #{cnn_forward.9} parent=0 // pred_check_branch
    %17 = sbr.rel (0) target = $region17
  $region16: #{cnn_forward.9} parent=0 // pred_region
    _
  $region17: #{cnn_forward.9} parent=0 // pred_fallthru
    _
  // Predicated region
  $region18: #{cnn_forward.9} parent=0 // pred_check
    _
  $region19: #{cnn_forward.9} parent=0 // pred_check_branch
    %19 = sbr.rel (0) target = $region21
  $region20: #{cnn_forward.9} parent=0 // pred_region
    _
  $region21: #{cnn_forward.9} parent=0 // pred_fallthru
    _
  %v20 = vld [vmem:[%s0] sm:$0xff]
  %v21 = vld [vmem:[%s0 + $0x8] sm:$0xff]
  %v22 = vld [vmem:[%s0 + $0x10] sm:$0xff]
  %v23 = vld [vmem:[%s0 + $0x18] sm:$0xff]
  %v24 = vld [vmem:[%s0 + $0x20] sm:$0xff]
  %v25 = vld [vmem:[%s0 + $0x28] sm:$0xff]
  %v26 = vld [vmem:[%s0 + $0x30] sm:$0xff]
  %v27 = vld [vmem:[%s0 + $0x38] sm:$0xff]
  %v28 = vld [vmem:[%s1] sm:$0xff]
  %v29 = vld [vmem:[%s1 + $0x8] sm:$0xff]
  %v30 = vld [vmem:[%s1 + $0x10] sm:$0xff]
  %v31 = vld [vmem:[%s1 + $0x18] sm:$0xff]
  %v32 = vld [vmem:[%s1 + $0x20] sm:$0xff]
  %v33 = vld [vmem:[%s1 + $0x28] sm:$0xff]
  %v34 = vld [vmem:[%s1 + $0x30] sm:$0xff]
  %v35 = vld [vmem:[%s1 + $0x38] sm:$0xff]
  %v36 = vld [vmem:[%s1 + $0x40] sm:$0xff]
  %v37 = vld [vmem:[%s1 + $0x48] sm:$0xff]
  %v38 = vld [vmem:[%s1 + $0x50] sm:$0xff]
  %v39 = vld [vmem:[%s1 + $0x58] sm:$0xff]
  %v40 = vld [vmem:[%s1 + $0x60] sm:$0xff]
  %v41 = vld [vmem:[%s1 + $0x68] sm:$0xff]
  %v42 = vld [vmem:[%s1 + $0x70] sm:$0xff]
  %v43 = vld [vmem:[%s1 + $0x78] sm:$0xff]
  %v44 = vld [vmem:[%s1 + $0x80] sm:$0xff]
  %v45 = vld [vmem:[%s1 + $0x88] sm:$0xff]
  %v46 = vld [vmem:[%s1 + $0x90] sm:$0xff]
  %v47 = vld [vmem:[%s1 + $0x98] sm:$0xff]
  %v48 = vld [vmem:[%s1 + $0xa0] sm:$0xff]
  %v49 = vld [vmem:[%s1 + $0xa8] sm:$0xff]
  %v50 = vld [vmem:[%s1 + $0xb0] sm:$0xff]
  %v51 = vld [vmem:[%s1 + $0xb8] sm:$0xff]
  %v52 = vld [vmem:[%s1 + $0xc0] sm:$0xff]
  %v53 = vld [vmem:[%s1 + $0xc8] sm:$0xff]
  %v54 = vld [vmem:[%s1 + $0xd0] sm:$0xff]
  %v55 = vld [vmem:[%s1 + $0xd8] sm:$0xff]
  %v56 = vld [vmem:[%s1 + $0xe0] sm:$0xff]
  %v57 = vld [vmem:[%s1 + $0xe8] sm:$0xff]
  %v58 = vld [vmem:[%s1 + $0xf0] sm:$0xff]
  %v59 = vld [vmem:[%s1 + $0xf8] sm:$0xff]
  %v60 = vld [vmem:[%s1 + $0x100] sm:$0xff]
  %v61 = vld [vmem:[%s1 + $0x108] sm:$0xff]
  %v62 = vld [vmem:[%s1 + $0x110] sm:$0xff]
  %v63 = vld [vmem:[%s1 + $0x118] sm:$0xff]
  %v64 = vld [vmem:[%s1 + $0x120] sm:$0xff]
  %v65 = vld [vmem:[%s1 + $0x128] sm:$0xff]
  %v66 = vld [vmem:[%s1 + $0x130] sm:$0xff]
  %v67 = vld [vmem:[%s1 + $0x138] sm:$0xff]
  %v68 = vld [vmem:[%s1 + $0x140] sm:$0xff]
  %v69 = vld [vmem:[%s1 + $0x148] sm:$0xff]
  %v70 = vld [vmem:[%s1 + $0x150] sm:$0xff]
  %v71 = vld [vmem:[%s1 + $0x158] sm:$0xff]
  %v72 = vld [vmem:[%s1 + $0x160] sm:$0xff]
  %v73 = vld [vmem:[%s1 + $0x168] sm:$0xff]
  %v74 = vld [vmem:[%s1 + $0x170] sm:$0xff]
  %v75 = vld [vmem:[%s1 + $0x178] sm:$0xff]
  %v76 = vld [vmem:[%s1 + $0x180] sm:$0xff]
  %v77 = vld [vmem:[%s1 + $0x188] sm:$0xff]
  %v78 = vld [vmem:[%s1 + $0x190] sm:$0xff]
  %v79 = vld [vmem:[%s1 + $0x198] sm:$0xff]
  %v80 = vld [vmem:[%s1 + $0x1a0] sm:$0xff]
  %v81 = vld [vmem:[%s1 + $0x1a8] sm:$0xff]
  %v82 = vld [vmem:[%s1 + $0x1b0] sm:$0xff]
  %v83 = vld [vmem:[%s1 + $0x1b8] sm:$0xff]
  %v84 = vld [vmem:[%s1 + $0x1c0] sm:$0xff]
  %v85 = vld [vmem:[%s1 + $0x1c8] sm:$0xff]
  %v86 = vld [vmem:[%s1 + $0x1d0] sm:$0xff]
  %v87 = vld [vmem:[%s1 + $0x1d8] sm:$0xff]
  %v88 = vld [vmem:[%s1 + $0x1e0] sm:$0xff]
  %v89 = vld [vmem:[%s1 + $0x1e8] sm:$0xff]
  %v90 = vld [vmem:[%s1 + $0x1f0] sm:$0xff]
  %v91 = vld [vmem:[%s1 + $0x1f8] sm:$0xff]
  %v92 = vld [vmem:[%s1 + $0x200] sm:$0xff]
  %v93 = vld [vmem:[%s1 + $0x208] sm:$0xff]
  %v94 = vld [vmem:[%s1 + $0x210] sm:$0xff]
  %v95 = vld [vmem:[%s1 + $0x218] sm:$0xff]
  %v96 = vld [vmem:[%s1 + $0x220] sm:$0xff]
  %v97 = vld [vmem:[%s1 + $0x228] sm:$0xff]
  %v98 = vld [vmem:[%s1 + $0x230] sm:$0xff]
  %v99 = vld [vmem:[%s1 + $0x238] sm:$0xff]
  %v100 = vld [vmem:[%s1 + $0x240] sm:$0xff]
  %v101 = vld [vmem:[%s1 + $0x248] sm:$0xff]
  %v102 = vld [vmem:[%s1 + $0x250] sm:$0xff]
  %v103 = vld [vmem:[%s1 + $0x258] sm:$0xff]
  %v104 = vld [vmem:[%s1 + $0x260] sm:$0xff]
  %v105 = vld [vmem:[%s1 + $0x268] sm:$0xff]
  %v106 = vld [vmem:[%s1 + $0x270] sm:$0xff]
  %v107 = vld [vmem:[%s1 + $0x278] sm:$0xff]
  %v108 = vld [vmem:[%s1 + $0x280] sm:$0xff]
  %v109 = vld [vmem:[%s1 + $0x288] sm:$0xff]
  %v110 = vld [vmem:[%s1 + $0x290] sm:$0xff]
  %v111 = vld [vmem:[%s1 + $0x298] sm:$0xff]
  %v112 = vld [vmem:[%s1 + $0x2a0] sm:$0xff]
  %v113 = vld [vmem:[%s1 + $0x2a8] sm:$0xff]
  %v114 = vld [vmem:[%s1 + $0x2b0] sm:$0xff]
  %v115 = vld [vmem:[%s1 + $0x2b8] sm:$0xff]
  %v116 = vld [vmem:[%s1 + $0x2c0] sm:$0xff]
  %v117 = vld [vmem:[%s1 + $0x2c8] sm:$0xff]
  %v118 = vld [vmem:[%s1 + $0x2d0] sm:$0xff]
  %v119 = vld [vmem:[%s1 + $0x2d8] sm:$0xff]
  %v120 = vld [vmem:[%s1 + $0x2e0] sm:$0xff]
  %v121 = vld [vmem:[%s1 + $0x2e8] sm:$0xff]
  %v122 = vld [vmem:[%s1 + $0x2f0] sm:$0xff]
  %v123 = vld [vmem:[%s1 + $0x2f8] sm:$0xff]
  %v124 = vld [vmem:[%s1 + $0x300] sm:$0xff]
  %v125 = vld [vmem:[%s1 + $0x308] sm:$0xff]
  %v126 = vld [vmem:[%s1 + $0x310] sm:$0xff]
  %v127 = vld [vmem:[%s1 + $0x318] sm:$0xff]
  %v128 = vld [vmem:[%s1 + $0x320] sm:$0xff]
  %v129 = vld [vmem:[%s1 + $0x328] sm:$0xff]
  %v130 = vld [vmem:[%s1 + $0x330] sm:$0xff]
  %v131 = vld [vmem:[%s1 + $0x338] sm:$0xff]
  %v132 = vld [vmem:[%s1 + $0x340] sm:$0xff]
  %v133 = vld [vmem:[%s1 + $0x348] sm:$0xff]
  %v134 = vld [vmem:[%s1 + $0x350] sm:$0xff]
  %v135 = vld [vmem:[%s1 + $0x358] sm:$0xff]
  %v136 = vld [vmem:[%s1 + $0x360] sm:$0xff]
  %v137 = vld [vmem:[%s1 + $0x368] sm:$0xff]
  %v138 = vld [vmem:[%s1 + $0x370] sm:$0xff]
  %v139 = vld [vmem:[%s1 + $0x378] sm:$0xff]
  %v140 = vld [vmem:[%s1 + $0x380] sm:$0xff]
  %v141 = vld [vmem:[%s1 + $0x388] sm:$0xff]
  %v142 = vld [vmem:[%s1 + $0x390] sm:$0xff]
  %v143 = vld [vmem:[%s1 + $0x398] sm:$0xff]
  %v144 = vld [vmem:[%s1 + $0x3a0] sm:$0xff]
  %v145 = vld [vmem:[%s1 + $0x3a8] sm:$0xff]
  %v146 = vld [vmem:[%s1 + $0x3b0] sm:$0xff]
  %v147 = vld [vmem:[%s1 + $0x3b8] sm:$0xff]
  %v148 = vld [vmem:[%s1 + $0x3c0] sm:$0xff]
  %v149 = vld [vmem:[%s1 + $0x3c8] sm:$0xff]
  %v150 = vld [vmem:[%s1 + $0x3d0] sm:$0xff]
  %v151 = vld [vmem:[%s1 + $0x3d8] sm:$0xff]
  %v152 = vld [vmem:[%s1 + $0x3e0] sm:$0xff]
  %v153 = vld [vmem:[%s1 + $0x3e8] sm:$0xff]
  %v154 = vld [vmem:[%s1 + $0x3f0] sm:$0xff]
  %v155 = vld [vmem:[%s1 + $0x3f8] sm:$0xff]
  %v156 = vld [vmem:[%s1 + $0x400] sm:$0xff]
  %v157 = vld [vmem:[%s1 + $0x408] sm:$0xff]
  %v158 = vld [vmem:[%s1 + $0x410] sm:$0xff]
  %v159 = vld [vmem:[%s1 + $0x418] sm:$0xff]
  %v160 = vld [vmem:[%s1 + $0x420] sm:$0xff]
  %v161 = vld [vmem:[%s1 + $0x428] sm:$0xff]
  %v162 = vld [vmem:[%s1 + $0x430] sm:$0xff]
  %v163 = vld [vmem:[%s1 + $0x438] sm:$0xff]
  %v164 = vld [vmem:[%s1 + $0x440] sm:$0xff]
  %v165 = vld [vmem:[%s1 + $0x448] sm:$0xff]
  %v166 = vld [vmem:[%s1 + $0x450] sm:$0xff]
  %v167 = vld [vmem:[%s1 + $0x458] sm:$0xff]
  %v168 = vld [vmem:[%s1 + $0x460] sm:$0xff]
  %v169 = vld [vmem:[%s1 + $0x468] sm:$0xff]
  %v170 = vld [vmem:[%s1 + $0x470] sm:$0xff]
  %v171 = vld [vmem:[%s1 + $0x478] sm:$0xff]
  %v172 = vld [vmem:[%s1 + $0x480] sm:$0xff]
  %v173 = vld [vmem:[%s1 + $0x488] sm:$0xff]
  %v174 = vld [vmem:[%s1 + $0x490] sm:$0xff]
  %v175 = vld [vmem:[%s1 + $0x498] sm:$0xff]
  %v176 = vld [vmem:[%s1 + $0x4a0] sm:$0xff]
  %v177 = vld [vmem:[%s1 + $0x4a8] sm:$0xff]
  %v178 = vld [vmem:[%s1 + $0x4b0] sm:$0xff]
  %v179 = vld [vmem:[%s1 + $0x4b8] sm:$0xff]
  %v180 = vld [vmem:[%s1 + $0x4c0] sm:$0xff]
  %v181 = vld [vmem:[%s1 + $0x4c8] sm:$0xff]
  %v182 = vld [vmem:[%s1 + $0x4d0] sm:$0xff]
  %v183 = vld [vmem:[%s1 + $0x4d8] sm:$0xff]
  %v184 = vld [vmem:[%s1 + $0x4e0] sm:$0xff]
  %v185 = vld [vmem:[%s1 + $0x4e8] sm:$0xff]
  %v186 = vld [vmem:[%s1 + $0x4f0] sm:$0xff]
  %v187 = vld [vmem:[%s1 + $0x4f8] sm:$0xff]
  %v188 = vld [vmem:[%s1 + $0x500] sm:$0xff]
  %v189 = vld [vmem:[%s1 + $0x508] sm:$0xff]
  %v190 = vld [vmem:[%s1 + $0x510] sm:$0xff]
  %v191 = vld [vmem:[%s1 + $0x518] sm:$0xff]
  %v192 = vld [vmem:[%s1 + $0x520] sm:$0xff]
  %v193 = vld [vmem:[%s1 + $0x528] sm:$0xff]
  %v194 = vld [vmem:[%s1 + $0x530] sm:$0xff]
  %v195 = vld [vmem:[%s1 + $0x538] sm:$0xff]
  %v196 = vld [vmem:[%s1 + $0x540] sm:$0xff]
  %v197 = vld [vmem:[%s1 + $0x548] sm:$0xff]
  %v198 = vld [vmem:[%s1 + $0x550] sm:$0xff]
  %v199 = vld [vmem:[%s1 + $0x558] sm:$0xff]
  %v200 = vld [vmem:[%s1 + $0x560] sm:$0xff]
  %v201 = vld [vmem:[%s1 + $0x568] sm:$0xff]
  %v202 = vld [vmem:[%s1 + $0x570] sm:$0xff]
  %v203 = vld [vmem:[%s1 + $0x578] sm:$0xff]
  %v204 = vld [vmem:[%s1 + $0x580] sm:$0xff]
  %v205 = vld [vmem:[%s1 + $0x588] sm:$0xff]
  %v206 = vld [vmem:[%s1 + $0x590] sm:$0xff]
  %v207 = vld [vmem:[%s1 + $0x598] sm:$0xff]
  %v208 = vld [vmem:[%s1 + $0x5a0] sm:$0xff]
  %v209 = vld [vmem:[%s1 + $0x5a8] sm:$0xff]
  %v210 = vld [vmem:[%s1 + $0x5b0] sm:$0xff]
  %v211 = vld [vmem:[%s1 + $0x5b8] sm:$0xff]
  %v212 = vld [vmem:[%s1 + $0x5c0] sm:$0xff]
  %v213 = vld [vmem:[%s1 + $0x5c8] sm:$0xff]
  %v214 = vld [vmem:[%s1 + $0x5d0] sm:$0xff]
  %v215 = vld [vmem:[%s1 + $0x5d8] sm:$0xff]
  %v216 = vld [vmem:[%s1 + $0x5e0] sm:$0xff]
  %v217 = vld [vmem:[%s1 + $0x5e8] sm:$0xff]
  %v218 = vld [vmem:[%s1 + $0x5f0] sm:$0xff]
  %v219 = vld [vmem:[%s1 + $0x5f8] sm:$0xff]
  %v220 = vld [vmem:[%s1 + $0x600] sm:$0xff]
  %v221 = vld [vmem:[%s1 + $0x608] sm:$0xff]
  %v222 = vld [vmem:[%s1 + $0x610] sm:$0xff]
  %v223 = vld [vmem:[%s1 + $0x618] sm:$0xff]
  %v224 = vld [vmem:[%s1 + $0x620] sm:$0xff]
  %v225 = vld [vmem:[%s1 + $0x628] sm:$0xff]
  %v226 = vld [vmem:[%s1 + $0x630] sm:$0xff]
  %v227 = vld [vmem:[%s1 + $0x638] sm:$0xff]
  %v228 = vld [vmem:[%s1 + $0x640] sm:$0xff]
  %v229 = vld [vmem:[%s1 + $0x648] sm:$0xff]
  %v230 = vld [vmem:[%s1 + $0x650] sm:$0xff]
  %v231 = vld [vmem:[%s1 + $0x658] sm:$0xff]
  %v232 = vld [vmem:[%s1 + $0x660] sm:$0xff]
  %v233 = vld [vmem:[%s1 + $0x668] sm:$0xff]
  %v234 = vld [vmem:[%s1 + $0x670] sm:$0xff]
  %v235 = vld [vmem:[%s1 + $0x678] sm:$0xff]
  %v236 = vld [vmem:[%s1 + $0x680] sm:$0xff]
  %v237 = vld [vmem:[%s1 + $0x688] sm:$0xff]
  %v238 = vld [vmem:[%s1 + $0x690] sm:$0xff]
  %v239 = vld [vmem:[%s1 + $0x698] sm:$0xff]
  %v240 = vld [vmem:[%s1 + $0x6a0] sm:$0xff]
  %v241 = vld [vmem:[%s1 + $0x6a8] sm:$0xff]
  %v242 = vld [vmem:[%s1 + $0x6b0] sm:$0xff]
  %v243 = vld [vmem:[%s1 + $0x6b8] sm:$0xff]
  %v244 = vld [vmem:[%s1 + $0x6c0] sm:$0xff]
  %v245 = vld [vmem:[%s1 + $0x6c8] sm:$0xff]
  %v246 = vld [vmem:[%s1 + $0x6d0] sm:$0xff]
  %v247 = vld [vmem:[%s1 + $0x6d8] sm:$0xff]
  %v248 = vld [vmem:[%s1 + $0x6e0] sm:$0xff]
  %v249 = vld [vmem:[%s1 + $0x6e8] sm:$0xff]
  %v250 = vld [vmem:[%s1 + $0x6f0] sm:$0xff]
  %v251 = vld [vmem:[%s1 + $0x6f8] sm:$0xff]
  %v252 = vld [vmem:[%s1 + $0x700] sm:$0xff]
  %v253 = vld [vmem:[%s1 + $0x708] sm:$0xff]
  %v254 = vld [vmem:[%s1 + $0x710] sm:$0xff]
  %v255 = vld [vmem:[%s1 + $0x718] sm:$0xff]
  %v256 = vld [vmem:[%s1 + $0x720] sm:$0xff]
  %v257 = vld [vmem:[%s1 + $0x728] sm:$0xff]
  %v258 = vld [vmem:[%s1 + $0x730] sm:$0xff]
  %v259 = vld [vmem:[%s1 + $0x738] sm:$0xff]
  %v260 = vld [vmem:[%s1 + $0x740] sm:$0xff]
  %v261 = vld [vmem:[%s1 + $0x748] sm:$0xff]
  %v262 = vld [vmem:[%s1 + $0x750] sm:$0xff]
  %v263 = vld [vmem:[%s1 + $0x758] sm:$0xff]
  %v264 = vld [vmem:[%s1 + $0x760] sm:$0xff]
  %v265 = vld [vmem:[%s1 + $0x768] sm:$0xff]
  %v266 = vld [vmem:[%s1 + $0x770] sm:$0xff]
  %v267 = vld [vmem:[%s1 + $0x778] sm:$0xff]
  %v268 = vld [vmem:[%s1 + $0x780] sm:$0xff]
  %v269 = vld [vmem:[%s1 + $0x788] sm:$0xff]
  %v270 = vld [vmem:[%s1 + $0x790] sm:$0xff]
  %v271 = vld [vmem:[%s1 + $0x798] sm:$0xff]
  %v272 = vld [vmem:[%s1 + $0x7a0] sm:$0xff]
  %v273 = vld [vmem:[%s1 + $0x7a8] sm:$0xff]
  %v274 = vld [vmem:[%s1 + $0x7b0] sm:$0xff]
  %v275 = vld [vmem:[%s1 + $0x7b8] sm:$0xff]
  %v276 = vld [vmem:[%s1 + $0x7c0] sm:$0xff]
  %v277 = vld [vmem:[%s1 + $0x7c8] sm:$0xff]
  %v278 = vld [vmem:[%s1 + $0x7d0] sm:$0xff]
  %v279 = vld [vmem:[%s1 + $0x7d8] sm:$0xff]
  %v280 = vld [vmem:[%s1 + $0x7e0] sm:$0xff]
  %v281 = vld [vmem:[%s1 + $0x7e8] sm:$0xff]
  %v282 = vld [vmem:[%s1 + $0x7f0] sm:$0xff]
  %v283 = vld [vmem:[%s1 + $0x7f8] sm:$0xff]
  %v284 = vld [vmem:[%s1 + $0x800] sm:$0xff]
  %v285 = vld [vmem:[%s1 + $0x808] sm:$0xff]
  %v286 = vld [vmem:[%s1 + $0x810] sm:$0xff]
  %v287 = vld [vmem:[%s1 + $0x818] sm:$0xff]
  %v288 = vld [vmem:[%s1 + $0x820] sm:$0xff]
  %v289 = vld [vmem:[%s1 + $0x828] sm:$0xff]
  %v290 = vld [vmem:[%s1 + $0x830] sm:$0xff]
  %v291 = vld [vmem:[%s1 + $0x838] sm:$0xff]
  %v292 = vld [vmem:[%s1 + $0x840] sm:$0xff]
  %v293 = vld [vmem:[%s1 + $0x848] sm:$0xff]
  %v294 = vld [vmem:[%s1 + $0x850] sm:$0xff]
  %v295 = vld [vmem:[%s1 + $0x858] sm:$0xff]
  %v296 = vld [vmem:[%s1 + $0x860] sm:$0xff]
  %v297 = vld [vmem:[%s1 + $0x868] sm:$0xff]
  %v298 = vld [vmem:[%s1 + $0x870] sm:$0xff]
  %v299 = vld [vmem:[%s1 + $0x878] sm:$0xff]
  %v300 = vld [vmem:[%s1 + $0x880] sm:$0xff]
  %v301 = vld [vmem:[%s1 + $0x888] sm:$0xff]
  %v302 = vld [vmem:[%s1 + $0x890] sm:$0xff]
  %v303 = vld [vmem:[%s1 + $0x898] sm:$0xff]
  %v304 = vld [vmem:[%s1 + $0x8a0] sm:$0xff]
  %v305 = vld [vmem:[%s1 + $0x8a8] sm:$0xff]
  %v306 = vld [vmem:[%s1 + $0x8b0] sm:$0xff]
  %v307 = vld [vmem:[%s1 + $0x8b8] sm:$0xff]
  %v308 = vld [vmem:[%s1 + $0x8c0] sm:$0xff]
  %v309 = vld [vmem:[%s1 + $0x8c8] sm:$0xff]
  %v310 = vld [vmem:[%s1 + $0x8d0] sm:$0xff]
  %v311 = vld [vmem:[%s1 + $0x8d8] sm:$0xff]
  %v312 = vld [vmem:[%s1 + $0x8e0] sm:$0xff]
  %v313 = vld [vmem:[%s1 + $0x8e8] sm:$0xff]
  %v314 = vld [vmem:[%s1 + $0x8f0] sm:$0xff]
  %v315 = vld [vmem:[%s1 + $0x8f8] sm:$0xff]
  %v316 = vld [vmem:[%s1 + $0x900] sm:$0xff]
  %v317 = vld [vmem:[%s1 + $0x908] sm:$0xff]
  %v318 = vld [vmem:[%s1 + $0x910] sm:$0xff]
  %v319 = vld [vmem:[%s1 + $0x918] sm:$0xff]
  %v320 = vld [vmem:[%s1 + $0x920] sm:$0xff]
  %v321 = vld [vmem:[%s1 + $0x928] sm:$0xff]
  %v322 = vld [vmem:[%s1 + $0x930] sm:$0xff]
  %v323 = vld [vmem:[%s1 + $0x938] sm:$0xff]
  %v324 = vld [vmem:[%s1 + $0x940] sm:$0xff]
  %v325 = vld [vmem:[%s1 + $0x948] sm:$0xff]
  %v326 = vld [vmem:[%s1 + $0x950] sm:$0xff]
  %v327 = vld [vmem:[%s1 + $0x958] sm:$0xff]
  %v328 = vld [vmem:[%s1 + $0x960] sm:$0xff]
  %v329 = vld [vmem:[%s1 + $0x968] sm:$0xff]
  %v330 = vld [vmem:[%s1 + $0x970] sm:$0xff]
  %v331 = vld [vmem:[%s1 + $0x978] sm:$0xff]
  %v332 = vld [vmem:[%s1 + $0x980] sm:$0xff]
  %v333 = vld [vmem:[%s1 + $0x988] sm:$0xff]
  %v334 = vld [vmem:[%s1 + $0x990] sm:$0xff]
  %v335 = vld [vmem:[%s1 + $0x998] sm:$0xff]
  %v336 = vld [vmem:[%s1 + $0x9a0] sm:$0xff]
  %v337 = vld [vmem:[%s1 + $0x9a8] sm:$0xff]
  %v338 = vld [vmem:[%s1 + $0x9b0] sm:$0xff]
  %v339 = vld [vmem:[%s1 + $0x9b8] sm:$0xff]
  %v340 = vld [vmem:[%s1 + $0x9c0] sm:$0xff]
  %v341 = vld [vmem:[%s1 + $0x9c8] sm:$0xff]
  %v342 = vld [vmem:[%s1 + $0x9d0] sm:$0xff]
  %v343 = vld [vmem:[%s1 + $0x9d8] sm:$0xff]
  %v344 = vld [vmem:[%s1 + $0x9e0] sm:$0xff]
  %v345 = vld [vmem:[%s1 + $0x9e8] sm:$0xff]
  %v346 = vld [vmem:[%s1 + $0x9f0] sm:$0xff]
  %v347 = vld [vmem:[%s1 + $0x9f8] sm:$0xff]
  %v348 = vld [vmem:[%s1 + $0xa00] sm:$0xff]
  %v349 = vld [vmem:[%s1 + $0xa08] sm:$0xff]
  %v350 = vld [vmem:[%s1 + $0xa10] sm:$0xff]
  %v351 = vld [vmem:[%s1 + $0xa18] sm:$0xff]
  %v352 = vld [vmem:[%s1 + $0xa20] sm:$0xff]
  %v353 = vld [vmem:[%s1 + $0xa28] sm:$0xff]
  %v354 = vld [vmem:[%s1 + $0xa30] sm:$0xff]
  %v355 = vld [vmem:[%s1 + $0xa38] sm:$0xff]
  %v356 = vld [vmem:[%s1 + $0xa40] sm:$0xff]
  %v357 = vld [vmem:[%s1 + $0xa48] sm:$0xff]
  %v358 = vld [vmem:[%s1 + $0xa50] sm:$0xff]
  %v359 = vld [vmem:[%s1 + $0xa58] sm:$0xff]
  %v360 = vld [vmem:[%s1 + $0xa60] sm:$0xff]
  %v361 = vld [vmem:[%s1 + $0xa68] sm:$0xff]
  %v362 = vld [vmem:[%s1 + $0xa70] sm:$0xff]
  %v363 = vld [vmem:[%s1 + $0xa78] sm:$0xff]
  %v364 = vld [vmem:[%s1 + $0xa80] sm:$0xff]
  %v365 = vld [vmem:[%s1 + $0xa88] sm:$0xff]
  %v366 = vld [vmem:[%s1 + $0xa90] sm:$0xff]
  %v367 = vld [vmem:[%s1 + $0xa98] sm:$0xff]
  %v368 = vld [vmem:[%s1 + $0xaa0] sm:$0xff]
  %v369 = vld [vmem:[%s1 + $0xaa8] sm:$0xff]
  %v370 = vld [vmem:[%s1 + $0xab0] sm:$0xff]
  %v371 = vld [vmem:[%s1 + $0xab8] sm:$0xff]
  %v372 = vld [vmem:[%s1 + $0xac0] sm:$0xff]
  %v373 = vld [vmem:[%s1 + $0xac8] sm:$0xff]
  %v374 = vld [vmem:[%s1 + $0xad0] sm:$0xff]
  %v375 = vld [vmem:[%s1 + $0xad8] sm:$0xff]
  %v376 = vld [vmem:[%s1 + $0xae0] sm:$0xff]
  %v377 = vld [vmem:[%s1 + $0xae8] sm:$0xff]
  %v378 = vld [vmem:[%s1 + $0xaf0] sm:$0xff]
  %v379 = vld [vmem:[%s1 + $0xaf8] sm:$0xff]
  %v380 = vld [vmem:[%s1 + $0xb00] sm:$0xff]
  %v381 = vld [vmem:[%s1 + $0xb08] sm:$0xff]
  %v382 = vld [vmem:[%s1 + $0xb10] sm:$0xff]
  %v383 = vld [vmem:[%s1 + $0xb18] sm:$0xff]
  %v384 = vld [vmem:[%s1 + $0xb20] sm:$0xff]
  %v385 = vld [vmem:[%s1 + $0xb28] sm:$0xff]
  %v386 = vld [vmem:[%s1 + $0xb30] sm:$0xff]
  %v387 = vld [vmem:[%s1 + $0xb38] sm:$0xff]
  %v388 = vld [vmem:[%s1 + $0xb40] sm:$0xff]
  %v389 = vld [vmem:[%s1 + $0xb48] sm:$0xff]
  %v390 = vld [vmem:[%s1 + $0xb50] sm:$0xff]
  %v391 = vld [vmem:[%s1 + $0xb58] sm:$0xff]
  %v392 = vld [vmem:[%s1 + $0xb60] sm:$0xff]
  %v393 = vld [vmem:[%s1 + $0xb68] sm:$0xff]
  %v394 = vld [vmem:[%s1 + $0xb70] sm:$0xff]
  %v395 = vld [vmem:[%s1 + $0xb78] sm:$0xff]
  %v396 = vld [vmem:[%s1 + $0xb80] sm:$0xff]
  %v397 = vld [vmem:[%s1 + $0xb88] sm:$0xff]
  %v398 = vld [vmem:[%s1 + $0xb90] sm:$0xff]
  %v399 = vld [vmem:[%s1 + $0xb98] sm:$0xff]
  %v400 = vld [vmem:[%s1 + $0xba0] sm:$0xff]
  %v401 = vld [vmem:[%s1 + $0xba8] sm:$0xff]
  %v402 = vld [vmem:[%s1 + $0xbb0] sm:$0xff]
  %v403 = vld [vmem:[%s1 + $0xbb8] sm:$0xff]
  %v404 = vld [vmem:[%s1 + $0xbc0] sm:$0xff]
  %v405 = vld [vmem:[%s1 + $0xbc8] sm:$0xff]
  %v406 = vld [vmem:[%s1 + $0xbd0] sm:$0xff]
  %v407 = vld [vmem:[%s1 + $0xbd8] sm:$0xff]
  %v408 = vld [vmem:[%s1 + $0xbe0] sm:$0xff]
  %v409 = vld [vmem:[%s1 + $0xbe8] sm:$0xff]
  %v410 = vld [vmem:[%s1 + $0xbf0] sm:$0xff]
  %v411 = vld [vmem:[%s1 + $0xbf8] sm:$0xff]
  %v412 = vld [vmem:[%s1 + $0xc00] sm:$0xff]
  %v413 = vld [vmem:[%s1 + $0xc08] sm:$0xff]
  %v414 = vld [vmem:[%s1 + $0xc10] sm:$0xff]
  %v415 = vld [vmem:[%s1 + $0xc18] sm:$0xff]
  %v416 = vld [vmem:[%s1 + $0xc20] sm:$0xff]
  %v417 = vld [vmem:[%s1 + $0xc28] sm:$0xff]
  %v418 = vld [vmem:[%s1 + $0xc30] sm:$0xff]
  %v419 = vld [vmem:[%s1 + $0xc38] sm:$0xff]
  %v420 = vld [vmem:[%s1 + $0xc40] sm:$0xff]
  %v421 = vld [vmem:[%s1 + $0xc48] sm:$0xff]
  %v422 = vld [vmem:[%s1 + $0xc50] sm:$0xff]
  %v423 = vld [vmem:[%s1 + $0xc58] sm:$0xff]
  %v424 = vld [vmem:[%s1 + $0xc60] sm:$0xff]
  %v425 = vld [vmem:[%s1 + $0xc68] sm:$0xff]
  %v426 = vld [vmem:[%s1 + $0xc70] sm:$0xff]
  %v427 = vld [vmem:[%s1 + $0xc78] sm:$0xff]
  %v428 = vld [vmem:[%s1 + $0xc80] sm:$0xff]
  %v429 = vld [vmem:[%s1 + $0xc88] sm:$0xff]
  %v430 = vld [vmem:[%s1 + $0xc90] sm:$0xff]
  %v431 = vld [vmem:[%s1 + $0xc98] sm:$0xff]
  %v432 = vld [vmem:[%s1 + $0xca0] sm:$0xff]
  %v433 = vld [vmem:[%s1 + $0xca8] sm:$0xff]
  %v434 = vld [vmem:[%s1 + $0xcb0] sm:$0xff]
  %v435 = vld [vmem:[%s1 + $0xcb8] sm:$0xff]
  %v436 = vld [vmem:[%s1 + $0xcc0] sm:$0xff]
  %v437 = vld [vmem:[%s1 + $0xcc8] sm:$0xff]
  %v438 = vld [vmem:[%s1 + $0xcd0] sm:$0xff]
  %v439 = vld [vmem:[%s1 + $0xcd8] sm:$0xff]
  %v440 = vld [vmem:[%s1 + $0xce0] sm:$0xff]
  %v441 = vld [vmem:[%s1 + $0xce8] sm:$0xff]
  %v442 = vld [vmem:[%s1 + $0xcf0] sm:$0xff]
  %v443 = vld [vmem:[%s1 + $0xcf8] sm:$0xff]
  %v444 = vld [vmem:[%s1 + $0xd00] sm:$0xff]
  %v445 = vld [vmem:[%s1 + $0xd08] sm:$0xff]
  %v446 = vld [vmem:[%s1 + $0xd10] sm:$0xff]
  %v447 = vld [vmem:[%s1 + $0xd18] sm:$0xff]
  %v448 = vld [vmem:[%s1 + $0xd20] sm:$0xff]
  %v449 = vld [vmem:[%s1 + $0xd28] sm:$0xff]
  %v450 = vld [vmem:[%s1 + $0xd30] sm:$0xff]
  %v451 = vld [vmem:[%s1 + $0xd38] sm:$0xff]
  %v452 = vld [vmem:[%s1 + $0xd40] sm:$0xff]
  %v453 = vld [vmem:[%s1 + $0xd48] sm:$0xff]
  %v454 = vld [vmem:[%s1 + $0xd50] sm:$0xff]
  %v455 = vld [vmem:[%s1 + $0xd58] sm:$0xff]
  %v456 = vld [vmem:[%s1 + $0xd60] sm:$0xff]
  %v457 = vld [vmem:[%s1 + $0xd68] sm:$0xff]
  %v458 = vld [vmem:[%s1 + $0xd70] sm:$0xff]
  %v459 = vld [vmem:[%s1 + $0xd78] sm:$0xff]
  %v460 = vld [vmem:[%s1 + $0xd80] sm:$0xff]
  %v461 = vld [vmem:[%s1 + $0xd88] sm:$0xff]
  %v462 = vld [vmem:[%s1 + $0xd90] sm:$0xff]
  %v463 = vld [vmem:[%s1 + $0xd98] sm:$0xff]
  %v464 = vld [vmem:[%s1 + $0xda0] sm:$0xff]
  %v465 = vld [vmem:[%s1 + $0xda8] sm:$0xff]
  %v466 = vld [vmem:[%s1 + $0xdb0] sm:$0xff]
  %v467 = vld [vmem:[%s1 + $0xdb8] sm:$0xff]
  %v468 = vld [vmem:[%s1 + $0xdc0] sm:$0xff]
  %v469 = vld [vmem:[%s1 + $0xdc8] sm:$0xff]
  %v470 = vld [vmem:[%s1 + $0xdd0] sm:$0xff]
  %v471 = vld [vmem:[%s1 + $0xdd8] sm:$0xff]
  %v472 = vld [vmem:[%s1 + $0xde0] sm:$0xff]
  %v473 = vld [vmem:[%s1 + $0xde8] sm:$0xff]
  %v474 = vld [vmem:[%s1 + $0xdf0] sm:$0xff]
  %v475 = vld [vmem:[%s1 + $0xdf8] sm:$0xff]
  %v476 = vld [vmem:[%s1 + $0xe00] sm:$0xff]
  %v477 = vld [vmem:[%s1 + $0xe08] sm:$0xff]
  %v478 = vld [vmem:[%s1 + $0xe10] sm:$0xff]
  %v479 = vld [vmem:[%s1 + $0xe18] sm:$0xff]
  %v480 = vld [vmem:[%s1 + $0xe20] sm:$0xff]
  %v481 = vld [vmem:[%s1 + $0xe28] sm:$0xff]
  %v482 = vld [vmem:[%s1 + $0xe30] sm:$0xff]
  %v483 = vld [vmem:[%s1 + $0xe38] sm:$0xff]
  %v484 = vld [vmem:[%s1 + $0xe40] sm:$0xff]
  %v485 = vld [vmem:[%s1 + $0xe48] sm:$0xff]
  %v486 = vld [vmem:[%s1 + $0xe50] sm:$0xff]
  %v487 = vld [vmem:[%s1 + $0xe58] sm:$0xff]
  %v488 = vld [vmem:[%s1 + $0xe60] sm:$0xff]
  %v489 = vld [vmem:[%s1 + $0xe68] sm:$0xff]
  %v490 = vld [vmem:[%s1 + $0xe70] sm:$0xff]
  %v491 = vld [vmem:[%s1 + $0xe78] sm:$0xff]
  %v492 = vld [vmem:[%s1 + $0xe80] sm:$0xff]
  %v493 = vld [vmem:[%s1 + $0xe88] sm:$0xff]
  %v494 = vld [vmem:[%s1 + $0xe90] sm:$0xff]
  %v495 = vld [vmem:[%s1 + $0xe98] sm:$0xff]
  %v496 = vld [vmem:[%s1 + $0xea0] sm:$0xff]
  %v497 = vld [vmem:[%s1 + $0xea8] sm:$0xff]
  %v498 = vld [vmem:[%s1 + $0xeb0] sm:$0xff]
  %v499 = vld [vmem:[%s1 + $0xeb8] sm:$0xff]
  %v500 = vld [vmem:[%s1 + $0xec0] sm:$0xff]
  %v501 = vld [vmem:[%s1 + $0xec8] sm:$0xff]
  %v502 = vld [vmem:[%s1 + $0xed0] sm:$0xff]
  %v503 = vld [vmem:[%s1 + $0xed8] sm:$0xff]
  %v504 = vld [vmem:[%s1 + $0xee0] sm:$0xff]
  %v505 = vld [vmem:[%s1 + $0xee8] sm:$0xff]
  %v506 = vld [vmem:[%s1 + $0xef0] sm:$0xff]
  %v507 = vld [vmem:[%s1 + $0xef8] sm:$0xff]
  %v508 = vld [vmem:[%s1 + $0xf00] sm:$0xff]
  %v509 = vld [vmem:[%s1 + $0xf08] sm:$0xff]
  %v510 = vld [vmem:[%s1 + $0xf10] sm:$0xff]
  %v511 = vld [vmem:[%s1 + $0xf18] sm:$0xff]
  %v512 = vld [vmem:[%s1 + $0xf20] sm:$0xff]
  %v513 = vld [vmem:[%s1 + $0xf28] sm:$0xff]
  %v514 = vld [vmem:[%s1 + $0xf30] sm:$0xff]
  %v515 = vld [vmem:[%s1 + $0xf38] sm:$0xff]
  %v516 = vld [vmem:[%s1 + $0xf40] sm:$0xff]
  %v517 = vld [vmem:[%s1 + $0xf48] sm:$0xff]
  %v518 = vld [vmem:[%s1 + $0xf50] sm:$0xff]
  %v519 = vld [vmem:[%s1 + $0xf58] sm:$0xff]
  %v520 = vld [vmem:[%s1 + $0xf60] sm:$0xff]
  %v521 = vld [vmem:[%s1 + $0xf68] sm:$0xff]
  %v522 = vld [vmem:[%s1 + $0xf70] sm:$0xff]
  %v523 = vld [vmem:[%s1 + $0xf78] sm:$0xff]
  %v524 = vld [vmem:[%s1 + $0xf80] sm:$0xff]
  %v525 = vld [vmem:[%s1 + $0xf88] sm:$0xff]
  %v526 = vld [vmem:[%s1 + $0xf90] sm:$0xff]
  %v527 = vld [vmem:[%s1 + $0xf98] sm:$0xff]
  %v528 = vld [vmem:[%s1 + $0xfa0] sm:$0xff]
  %v529 = vld [vmem:[%s1 + $0xfa8] sm:$0xff]
  %v530 = vld [vmem:[%s1 + $0xfb0] sm:$0xff]
  %v531 = vld [vmem:[%s1 + $0xfb8] sm:$0xff]
  %v532 = vld [vmem:[%s1 + $0xfc0] sm:$0xff]
  %v533 = vld [vmem:[%s1 + $0xfc8] sm:$0xff]
  %v534 = vld [vmem:[%s1 + $0xfd0] sm:$0xff]
  %v535 = vld [vmem:[%s1 + $0xfd8] sm:$0xff]
  %v536 = vld [vmem:[%s1 + $0xfe0] sm:$0xff]
  %v537 = vld [vmem:[%s1 + $0xfe8] sm:$0xff]
  %v538 = vld [vmem:[%s1 + $0xff0] sm:$0xff]
  %v539 = vld [vmem:[%s1 + $0xff8] sm:$0xff]
  %v540 = vld [vmem:[%s1 + $0x1000] sm:$0xff]
  %v541 = vld [vmem:[%s1 + $0x1008] sm:$0xff]
  %v542 = vld [vmem:[%s1 + $0x1010] sm:$0xff]
  %v543 = vld [vmem:[%s1 + $0x1018] sm:$0xff]
  %v544 = vld [vmem:[%s1 + $0x1020] sm:$0xff]
  %v545 = vld [vmem:[%s1 + $0x1028] sm:$0xff]
  %v546 = vld [vmem:[%s1 + $0x1030] sm:$0xff]
  %v547 = vld [vmem:[%s1 + $0x1038] sm:$0xff]
  %v548 = vld [vmem:[%s1 + $0x1040] sm:$0xff]
  %v549 = vld [vmem:[%s1 + $0x1048] sm:$0xff]
  %v550 = vld [vmem:[%s1 + $0x1050] sm:$0xff]
  %v551 = vld [vmem:[%s1 + $0x1058] sm:$0xff]
  %v552 = vld [vmem:[%s1 + $0x1060] sm:$0xff]
  %v553 = vld [vmem:[%s1 + $0x1068] sm:$0xff]
  %v554 = vld [vmem:[%s1 + $0x1070] sm:$0xff]
  %v555 = vld [vmem:[%s1 + $0x1078] sm:$0xff]
  %v556 = vld [vmem:[%s1 + $0x1080] sm:$0xff]
  %v557 = vld [vmem:[%s1 + $0x1088] sm:$0xff]
  %v558 = vld [vmem:[%s1 + $0x1090] sm:$0xff]
  %v559 = vld [vmem:[%s1 + $0x1098] sm:$0xff]
  %v560 = vld [vmem:[%s1 + $0x10a0] sm:$0xff]
  %v561 = vld [vmem:[%s1 + $0x10a8] sm:$0xff]
  %v562 = vld [vmem:[%s1 + $0x10b0] sm:$0xff]
  %v563 = vld [vmem:[%s1 + $0x10b8] sm:$0xff]
  %v564 = vld [vmem:[%s1 + $0x10c0] sm:$0xff]
  %v565 = vld [vmem:[%s1 + $0x10c8] sm:$0xff]
  %v566 = vld [vmem:[%s1 + $0x10d0] sm:$0xff]
  %v567 = vld [vmem:[%s1 + $0x10d8] sm:$0xff]
  %v568 = vld [vmem:[%s1 + $0x10e0] sm:$0xff]
  %v569 = vld [vmem:[%s1 + $0x10e8] sm:$0xff]
  %v570 = vld [vmem:[%s1 + $0x10f0] sm:$0xff]
  %v571 = vld [vmem:[%s1 + $0x10f8] sm:$0xff]
  %v572 = vld [vmem:[%s1 + $0x1100] sm:$0xff]
  %v573 = vld [vmem:[%s1 + $0x1108] sm:$0xff]
  %v574 = vld [vmem:[%s1 + $0x1110] sm:$0xff]
  %v575 = vld [vmem:[%s1 + $0x1118] sm:$0xff]
  %v576 = vld [vmem:[%s1 + $0x1120] sm:$0xff]
  %v577 = vld [vmem:[%s1 + $0x1128] sm:$0xff]
  %v578 = vld [vmem:[%s1 + $0x1130] sm:$0xff]
  %v579 = vld [vmem:[%s1 + $0x1138] sm:$0xff]
  %v580 = vld [vmem:[%s1 + $0x1140] sm:$0xff]
  %v581 = vld [vmem:[%s1 + $0x1148] sm:$0xff]
  %v582 = vld [vmem:[%s1 + $0x1150] sm:$0xff]
  %v583 = vld [vmem:[%s1 + $0x1158] sm:$0xff]
  %v584 = vld [vmem:[%s1 + $0x1160] sm:$0xff]
  %v585 = vld [vmem:[%s1 + $0x1168] sm:$0xff]
  %v586 = vld [vmem:[%s1 + $0x1170] sm:$0xff]
  %v587 = vld [vmem:[%s1 + $0x1178] sm:$0xff]
  %v588 = vld [vmem:[%s1 + $0x1180] sm:$0xff]
  %v589 = vld [vmem:[%s1 + $0x1188] sm:$0xff]
  %v590 = vld [vmem:[%s1 + $0x1190] sm:$0xff]
  %v591 = vld [vmem:[%s1 + $0x1198] sm:$0xff]
  %v592 = vld [vmem:[%s1 + $0x11a0] sm:$0xff]
  %v593 = vld [vmem:[%s1 + $0x11a8] sm:$0xff]
  %v594 = vld [vmem:[%s1 + $0x11b0] sm:$0xff]
  %v595 = vld [vmem:[%s1 + $0x11b8] sm:$0xff]
  %v596 = vld [vmem:[%s1 + $0x11c0] sm:$0xff]
  %v597 = vld [vmem:[%s1 + $0x11c8] sm:$0xff]
  %v598 = vld [vmem:[%s1 + $0x11d0] sm:$0xff]
  %v599 = vld [vmem:[%s1 + $0x11d8] sm:$0xff]
  %v600 = vld [vmem:[%s1 + $0x11e0] sm:$0xff]
  %v601 = vld [vmem:[%s1 + $0x11e8] sm:$0xff]
  %v602 = vld [vmem:[%s1 + $0x11f0] sm:$0xff]
  %v603 = vld [vmem:[%s1 + $0x11f8] sm:$0xff]
  %v604 = vld [vmem:[%s1 + $0x1200] sm:$0xff]
  %v605 = vld [vmem:[%s1 + $0x1208] sm:$0xff]
  %v606 = vld [vmem:[%s1 + $0x1210] sm:$0xff]
  %v607 = vld [vmem:[%s1 + $0x1218] sm:$0xff]
  %v608 = vld [vmem:[%s1 + $0x1220] sm:$0xff]
  %v609 = vld [vmem:[%s1 + $0x1228] sm:$0xff]
  %v610 = vld [vmem:[%s1 + $0x1230] sm:$0xff]
  %v611 = vld [vmem:[%s1 + $0x1238] sm:$0xff]
  %v612 = vld [vmem:[%s1 + $0x1240] sm:$0xff]
  %v613 = vld [vmem:[%s1 + $0x1248] sm:$0xff]
  %v614 = vld [vmem:[%s1 + $0x1250] sm:$0xff]
  %v615 = vld [vmem:[%s1 + $0x1258] sm:$0xff]
  %v616 = vld [vmem:[%s1 + $0x1260] sm:$0xff]
  %v617 = vld [vmem:[%s1 + $0x1268] sm:$0xff]
  %v618 = vld [vmem:[%s1 + $0x1270] sm:$0xff]
  %v619 = vld [vmem:[%s1 + $0x1278] sm:$0xff]
  %v620 = vld [vmem:[%s1 + $0x1280] sm:$0xff]
  %v621 = vld [vmem:[%s1 + $0x1288] sm:$0xff]
  %v622 = vld [vmem:[%s1 + $0x1290] sm:$0xff]
  %v623 = vld [vmem:[%s1 + $0x1298] sm:$0xff]
  %v624 = vld [vmem:[%s1 + $0x12a0] sm:$0xff]
  %v625 = vld [vmem:[%s1 + $0x12a8] sm:$0xff]
  %v626 = vld [vmem:[%s1 + $0x12b0] sm:$0xff]
  %v627 = vld [vmem:[%s1 + $0x12b8] sm:$0xff]
  %v628 = vld [vmem:[%s1 + $0x12c0] sm:$0xff]
  %v629 = vld [vmem:[%s1 + $0x12c8] sm:$0xff]
  %v630 = vld [vmem:[%s1 + $0x12d0] sm:$0xff]
  %v631 = vld [vmem:[%s1 + $0x12d8] sm:$0xff]
  %v632 = vld [vmem:[%s1 + $0x12e0] sm:$0xff]
  %v633 = vld [vmem:[%s1 + $0x12e8] sm:$0xff]
  %v634 = vld [vmem:[%s1 + $0x12f0] sm:$0xff]
  %v635 = vld [vmem:[%s1 + $0x12f8] sm:$0xff]
  %v636 = vld [vmem:[%s1 + $0x1300] sm:$0xff]
  %v637 = vld [vmem:[%s1 + $0x1308] sm:$0xff]
  %v638 = vld [vmem:[%s1 + $0x1310] sm:$0xff]
  %v639 = vld [vmem:[%s1 + $0x1318] sm:$0xff]
  %v640 = vld [vmem:[%s1 + $0x1320] sm:$0xff]
  %v641 = vld [vmem:[%s1 + $0x1328] sm:$0xff]
  %v642 = vld [vmem:[%s1 + $0x1330] sm:$0xff]
  %v643 = vld [vmem:[%s1 + $0x1338] sm:$0xff]
  %v644 = vld [vmem:[%s1 + $0x1340] sm:$0xff]
  %v645 = vld [vmem:[%s1 + $0x1348] sm:$0xff]
  %v646 = vld [vmem:[%s1 + $0x1350] sm:$0xff]
  %v647 = vld [vmem:[%s1 + $0x1358] sm:$0xff]
  %v648 = vld [vmem:[%s1 + $0x1360] sm:$0xff]
  %v649 = vld [vmem:[%s1 + $0x1368] sm:$0xff]
  %v650 = vld [vmem:[%s1 + $0x1370] sm:$0xff]
  %v651 = vld [vmem:[%s1 + $0x1378] sm:$0xff]
  %v652 = vld [vmem:[%s1 + $0x1380] sm:$0xff]
  %v653 = vld [vmem:[%s1 + $0x1388] sm:$0xff]
  %v654 = vld [vmem:[%s1 + $0x1390] sm:$0xff]
  %v655 = vld [vmem:[%s1 + $0x1398] sm:$0xff]
  %v656 = vld [vmem:[%s1 + $0x13a0] sm:$0xff]
  %v657 = vld [vmem:[%s1 + $0x13a8] sm:$0xff]
  %v658 = vld [vmem:[%s1 + $0x13b0] sm:$0xff]
  %v659 = vld [vmem:[%s1 + $0x13b8] sm:$0xff]
  %v660 = vld [vmem:[%s1 + $0x13c0] sm:$0xff]
  %v661 = vld [vmem:[%s1 + $0x13c8] sm:$0xff]
  %v662 = vld [vmem:[%s1 + $0x13d0] sm:$0xff]
  %v663 = vld [vmem:[%s1 + $0x13d8] sm:$0xff]
  %v664 = vld [vmem:[%s1 + $0x13e0] sm:$0xff]
  %v665 = vld [vmem:[%s1 + $0x13e8] sm:$0xff]
  %v666 = vld [vmem:[%s1 + $0x13f0] sm:$0xff]
  %v667 = vld [vmem:[%s1 + $0x13f8] sm:$0xff]
  %v668 = vld [vmem:[%s1 + $0x1400] sm:$0xff]
  %v669 = vld [vmem:[%s1 + $0x1408] sm:$0xff]
  %v670 = vld [vmem:[%s1 + $0x1410] sm:$0xff]
  %v671 = vld [vmem:[%s1 + $0x1418] sm:$0xff]
  %v672 = vld [vmem:[%s1 + $0x1420] sm:$0xff]
  %v673 = vld [vmem:[%s1 + $0x1428] sm:$0xff]
  %v674 = vld [vmem:[%s1 + $0x1430] sm:$0xff]
  %v675 = vld [vmem:[%s1 + $0x1438] sm:$0xff]
  %v676 = vld [vmem:[%s1 + $0x1440] sm:$0xff]
  %v677 = vld [vmem:[%s1 + $0x1448] sm:$0xff]
  %v678 = vld [vmem:[%s1 + $0x1450] sm:$0xff]
  %v679 = vld [vmem:[%s1 + $0x1458] sm:$0xff]
  %v680 = vld [vmem:[%s1 + $0x1460] sm:$0xff]
  %v681 = vld [vmem:[%s1 + $0x1468] sm:$0xff]
  %v682 = vld [vmem:[%s1 + $0x1470] sm:$0xff]
  %v683 = vld [vmem:[%s1 + $0x1478] sm:$0xff]
  %v684 = vld [vmem:[%s1 + $0x1480] sm:$0xff]
  %v685 = vld [vmem:[%s1 + $0x1488] sm:$0xff]
  %v686 = vld [vmem:[%s1 + $0x1490] sm:$0xff]
  %v687 = vld [vmem:[%s1 + $0x1498] sm:$0xff]
  %v688 = vld [vmem:[%s1 + $0x14a0] sm:$0xff]
  %v689 = vld [vmem:[%s1 + $0x14a8] sm:$0xff]
  %v690 = vld [vmem:[%s1 + $0x14b0] sm:$0xff]
  %v691 = vld [vmem:[%s1 + $0x14b8] sm:$0xff]
  %v692 = vld [vmem:[%s1 + $0x14c0] sm:$0xff]
  %v693 = vld [vmem:[%s1 + $0x14c8] sm:$0xff]
  %v694 = vld [vmem:[%s1 + $0x14d0] sm:$0xff]
  %v695 = vld [vmem:[%s1 + $0x14d8] sm:$0xff]
  %v696 = vld [vmem:[%s1 + $0x14e0] sm:$0xff]
  %v697 = vld [vmem:[%s1 + $0x14e8] sm:$0xff]
  %v698 = vld [vmem:[%s1 + $0x14f0] sm:$0xff]
  %v699 = vld [vmem:[%s1 + $0x14f8] sm:$0xff]
  %v700 = vld [vmem:[%s1 + $0x1500] sm:$0xff]
  %v701 = vld [vmem:[%s1 + $0x1508] sm:$0xff]
  %v702 = vld [vmem:[%s1 + $0x1510] sm:$0xff]
  %v703 = vld [vmem:[%s1 + $0x1518] sm:$0xff]
  %v704 = vld [vmem:[%s1 + $0x1520] sm:$0xff]
  %v705 = vld [vmem:[%s1 + $0x1528] sm:$0xff]
  %v706 = vld [vmem:[%s1 + $0x1530] sm:$0xff]
  %v707 = vld [vmem:[%s1 + $0x1538] sm:$0xff]
  %v708 = vld [vmem:[%s1 + $0x1540] sm:$0xff]
  %v709 = vld [vmem:[%s1 + $0x1548] sm:$0xff]
  %v710 = vld [vmem:[%s1 + $0x1550] sm:$0xff]
  %v711 = vld [vmem:[%s1 + $0x1558] sm:$0xff]
  %v712 = vld [vmem:[%s1 + $0x1560] sm:$0xff]
  %v713 = vld [vmem:[%s1 + $0x1568] sm:$0xff]
  %v714 = vld [vmem:[%s1 + $0x1570] sm:$0xff]
  %v715 = vld [vmem:[%s1 + $0x1578] sm:$0xff]
  %v716 = vld [vmem:[%s1 + $0x1580] sm:$0xff]
  %v717 = vld [vmem:[%s1 + $0x1588] sm:$0xff]
  %v718 = vld [vmem:[%s1 + $0x1590] sm:$0xff]
  %v719 = vld [vmem:[%s1 + $0x1598] sm:$0xff]
  %v720 = vld [vmem:[%s1 + $0x15a0] sm:$0xff]
  %v721 = vld [vmem:[%s1 + $0x15a8] sm:$0xff]
  %v722 = vld [vmem:[%s1 + $0x15b0] sm:$0xff]
  %v723 = vld [vmem:[%s1 + $0x15b8] sm:$0xff]
  %v724 = vld [vmem:[%s1 + $0x15c0] sm:$0xff]
  %v725 = vld [vmem:[%s1 + $0x15c8] sm:$0xff]
  %v726 = vld [vmem:[%s1 + $0x15d0] sm:$0xff]
  %v727 = vld [vmem:[%s1 + $0x15d8] sm:$0xff]
  %v728 = vld [vmem:[%s1 + $0x15e0] sm:$0xff]
  %v729 = vld [vmem:[%s1 + $0x15e8] sm:$0xff]
  %v730 = vld [vmem:[%s1 + $0x15f0] sm:$0xff]
  %v731 = vld [vmem:[%s1 + $0x15f8] sm:$0xff]
  %v732 = vld [vmem:[%s1 + $0x1600] sm:$0xff]
  %v733 = vld [vmem:[%s1 + $0x1608] sm:$0xff]
  %v734 = vld [vmem:[%s1 + $0x1610] sm:$0xff]
  %v735 = vld [vmem:[%s1 + $0x1618] sm:$0xff]
  %v736 = vld [vmem:[%s1 + $0x1620] sm:$0xff]
  %v737 = vld [vmem:[%s1 + $0x1628] sm:$0xff]
  %v738 = vld [vmem:[%s1 + $0x1630] sm:$0xff]
  %v739 = vld [vmem:[%s1 + $0x1638] sm:$0xff]
  %v740 = vld [vmem:[%s1 + $0x1640] sm:$0xff]
  %v741 = vld [vmem:[%s1 + $0x1648] sm:$0xff]
  %v742 = vld [vmem:[%s1 + $0x1650] sm:$0xff]
  %v743 = vld [vmem:[%s1 + $0x1658] sm:$0xff]
  %v744 = vld [vmem:[%s1 + $0x1660] sm:$0xff]
  %v745 = vld [vmem:[%s1 + $0x1668] sm:$0xff]
  %v746 = vld [vmem:[%s1 + $0x1670] sm:$0xff]
  %v747 = vld [vmem:[%s1 + $0x1678] sm:$0xff]
  %v748 = vld [vmem:[%s1 + $0x1680] sm:$0xff]
  %v749 = vld [vmem:[%s1 + $0x1688] sm:$0xff]
  %v750 = vld [vmem:[%s1 + $0x1690] sm:$0xff]
  %v751 = vld [vmem:[%s1 + $0x1698] sm:$0xff]
  %v752 = vld [vmem:[%s1 + $0x16a0] sm:$0xff]
  %v753 = vld [vmem:[%s1 + $0x16a8] sm:$0xff]
  %v754 = vld [vmem:[%s1 + $0x16b0] sm:$0xff]
  %v755 = vld [vmem:[%s1 + $0x16b8] sm:$0xff]
  %v756 = vld [vmem:[%s1 + $0x16c0] sm:$0xff]
  %v757 = vld [vmem:[%s1 + $0x16c8] sm:$0xff]
  %v758 = vld [vmem:[%s1 + $0x16d0] sm:$0xff]
  %v759 = vld [vmem:[%s1 + $0x16d8] sm:$0xff]
  %v760 = vld [vmem:[%s1 + $0x16e0] sm:$0xff]
  %v761 = vld [vmem:[%s1 + $0x16e8] sm:$0xff]
  %v762 = vld [vmem:[%s1 + $0x16f0] sm:$0xff]
  %v763 = vld [vmem:[%s1 + $0x16f8] sm:$0xff]
  %v764 = vld [vmem:[%s1 + $0x1700] sm:$0xff]
  %v765 = vld [vmem:[%s1 + $0x1708] sm:$0xff]
  %v766 = vld [vmem:[%s1 + $0x1710] sm:$0xff]
  %v767 = vld [vmem:[%s1 + $0x1718] sm:$0xff]
  %v768 = vld [vmem:[%s1 + $0x1720] sm:$0xff]
  %v769 = vld [vmem:[%s1 + $0x1728] sm:$0xff]
  %v770 = vld [vmem:[%s1 + $0x1730] sm:$0xff]
  %v771 = vld [vmem:[%s1 + $0x1738] sm:$0xff]
  %v772 = vld [vmem:[%s1 + $0x1740] sm:$0xff]
  %v773 = vld [vmem:[%s1 + $0x1748] sm:$0xff]
  %v774 = vld [vmem:[%s1 + $0x1750] sm:$0xff]
  %v775 = vld [vmem:[%s1 + $0x1758] sm:$0xff]
  %v776 = vld [vmem:[%s1 + $0x1760] sm:$0xff]
  %v777 = vld [vmem:[%s1 + $0x1768] sm:$0xff]
  %v778 = vld [vmem:[%s1 + $0x1770] sm:$0xff]
  %v779 = vld [vmem:[%s1 + $0x1778] sm:$0xff]
  %v780 = vld [vmem:[%s1 + $0x1780] sm:$0xff]
  %v781 = vld [vmem:[%s1 + $0x1788] sm:$0xff]
  %v782 = vld [vmem:[%s1 + $0x1790] sm:$0xff]
  %v783 = vld [vmem:[%s1 + $0x1798] sm:$0xff]
  %v784 = vld [vmem:[%s1 + $0x17a0] sm:$0xff]
  %v785 = vld [vmem:[%s1 + $0x17a8] sm:$0xff]
  %v786 = vld [vmem:[%s1 + $0x17b0] sm:$0xff]
  %v787 = vld [vmem:[%s1 + $0x17b8] sm:$0xff]
  %v788 = vld [vmem:[%s1 + $0x17c0] sm:$0xff]
  %v789 = vld [vmem:[%s1 + $0x17c8] sm:$0xff]
  %v790 = vld [vmem:[%s1 + $0x17d0] sm:$0xff]
  %v791 = vld [vmem:[%s1 + $0x17d8] sm:$0xff]
  %v792 = vld [vmem:[%s1 + $0x17e0] sm:$0xff]
  %v793 = vld [vmem:[%s1 + $0x17e8] sm:$0xff]
  %v794 = vld [vmem:[%s1 + $0x17f0] sm:$0xff]
  %v795 = vld [vmem:[%s1 + $0x17f8] sm:$0xff]
  %v796 = vld [vmem:[%s1 + $0x1800] sm:$0xff]
  %v797 = vld [vmem:[%s1 + $0x1808] sm:$0xff]
  %v798 = vld [vmem:[%s1 + $0x1810] sm:$0xff]
  %v799 = vld [vmem:[%s1 + $0x1818] sm:$0xff]
  %v800 = vld [vmem:[%s1 + $0x1820] sm:$0xff]
  %v801 = vld [vmem:[%s1 + $0x1828] sm:$0xff]
  %v802 = vld [vmem:[%s1 + $0x1830] sm:$0xff]
  %v803 = vld [vmem:[%s1 + $0x1838] sm:$0xff]
  %v804 = vld [vmem:[%s1 + $0x1840] sm:$0xff]
  %v805 = vld [vmem:[%s1 + $0x1848] sm:$0xff]
  %v806 = vld [vmem:[%s1 + $0x1850] sm:$0xff]
  %v807 = vld [vmem:[%s1 + $0x1858] sm:$0xff]
  %v808 = vld [vmem:[%s1 + $0x1860] sm:$0xff]
  %v809 = vld [vmem:[%s1 + $0x1868] sm:$0xff]
  %v810 = vld [vmem:[%s1 + $0x1870] sm:$0xff]
  %v811 = vld [vmem:[%s1 + $0x1878] sm:$0xff]
  %v812 = vld [vmem:[%s1 + $0x1880] sm:$0xff]
  %v813 = vld [vmem:[%s1 + $0x1888] sm:$0xff]
  %v814 = vld [vmem:[%s1 + $0x1890] sm:$0xff]
  %v815 = vld [vmem:[%s1 + $0x1898] sm:$0xff]
  %v816 = vld [vmem:[%s1 + $0x18a0] sm:$0xff]
  %v817 = vld [vmem:[%s1 + $0x18a8] sm:$0xff]
  %v818 = vld [vmem:[%s1 + $0x18b0] sm:$0xff]
  %v819 = vld [vmem:[%s1 + $0x18b8] sm:$0xff]
  %v820 = vld [vmem:[%s1 + $0x18c0] sm:$0xff]
  %v821 = vld [vmem:[%s1 + $0x18c8] sm:$0xff]
  %v822 = vld [vmem:[%s1 + $0x18d0] sm:$0xff]
  %v823 = vld [vmem:[%s1 + $0x18d8] sm:$0xff]
  %v824 = vld [vmem:[%s1 + $0x18e0] sm:$0xff]
  %v825 = vld [vmem:[%s1 + $0x18e8] sm:$0xff]
  %v826 = vld [vmem:[%s1 + $0x18f0] sm:$0xff]
  %v827 = vld [vmem:[%s1 + $0x18f8] sm:$0xff]
  %v828 = vld [vmem:[%s1 + $0x1900] sm:$0xff]
  %v829 = vld [vmem:[%s1 + $0x1908] sm:$0xff]
  %v830 = vld [vmem:[%s1 + $0x1910] sm:$0xff]
  %v831 = vld [vmem:[%s1 + $0x1918] sm:$0xff]
  %v832 = vld [vmem:[%s1 + $0x1920] sm:$0xff]
  %v833 = vld [vmem:[%s1 + $0x1928] sm:$0xff]
  %v834 = vld [vmem:[%s1 + $0x1930] sm:$0xff]
  %v835 = vld [vmem:[%s1 + $0x1938] sm:$0xff]
  %v836 = vld [vmem:[%s1 + $0x1940] sm:$0xff]
  %v837 = vld [vmem:[%s1 + $0x1948] sm:$0xff]
  %v838 = vld [vmem:[%s1 + $0x1950] sm:$0xff]
  %v839 = vld [vmem:[%s1 + $0x1958] sm:$0xff]
  %v840 = vld [vmem:[%s1 + $0x1960] sm:$0xff]
  %v841 = vld [vmem:[%s1 + $0x1968] sm:$0xff]
  %v842 = vld [vmem:[%s1 + $0x1970] sm:$0xff]
  %v843 = vld [vmem:[%s1 + $0x1978] sm:$0xff]
  %v844 = vld [vmem:[%s1 + $0x1980] sm:$0xff]
  %v845 = vld [vmem:[%s1 + $0x1988] sm:$0xff]
  %v846 = vld [vmem:[%s1 + $0x1990] sm:$0xff]
  %v847 = vld [vmem:[%s1 + $0x1998] sm:$0xff]
  %v848 = vld [vmem:[%s1 + $0x19a0] sm:$0xff]
  %v849 = vld [vmem:[%s1 + $0x19a8] sm:$0xff]
  %v850 = vld [vmem:[%s1 + $0x19b0] sm:$0xff]
  %v851 = vld [vmem:[%s1 + $0x19b8] sm:$0xff]
  %v852 = vld [vmem:[%s1 + $0x19c0] sm:$0xff]
  %v853 = vld [vmem:[%s1 + $0x19c8] sm:$0xff]
  %v854 = vld [vmem:[%s1 + $0x19d0] sm:$0xff]
  %v855 = vld [vmem:[%s1 + $0x19d8] sm:$0xff]
  %v856 = vld [vmem:[%s1 + $0x19e0] sm:$0xff]
  %v857 = vld [vmem:[%s1 + $0x19e8] sm:$0xff]
  %v858 = vld [vmem:[%s1 + $0x19f0] sm:$0xff]
  %v859 = vld [vmem:[%s1 + $0x19f8] sm:$0xff]
  %v860 = vld [vmem:[%s1 + $0x1a00] sm:$0xff]
  %v861 = vld [vmem:[%s1 + $0x1a08] sm:$0xff]
  %v862 = vld [vmem:[%s1 + $0x1a10] sm:$0xff]
  %v863 = vld [vmem:[%s1 + $0x1a18] sm:$0xff]
  %v864 = vld [vmem:[%s1 + $0x1a20] sm:$0xff]
  %v865 = vld [vmem:[%s1 + $0x1a28] sm:$0xff]
  %v866 = vld [vmem:[%s1 + $0x1a30] sm:$0xff]
  %v867 = vld [vmem:[%s1 + $0x1a38] sm:$0xff]
  %v868 = vld [vmem:[%s1 + $0x1a40] sm:$0xff]
  %v869 = vld [vmem:[%s1 + $0x1a48] sm:$0xff]
  %v870 = vld [vmem:[%s1 + $0x1a50] sm:$0xff]
  %v871 = vld [vmem:[%s1 + $0x1a58] sm:$0xff]
  %v872 = vld [vmem:[%s1 + $0x1a60] sm:$0xff]
  %v873 = vld [vmem:[%s1 + $0x1a68] sm:$0xff]
  %v874 = vld [vmem:[%s1 + $0x1a70] sm:$0xff]
  %v875 = vld [vmem:[%s1 + $0x1a78] sm:$0xff]
  %v876 = vld [vmem:[%s1 + $0x1a80] sm:$0xff]
  %v877 = vld [vmem:[%s1 + $0x1a88] sm:$0xff]
  %v878 = vld [vmem:[%s1 + $0x1a90] sm:$0xff]
  %v879 = vld [vmem:[%s1 + $0x1a98] sm:$0xff]
  %v880 = vld [vmem:[%s1 + $0x1aa0] sm:$0xff]
  %v881 = vld [vmem:[%s1 + $0x1aa8] sm:$0xff]
  %v882 = vld [vmem:[%s1 + $0x1ab0] sm:$0xff]
  %v883 = vld [vmem:[%s1 + $0x1ab8] sm:$0xff]
  %v884 = vld [vmem:[%s1 + $0x1ac0] sm:$0xff]
  %v885 = vld [vmem:[%s1 + $0x1ac8] sm:$0xff]
  %v886 = vld [vmem:[%s1 + $0x1ad0] sm:$0xff]
  %v887 = vld [vmem:[%s1 + $0x1ad8] sm:$0xff]
  %v888 = vld [vmem:[%s1 + $0x1ae0] sm:$0xff]
  %v889 = vld [vmem:[%s1 + $0x1ae8] sm:$0xff]
  %v890 = vld [vmem:[%s1 + $0x1af0] sm:$0xff]
  %v891 = vld [vmem:[%s1 + $0x1af8] sm:$0xff]
  %v892 = vld [vmem:[%s1 + $0x1b00] sm:$0xff]
  %v893 = vld [vmem:[%s1 + $0x1b08] sm:$0xff]
  %v894 = vld [vmem:[%s1 + $0x1b10] sm:$0xff]
  %v895 = vld [vmem:[%s1 + $0x1b18] sm:$0xff]
  %v896 = vld [vmem:[%s1 + $0x1b20] sm:$0xff]
  %v897 = vld [vmem:[%s1 + $0x1b28] sm:$0xff]
  %v898 = vld [vmem:[%s1 + $0x1b30] sm:$0xff]
  %v899 = vld [vmem:[%s1 + $0x1b38] sm:$0xff]
  %v900 = vld [vmem:[%s1 + $0x1b40] sm:$0xff]
  %v901 = vld [vmem:[%s1 + $0x1b48] sm:$0xff]
  %v902 = vld [vmem:[%s1 + $0x1b50] sm:$0xff]
  %v903 = vld [vmem:[%s1 + $0x1b58] sm:$0xff]
  %v904 = vld [vmem:[%s1 + $0x1b60] sm:$0xff]
  %v905 = vld [vmem:[%s1 + $0x1b68] sm:$0xff]
  %v906 = vld [vmem:[%s1 + $0x1b70] sm:$0xff]
  %v907 = vld [vmem:[%s1 + $0x1b78] sm:$0xff]
  %v908 = vld [vmem:[%s1 + $0x1b80] sm:$0xff]
  %v909 = vld [vmem:[%s1 + $0x1b88] sm:$0xff]
  %v910 = vld [vmem:[%s1 + $0x1b90] sm:$0xff]
  %v911 = vld [vmem:[%s1 + $0x1b98] sm:$0xff]
  %v912 = vld [vmem:[%s1 + $0x1ba0] sm:$0xff]
  %v913 = vld [vmem:[%s1 + $0x1ba8] sm:$0xff]
  %v914 = vld [vmem:[%s1 + $0x1bb0] sm:$0xff]
  %v915 = vld [vmem:[%s1 + $0x1bb8] sm:$0xff]
  %v916 = vld [vmem:[%s1 + $0x1bc0] sm:$0xff]
  %v917 = vld [vmem:[%s1 + $0x1bc8] sm:$0xff]
  %v918 = vld [vmem:[%s1 + $0x1bd0] sm:$0xff]
  %v919 = vld [vmem:[%s1 + $0x1bd8] sm:$0xff]
  %v920 = vld [vmem:[%s1 + $0x1be0] sm:$0xff]
  %v921 = vld [vmem:[%s1 + $0x1be8] sm:$0xff]
  %v922 = vld [vmem:[%s1 + $0x1bf0] sm:$0xff]
  %v923 = vld [vmem:[%s1 + $0x1bf8] sm:$0xff]
  %v924 = vld [vmem:[%s1 + $0x1c00] sm:$0xff]
  %v925 = vld [vmem:[%s1 + $0x1c08] sm:$0xff]
  %v926 = vld [vmem:[%s1 + $0x1c10] sm:$0xff]
  %v927 = vld [vmem:[%s1 + $0x1c18] sm:$0xff]
  %v928 = vld [vmem:[%s1 + $0x1c20] sm:$0xff]
  %v929 = vld [vmem:[%s1 + $0x1c28] sm:$0xff]
  %v930 = vld [vmem:[%s1 + $0x1c30] sm:$0xff]
  %v931 = vld [vmem:[%s1 + $0x1c38] sm:$0xff]
  %v932 = vld [vmem:[%s1 + $0x1c40] sm:$0xff]
  %v933 = vld [vmem:[%s1 + $0x1c48] sm:$0xff]
  %v934 = vld [vmem:[%s1 + $0x1c50] sm:$0xff]
  %v935 = vld [vmem:[%s1 + $0x1c58] sm:$0xff]
  %v936 = vld [vmem:[%s1 + $0x1c60] sm:$0xff]
  %v937 = vld [vmem:[%s1 + $0x1c68] sm:$0xff]
  %v938 = vld [vmem:[%s1 + $0x1c70] sm:$0xff]
  %v939 = vld [vmem:[%s1 + $0x1c78] sm:$0xff]
  %v940 = vld [vmem:[%s1 + $0x1c80] sm:$0xff]
  %v941 = vld [vmem:[%s1 + $0x1c88] sm:$0xff]
  %v942 = vld [vmem:[%s1 + $0x1c90] sm:$0xff]
  %v943 = vld [vmem:[%s1 + $0x1c98] sm:$0xff]
  %v944 = vld [vmem:[%s1 + $0x1ca0] sm:$0xff]
  %v945 = vld [vmem:[%s1 + $0x1ca8] sm:$0xff]
  %v946 = vld [vmem:[%s1 + $0x1cb0] sm:$0xff]
  %v947 = vld [vmem:[%s1 + $0x1cb8] sm:$0xff]
  %v948 = vld [vmem:[%s1 + $0x1cc0] sm:$0xff]
  %v949 = vld [vmem:[%s1 + $0x1cc8] sm:$0xff]
  %v950 = vld [vmem:[%s1 + $0x1cd0] sm:$0xff]
  %v951 = vld [vmem:[%s1 + $0x1cd8] sm:$0xff]
  %v952 = vld [vmem:[%s1 + $0x1ce0] sm:$0xff]
  %v953 = vld [vmem:[%s1 + $0x1ce8] sm:$0xff]
  %v954 = vld [vmem:[%s1 + $0x1cf0] sm:$0xff]
  %v955 = vld [vmem:[%s1 + $0x1cf8] sm:$0xff]
  %v956 = vld [vmem:[%s1 + $0x1d00] sm:$0xff]
  %v957 = vld [vmem:[%s1 + $0x1d08] sm:$0xff]
  %v958 = vld [vmem:[%s1 + $0x1d10] sm:$0xff]
  %v959 = vld [vmem:[%s1 + $0x1d18] sm:$0xff]
  %v960 = vld [vmem:[%s1 + $0x1d20] sm:$0xff]
  %v961 = vld [vmem:[%s1 + $0x1d28] sm:$0xff]
  %v962 = vld [vmem:[%s1 + $0x1d30] sm:$0xff]
  %v963 = vld [vmem:[%s1 + $0x1d38] sm:$0xff]
  %v964 = vld [vmem:[%s1 + $0x1d40] sm:$0xff]
  %v965 = vld [vmem:[%s1 + $0x1d48] sm:$0xff]
  %v966 = vld [vmem:[%s1 + $0x1d50] sm:$0xff]
  %v967 = vld [vmem:[%s1 + $0x1d58] sm:$0xff]
  %v968 = vld [vmem:[%s1 + $0x1d60] sm:$0xff]
  %v969 = vld [vmem:[%s1 + $0x1d68] sm:$0xff]
  %v970 = vld [vmem:[%s1 + $0x1d70] sm:$0xff]
  %v971 = vld [vmem:[%s1 + $0x1d78] sm:$0xff]
  %v972 = vld [vmem:[%s1 + $0x1d80] sm:$0xff]
  %v973 = vld [vmem:[%s1 + $0x1d88] sm:$0xff]
  %v974 = vld [vmem:[%s1 + $0x1d90] sm:$0xff]
  %v975 = vld [vmem:[%s1 + $0x1d98] sm:$0xff]
  %v976 = vld [vmem:[%s1 + $0x1da0] sm:$0xff]
  %v977 = vld [vmem:[%s1 + $0x1da8] sm:$0xff]
  %v978 = vld [vmem:[%s1 + $0x1db0] sm:$0xff]
  %v979 = vld [vmem:[%s1 + $0x1db8] sm:$0xff]
  %v980 = vld [vmem:[%s1 + $0x1dc0] sm:$0xff]
  %v981 = vld [vmem:[%s1 + $0x1dc8] sm:$0xff]
  %v982 = vld [vmem:[%s1 + $0x1dd0] sm:$0xff]
  %v983 = vld [vmem:[%s1 + $0x1dd8] sm:$0xff]
  %v984 = vld [vmem:[%s1 + $0x1de0] sm:$0xff]
  %v985 = vld [vmem:[%s1 + $0x1de8] sm:$0xff]
  %v986 = vld [vmem:[%s1 + $0x1df0] sm:$0xff]
  %v987 = vld [vmem:[%s1 + $0x1df8] sm:$0xff]
  %v988 = vld [vmem:[%s1 + $0x1e00] sm:$0xff]
  %v989 = vld [vmem:[%s1 + $0x1e08] sm:$0xff]
  %v990 = vld [vmem:[%s1 + $0x1e10] sm:$0xff]
  %v991 = vld [vmem:[%s1 + $0x1e18] sm:$0xff]
  %v992 = vld [vmem:[%s1 + $0x1e20] sm:$0xff]
  %v993 = vld [vmem:[%s1 + $0x1e28] sm:$0xff]
  %v994 = vld [vmem:[%s1 + $0x1e30] sm:$0xff]
  %v995 = vld [vmem:[%s1 + $0x1e38] sm:$0xff]
  %v996 = vld [vmem:[%s1 + $0x1e40] sm:$0xff]
  %v997 = vld [vmem:[%s1 + $0x1e48] sm:$0xff]
  %v998 = vld [vmem:[%s1 + $0x1e50] sm:$0xff]
  %v999 = vld [vmem:[%s1 + $0x1e58] sm:$0xff]
  %v1000 = vld [vmem:[%s1 + $0x1e60] sm:$0xff]
  %v1001 = vld [vmem:[%s1 + $0x1e68] sm:$0xff]
  %v1002 = vld [vmem:[%s1 + $0x1e70] sm:$0xff]
  %v1003 = vld [vmem:[%s1 + $0x1e78] sm:$0xff]
  %v1004 = vld [vmem:[%s1 + $0x1e80] sm:$0xff]
  %v1005 = vld [vmem:[%s1 + $0x1e88] sm:$0xff]
  %v1006 = vld [vmem:[%s1 + $0x1e90] sm:$0xff]
  %v1007 = vld [vmem:[%s1 + $0x1e98] sm:$0xff]
  %v1008 = vld [vmem:[%s1 + $0x1ea0] sm:$0xff]
  %v1009 = vld [vmem:[%s1 + $0x1ea8] sm:$0xff]
  %v1010 = vld [vmem:[%s1 + $0x1eb0] sm:$0xff]
  %v1011 = vld [vmem:[%s1 + $0x1eb8] sm:$0xff]
  %v1012 = vld [vmem:[%s1 + $0x1ec0] sm:$0xff]
  %v1013 = vld [vmem:[%s1 + $0x1ec8] sm:$0xff]
  %v1014 = vld [vmem:[%s1 + $0x1ed0] sm:$0xff]
  %v1015 = vld [vmem:[%s1 + $0x1ed8] sm:$0xff]
  %v1016 = vld [vmem:[%s1 + $0x1ee0] sm:$0xff]
  %v1017 = vld [vmem:[%s1 + $0x1ee8] sm:$0xff]
  %v1018 = vld [vmem:[%s1 + $0x1ef0] sm:$0xff]
  %v1019 = vld [vmem:[%s1 + $0x1ef8] sm:$0xff]
  %v1020 = vld [vmem:[%s1 + $0x1f00] sm:$0xff]
  %v1021 = vld [vmem:[%s1 + $0x1f08] sm:$0xff]
  %v1022 = vld [vmem:[%s1 + $0x1f10] sm:$0xff]
  %v1023 = vld [vmem:[%s1 + $0x1f18] sm:$0xff]
  %v1024 = vld [vmem:[%s1 + $0x1f20] sm:$0xff]
  %v1025 = vld [vmem:[%s1 + $0x1f28] sm:$0xff]
  %v1026 = vld [vmem:[%s1 + $0x1f30] sm:$0xff]
  %v1027 = vld [vmem:[%s1 + $0x1f38] sm:$0xff]
  %v1028 = vld [vmem:[%s1 + $0x1f40] sm:$0xff]
  %v1029 = vld [vmem:[%s1 + $0x1f48] sm:$0xff]
  %v1030 = vld [vmem:[%s1 + $0x1f50] sm:$0xff]
  %v1031 = vld [vmem:[%s1 + $0x1f58] sm:$0xff]
  %v1032 = vld [vmem:[%s1 + $0x1f60] sm:$0xff]
  %v1033 = vld [vmem:[%s1 + $0x1f68] sm:$0xff]
  %v1034 = vld [vmem:[%s1 + $0x1f70] sm:$0xff]
  %v1035 = vld [vmem:[%s1 + $0x1f78] sm:$0xff]
  %v1036 = vld [vmem:[%s1 + $0x1f80] sm:$0xff]
  %v1037 = vld [vmem:[%s1 + $0x1f88] sm:$0xff]
  %v1038 = vld [vmem:[%s1 + $0x1f90] sm:$0xff]
  %v1039 = vld [vmem:[%s1 + $0x1f98] sm:$0xff]
  %v1040 = vld [vmem:[%s1 + $0x1fa0] sm:$0xff]
  %v1041 = vld [vmem:[%s1 + $0x1fa8] sm:$0xff]
  %v1042 = vld [vmem:[%s1 + $0x1fb0] sm:$0xff]
  %v1043 = vld [vmem:[%s1 + $0x1fb8] sm:$0xff]
  %v1044 = vld [vmem:[%s1 + $0x1fc0] sm:$0xff]
  %v1045 = vld [vmem:[%s1 + $0x1fc8] sm:$0xff]
  %v1046 = vld [vmem:[%s1 + $0x1fd0] sm:$0xff]
  %v1047 = vld [vmem:[%s1 + $0x1fd8] sm:$0xff]
  %v1048 = vld [vmem:[%s1 + $0x1fe0] sm:$0xff]
  %v1049 = vld [vmem:[%s1 + $0x1fe8] sm:$0xff]
  %v1050 = vld [vmem:[%s1 + $0x1ff0] sm:$0xff]
  %v1051 = vld [vmem:[%s1 + $0x1ff8] sm:$0xff]
  %v1052 = vld [vmem:[%s2] sm:$0xff]
  %v1054 = vperm.slane %v1052, 0
  %v1055 = vperm.slane %v1052, 1
  %v1056 = vperm.slane %v1052, 2
  %v1057 = vperm.slane %v1052, 3
  %v1058 = vperm.slane %v1052, 4
  %v1059 = vperm.slane %v1052, 5
  %v1060 = vperm.slane %v1052, 6
  %v1061 = vperm.slane %v1052, 7
  %v1078 = vunpack.c.l.b16 %v20
  %v1079 = vunpack.c.h.b16 %v20
  %v1080 = vunpack.c.l.b16 %v21
  %v1081 = vunpack.c.h.b16 %v21
  %v1082 = vunpack.c.l.b16 %v22
  %v1083 = vunpack.c.h.b16 %v22
  %v1084 = vunpack.c.l.b16 %v23
  %v1085 = vunpack.c.h.b16 %v23
  %v1086 = vunpack.c.l.b16 %v24
  %v1087 = vunpack.c.h.b16 %v24
  %v1088 = vunpack.c.l.b16 %v25
  %v1089 = vunpack.c.h.b16 %v25
  %v1090 = vunpack.c.l.b16 %v26
  %v1091 = vunpack.c.h.b16 %v26
  %v1092 = vunpack.c.l.b16 %v27
  %v1093 = vunpack.c.h.b16 %v27
  %v1094 = vpack.c.b16 %v1078, %v1078
  %v1095 = vpack.c.b16 %v1079, %v1079
  %v1096 = vpack.c.b16 %v1080, %v1080
  %v1097 = vpack.c.b16 %v1081, %v1081
  %v1098 = vpack.c.b16 %v1082, %v1082
  %v1099 = vpack.c.b16 %v1083, %v1083
  %v1100 = vpack.c.b16 %v1084, %v1084
  %v1101 = vpack.c.b16 %v1085, %v1085
  %v1102 = vpack.c.b16 %v1086, %v1086
  %v1103 = vpack.c.b16 %v1087, %v1087
  %v1104 = vpack.c.b16 %v1088, %v1088
  %v1105 = vpack.c.b16 %v1089, %v1089
  %v1106 = vpack.c.b16 %v1090, %v1090
  %v1107 = vpack.c.b16 %v1091, %v1091
  %v1108 = vpack.c.b16 %v1092, %v1092
  %v1109 = vpack.c.b16 %v1093, %v1093
  %v2150 = vunpack.c.l.b16 %v28
  %v2151 = vunpack.c.h.b16 %v28
  %v2152 = vunpack.c.l.b16 %v29
  %v2153 = vunpack.c.h.b16 %v29
  %v2154 = vunpack.c.l.b16 %v30
  %v2155 = vunpack.c.h.b16 %v30
  %v2156 = vunpack.c.l.b16 %v31
  %v2157 = vunpack.c.h.b16 %v31
  %v2158 = vunpack.c.l.b16 %v32
  %v2159 = vunpack.c.h.b16 %v32
  %v2160 = vunpack.c.l.b16 %v33
  %v2161 = vunpack.c.h.b16 %v33
  %v2162 = vunpack.c.l.b16 %v34
  %v2163 = vunpack.c.h.b16 %v34
  %v2164 = vunpack.c.l.b16 %v35
  %v2165 = vunpack.c.h.b16 %v35
  %v2166 = vunpack.c.l.b16 %v36
  %v2167 = vunpack.c.h.b16 %v36
  %v2168 = vunpack.c.l.b16 %v37
  %v2169 = vunpack.c.h.b16 %v37
  %v2170 = vunpack.c.l.b16 %v38
  %v2171 = vunpack.c.h.b16 %v38
  %v2172 = vunpack.c.l.b16 %v39
  %v2173 = vunpack.c.h.b16 %v39
  %v2174 = vunpack.c.l.b16 %v40
  %v2175 = vunpack.c.h.b16 %v40
  %v2176 = vunpack.c.l.b16 %v41
  %v2177 = vunpack.c.h.b16 %v41
  %v2178 = vunpack.c.l.b16 %v42
  %v2179 = vunpack.c.h.b16 %v42
  %v2180 = vunpack.c.l.b16 %v43
  %v2181 = vunpack.c.h.b16 %v43
  %v2182 = vunpack.c.l.b16 %v44
  %v2183 = vunpack.c.h.b16 %v44
  %v2184 = vunpack.c.l.b16 %v45
  %v2185 = vunpack.c.h.b16 %v45
  %v2186 = vunpack.c.l.b16 %v46
  %v2187 = vunpack.c.h.b16 %v46
  %v2188 = vunpack.c.l.b16 %v47
  %v2189 = vunpack.c.h.b16 %v47
  %v2190 = vunpack.c.l.b16 %v48
  %v2191 = vunpack.c.h.b16 %v48
  %v2192 = vunpack.c.l.b16 %v49
  %v2193 = vunpack.c.h.b16 %v49
  %v2194 = vunpack.c.l.b16 %v50
  %v2195 = vunpack.c.h.b16 %v50
  %v2196 = vunpack.c.l.b16 %v51
  %v2197 = vunpack.c.h.b16 %v51
  %v2198 = vunpack.c.l.b16 %v52
  %v2199 = vunpack.c.h.b16 %v52
  %v2200 = vunpack.c.l.b16 %v53
  %v2201 = vunpack.c.h.b16 %v53
  %v2202 = vunpack.c.l.b16 %v54
  %v2203 = vunpack.c.h.b16 %v54
  %v2204 = vunpack.c.l.b16 %v55
  %v2205 = vunpack.c.h.b16 %v55
  %v2206 = vunpack.c.l.b16 %v56
  %v2207 = vunpack.c.h.b16 %v56
  %v2208 = vunpack.c.l.b16 %v57
  %v2209 = vunpack.c.h.b16 %v57
  %v2210 = vunpack.c.l.b16 %v58
  %v2211 = vunpack.c.h.b16 %v58
  %v2212 = vunpack.c.l.b16 %v59
  %v2213 = vunpack.c.h.b16 %v59
  %v2214 = vunpack.c.l.b16 %v60
  %v2215 = vunpack.c.h.b16 %v60
  %v2216 = vunpack.c.l.b16 %v61
  %v2217 = vunpack.c.h.b16 %v61
  %v2218 = vunpack.c.l.b16 %v62
  %v2219 = vunpack.c.h.b16 %v62
  %v2220 = vunpack.c.l.b16 %v63
  %v2221 = vunpack.c.h.b16 %v63
  %v2222 = vunpack.c.l.b16 %v64
  %v2223 = vunpack.c.h.b16 %v64
  %v2224 = vunpack.c.l.b16 %v65
  %v2225 = vunpack.c.h.b16 %v65
  %v2226 = vunpack.c.l.b16 %v66
  %v2227 = vunpack.c.h.b16 %v66
  %v2228 = vunpack.c.l.b16 %v67
  %v2229 = vunpack.c.h.b16 %v67
  %v2230 = vunpack.c.l.b16 %v68
  %v2231 = vunpack.c.h.b16 %v68
  %v2232 = vunpack.c.l.b16 %v69
  %v2233 = vunpack.c.h.b16 %v69
  %v2234 = vunpack.c.l.b16 %v70
  %v2235 = vunpack.c.h.b16 %v70
  %v2236 = vunpack.c.l.b16 %v71
  %v2237 = vunpack.c.h.b16 %v71
  %v2238 = vunpack.c.l.b16 %v72
  %v2239 = vunpack.c.h.b16 %v72
  %v2240 = vunpack.c.l.b16 %v73
  %v2241 = vunpack.c.h.b16 %v73
  %v2242 = vunpack.c.l.b16 %v74
  %v2243 = vunpack.c.h.b16 %v74
  %v2244 = vunpack.c.l.b16 %v75
  %v2245 = vunpack.c.h.b16 %v75
  %v2246 = vunpack.c.l.b16 %v76
  %v2247 = vunpack.c.h.b16 %v76
  %v2248 = vunpack.c.l.b16 %v77
  %v2249 = vunpack.c.h.b16 %v77
  %v2250 = vunpack.c.l.b16 %v78
  %v2251 = vunpack.c.h.b16 %v78
  %v2252 = vunpack.c.l.b16 %v79
  %v2253 = vunpack.c.h.b16 %v79
  %v2254 = vunpack.c.l.b16 %v80
  %v2255 = vunpack.c.h.b16 %v80
  %v2256 = vunpack.c.l.b16 %v81
  %v2257 = vunpack.c.h.b16 %v81
  %v2258 = vunpack.c.l.b16 %v82
  %v2259 = vunpack.c.h.b16 %v82
  %v2260 = vunpack.c.l.b16 %v83
  %v2261 = vunpack.c.h.b16 %v83
  %v2262 = vunpack.c.l.b16 %v84
  %v2263 = vunpack.c.h.b16 %v84
  %v2264 = vunpack.c.l.b16 %v85
  %v2265 = vunpack.c.h.b16 %v85
  %v2266 = vunpack.c.l.b16 %v86
  %v2267 = vunpack.c.h.b16 %v86
  %v2268 = vunpack.c.l.b16 %v87
  %v2269 = vunpack.c.h.b16 %v87
  %v2270 = vunpack.c.l.b16 %v88
  %v2271 = vunpack.c.h.b16 %v88
  %v2272 = vunpack.c.l.b16 %v89
  %v2273 = vunpack.c.h.b16 %v89
  %v2274 = vunpack.c.l.b16 %v90
  %v2275 = vunpack.c.h.b16 %v90
  %v2276 = vunpack.c.l.b16 %v91
  %v2277 = vunpack.c.h.b16 %v91
  %v2278 = vunpack.c.l.b16 %v92
  %v2279 = vunpack.c.h.b16 %v92
  %v2280 = vunpack.c.l.b16 %v93
  %v2281 = vunpack.c.h.b16 %v93
  %v2282 = vunpack.c.l.b16 %v94
  %v2283 = vunpack.c.h.b16 %v94
  %v2284 = vunpack.c.l.b16 %v95
  %v2285 = vunpack.c.h.b16 %v95
  %v2286 = vunpack.c.l.b16 %v96
  %v2287 = vunpack.c.h.b16 %v96
  %v2288 = vunpack.c.l.b16 %v97
  %v2289 = vunpack.c.h.b16 %v97
  %v2290 = vunpack.c.l.b16 %v98
  %v2291 = vunpack.c.h.b16 %v98
  %v2292 = vunpack.c.l.b16 %v99
  %v2293 = vunpack.c.h.b16 %v99
  %v2294 = vunpack.c.l.b16 %v100
  %v2295 = vunpack.c.h.b16 %v100
  %v2296 = vunpack.c.l.b16 %v101
  %v2297 = vunpack.c.h.b16 %v101
  %v2298 = vunpack.c.l.b16 %v102
  %v2299 = vunpack.c.h.b16 %v102
  %v2300 = vunpack.c.l.b16 %v103
  %v2301 = vunpack.c.h.b16 %v103
  %v2302 = vunpack.c.l.b16 %v104
  %v2303 = vunpack.c.h.b16 %v104
  %v2304 = vunpack.c.l.b16 %v105
  %v2305 = vunpack.c.h.b16 %v105
  %v2306 = vunpack.c.l.b16 %v106
  %v2307 = vunpack.c.h.b16 %v106
  %v2308 = vunpack.c.l.b16 %v107
  %v2309 = vunpack.c.h.b16 %v107
  %v2310 = vunpack.c.l.b16 %v108
  %v2311 = vunpack.c.h.b16 %v108
  %v2312 = vunpack.c.l.b16 %v109
  %v2313 = vunpack.c.h.b16 %v109
  %v2314 = vunpack.c.l.b16 %v110
  %v2315 = vunpack.c.h.b16 %v110
  %v2316 = vunpack.c.l.b16 %v111
  %v2317 = vunpack.c.h.b16 %v111
  %v2318 = vunpack.c.l.b16 %v112
  %v2319 = vunpack.c.h.b16 %v112
  %v2320 = vunpack.c.l.b16 %v113
  %v2321 = vunpack.c.h.b16 %v113
  %v2322 = vunpack.c.l.b16 %v114
  %v2323 = vunpack.c.h.b16 %v114
  %v2324 = vunpack.c.l.b16 %v115
  %v2325 = vunpack.c.h.b16 %v115
  %v2326 = vunpack.c.l.b16 %v116
  %v2327 = vunpack.c.h.b16 %v116
  %v2328 = vunpack.c.l.b16 %v117
  %v2329 = vunpack.c.h.b16 %v117
  %v2330 = vunpack.c.l.b16 %v118
  %v2331 = vunpack.c.h.b16 %v118
  %v2332 = vunpack.c.l.b16 %v119
  %v2333 = vunpack.c.h.b16 %v119
  %v2334 = vunpack.c.l.b16 %v120
  %v2335 = vunpack.c.h.b16 %v120
  %v2336 = vunpack.c.l.b16 %v121
  %v2337 = vunpack.c.h.b16 %v121
  %v2338 = vunpack.c.l.b16 %v122
  %v2339 = vunpack.c.h.b16 %v122
  %v2340 = vunpack.c.l.b16 %v123
  %v2341 = vunpack.c.h.b16 %v123
  %v2342 = vunpack.c.l.b16 %v124
  %v2343 = vunpack.c.h.b16 %v124
  %v2344 = vunpack.c.l.b16 %v125
  %v2345 = vunpack.c.h.b16 %v125
  %v2346 = vunpack.c.l.b16 %v126
  %v2347 = vunpack.c.h.b16 %v126
  %v2348 = vunpack.c.l.b16 %v127
  %v2349 = vunpack.c.h.b16 %v127
  %v2350 = vunpack.c.l.b16 %v128
  %v2351 = vunpack.c.h.b16 %v128
  %v2352 = vunpack.c.l.b16 %v129
  %v2353 = vunpack.c.h.b16 %v129
  %v2354 = vunpack.c.l.b16 %v130
  %v2355 = vunpack.c.h.b16 %v130
  %v2356 = vunpack.c.l.b16 %v131
  %v2357 = vunpack.c.h.b16 %v131
  %v2358 = vunpack.c.l.b16 %v132
  %v2359 = vunpack.c.h.b16 %v132
  %v2360 = vunpack.c.l.b16 %v133
  %v2361 = vunpack.c.h.b16 %v133
  %v2362 = vunpack.c.l.b16 %v134
  %v2363 = vunpack.c.h.b16 %v134
  %v2364 = vunpack.c.l.b16 %v135
  %v2365 = vunpack.c.h.b16 %v135
  %v2366 = vunpack.c.l.b16 %v136
  %v2367 = vunpack.c.h.b16 %v136
  %v2368 = vunpack.c.l.b16 %v137
  %v2369 = vunpack.c.h.b16 %v137
  %v2370 = vunpack.c.l.b16 %v138
  %v2371 = vunpack.c.h.b16 %v138
  %v2372 = vunpack.c.l.b16 %v139
  %v2373 = vunpack.c.h.b16 %v139
  %v2374 = vunpack.c.l.b16 %v140
  %v2375 = vunpack.c.h.b16 %v140
  %v2376 = vunpack.c.l.b16 %v141
  %v2377 = vunpack.c.h.b16 %v141
  %v2378 = vunpack.c.l.b16 %v142
  %v2379 = vunpack.c.h.b16 %v142
  %v2380 = vunpack.c.l.b16 %v143
  %v2381 = vunpack.c.h.b16 %v143
  %v2382 = vunpack.c.l.b16 %v144
  %v2383 = vunpack.c.h.b16 %v144
  %v2384 = vunpack.c.l.b16 %v145
  %v2385 = vunpack.c.h.b16 %v145
  %v2386 = vunpack.c.l.b16 %v146
  %v2387 = vunpack.c.h.b16 %v146
  %v2388 = vunpack.c.l.b16 %v147
  %v2389 = vunpack.c.h.b16 %v147
  %v2390 = vunpack.c.l.b16 %v148
  %v2391 = vunpack.c.h.b16 %v148
  %v2392 = vunpack.c.l.b16 %v149
  %v2393 = vunpack.c.h.b16 %v149
  %v2394 = vunpack.c.l.b16 %v150
  %v2395 = vunpack.c.h.b16 %v150
  %v2396 = vunpack.c.l.b16 %v151
  %v2397 = vunpack.c.h.b16 %v151
  %v2398 = vunpack.c.l.b16 %v152
  %v2399 = vunpack.c.h.b16 %v152
  %v2400 = vunpack.c.l.b16 %v153
  %v2401 = vunpack.c.h.b16 %v153
  %v2402 = vunpack.c.l.b16 %v154
  %v2403 = vunpack.c.h.b16 %v154
  %v2404 = vunpack.c.l.b16 %v155
  %v2405 = vunpack.c.h.b16 %v155
  %v2406 = vunpack.c.l.b16 %v156
  %v2407 = vunpack.c.h.b16 %v156
  %v2408 = vunpack.c.l.b16 %v157
  %v2409 = vunpack.c.h.b16 %v157
  %v2410 = vunpack.c.l.b16 %v158
  %v2411 = vunpack.c.h.b16 %v158
  %v2412 = vunpack.c.l.b16 %v159
  %v2413 = vunpack.c.h.b16 %v159
  %v2414 = vunpack.c.l.b16 %v160
  %v2415 = vunpack.c.h.b16 %v160
  %v2416 = vunpack.c.l.b16 %v161
  %v2417 = vunpack.c.h.b16 %v161
  %v2418 = vunpack.c.l.b16 %v162
  %v2419 = vunpack.c.h.b16 %v162
  %v2420 = vunpack.c.l.b16 %v163
  %v2421 = vunpack.c.h.b16 %v163
  %v2422 = vunpack.c.l.b16 %v164
  %v2423 = vunpack.c.h.b16 %v164
  %v2424 = vunpack.c.l.b16 %v165
  %v2425 = vunpack.c.h.b16 %v165
  %v2426 = vunpack.c.l.b16 %v166
  %v2427 = vunpack.c.h.b16 %v166
  %v2428 = vunpack.c.l.b16 %v167
  %v2429 = vunpack.c.h.b16 %v167
  %v2430 = vunpack.c.l.b16 %v168
  %v2431 = vunpack.c.h.b16 %v168
  %v2432 = vunpack.c.l.b16 %v169
  %v2433 = vunpack.c.h.b16 %v169
  %v2434 = vunpack.c.l.b16 %v170
  %v2435 = vunpack.c.h.b16 %v170
  %v2436 = vunpack.c.l.b16 %v171
  %v2437 = vunpack.c.h.b16 %v171
  %v2438 = vunpack.c.l.b16 %v172
  %v2439 = vunpack.c.h.b16 %v172
  %v2440 = vunpack.c.l.b16 %v173
  %v2441 = vunpack.c.h.b16 %v173
  %v2442 = vunpack.c.l.b16 %v174
  %v2443 = vunpack.c.h.b16 %v174
  %v2444 = vunpack.c.l.b16 %v175
  %v2445 = vunpack.c.h.b16 %v175
  %v2446 = vunpack.c.l.b16 %v176
  %v2447 = vunpack.c.h.b16 %v176
  %v2448 = vunpack.c.l.b16 %v177
  %v2449 = vunpack.c.h.b16 %v177
  %v2450 = vunpack.c.l.b16 %v178
  %v2451 = vunpack.c.h.b16 %v178
  %v2452 = vunpack.c.l.b16 %v179
  %v2453 = vunpack.c.h.b16 %v179
  %v2454 = vunpack.c.l.b16 %v180
  %v2455 = vunpack.c.h.b16 %v180
  %v2456 = vunpack.c.l.b16 %v181
  %v2457 = vunpack.c.h.b16 %v181
  %v2458 = vunpack.c.l.b16 %v182
  %v2459 = vunpack.c.h.b16 %v182
  %v2460 = vunpack.c.l.b16 %v183
  %v2461 = vunpack.c.h.b16 %v183
  %v2462 = vunpack.c.l.b16 %v184
  %v2463 = vunpack.c.h.b16 %v184
  %v2464 = vunpack.c.l.b16 %v185
  %v2465 = vunpack.c.h.b16 %v185
  %v2466 = vunpack.c.l.b16 %v186
  %v2467 = vunpack.c.h.b16 %v186
  %v2468 = vunpack.c.l.b16 %v187
  %v2469 = vunpack.c.h.b16 %v187
  %v2470 = vunpack.c.l.b16 %v188
  %v2471 = vunpack.c.h.b16 %v188
  %v2472 = vunpack.c.l.b16 %v189
  %v2473 = vunpack.c.h.b16 %v189
  %v2474 = vunpack.c.l.b16 %v190
  %v2475 = vunpack.c.h.b16 %v190
  %v2476 = vunpack.c.l.b16 %v191
  %v2477 = vunpack.c.h.b16 %v191
  %v2478 = vunpack.c.l.b16 %v192
  %v2479 = vunpack.c.h.b16 %v192
  %v2480 = vunpack.c.l.b16 %v193
  %v2481 = vunpack.c.h.b16 %v193
  %v2482 = vunpack.c.l.b16 %v194
  %v2483 = vunpack.c.h.b16 %v194
  %v2484 = vunpack.c.l.b16 %v195
  %v2485 = vunpack.c.h.b16 %v195
  %v2486 = vunpack.c.l.b16 %v196
  %v2487 = vunpack.c.h.b16 %v196
  %v2488 = vunpack.c.l.b16 %v197
  %v2489 = vunpack.c.h.b16 %v197
  %v2490 = vunpack.c.l.b16 %v198
  %v2491 = vunpack.c.h.b16 %v198
  %v2492 = vunpack.c.l.b16 %v199
  %v2493 = vunpack.c.h.b16 %v199
  %v2494 = vunpack.c.l.b16 %v200
  %v2495 = vunpack.c.h.b16 %v200
  %v2496 = vunpack.c.l.b16 %v201
  %v2497 = vunpack.c.h.b16 %v201
  %v2498 = vunpack.c.l.b16 %v202
  %v2499 = vunpack.c.h.b16 %v202
  %v2500 = vunpack.c.l.b16 %v203
  %v2501 = vunpack.c.h.b16 %v203
  %v2502 = vunpack.c.l.b16 %v204
  %v2503 = vunpack.c.h.b16 %v204
  %v2504 = vunpack.c.l.b16 %v205
  %v2505 = vunpack.c.h.b16 %v205
  %v2506 = vunpack.c.l.b16 %v206
  %v2507 = vunpack.c.h.b16 %v206
  %v2508 = vunpack.c.l.b16 %v207
  %v2509 = vunpack.c.h.b16 %v207
  %v2510 = vunpack.c.l.b16 %v208
  %v2511 = vunpack.c.h.b16 %v208
  %v2512 = vunpack.c.l.b16 %v209
  %v2513 = vunpack.c.h.b16 %v209
  %v2514 = vunpack.c.l.b16 %v210
  %v2515 = vunpack.c.h.b16 %v210
  %v2516 = vunpack.c.l.b16 %v211
  %v2517 = vunpack.c.h.b16 %v211
  %v2518 = vunpack.c.l.b16 %v212
  %v2519 = vunpack.c.h.b16 %v212
  %v2520 = vunpack.c.l.b16 %v213
  %v2521 = vunpack.c.h.b16 %v213
  %v2522 = vunpack.c.l.b16 %v214
  %v2523 = vunpack.c.h.b16 %v214
  %v2524 = vunpack.c.l.b16 %v215
  %v2525 = vunpack.c.h.b16 %v215
  %v2526 = vunpack.c.l.b16 %v216
  %v2527 = vunpack.c.h.b16 %v216
  %v2528 = vunpack.c.l.b16 %v217
  %v2529 = vunpack.c.h.b16 %v217
  %v2530 = vunpack.c.l.b16 %v218
  %v2531 = vunpack.c.h.b16 %v218
  %v2532 = vunpack.c.l.b16 %v219
  %v2533 = vunpack.c.h.b16 %v219
  %v2534 = vunpack.c.l.b16 %v220
  %v2535 = vunpack.c.h.b16 %v220
  %v2536 = vunpack.c.l.b16 %v221
  %v2537 = vunpack.c.h.b16 %v221
  %v2538 = vunpack.c.l.b16 %v222
  %v2539 = vunpack.c.h.b16 %v222
  %v2540 = vunpack.c.l.b16 %v223
  %v2541 = vunpack.c.h.b16 %v223
  %v2542 = vunpack.c.l.b16 %v224
  %v2543 = vunpack.c.h.b16 %v224
  %v2544 = vunpack.c.l.b16 %v225
  %v2545 = vunpack.c.h.b16 %v225
  %v2546 = vunpack.c.l.b16 %v226
  %v2547 = vunpack.c.h.b16 %v226
  %v2548 = vunpack.c.l.b16 %v227
  %v2549 = vunpack.c.h.b16 %v227
  %v2550 = vunpack.c.l.b16 %v228
  %v2551 = vunpack.c.h.b16 %v228
  %v2552 = vunpack.c.l.b16 %v229
  %v2553 = vunpack.c.h.b16 %v229
  %v2554 = vunpack.c.l.b16 %v230
  %v2555 = vunpack.c.h.b16 %v230
  %v2556 = vunpack.c.l.b16 %v231
  %v2557 = vunpack.c.h.b16 %v231
  %v2558 = vunpack.c.l.b16 %v232
  %v2559 = vunpack.c.h.b16 %v232
  %v2560 = vunpack.c.l.b16 %v233
  %v2561 = vunpack.c.h.b16 %v233
  %v2562 = vunpack.c.l.b16 %v234
  %v2563 = vunpack.c.h.b16 %v234
  %v2564 = vunpack.c.l.b16 %v235
  %v2565 = vunpack.c.h.b16 %v235
  %v2566 = vunpack.c.l.b16 %v236
  %v2567 = vunpack.c.h.b16 %v236
  %v2568 = vunpack.c.l.b16 %v237
  %v2569 = vunpack.c.h.b16 %v237
  %v2570 = vunpack.c.l.b16 %v238
  %v2571 = vunpack.c.h.b16 %v238
  %v2572 = vunpack.c.l.b16 %v239
  %v2573 = vunpack.c.h.b16 %v239
  %v2574 = vunpack.c.l.b16 %v240
  %v2575 = vunpack.c.h.b16 %v240
  %v2576 = vunpack.c.l.b16 %v241
  %v2577 = vunpack.c.h.b16 %v241
  %v2578 = vunpack.c.l.b16 %v242
  %v2579 = vunpack.c.h.b16 %v242
  %v2580 = vunpack.c.l.b16 %v243
  %v2581 = vunpack.c.h.b16 %v243
  %v2582 = vunpack.c.l.b16 %v244
  %v2583 = vunpack.c.h.b16 %v244
  %v2584 = vunpack.c.l.b16 %v245
  %v2585 = vunpack.c.h.b16 %v245
  %v2586 = vunpack.c.l.b16 %v246
  %v2587 = vunpack.c.h.b16 %v246
  %v2588 = vunpack.c.l.b16 %v247
  %v2589 = vunpack.c.h.b16 %v247
  %v2590 = vunpack.c.l.b16 %v248
  %v2591 = vunpack.c.h.b16 %v248
  %v2592 = vunpack.c.l.b16 %v249
  %v2593 = vunpack.c.h.b16 %v249
  %v2594 = vunpack.c.l.b16 %v250
  %v2595 = vunpack.c.h.b16 %v250
  %v2596 = vunpack.c.l.b16 %v251
  %v2597 = vunpack.c.h.b16 %v251
  %v2598 = vunpack.c.l.b16 %v252
  %v2599 = vunpack.c.h.b16 %v252
  %v2600 = vunpack.c.l.b16 %v253
  %v2601 = vunpack.c.h.b16 %v253
  %v2602 = vunpack.c.l.b16 %v254
  %v2603 = vunpack.c.h.b16 %v254
  %v2604 = vunpack.c.l.b16 %v255
  %v2605 = vunpack.c.h.b16 %v255
  %v2606 = vunpack.c.l.b16 %v256
  %v2607 = vunpack.c.h.b16 %v256
  %v2608 = vunpack.c.l.b16 %v257
  %v2609 = vunpack.c.h.b16 %v257
  %v2610 = vunpack.c.l.b16 %v258
  %v2611 = vunpack.c.h.b16 %v258
  %v2612 = vunpack.c.l.b16 %v259
  %v2613 = vunpack.c.h.b16 %v259
  %v2614 = vunpack.c.l.b16 %v260
  %v2615 = vunpack.c.h.b16 %v260
  %v2616 = vunpack.c.l.b16 %v261
  %v2617 = vunpack.c.h.b16 %v261
  %v2618 = vunpack.c.l.b16 %v262
  %v2619 = vunpack.c.h.b16 %v262
  %v2620 = vunpack.c.l.b16 %v263
  %v2621 = vunpack.c.h.b16 %v263
  %v2622 = vunpack.c.l.b16 %v264
  %v2623 = vunpack.c.h.b16 %v264
  %v2624 = vunpack.c.l.b16 %v265
  %v2625 = vunpack.c.h.b16 %v265
  %v2626 = vunpack.c.l.b16 %v266
  %v2627 = vunpack.c.h.b16 %v266
  %v2628 = vunpack.c.l.b16 %v267
  %v2629 = vunpack.c.h.b16 %v267
  %v2630 = vunpack.c.l.b16 %v268
  %v2631 = vunpack.c.h.b16 %v268
  %v2632 = vunpack.c.l.b16 %v269
  %v2633 = vunpack.c.h.b16 %v269
  %v2634 = vunpack.c.l.b16 %v270
  %v2635 = vunpack.c.h.b16 %v270
  %v2636 = vunpack.c.l.b16 %v271
  %v2637 = vunpack.c.h.b16 %v271
  %v2638 = vunpack.c.l.b16 %v272
  %v2639 = vunpack.c.h.b16 %v272
  %v2640 = vunpack.c.l.b16 %v273
  %v2641 = vunpack.c.h.b16 %v273
  %v2642 = vunpack.c.l.b16 %v274
  %v2643 = vunpack.c.h.b16 %v274
  %v2644 = vunpack.c.l.b16 %v275
  %v2645 = vunpack.c.h.b16 %v275
  %v2646 = vunpack.c.l.b16 %v276
  %v2647 = vunpack.c.h.b16 %v276
  %v2648 = vunpack.c.l.b16 %v277
  %v2649 = vunpack.c.h.b16 %v277
  %v2650 = vunpack.c.l.b16 %v278
  %v2651 = vunpack.c.h.b16 %v278
  %v2652 = vunpack.c.l.b16 %v279
  %v2653 = vunpack.c.h.b16 %v279
  %v2654 = vunpack.c.l.b16 %v280
  %v2655 = vunpack.c.h.b16 %v280
  %v2656 = vunpack.c.l.b16 %v281
  %v2657 = vunpack.c.h.b16 %v281
  %v2658 = vunpack.c.l.b16 %v282
  %v2659 = vunpack.c.h.b16 %v282
  %v2660 = vunpack.c.l.b16 %v283
  %v2661 = vunpack.c.h.b16 %v283
  %v2662 = vunpack.c.l.b16 %v284
  %v2663 = vunpack.c.h.b16 %v284
  %v2664 = vunpack.c.l.b16 %v285
  %v2665 = vunpack.c.h.b16 %v285
  %v2666 = vunpack.c.l.b16 %v286
  %v2667 = vunpack.c.h.b16 %v286
  %v2668 = vunpack.c.l.b16 %v287
  %v2669 = vunpack.c.h.b16 %v287
  %v2670 = vunpack.c.l.b16 %v288
  %v2671 = vunpack.c.h.b16 %v288
  %v2672 = vunpack.c.l.b16 %v289
  %v2673 = vunpack.c.h.b16 %v289
  %v2674 = vunpack.c.l.b16 %v290
  %v2675 = vunpack.c.h.b16 %v290
  %v2676 = vunpack.c.l.b16 %v291
  %v2677 = vunpack.c.h.b16 %v291
  %v2678 = vunpack.c.l.b16 %v292
  %v2679 = vunpack.c.h.b16 %v292
  %v2680 = vunpack.c.l.b16 %v293
  %v2681 = vunpack.c.h.b16 %v293
  %v2682 = vunpack.c.l.b16 %v294
  %v2683 = vunpack.c.h.b16 %v294
  %v2684 = vunpack.c.l.b16 %v295
  %v2685 = vunpack.c.h.b16 %v295
  %v2686 = vunpack.c.l.b16 %v296
  %v2687 = vunpack.c.h.b16 %v296
  %v2688 = vunpack.c.l.b16 %v297
  %v2689 = vunpack.c.h.b16 %v297
  %v2690 = vunpack.c.l.b16 %v298
  %v2691 = vunpack.c.h.b16 %v298
  %v2692 = vunpack.c.l.b16 %v299
  %v2693 = vunpack.c.h.b16 %v299
  %v2694 = vunpack.c.l.b16 %v300
  %v2695 = vunpack.c.h.b16 %v300
  %v2696 = vunpack.c.l.b16 %v301
  %v2697 = vunpack.c.h.b16 %v301
  %v2698 = vunpack.c.l.b16 %v302
  %v2699 = vunpack.c.h.b16 %v302
  %v2700 = vunpack.c.l.b16 %v303
  %v2701 = vunpack.c.h.b16 %v303
  %v2702 = vunpack.c.l.b16 %v304
  %v2703 = vunpack.c.h.b16 %v304
  %v2704 = vunpack.c.l.b16 %v305
  %v2705 = vunpack.c.h.b16 %v305
  %v2706 = vunpack.c.l.b16 %v306
  %v2707 = vunpack.c.h.b16 %v306
  %v2708 = vunpack.c.l.b16 %v307
  %v2709 = vunpack.c.h.b16 %v307
  %v2710 = vunpack.c.l.b16 %v308
  %v2711 = vunpack.c.h.b16 %v308
  %v2712 = vunpack.c.l.b16 %v309
  %v2713 = vunpack.c.h.b16 %v309
  %v2714 = vunpack.c.l.b16 %v310
  %v2715 = vunpack.c.h.b16 %v310
  %v2716 = vunpack.c.l.b16 %v311
  %v2717 = vunpack.c.h.b16 %v311
  %v2718 = vunpack.c.l.b16 %v312
  %v2719 = vunpack.c.h.b16 %v312
  %v2720 = vunpack.c.l.b16 %v313
  %v2721 = vunpack.c.h.b16 %v313
  %v2722 = vunpack.c.l.b16 %v314
  %v2723 = vunpack.c.h.b16 %v314
  %v2724 = vunpack.c.l.b16 %v315
  %v2725 = vunpack.c.h.b16 %v315
  %v2726 = vunpack.c.l.b16 %v316
  %v2727 = vunpack.c.h.b16 %v316
  %v2728 = vunpack.c.l.b16 %v317
  %v2729 = vunpack.c.h.b16 %v317
  %v2730 = vunpack.c.l.b16 %v318
  %v2731 = vunpack.c.h.b16 %v318
  %v2732 = vunpack.c.l.b16 %v319
  %v2733 = vunpack.c.h.b16 %v319
  %v2734 = vunpack.c.l.b16 %v320
  %v2735 = vunpack.c.h.b16 %v320
  %v2736 = vunpack.c.l.b16 %v321
  %v2737 = vunpack.c.h.b16 %v321
  %v2738 = vunpack.c.l.b16 %v322
  %v2739 = vunpack.c.h.b16 %v322
  %v2740 = vunpack.c.l.b16 %v323
  %v2741 = vunpack.c.h.b16 %v323
  %v2742 = vunpack.c.l.b16 %v324
  %v2743 = vunpack.c.h.b16 %v324
  %v2744 = vunpack.c.l.b16 %v325
  %v2745 = vunpack.c.h.b16 %v325
  %v2746 = vunpack.c.l.b16 %v326
  %v2747 = vunpack.c.h.b16 %v326
  %v2748 = vunpack.c.l.b16 %v327
  %v2749 = vunpack.c.h.b16 %v327
  %v2750 = vunpack.c.l.b16 %v328
  %v2751 = vunpack.c.h.b16 %v328
  %v2752 = vunpack.c.l.b16 %v329
  %v2753 = vunpack.c.h.b16 %v329
  %v2754 = vunpack.c.l.b16 %v330
  %v2755 = vunpack.c.h.b16 %v330
  %v2756 = vunpack.c.l.b16 %v331
  %v2757 = vunpack.c.h.b16 %v331
  %v2758 = vunpack.c.l.b16 %v332
  %v2759 = vunpack.c.h.b16 %v332
  %v2760 = vunpack.c.l.b16 %v333
  %v2761 = vunpack.c.h.b16 %v333
  %v2762 = vunpack.c.l.b16 %v334
  %v2763 = vunpack.c.h.b16 %v334
  %v2764 = vunpack.c.l.b16 %v335
  %v2765 = vunpack.c.h.b16 %v335
  %v2766 = vunpack.c.l.b16 %v336
  %v2767 = vunpack.c.h.b16 %v336
  %v2768 = vunpack.c.l.b16 %v337
  %v2769 = vunpack.c.h.b16 %v337
  %v2770 = vunpack.c.l.b16 %v338
  %v2771 = vunpack.c.h.b16 %v338
  %v2772 = vunpack.c.l.b16 %v339
  %v2773 = vunpack.c.h.b16 %v339
  %v2774 = vunpack.c.l.b16 %v340
  %v2775 = vunpack.c.h.b16 %v340
  %v2776 = vunpack.c.l.b16 %v341
  %v2777 = vunpack.c.h.b16 %v341
  %v2778 = vunpack.c.l.b16 %v342
  %v2779 = vunpack.c.h.b16 %v342
  %v2780 = vunpack.c.l.b16 %v343
  %v2781 = vunpack.c.h.b16 %v343
  %v2782 = vunpack.c.l.b16 %v344
  %v2783 = vunpack.c.h.b16 %v344
  %v2784 = vunpack.c.l.b16 %v345
  %v2785 = vunpack.c.h.b16 %v345
  %v2786 = vunpack.c.l.b16 %v346
  %v2787 = vunpack.c.h.b16 %v346
  %v2788 = vunpack.c.l.b16 %v347
  %v2789 = vunpack.c.h.b16 %v347
  %v2790 = vunpack.c.l.b16 %v348
  %v2791 = vunpack.c.h.b16 %v348
  %v2792 = vunpack.c.l.b16 %v349
  %v2793 = vunpack.c.h.b16 %v349
  %v2794 = vunpack.c.l.b16 %v350
  %v2795 = vunpack.c.h.b16 %v350
  %v2796 = vunpack.c.l.b16 %v351
  %v2797 = vunpack.c.h.b16 %v351
  %v2798 = vunpack.c.l.b16 %v352
  %v2799 = vunpack.c.h.b16 %v352
  %v2800 = vunpack.c.l.b16 %v353
  %v2801 = vunpack.c.h.b16 %v353
  %v2802 = vunpack.c.l.b16 %v354
  %v2803 = vunpack.c.h.b16 %v354
  %v2804 = vunpack.c.l.b16 %v355
  %v2805 = vunpack.c.h.b16 %v355
  %v2806 = vunpack.c.l.b16 %v356
  %v2807 = vunpack.c.h.b16 %v356
  %v2808 = vunpack.c.l.b16 %v357
  %v2809 = vunpack.c.h.b16 %v357
  %v2810 = vunpack.c.l.b16 %v358
  %v2811 = vunpack.c.h.b16 %v358
  %v2812 = vunpack.c.l.b16 %v359
  %v2813 = vunpack.c.h.b16 %v359
  %v2814 = vunpack.c.l.b16 %v360
  %v2815 = vunpack.c.h.b16 %v360
  %v2816 = vunpack.c.l.b16 %v361
  %v2817 = vunpack.c.h.b16 %v361
  %v2818 = vunpack.c.l.b16 %v362
  %v2819 = vunpack.c.h.b16 %v362
  %v2820 = vunpack.c.l.b16 %v363
  %v2821 = vunpack.c.h.b16 %v363
  %v2822 = vunpack.c.l.b16 %v364
  %v2823 = vunpack.c.h.b16 %v364
  %v2824 = vunpack.c.l.b16 %v365
  %v2825 = vunpack.c.h.b16 %v365
  %v2826 = vunpack.c.l.b16 %v366
  %v2827 = vunpack.c.h.b16 %v366
  %v2828 = vunpack.c.l.b16 %v367
  %v2829 = vunpack.c.h.b16 %v367
  %v2830 = vunpack.c.l.b16 %v368
  %v2831 = vunpack.c.h.b16 %v368
  %v2832 = vunpack.c.l.b16 %v369
  %v2833 = vunpack.c.h.b16 %v369
  %v2834 = vunpack.c.l.b16 %v370
  %v2835 = vunpack.c.h.b16 %v370
  %v2836 = vunpack.c.l.b16 %v371
  %v2837 = vunpack.c.h.b16 %v371
  %v2838 = vunpack.c.l.b16 %v372
  %v2839 = vunpack.c.h.b16 %v372
  %v2840 = vunpack.c.l.b16 %v373
  %v2841 = vunpack.c.h.b16 %v373
  %v2842 = vunpack.c.l.b16 %v374
  %v2843 = vunpack.c.h.b16 %v374
  %v2844 = vunpack.c.l.b16 %v375
  %v2845 = vunpack.c.h.b16 %v375
  %v2846 = vunpack.c.l.b16 %v376
  %v2847 = vunpack.c.h.b16 %v376
  %v2848 = vunpack.c.l.b16 %v377
  %v2849 = vunpack.c.h.b16 %v377
  %v2850 = vunpack.c.l.b16 %v378
  %v2851 = vunpack.c.h.b16 %v378
  %v2852 = vunpack.c.l.b16 %v379
  %v2853 = vunpack.c.h.b16 %v379
  %v2854 = vunpack.c.l.b16 %v380
  %v2855 = vunpack.c.h.b16 %v380
  %v2856 = vunpack.c.l.b16 %v381
  %v2857 = vunpack.c.h.b16 %v381
  %v2858 = vunpack.c.l.b16 %v382
  %v2859 = vunpack.c.h.b16 %v382
  %v2860 = vunpack.c.l.b16 %v383
  %v2861 = vunpack.c.h.b16 %v383
  %v2862 = vunpack.c.l.b16 %v384
  %v2863 = vunpack.c.h.b16 %v384
  %v2864 = vunpack.c.l.b16 %v385
  %v2865 = vunpack.c.h.b16 %v385
  %v2866 = vunpack.c.l.b16 %v386
  %v2867 = vunpack.c.h.b16 %v386
  %v2868 = vunpack.c.l.b16 %v387
  %v2869 = vunpack.c.h.b16 %v387
  %v2870 = vunpack.c.l.b16 %v388
  %v2871 = vunpack.c.h.b16 %v388
  %v2872 = vunpack.c.l.b16 %v389
  %v2873 = vunpack.c.h.b16 %v389
  %v2874 = vunpack.c.l.b16 %v390
  %v2875 = vunpack.c.h.b16 %v390
  %v2876 = vunpack.c.l.b16 %v391
  %v2877 = vunpack.c.h.b16 %v391
  %v2878 = vunpack.c.l.b16 %v392
  %v2879 = vunpack.c.h.b16 %v392
  %v2880 = vunpack.c.l.b16 %v393
  %v2881 = vunpack.c.h.b16 %v393
  %v2882 = vunpack.c.l.b16 %v394
  %v2883 = vunpack.c.h.b16 %v394
  %v2884 = vunpack.c.l.b16 %v395
  %v2885 = vunpack.c.h.b16 %v395
  %v2886 = vunpack.c.l.b16 %v396
  %v2887 = vunpack.c.h.b16 %v396
  %v2888 = vunpack.c.l.b16 %v397
  %v2889 = vunpack.c.h.b16 %v397
  %v2890 = vunpack.c.l.b16 %v398
  %v2891 = vunpack.c.h.b16 %v398
  %v2892 = vunpack.c.l.b16 %v399
  %v2893 = vunpack.c.h.b16 %v399
  %v2894 = vunpack.c.l.b16 %v400
  %v2895 = vunpack.c.h.b16 %v400
  %v2896 = vunpack.c.l.b16 %v401
  %v2897 = vunpack.c.h.b16 %v401
  %v2898 = vunpack.c.l.b16 %v402
  %v2899 = vunpack.c.h.b16 %v402
  %v2900 = vunpack.c.l.b16 %v403
  %v2901 = vunpack.c.h.b16 %v403
  %v2902 = vunpack.c.l.b16 %v404
  %v2903 = vunpack.c.h.b16 %v404
  %v2904 = vunpack.c.l.b16 %v405
  %v2905 = vunpack.c.h.b16 %v405
  %v2906 = vunpack.c.l.b16 %v406
  %v2907 = vunpack.c.h.b16 %v406
  %v2908 = vunpack.c.l.b16 %v407
  %v2909 = vunpack.c.h.b16 %v407
  %v2910 = vunpack.c.l.b16 %v408
  %v2911 = vunpack.c.h.b16 %v408
  %v2912 = vunpack.c.l.b16 %v409
  %v2913 = vunpack.c.h.b16 %v409
  %v2914 = vunpack.c.l.b16 %v410
  %v2915 = vunpack.c.h.b16 %v410
  %v2916 = vunpack.c.l.b16 %v411
  %v2917 = vunpack.c.h.b16 %v411
  %v2918 = vunpack.c.l.b16 %v412
  %v2919 = vunpack.c.h.b16 %v412
  %v2920 = vunpack.c.l.b16 %v413
  %v2921 = vunpack.c.h.b16 %v413
  %v2922 = vunpack.c.l.b16 %v414
  %v2923 = vunpack.c.h.b16 %v414
  %v2924 = vunpack.c.l.b16 %v415
  %v2925 = vunpack.c.h.b16 %v415
  %v2926 = vunpack.c.l.b16 %v416
  %v2927 = vunpack.c.h.b16 %v416
  %v2928 = vunpack.c.l.b16 %v417
  %v2929 = vunpack.c.h.b16 %v417
  %v2930 = vunpack.c.l.b16 %v418
  %v2931 = vunpack.c.h.b16 %v418
  %v2932 = vunpack.c.l.b16 %v419
  %v2933 = vunpack.c.h.b16 %v419
  %v2934 = vunpack.c.l.b16 %v420
  %v2935 = vunpack.c.h.b16 %v420
  %v2936 = vunpack.c.l.b16 %v421
  %v2937 = vunpack.c.h.b16 %v421
  %v2938 = vunpack.c.l.b16 %v422
  %v2939 = vunpack.c.h.b16 %v422
  %v2940 = vunpack.c.l.b16 %v423
  %v2941 = vunpack.c.h.b16 %v423
  %v2942 = vunpack.c.l.b16 %v424
  %v2943 = vunpack.c.h.b16 %v424
  %v2944 = vunpack.c.l.b16 %v425
  %v2945 = vunpack.c.h.b16 %v425
  %v2946 = vunpack.c.l.b16 %v426
  %v2947 = vunpack.c.h.b16 %v426
  %v2948 = vunpack.c.l.b16 %v427
  %v2949 = vunpack.c.h.b16 %v427
  %v2950 = vunpack.c.l.b16 %v428
  %v2951 = vunpack.c.h.b16 %v428
  %v2952 = vunpack.c.l.b16 %v429
  %v2953 = vunpack.c.h.b16 %v429
  %v2954 = vunpack.c.l.b16 %v430
  %v2955 = vunpack.c.h.b16 %v430
  %v2956 = vunpack.c.l.b16 %v431
  %v2957 = vunpack.c.h.b16 %v431
  %v2958 = vunpack.c.l.b16 %v432
  %v2959 = vunpack.c.h.b16 %v432
  %v2960 = vunpack.c.l.b16 %v433
  %v2961 = vunpack.c.h.b16 %v433
  %v2962 = vunpack.c.l.b16 %v434
  %v2963 = vunpack.c.h.b16 %v434
  %v2964 = vunpack.c.l.b16 %v435
  %v2965 = vunpack.c.h.b16 %v435
  %v2966 = vunpack.c.l.b16 %v436
  %v2967 = vunpack.c.h.b16 %v436
  %v2968 = vunpack.c.l.b16 %v437
  %v2969 = vunpack.c.h.b16 %v437
  %v2970 = vunpack.c.l.b16 %v438
  %v2971 = vunpack.c.h.b16 %v438
  %v2972 = vunpack.c.l.b16 %v439
  %v2973 = vunpack.c.h.b16 %v439
  %v2974 = vunpack.c.l.b16 %v440
  %v2975 = vunpack.c.h.b16 %v440
  %v2976 = vunpack.c.l.b16 %v441
  %v2977 = vunpack.c.h.b16 %v441
  %v2978 = vunpack.c.l.b16 %v442
  %v2979 = vunpack.c.h.b16 %v442
  %v2980 = vunpack.c.l.b16 %v443
  %v2981 = vunpack.c.h.b16 %v443
  %v2982 = vunpack.c.l.b16 %v444
  %v2983 = vunpack.c.h.b16 %v444
  %v2984 = vunpack.c.l.b16 %v445
  %v2985 = vunpack.c.h.b16 %v445
  %v2986 = vunpack.c.l.b16 %v446
  %v2987 = vunpack.c.h.b16 %v446
  %v2988 = vunpack.c.l.b16 %v447
  %v2989 = vunpack.c.h.b16 %v447
  %v2990 = vunpack.c.l.b16 %v448
  %v2991 = vunpack.c.h.b16 %v448
  %v2992 = vunpack.c.l.b16 %v449
  %v2993 = vunpack.c.h.b16 %v449
  %v2994 = vunpack.c.l.b16 %v450
  %v2995 = vunpack.c.h.b16 %v450
  %v2996 = vunpack.c.l.b16 %v451
  %v2997 = vunpack.c.h.b16 %v451
  %v2998 = vunpack.c.l.b16 %v452
  %v2999 = vunpack.c.h.b16 %v452
  %v3000 = vunpack.c.l.b16 %v453
  %v3001 = vunpack.c.h.b16 %v453
  %v3002 = vunpack.c.l.b16 %v454
  %v3003 = vunpack.c.h.b16 %v454
  %v3004 = vunpack.c.l.b16 %v455
  %v3005 = vunpack.c.h.b16 %v455
  %v3006 = vunpack.c.l.b16 %v456
  %v3007 = vunpack.c.h.b16 %v456
  %v3008 = vunpack.c.l.b16 %v457
  %v3009 = vunpack.c.h.b16 %v457
  %v3010 = vunpack.c.l.b16 %v458
  %v3011 = vunpack.c.h.b16 %v458
  %v3012 = vunpack.c.l.b16 %v459
  %v3013 = vunpack.c.h.b16 %v459
  %v3014 = vunpack.c.l.b16 %v460
  %v3015 = vunpack.c.h.b16 %v460
  %v3016 = vunpack.c.l.b16 %v461
  %v3017 = vunpack.c.h.b16 %v461
  %v3018 = vunpack.c.l.b16 %v462
  %v3019 = vunpack.c.h.b16 %v462
  %v3020 = vunpack.c.l.b16 %v463
  %v3021 = vunpack.c.h.b16 %v463
  %v3022 = vunpack.c.l.b16 %v464
  %v3023 = vunpack.c.h.b16 %v464
  %v3024 = vunpack.c.l.b16 %v465
  %v3025 = vunpack.c.h.b16 %v465
  %v3026 = vunpack.c.l.b16 %v466
  %v3027 = vunpack.c.h.b16 %v466
  %v3028 = vunpack.c.l.b16 %v467
  %v3029 = vunpack.c.h.b16 %v467
  %v3030 = vunpack.c.l.b16 %v468
  %v3031 = vunpack.c.h.b16 %v468
  %v3032 = vunpack.c.l.b16 %v469
  %v3033 = vunpack.c.h.b16 %v469
  %v3034 = vunpack.c.l.b16 %v470
  %v3035 = vunpack.c.h.b16 %v470
  %v3036 = vunpack.c.l.b16 %v471
  %v3037 = vunpack.c.h.b16 %v471
  %v3038 = vunpack.c.l.b16 %v472
  %v3039 = vunpack.c.h.b16 %v472
  %v3040 = vunpack.c.l.b16 %v473
  %v3041 = vunpack.c.h.b16 %v473
  %v3042 = vunpack.c.l.b16 %v474
  %v3043 = vunpack.c.h.b16 %v474
  %v3044 = vunpack.c.l.b16 %v475
  %v3045 = vunpack.c.h.b16 %v475
  %v3046 = vunpack.c.l.b16 %v476
  %v3047 = vunpack.c.h.b16 %v476
  %v3048 = vunpack.c.l.b16 %v477
  %v3049 = vunpack.c.h.b16 %v477
  %v3050 = vunpack.c.l.b16 %v478
  %v3051 = vunpack.c.h.b16 %v478
  %v3052 = vunpack.c.l.b16 %v479
  %v3053 = vunpack.c.h.b16 %v479
  %v3054 = vunpack.c.l.b16 %v480
  %v3055 = vunpack.c.h.b16 %v480
  %v3056 = vunpack.c.l.b16 %v481
  %v3057 = vunpack.c.h.b16 %v481
  %v3058 = vunpack.c.l.b16 %v482
  %v3059 = vunpack.c.h.b16 %v482
  %v3060 = vunpack.c.l.b16 %v483
  %v3061 = vunpack.c.h.b16 %v483
  %v3062 = vunpack.c.l.b16 %v484
  %v3063 = vunpack.c.h.b16 %v484
  %v3064 = vunpack.c.l.b16 %v485
  %v3065 = vunpack.c.h.b16 %v485
  %v3066 = vunpack.c.l.b16 %v486
  %v3067 = vunpack.c.h.b16 %v486
  %v3068 = vunpack.c.l.b16 %v487
  %v3069 = vunpack.c.h.b16 %v487
  %v3070 = vunpack.c.l.b16 %v488
  %v3071 = vunpack.c.h.b16 %v488
  %v3072 = vunpack.c.l.b16 %v489
  %v3073 = vunpack.c.h.b16 %v489
  %v3074 = vunpack.c.l.b16 %v490
  %v3075 = vunpack.c.h.b16 %v490
  %v3076 = vunpack.c.l.b16 %v491
  %v3077 = vunpack.c.h.b16 %v491
  %v3078 = vunpack.c.l.b16 %v492
  %v3079 = vunpack.c.h.b16 %v492
  %v3080 = vunpack.c.l.b16 %v493
  %v3081 = vunpack.c.h.b16 %v493
  %v3082 = vunpack.c.l.b16 %v494
  %v3083 = vunpack.c.h.b16 %v494
  %v3084 = vunpack.c.l.b16 %v495
  %v3085 = vunpack.c.h.b16 %v495
  %v3086 = vunpack.c.l.b16 %v496
  %v3087 = vunpack.c.h.b16 %v496
  %v3088 = vunpack.c.l.b16 %v497
  %v3089 = vunpack.c.h.b16 %v497
  %v3090 = vunpack.c.l.b16 %v498
  %v3091 = vunpack.c.h.b16 %v498
  %v3092 = vunpack.c.l.b16 %v499
  %v3093 = vunpack.c.h.b16 %v499
  %v3094 = vunpack.c.l.b16 %v500
  %v3095 = vunpack.c.h.b16 %v500
  %v3096 = vunpack.c.l.b16 %v501
  %v3097 = vunpack.c.h.b16 %v501
  %v3098 = vunpack.c.l.b16 %v502
  %v3099 = vunpack.c.h.b16 %v502
  %v3100 = vunpack.c.l.b16 %v503
  %v3101 = vunpack.c.h.b16 %v503
  %v3102 = vunpack.c.l.b16 %v504
  %v3103 = vunpack.c.h.b16 %v504
  %v3104 = vunpack.c.l.b16 %v505
  %v3105 = vunpack.c.h.b16 %v505
  %v3106 = vunpack.c.l.b16 %v506
  %v3107 = vunpack.c.h.b16 %v506
  %v3108 = vunpack.c.l.b16 %v507
  %v3109 = vunpack.c.h.b16 %v507
  %v3110 = vunpack.c.l.b16 %v508
  %v3111 = vunpack.c.h.b16 %v508
  %v3112 = vunpack.c.l.b16 %v509
  %v3113 = vunpack.c.h.b16 %v509
  %v3114 = vunpack.c.l.b16 %v510
  %v3115 = vunpack.c.h.b16 %v510
  %v3116 = vunpack.c.l.b16 %v511
  %v3117 = vunpack.c.h.b16 %v511
  %v3118 = vunpack.c.l.b16 %v512
  %v3119 = vunpack.c.h.b16 %v512
  %v3120 = vunpack.c.l.b16 %v513
  %v3121 = vunpack.c.h.b16 %v513
  %v3122 = vunpack.c.l.b16 %v514
  %v3123 = vunpack.c.h.b16 %v514
  %v3124 = vunpack.c.l.b16 %v515
  %v3125 = vunpack.c.h.b16 %v515
  %v3126 = vunpack.c.l.b16 %v516
  %v3127 = vunpack.c.h.b16 %v516
  %v3128 = vunpack.c.l.b16 %v517
  %v3129 = vunpack.c.h.b16 %v517
  %v3130 = vunpack.c.l.b16 %v518
  %v3131 = vunpack.c.h.b16 %v518
  %v3132 = vunpack.c.l.b16 %v519
  %v3133 = vunpack.c.h.b16 %v519
  %v3134 = vunpack.c.l.b16 %v520
  %v3135 = vunpack.c.h.b16 %v520
  %v3136 = vunpack.c.l.b16 %v521
  %v3137 = vunpack.c.h.b16 %v521
  %v3138 = vunpack.c.l.b16 %v522
  %v3139 = vunpack.c.h.b16 %v522
  %v3140 = vunpack.c.l.b16 %v523
  %v3141 = vunpack.c.h.b16 %v523
  %v3142 = vunpack.c.l.b16 %v524
  %v3143 = vunpack.c.h.b16 %v524
  %v3144 = vunpack.c.l.b16 %v525
  %v3145 = vunpack.c.h.b16 %v525
  %v3146 = vunpack.c.l.b16 %v526
  %v3147 = vunpack.c.h.b16 %v526
  %v3148 = vunpack.c.l.b16 %v527
  %v3149 = vunpack.c.h.b16 %v527
  %v3150 = vunpack.c.l.b16 %v528
  %v3151 = vunpack.c.h.b16 %v528
  %v3152 = vunpack.c.l.b16 %v529
  %v3153 = vunpack.c.h.b16 %v529
  %v3154 = vunpack.c.l.b16 %v530
  %v3155 = vunpack.c.h.b16 %v530
  %v3156 = vunpack.c.l.b16 %v531
  %v3157 = vunpack.c.h.b16 %v531
  %v3158 = vunpack.c.l.b16 %v532
  %v3159 = vunpack.c.h.b16 %v532
  %v3160 = vunpack.c.l.b16 %v533
  %v3161 = vunpack.c.h.b16 %v533
  %v3162 = vunpack.c.l.b16 %v534
  %v3163 = vunpack.c.h.b16 %v534
  %v3164 = vunpack.c.l.b16 %v535
  %v3165 = vunpack.c.h.b16 %v535
  %v3166 = vunpack.c.l.b16 %v536
  %v3167 = vunpack.c.h.b16 %v536
  %v3168 = vunpack.c.l.b16 %v537
  %v3169 = vunpack.c.h.b16 %v537
  %v3170 = vunpack.c.l.b16 %v538
  %v3171 = vunpack.c.h.b16 %v538
  %v3172 = vunpack.c.l.b16 %v539
  %v3173 = vunpack.c.h.b16 %v539
  %v3174 = vunpack.c.l.b16 %v540
  %v3175 = vunpack.c.h.b16 %v540
  %v3176 = vunpack.c.l.b16 %v541
  %v3177 = vunpack.c.h.b16 %v541
  %v3178 = vunpack.c.l.b16 %v542
  %v3179 = vunpack.c.h.b16 %v542
  %v3180 = vunpack.c.l.b16 %v543
  %v3181 = vunpack.c.h.b16 %v543
  %v3182 = vunpack.c.l.b16 %v544
  %v3183 = vunpack.c.h.b16 %v544
  %v3184 = vunpack.c.l.b16 %v545
  %v3185 = vunpack.c.h.b16 %v545
  %v3186 = vunpack.c.l.b16 %v546
  %v3187 = vunpack.c.h.b16 %v546
  %v3188 = vunpack.c.l.b16 %v547
  %v3189 = vunpack.c.h.b16 %v547
  %v3190 = vunpack.c.l.b16 %v548
  %v3191 = vunpack.c.h.b16 %v548
  %v3192 = vunpack.c.l.b16 %v549
  %v3193 = vunpack.c.h.b16 %v549
  %v3194 = vunpack.c.l.b16 %v550
  %v3195 = vunpack.c.h.b16 %v550
  %v3196 = vunpack.c.l.b16 %v551
  %v3197 = vunpack.c.h.b16 %v551
  %v3198 = vunpack.c.l.b16 %v552
  %v3199 = vunpack.c.h.b16 %v552
  %v3200 = vunpack.c.l.b16 %v553
  %v3201 = vunpack.c.h.b16 %v553
  %v3202 = vunpack.c.l.b16 %v554
  %v3203 = vunpack.c.h.b16 %v554
  %v3204 = vunpack.c.l.b16 %v555
  %v3205 = vunpack.c.h.b16 %v555
  %v3206 = vunpack.c.l.b16 %v556
  %v3207 = vunpack.c.h.b16 %v556
  %v3208 = vunpack.c.l.b16 %v557
  %v3209 = vunpack.c.h.b16 %v557
  %v3210 = vunpack.c.l.b16 %v558
  %v3211 = vunpack.c.h.b16 %v558
  %v3212 = vunpack.c.l.b16 %v559
  %v3213 = vunpack.c.h.b16 %v559
  %v3214 = vunpack.c.l.b16 %v560
  %v3215 = vunpack.c.h.b16 %v560
  %v3216 = vunpack.c.l.b16 %v561
  %v3217 = vunpack.c.h.b16 %v561
  %v3218 = vunpack.c.l.b16 %v562
  %v3219 = vunpack.c.h.b16 %v562
  %v3220 = vunpack.c.l.b16 %v563
  %v3221 = vunpack.c.h.b16 %v563
  %v3222 = vunpack.c.l.b16 %v564
  %v3223 = vunpack.c.h.b16 %v564
  %v3224 = vunpack.c.l.b16 %v565
  %v3225 = vunpack.c.h.b16 %v565
  %v3226 = vunpack.c.l.b16 %v566
  %v3227 = vunpack.c.h.b16 %v566
  %v3228 = vunpack.c.l.b16 %v567
  %v3229 = vunpack.c.h.b16 %v567
  %v3230 = vunpack.c.l.b16 %v568
  %v3231 = vunpack.c.h.b16 %v568
  %v3232 = vunpack.c.l.b16 %v569
  %v3233 = vunpack.c.h.b16 %v569
  %v3234 = vunpack.c.l.b16 %v570
  %v3235 = vunpack.c.h.b16 %v570
  %v3236 = vunpack.c.l.b16 %v571
  %v3237 = vunpack.c.h.b16 %v571
  %v3238 = vunpack.c.l.b16 %v572
  %v3239 = vunpack.c.h.b16 %v572
  %v3240 = vunpack.c.l.b16 %v573
  %v3241 = vunpack.c.h.b16 %v573
  %v3242 = vunpack.c.l.b16 %v574
  %v3243 = vunpack.c.h.b16 %v574
  %v3244 = vunpack.c.l.b16 %v575
  %v3245 = vunpack.c.h.b16 %v575
  %v3246 = vunpack.c.l.b16 %v576
  %v3247 = vunpack.c.h.b16 %v576
  %v3248 = vunpack.c.l.b16 %v577
  %v3249 = vunpack.c.h.b16 %v577
  %v3250 = vunpack.c.l.b16 %v578
  %v3251 = vunpack.c.h.b16 %v578
  %v3252 = vunpack.c.l.b16 %v579
  %v3253 = vunpack.c.h.b16 %v579
  %v3254 = vunpack.c.l.b16 %v580
  %v3255 = vunpack.c.h.b16 %v580
  %v3256 = vunpack.c.l.b16 %v581
  %v3257 = vunpack.c.h.b16 %v581
  %v3258 = vunpack.c.l.b16 %v582
  %v3259 = vunpack.c.h.b16 %v582
  %v3260 = vunpack.c.l.b16 %v583
  %v3261 = vunpack.c.h.b16 %v583
  %v3262 = vunpack.c.l.b16 %v584
  %v3263 = vunpack.c.h.b16 %v584
  %v3264 = vunpack.c.l.b16 %v585
  %v3265 = vunpack.c.h.b16 %v585
  %v3266 = vunpack.c.l.b16 %v586
  %v3267 = vunpack.c.h.b16 %v586
  %v3268 = vunpack.c.l.b16 %v587
  %v3269 = vunpack.c.h.b16 %v587
  %v3270 = vunpack.c.l.b16 %v588
  %v3271 = vunpack.c.h.b16 %v588
  %v3272 = vunpack.c.l.b16 %v589
  %v3273 = vunpack.c.h.b16 %v589
  %v3274 = vunpack.c.l.b16 %v590
  %v3275 = vunpack.c.h.b16 %v590
  %v3276 = vunpack.c.l.b16 %v591
  %v3277 = vunpack.c.h.b16 %v591
  %v3278 = vunpack.c.l.b16 %v592
  %v3279 = vunpack.c.h.b16 %v592
  %v3280 = vunpack.c.l.b16 %v593
  %v3281 = vunpack.c.h.b16 %v593
  %v3282 = vunpack.c.l.b16 %v594
  %v3283 = vunpack.c.h.b16 %v594
  %v3284 = vunpack.c.l.b16 %v595
  %v3285 = vunpack.c.h.b16 %v595
  %v3286 = vunpack.c.l.b16 %v596
  %v3287 = vunpack.c.h.b16 %v596
  %v3288 = vunpack.c.l.b16 %v597
  %v3289 = vunpack.c.h.b16 %v597
  %v3290 = vunpack.c.l.b16 %v598
  %v3291 = vunpack.c.h.b16 %v598
  %v3292 = vunpack.c.l.b16 %v599
  %v3293 = vunpack.c.h.b16 %v599
  %v3294 = vunpack.c.l.b16 %v600
  %v3295 = vunpack.c.h.b16 %v600
  %v3296 = vunpack.c.l.b16 %v601
  %v3297 = vunpack.c.h.b16 %v601
  %v3298 = vunpack.c.l.b16 %v602
  %v3299 = vunpack.c.h.b16 %v602
  %v3300 = vunpack.c.l.b16 %v603
  %v3301 = vunpack.c.h.b16 %v603
  %v3302 = vunpack.c.l.b16 %v604
  %v3303 = vunpack.c.h.b16 %v604
  %v3304 = vunpack.c.l.b16 %v605
  %v3305 = vunpack.c.h.b16 %v605
  %v3306 = vunpack.c.l.b16 %v606
  %v3307 = vunpack.c.h.b16 %v606
  %v3308 = vunpack.c.l.b16 %v607
  %v3309 = vunpack.c.h.b16 %v607
  %v3310 = vunpack.c.l.b16 %v608
  %v3311 = vunpack.c.h.b16 %v608
  %v3312 = vunpack.c.l.b16 %v609
  %v3313 = vunpack.c.h.b16 %v609
  %v3314 = vunpack.c.l.b16 %v610
  %v3315 = vunpack.c.h.b16 %v610
  %v3316 = vunpack.c.l.b16 %v611
  %v3317 = vunpack.c.h.b16 %v611
  %v3318 = vunpack.c.l.b16 %v612
  %v3319 = vunpack.c.h.b16 %v612
  %v3320 = vunpack.c.l.b16 %v613
  %v3321 = vunpack.c.h.b16 %v613
  %v3322 = vunpack.c.l.b16 %v614
  %v3323 = vunpack.c.h.b16 %v614
  %v3324 = vunpack.c.l.b16 %v615
  %v3325 = vunpack.c.h.b16 %v615
  %v3326 = vunpack.c.l.b16 %v616
  %v3327 = vunpack.c.h.b16 %v616
  %v3328 = vunpack.c.l.b16 %v617
  %v3329 = vunpack.c.h.b16 %v617
  %v3330 = vunpack.c.l.b16 %v618
  %v3331 = vunpack.c.h.b16 %v618
  %v3332 = vunpack.c.l.b16 %v619
  %v3333 = vunpack.c.h.b16 %v619
  %v3334 = vunpack.c.l.b16 %v620
  %v3335 = vunpack.c.h.b16 %v620
  %v3336 = vunpack.c.l.b16 %v621
  %v3337 = vunpack.c.h.b16 %v621
  %v3338 = vunpack.c.l.b16 %v622
  %v3339 = vunpack.c.h.b16 %v622
  %v3340 = vunpack.c.l.b16 %v623
  %v3341 = vunpack.c.h.b16 %v623
  %v3342 = vunpack.c.l.b16 %v624
  %v3343 = vunpack.c.h.b16 %v624
  %v3344 = vunpack.c.l.b16 %v625
  %v3345 = vunpack.c.h.b16 %v625
  %v3346 = vunpack.c.l.b16 %v626
  %v3347 = vunpack.c.h.b16 %v626
  %v3348 = vunpack.c.l.b16 %v627
  %v3349 = vunpack.c.h.b16 %v627
  %v3350 = vunpack.c.l.b16 %v628
  %v3351 = vunpack.c.h.b16 %v628
  %v3352 = vunpack.c.l.b16 %v629
  %v3353 = vunpack.c.h.b16 %v629
  %v3354 = vunpack.c.l.b16 %v630
  %v3355 = vunpack.c.h.b16 %v630
  %v3356 = vunpack.c.l.b16 %v631
  %v3357 = vunpack.c.h.b16 %v631
  %v3358 = vunpack.c.l.b16 %v632
  %v3359 = vunpack.c.h.b16 %v632
  %v3360 = vunpack.c.l.b16 %v633
  %v3361 = vunpack.c.h.b16 %v633
  %v3362 = vunpack.c.l.b16 %v634
  %v3363 = vunpack.c.h.b16 %v634
  %v3364 = vunpack.c.l.b16 %v635
  %v3365 = vunpack.c.h.b16 %v635
  %v3366 = vunpack.c.l.b16 %v636
  %v3367 = vunpack.c.h.b16 %v636
  %v3368 = vunpack.c.l.b16 %v637
  %v3369 = vunpack.c.h.b16 %v637
  %v3370 = vunpack.c.l.b16 %v638
  %v3371 = vunpack.c.h.b16 %v638
  %v3372 = vunpack.c.l.b16 %v639
  %v3373 = vunpack.c.h.b16 %v639
  %v3374 = vunpack.c.l.b16 %v640
  %v3375 = vunpack.c.h.b16 %v640
  %v3376 = vunpack.c.l.b16 %v641
  %v3377 = vunpack.c.h.b16 %v641
  %v3378 = vunpack.c.l.b16 %v642
  %v3379 = vunpack.c.h.b16 %v642
  %v3380 = vunpack.c.l.b16 %v643
  %v3381 = vunpack.c.h.b16 %v643
  %v3382 = vunpack.c.l.b16 %v644
  %v3383 = vunpack.c.h.b16 %v644
  %v3384 = vunpack.c.l.b16 %v645
  %v3385 = vunpack.c.h.b16 %v645
  %v3386 = vunpack.c.l.b16 %v646
  %v3387 = vunpack.c.h.b16 %v646
  %v3388 = vunpack.c.l.b16 %v647
  %v3389 = vunpack.c.h.b16 %v647
  %v3390 = vunpack.c.l.b16 %v648
  %v3391 = vunpack.c.h.b16 %v648
  %v3392 = vunpack.c.l.b16 %v649
  %v3393 = vunpack.c.h.b16 %v649
  %v3394 = vunpack.c.l.b16 %v650
  %v3395 = vunpack.c.h.b16 %v650
  %v3396 = vunpack.c.l.b16 %v651
  %v3397 = vunpack.c.h.b16 %v651
  %v3398 = vunpack.c.l.b16 %v652
  %v3399 = vunpack.c.h.b16 %v652
  %v3400 = vunpack.c.l.b16 %v653
  %v3401 = vunpack.c.h.b16 %v653
  %v3402 = vunpack.c.l.b16 %v654
  %v3403 = vunpack.c.h.b16 %v654
  %v3404 = vunpack.c.l.b16 %v655
  %v3405 = vunpack.c.h.b16 %v655
  %v3406 = vunpack.c.l.b16 %v656
  %v3407 = vunpack.c.h.b16 %v656
  %v3408 = vunpack.c.l.b16 %v657
  %v3409 = vunpack.c.h.b16 %v657
  %v3410 = vunpack.c.l.b16 %v658
  %v3411 = vunpack.c.h.b16 %v658
  %v3412 = vunpack.c.l.b16 %v659
  %v3413 = vunpack.c.h.b16 %v659
  %v3414 = vunpack.c.l.b16 %v660
  %v3415 = vunpack.c.h.b16 %v660
  %v3416 = vunpack.c.l.b16 %v661
  %v3417 = vunpack.c.h.b16 %v661
  %v3418 = vunpack.c.l.b16 %v662
  %v3419 = vunpack.c.h.b16 %v662
  %v3420 = vunpack.c.l.b16 %v663
  %v3421 = vunpack.c.h.b16 %v663
  %v3422 = vunpack.c.l.b16 %v664
  %v3423 = vunpack.c.h.b16 %v664
  %v3424 = vunpack.c.l.b16 %v665
  %v3425 = vunpack.c.h.b16 %v665
  %v3426 = vunpack.c.l.b16 %v666
  %v3427 = vunpack.c.h.b16 %v666
  %v3428 = vunpack.c.l.b16 %v667
  %v3429 = vunpack.c.h.b16 %v667
  %v3430 = vunpack.c.l.b16 %v668
  %v3431 = vunpack.c.h.b16 %v668
  %v3432 = vunpack.c.l.b16 %v669
  %v3433 = vunpack.c.h.b16 %v669
  %v3434 = vunpack.c.l.b16 %v670
  %v3435 = vunpack.c.h.b16 %v670
  %v3436 = vunpack.c.l.b16 %v671
  %v3437 = vunpack.c.h.b16 %v671
  %v3438 = vunpack.c.l.b16 %v672
  %v3439 = vunpack.c.h.b16 %v672
  %v3440 = vunpack.c.l.b16 %v673
  %v3441 = vunpack.c.h.b16 %v673
  %v3442 = vunpack.c.l.b16 %v674
  %v3443 = vunpack.c.h.b16 %v674
  %v3444 = vunpack.c.l.b16 %v675
  %v3445 = vunpack.c.h.b16 %v675
  %v3446 = vunpack.c.l.b16 %v676
  %v3447 = vunpack.c.h.b16 %v676
  %v3448 = vunpack.c.l.b16 %v677
  %v3449 = vunpack.c.h.b16 %v677
  %v3450 = vunpack.c.l.b16 %v678
  %v3451 = vunpack.c.h.b16 %v678
  %v3452 = vunpack.c.l.b16 %v679
  %v3453 = vunpack.c.h.b16 %v679
  %v3454 = vunpack.c.l.b16 %v680
  %v3455 = vunpack.c.h.b16 %v680
  %v3456 = vunpack.c.l.b16 %v681
  %v3457 = vunpack.c.h.b16 %v681
  %v3458 = vunpack.c.l.b16 %v682
  %v3459 = vunpack.c.h.b16 %v682
  %v3460 = vunpack.c.l.b16 %v683
  %v3461 = vunpack.c.h.b16 %v683
  %v3462 = vunpack.c.l.b16 %v684
  %v3463 = vunpack.c.h.b16 %v684
  %v3464 = vunpack.c.l.b16 %v685
  %v3465 = vunpack.c.h.b16 %v685
  %v3466 = vunpack.c.l.b16 %v686
  %v3467 = vunpack.c.h.b16 %v686
  %v3468 = vunpack.c.l.b16 %v687
  %v3469 = vunpack.c.h.b16 %v687
  %v3470 = vunpack.c.l.b16 %v688
  %v3471 = vunpack.c.h.b16 %v688
  %v3472 = vunpack.c.l.b16 %v689
  %v3473 = vunpack.c.h.b16 %v689
  %v3474 = vunpack.c.l.b16 %v690
  %v3475 = vunpack.c.h.b16 %v690
  %v3476 = vunpack.c.l.b16 %v691
  %v3477 = vunpack.c.h.b16 %v691
  %v3478 = vunpack.c.l.b16 %v692
  %v3479 = vunpack.c.h.b16 %v692
  %v3480 = vunpack.c.l.b16 %v693
  %v3481 = vunpack.c.h.b16 %v693
  %v3482 = vunpack.c.l.b16 %v694
  %v3483 = vunpack.c.h.b16 %v694
  %v3484 = vunpack.c.l.b16 %v695
  %v3485 = vunpack.c.h.b16 %v695
  %v3486 = vunpack.c.l.b16 %v696
  %v3487 = vunpack.c.h.b16 %v696
  %v3488 = vunpack.c.l.b16 %v697
  %v3489 = vunpack.c.h.b16 %v697
  %v3490 = vunpack.c.l.b16 %v698
  %v3491 = vunpack.c.h.b16 %v698
  %v3492 = vunpack.c.l.b16 %v699
  %v3493 = vunpack.c.h.b16 %v699
  %v3494 = vunpack.c.l.b16 %v700
  %v3495 = vunpack.c.h.b16 %v700
  %v3496 = vunpack.c.l.b16 %v701
  %v3497 = vunpack.c.h.b16 %v701
  %v3498 = vunpack.c.l.b16 %v702
  %v3499 = vunpack.c.h.b16 %v702
  %v3500 = vunpack.c.l.b16 %v703
  %v3501 = vunpack.c.h.b16 %v703
  %v3502 = vunpack.c.l.b16 %v704
  %v3503 = vunpack.c.h.b16 %v704
  %v3504 = vunpack.c.l.b16 %v705
  %v3505 = vunpack.c.h.b16 %v705
  %v3506 = vunpack.c.l.b16 %v706
  %v3507 = vunpack.c.h.b16 %v706
  %v3508 = vunpack.c.l.b16 %v707
  %v3509 = vunpack.c.h.b16 %v707
  %v3510 = vunpack.c.l.b16 %v708
  %v3511 = vunpack.c.h.b16 %v708
  %v3512 = vunpack.c.l.b16 %v709
  %v3513 = vunpack.c.h.b16 %v709
  %v3514 = vunpack.c.l.b16 %v710
  %v3515 = vunpack.c.h.b16 %v710
  %v3516 = vunpack.c.l.b16 %v711
  %v3517 = vunpack.c.h.b16 %v711
  %v3518 = vunpack.c.l.b16 %v712
  %v3519 = vunpack.c.h.b16 %v712
  %v3520 = vunpack.c.l.b16 %v713
  %v3521 = vunpack.c.h.b16 %v713
  %v3522 = vunpack.c.l.b16 %v714
  %v3523 = vunpack.c.h.b16 %v714
  %v3524 = vunpack.c.l.b16 %v715
  %v3525 = vunpack.c.h.b16 %v715
  %v3526 = vunpack.c.l.b16 %v716
  %v3527 = vunpack.c.h.b16 %v716
  %v3528 = vunpack.c.l.b16 %v717
  %v3529 = vunpack.c.h.b16 %v717
  %v3530 = vunpack.c.l.b16 %v718
  %v3531 = vunpack.c.h.b16 %v718
  %v3532 = vunpack.c.l.b16 %v719
  %v3533 = vunpack.c.h.b16 %v719
  %v3534 = vunpack.c.l.b16 %v720
  %v3535 = vunpack.c.h.b16 %v720
  %v3536 = vunpack.c.l.b16 %v721
  %v3537 = vunpack.c.h.b16 %v721
  %v3538 = vunpack.c.l.b16 %v722
  %v3539 = vunpack.c.h.b16 %v722
  %v3540 = vunpack.c.l.b16 %v723
  %v3541 = vunpack.c.h.b16 %v723
  %v3542 = vunpack.c.l.b16 %v724
  %v3543 = vunpack.c.h.b16 %v724
  %v3544 = vunpack.c.l.b16 %v725
  %v3545 = vunpack.c.h.b16 %v725
  %v3546 = vunpack.c.l.b16 %v726
  %v3547 = vunpack.c.h.b16 %v726
  %v3548 = vunpack.c.l.b16 %v727
  %v3549 = vunpack.c.h.b16 %v727
  %v3550 = vunpack.c.l.b16 %v728
  %v3551 = vunpack.c.h.b16 %v728
  %v3552 = vunpack.c.l.b16 %v729
  %v3553 = vunpack.c.h.b16 %v729
  %v3554 = vunpack.c.l.b16 %v730
  %v3555 = vunpack.c.h.b16 %v730
  %v3556 = vunpack.c.l.b16 %v731
  %v3557 = vunpack.c.h.b16 %v731
  %v3558 = vunpack.c.l.b16 %v732
  %v3559 = vunpack.c.h.b16 %v732
  %v3560 = vunpack.c.l.b16 %v733
  %v3561 = vunpack.c.h.b16 %v733
  %v3562 = vunpack.c.l.b16 %v734
  %v3563 = vunpack.c.h.b16 %v734
  %v3564 = vunpack.c.l.b16 %v735
  %v3565 = vunpack.c.h.b16 %v735
  %v3566 = vunpack.c.l.b16 %v736
  %v3567 = vunpack.c.h.b16 %v736
  %v3568 = vunpack.c.l.b16 %v737
  %v3569 = vunpack.c.h.b16 %v737
  %v3570 = vunpack.c.l.b16 %v738
  %v3571 = vunpack.c.h.b16 %v738
  %v3572 = vunpack.c.l.b16 %v739
  %v3573 = vunpack.c.h.b16 %v739
  %v3574 = vunpack.c.l.b16 %v740
  %v3575 = vunpack.c.h.b16 %v740
  %v3576 = vunpack.c.l.b16 %v741
  %v3577 = vunpack.c.h.b16 %v741
  %v3578 = vunpack.c.l.b16 %v742
  %v3579 = vunpack.c.h.b16 %v742
  %v3580 = vunpack.c.l.b16 %v743
  %v3581 = vunpack.c.h.b16 %v743
  %v3582 = vunpack.c.l.b16 %v744
  %v3583 = vunpack.c.h.b16 %v744
  %v3584 = vunpack.c.l.b16 %v745
  %v3585 = vunpack.c.h.b16 %v745
  %v3586 = vunpack.c.l.b16 %v746
  %v3587 = vunpack.c.h.b16 %v746
  %v3588 = vunpack.c.l.b16 %v747
  %v3589 = vunpack.c.h.b16 %v747
  %v3590 = vunpack.c.l.b16 %v748
  %v3591 = vunpack.c.h.b16 %v748
  %v3592 = vunpack.c.l.b16 %v749
  %v3593 = vunpack.c.h.b16 %v749
  %v3594 = vunpack.c.l.b16 %v750
  %v3595 = vunpack.c.h.b16 %v750
  %v3596 = vunpack.c.l.b16 %v751
  %v3597 = vunpack.c.h.b16 %v751
  %v3598 = vunpack.c.l.b16 %v752
  %v3599 = vunpack.c.h.b16 %v752
  %v3600 = vunpack.c.l.b16 %v753
  %v3601 = vunpack.c.h.b16 %v753
  %v3602 = vunpack.c.l.b16 %v754
  %v3603 = vunpack.c.h.b16 %v754
  %v3604 = vunpack.c.l.b16 %v755
  %v3605 = vunpack.c.h.b16 %v755
  %v3606 = vunpack.c.l.b16 %v756
  %v3607 = vunpack.c.h.b16 %v756
  %v3608 = vunpack.c.l.b16 %v757
  %v3609 = vunpack.c.h.b16 %v757
  %v3610 = vunpack.c.l.b16 %v758
  %v3611 = vunpack.c.h.b16 %v758
  %v3612 = vunpack.c.l.b16 %v759
  %v3613 = vunpack.c.h.b16 %v759
  %v3614 = vunpack.c.l.b16 %v760
  %v3615 = vunpack.c.h.b16 %v760
  %v3616 = vunpack.c.l.b16 %v761
  %v3617 = vunpack.c.h.b16 %v761
  %v3618 = vunpack.c.l.b16 %v762
  %v3619 = vunpack.c.h.b16 %v762
  %v3620 = vunpack.c.l.b16 %v763
  %v3621 = vunpack.c.h.b16 %v763
  %v3622 = vunpack.c.l.b16 %v764
  %v3623 = vunpack.c.h.b16 %v764
  %v3624 = vunpack.c.l.b16 %v765
  %v3625 = vunpack.c.h.b16 %v765
  %v3626 = vunpack.c.l.b16 %v766
  %v3627 = vunpack.c.h.b16 %v766
  %v3628 = vunpack.c.l.b16 %v767
  %v3629 = vunpack.c.h.b16 %v767
  %v3630 = vunpack.c.l.b16 %v768
  %v3631 = vunpack.c.h.b16 %v768
  %v3632 = vunpack.c.l.b16 %v769
  %v3633 = vunpack.c.h.b16 %v769
  %v3634 = vunpack.c.l.b16 %v770
  %v3635 = vunpack.c.h.b16 %v770
  %v3636 = vunpack.c.l.b16 %v771
  %v3637 = vunpack.c.h.b16 %v771
  %v3638 = vunpack.c.l.b16 %v772
  %v3639 = vunpack.c.h.b16 %v772
  %v3640 = vunpack.c.l.b16 %v773
  %v3641 = vunpack.c.h.b16 %v773
  %v3642 = vunpack.c.l.b16 %v774
  %v3643 = vunpack.c.h.b16 %v774
  %v3644 = vunpack.c.l.b16 %v775
  %v3645 = vunpack.c.h.b16 %v775
  %v3646 = vunpack.c.l.b16 %v776
  %v3647 = vunpack.c.h.b16 %v776
  %v3648 = vunpack.c.l.b16 %v777
  %v3649 = vunpack.c.h.b16 %v777
  %v3650 = vunpack.c.l.b16 %v778
  %v3651 = vunpack.c.h.b16 %v778
  %v3652 = vunpack.c.l.b16 %v779
  %v3653 = vunpack.c.h.b16 %v779
  %v3654 = vunpack.c.l.b16 %v780
  %v3655 = vunpack.c.h.b16 %v780
  %v3656 = vunpack.c.l.b16 %v781
  %v3657 = vunpack.c.h.b16 %v781
  %v3658 = vunpack.c.l.b16 %v782
  %v3659 = vunpack.c.h.b16 %v782
  %v3660 = vunpack.c.l.b16 %v783
  %v3661 = vunpack.c.h.b16 %v783
  %v3662 = vunpack.c.l.b16 %v784
  %v3663 = vunpack.c.h.b16 %v784
  %v3664 = vunpack.c.l.b16 %v785
  %v3665 = vunpack.c.h.b16 %v785
  %v3666 = vunpack.c.l.b16 %v786
  %v3667 = vunpack.c.h.b16 %v786
  %v3668 = vunpack.c.l.b16 %v787
  %v3669 = vunpack.c.h.b16 %v787
  %v3670 = vunpack.c.l.b16 %v788
  %v3671 = vunpack.c.h.b16 %v788
  %v3672 = vunpack.c.l.b16 %v789
  %v3673 = vunpack.c.h.b16 %v789
  %v3674 = vunpack.c.l.b16 %v790
  %v3675 = vunpack.c.h.b16 %v790
  %v3676 = vunpack.c.l.b16 %v791
  %v3677 = vunpack.c.h.b16 %v791
  %v3678 = vunpack.c.l.b16 %v792
  %v3679 = vunpack.c.h.b16 %v792
  %v3680 = vunpack.c.l.b16 %v793
  %v3681 = vunpack.c.h.b16 %v793
  %v3682 = vunpack.c.l.b16 %v794
  %v3683 = vunpack.c.h.b16 %v794
  %v3684 = vunpack.c.l.b16 %v795
  %v3685 = vunpack.c.h.b16 %v795
  %v3686 = vunpack.c.l.b16 %v796
  %v3687 = vunpack.c.h.b16 %v796
  %v3688 = vunpack.c.l.b16 %v797
  %v3689 = vunpack.c.h.b16 %v797
  %v3690 = vunpack.c.l.b16 %v798
  %v3691 = vunpack.c.h.b16 %v798
  %v3692 = vunpack.c.l.b16 %v799
  %v3693 = vunpack.c.h.b16 %v799
  %v3694 = vunpack.c.l.b16 %v800
  %v3695 = vunpack.c.h.b16 %v800
  %v3696 = vunpack.c.l.b16 %v801
  %v3697 = vunpack.c.h.b16 %v801
  %v3698 = vunpack.c.l.b16 %v802
  %v3699 = vunpack.c.h.b16 %v802
  %v3700 = vunpack.c.l.b16 %v803
  %v3701 = vunpack.c.h.b16 %v803
  %v3702 = vunpack.c.l.b16 %v804
  %v3703 = vunpack.c.h.b16 %v804
  %v3704 = vunpack.c.l.b16 %v805
  %v3705 = vunpack.c.h.b16 %v805
  %v3706 = vunpack.c.l.b16 %v806
  %v3707 = vunpack.c.h.b16 %v806
  %v3708 = vunpack.c.l.b16 %v807
  %v3709 = vunpack.c.h.b16 %v807
  %v3710 = vunpack.c.l.b16 %v808
  %v3711 = vunpack.c.h.b16 %v808
  %v3712 = vunpack.c.l.b16 %v809
  %v3713 = vunpack.c.h.b16 %v809
  %v3714 = vunpack.c.l.b16 %v810
  %v3715 = vunpack.c.h.b16 %v810
  %v3716 = vunpack.c.l.b16 %v811
  %v3717 = vunpack.c.h.b16 %v811
  %v3718 = vunpack.c.l.b16 %v812
  %v3719 = vunpack.c.h.b16 %v812
  %v3720 = vunpack.c.l.b16 %v813
  %v3721 = vunpack.c.h.b16 %v813
  %v3722 = vunpack.c.l.b16 %v814
  %v3723 = vunpack.c.h.b16 %v814
  %v3724 = vunpack.c.l.b16 %v815
  %v3725 = vunpack.c.h.b16 %v815
  %v3726 = vunpack.c.l.b16 %v816
  %v3727 = vunpack.c.h.b16 %v816
  %v3728 = vunpack.c.l.b16 %v817
  %v3729 = vunpack.c.h.b16 %v817
  %v3730 = vunpack.c.l.b16 %v818
  %v3731 = vunpack.c.h.b16 %v818
  %v3732 = vunpack.c.l.b16 %v819
  %v3733 = vunpack.c.h.b16 %v819
  %v3734 = vunpack.c.l.b16 %v820
  %v3735 = vunpack.c.h.b16 %v820
  %v3736 = vunpack.c.l.b16 %v821
  %v3737 = vunpack.c.h.b16 %v821
  %v3738 = vunpack.c.l.b16 %v822
  %v3739 = vunpack.c.h.b16 %v822
  %v3740 = vunpack.c.l.b16 %v823
  %v3741 = vunpack.c.h.b16 %v823
  %v3742 = vunpack.c.l.b16 %v824
  %v3743 = vunpack.c.h.b16 %v824
  %v3744 = vunpack.c.l.b16 %v825
  %v3745 = vunpack.c.h.b16 %v825
  %v3746 = vunpack.c.l.b16 %v826
  %v3747 = vunpack.c.h.b16 %v826
  %v3748 = vunpack.c.l.b16 %v827
  %v3749 = vunpack.c.h.b16 %v827
  %v3750 = vunpack.c.l.b16 %v828
  %v3751 = vunpack.c.h.b16 %v828
  %v3752 = vunpack.c.l.b16 %v829
  %v3753 = vunpack.c.h.b16 %v829
  %v3754 = vunpack.c.l.b16 %v830
  %v3755 = vunpack.c.h.b16 %v830
  %v3756 = vunpack.c.l.b16 %v831
  %v3757 = vunpack.c.h.b16 %v831
  %v3758 = vunpack.c.l.b16 %v832
  %v3759 = vunpack.c.h.b16 %v832
  %v3760 = vunpack.c.l.b16 %v833
  %v3761 = vunpack.c.h.b16 %v833
  %v3762 = vunpack.c.l.b16 %v834
  %v3763 = vunpack.c.h.b16 %v834
  %v3764 = vunpack.c.l.b16 %v835
  %v3765 = vunpack.c.h.b16 %v835
  %v3766 = vunpack.c.l.b16 %v836
  %v3767 = vunpack.c.h.b16 %v836
  %v3768 = vunpack.c.l.b16 %v837
  %v3769 = vunpack.c.h.b16 %v837
  %v3770 = vunpack.c.l.b16 %v838
  %v3771 = vunpack.c.h.b16 %v838
  %v3772 = vunpack.c.l.b16 %v839
  %v3773 = vunpack.c.h.b16 %v839
  %v3774 = vunpack.c.l.b16 %v840
  %v3775 = vunpack.c.h.b16 %v840
  %v3776 = vunpack.c.l.b16 %v841
  %v3777 = vunpack.c.h.b16 %v841
  %v3778 = vunpack.c.l.b16 %v842
  %v3779 = vunpack.c.h.b16 %v842
  %v3780 = vunpack.c.l.b16 %v843
  %v3781 = vunpack.c.h.b16 %v843
  %v3782 = vunpack.c.l.b16 %v844
  %v3783 = vunpack.c.h.b16 %v844
  %v3784 = vunpack.c.l.b16 %v845
  %v3785 = vunpack.c.h.b16 %v845
  %v3786 = vunpack.c.l.b16 %v846
  %v3787 = vunpack.c.h.b16 %v846
  %v3788 = vunpack.c.l.b16 %v847
  %v3789 = vunpack.c.h.b16 %v847
  %v3790 = vunpack.c.l.b16 %v848
  %v3791 = vunpack.c.h.b16 %v848
  %v3792 = vunpack.c.l.b16 %v849
  %v3793 = vunpack.c.h.b16 %v849
  %v3794 = vunpack.c.l.b16 %v850
  %v3795 = vunpack.c.h.b16 %v850
  %v3796 = vunpack.c.l.b16 %v851
  %v3797 = vunpack.c.h.b16 %v851
  %v3798 = vunpack.c.l.b16 %v852
  %v3799 = vunpack.c.h.b16 %v852
  %v3800 = vunpack.c.l.b16 %v853
  %v3801 = vunpack.c.h.b16 %v853
  %v3802 = vunpack.c.l.b16 %v854
  %v3803 = vunpack.c.h.b16 %v854
  %v3804 = vunpack.c.l.b16 %v855
  %v3805 = vunpack.c.h.b16 %v855
  %v3806 = vunpack.c.l.b16 %v856
  %v3807 = vunpack.c.h.b16 %v856
  %v3808 = vunpack.c.l.b16 %v857
  %v3809 = vunpack.c.h.b16 %v857
  %v3810 = vunpack.c.l.b16 %v858
  %v3811 = vunpack.c.h.b16 %v858
  %v3812 = vunpack.c.l.b16 %v859
  %v3813 = vunpack.c.h.b16 %v859
  %v3814 = vunpack.c.l.b16 %v860
  %v3815 = vunpack.c.h.b16 %v860
  %v3816 = vunpack.c.l.b16 %v861
  %v3817 = vunpack.c.h.b16 %v861
  %v3818 = vunpack.c.l.b16 %v862
  %v3819 = vunpack.c.h.b16 %v862
  %v3820 = vunpack.c.l.b16 %v863
  %v3821 = vunpack.c.h.b16 %v863
  %v3822 = vunpack.c.l.b16 %v864
  %v3823 = vunpack.c.h.b16 %v864
  %v3824 = vunpack.c.l.b16 %v865
  %v3825 = vunpack.c.h.b16 %v865
  %v3826 = vunpack.c.l.b16 %v866
  %v3827 = vunpack.c.h.b16 %v866
  %v3828 = vunpack.c.l.b16 %v867
  %v3829 = vunpack.c.h.b16 %v867
  %v3830 = vunpack.c.l.b16 %v868
  %v3831 = vunpack.c.h.b16 %v868
  %v3832 = vunpack.c.l.b16 %v869
  %v3833 = vunpack.c.h.b16 %v869
  %v3834 = vunpack.c.l.b16 %v870
  %v3835 = vunpack.c.h.b16 %v870
  %v3836 = vunpack.c.l.b16 %v871
  %v3837 = vunpack.c.h.b16 %v871
  %v3838 = vunpack.c.l.b16 %v872
  %v3839 = vunpack.c.h.b16 %v872
  %v3840 = vunpack.c.l.b16 %v873
  %v3841 = vunpack.c.h.b16 %v873
  %v3842 = vunpack.c.l.b16 %v874
  %v3843 = vunpack.c.h.b16 %v874
  %v3844 = vunpack.c.l.b16 %v875
  %v3845 = vunpack.c.h.b16 %v875
  %v3846 = vunpack.c.l.b16 %v876
  %v3847 = vunpack.c.h.b16 %v876
  %v3848 = vunpack.c.l.b16 %v877
  %v3849 = vunpack.c.h.b16 %v877
  %v3850 = vunpack.c.l.b16 %v878
  %v3851 = vunpack.c.h.b16 %v878
  %v3852 = vunpack.c.l.b16 %v879
  %v3853 = vunpack.c.h.b16 %v879
  %v3854 = vunpack.c.l.b16 %v880
  %v3855 = vunpack.c.h.b16 %v880
  %v3856 = vunpack.c.l.b16 %v881
  %v3857 = vunpack.c.h.b16 %v881
  %v3858 = vunpack.c.l.b16 %v882
  %v3859 = vunpack.c.h.b16 %v882
  %v3860 = vunpack.c.l.b16 %v883
  %v3861 = vunpack.c.h.b16 %v883
  %v3862 = vunpack.c.l.b16 %v884
  %v3863 = vunpack.c.h.b16 %v884
  %v3864 = vunpack.c.l.b16 %v885
  %v3865 = vunpack.c.h.b16 %v885
  %v3866 = vunpack.c.l.b16 %v886
  %v3867 = vunpack.c.h.b16 %v886
  %v3868 = vunpack.c.l.b16 %v887
  %v3869 = vunpack.c.h.b16 %v887
  %v3870 = vunpack.c.l.b16 %v888
  %v3871 = vunpack.c.h.b16 %v888
  %v3872 = vunpack.c.l.b16 %v889
  %v3873 = vunpack.c.h.b16 %v889
  %v3874 = vunpack.c.l.b16 %v890
  %v3875 = vunpack.c.h.b16 %v890
  %v3876 = vunpack.c.l.b16 %v891
  %v3877 = vunpack.c.h.b16 %v891
  %v3878 = vunpack.c.l.b16 %v892
  %v3879 = vunpack.c.h.b16 %v892
  %v3880 = vunpack.c.l.b16 %v893
  %v3881 = vunpack.c.h.b16 %v893
  %v3882 = vunpack.c.l.b16 %v894
  %v3883 = vunpack.c.h.b16 %v894
  %v3884 = vunpack.c.l.b16 %v895
  %v3885 = vunpack.c.h.b16 %v895
  %v3886 = vunpack.c.l.b16 %v896
  %v3887 = vunpack.c.h.b16 %v896
  %v3888 = vunpack.c.l.b16 %v897
  %v3889 = vunpack.c.h.b16 %v897
  %v3890 = vunpack.c.l.b16 %v898
  %v3891 = vunpack.c.h.b16 %v898
  %v3892 = vunpack.c.l.b16 %v899
  %v3893 = vunpack.c.h.b16 %v899
  %v3894 = vunpack.c.l.b16 %v900
  %v3895 = vunpack.c.h.b16 %v900
  %v3896 = vunpack.c.l.b16 %v901
  %v3897 = vunpack.c.h.b16 %v901
  %v3898 = vunpack.c.l.b16 %v902
  %v3899 = vunpack.c.h.b16 %v902
  %v3900 = vunpack.c.l.b16 %v903
  %v3901 = vunpack.c.h.b16 %v903
  %v3902 = vunpack.c.l.b16 %v904
  %v3903 = vunpack.c.h.b16 %v904
  %v3904 = vunpack.c.l.b16 %v905
  %v3905 = vunpack.c.h.b16 %v905
  %v3906 = vunpack.c.l.b16 %v906
  %v3907 = vunpack.c.h.b16 %v906
  %v3908 = vunpack.c.l.b16 %v907
  %v3909 = vunpack.c.h.b16 %v907
  %v3910 = vunpack.c.l.b16 %v908
  %v3911 = vunpack.c.h.b16 %v908
  %v3912 = vunpack.c.l.b16 %v909
  %v3913 = vunpack.c.h.b16 %v909
  %v3914 = vunpack.c.l.b16 %v910
  %v3915 = vunpack.c.h.b16 %v910
  %v3916 = vunpack.c.l.b16 %v911
  %v3917 = vunpack.c.h.b16 %v911
  %v3918 = vunpack.c.l.b16 %v912
  %v3919 = vunpack.c.h.b16 %v912
  %v3920 = vunpack.c.l.b16 %v913
  %v3921 = vunpack.c.h.b16 %v913
  %v3922 = vunpack.c.l.b16 %v914
  %v3923 = vunpack.c.h.b16 %v914
  %v3924 = vunpack.c.l.b16 %v915
  %v3925 = vunpack.c.h.b16 %v915
  %v3926 = vunpack.c.l.b16 %v916
  %v3927 = vunpack.c.h.b16 %v916
  %v3928 = vunpack.c.l.b16 %v917
  %v3929 = vunpack.c.h.b16 %v917
  %v3930 = vunpack.c.l.b16 %v918
  %v3931 = vunpack.c.h.b16 %v918
  %v3932 = vunpack.c.l.b16 %v919
  %v3933 = vunpack.c.h.b16 %v919
  %v3934 = vunpack.c.l.b16 %v920
  %v3935 = vunpack.c.h.b16 %v920
  %v3936 = vunpack.c.l.b16 %v921
  %v3937 = vunpack.c.h.b16 %v921
  %v3938 = vunpack.c.l.b16 %v922
  %v3939 = vunpack.c.h.b16 %v922
  %v3940 = vunpack.c.l.b16 %v923
  %v3941 = vunpack.c.h.b16 %v923
  %v3942 = vunpack.c.l.b16 %v924
  %v3943 = vunpack.c.h.b16 %v924
  %v3944 = vunpack.c.l.b16 %v925
  %v3945 = vunpack.c.h.b16 %v925
  %v3946 = vunpack.c.l.b16 %v926
  %v3947 = vunpack.c.h.b16 %v926
  %v3948 = vunpack.c.l.b16 %v927
  %v3949 = vunpack.c.h.b16 %v927
  %v3950 = vunpack.c.l.b16 %v928
  %v3951 = vunpack.c.h.b16 %v928
  %v3952 = vunpack.c.l.b16 %v929
  %v3953 = vunpack.c.h.b16 %v929
  %v3954 = vunpack.c.l.b16 %v930
  %v3955 = vunpack.c.h.b16 %v930
  %v3956 = vunpack.c.l.b16 %v931
  %v3957 = vunpack.c.h.b16 %v931
  %v3958 = vunpack.c.l.b16 %v932
  %v3959 = vunpack.c.h.b16 %v932
  %v3960 = vunpack.c.l.b16 %v933
  %v3961 = vunpack.c.h.b16 %v933
  %v3962 = vunpack.c.l.b16 %v934
  %v3963 = vunpack.c.h.b16 %v934
  %v3964 = vunpack.c.l.b16 %v935
  %v3965 = vunpack.c.h.b16 %v935
  %v3966 = vunpack.c.l.b16 %v936
  %v3967 = vunpack.c.h.b16 %v936
  %v3968 = vunpack.c.l.b16 %v937
  %v3969 = vunpack.c.h.b16 %v937
  %v3970 = vunpack.c.l.b16 %v938
  %v3971 = vunpack.c.h.b16 %v938
  %v3972 = vunpack.c.l.b16 %v939
  %v3973 = vunpack.c.h.b16 %v939
  %v3974 = vunpack.c.l.b16 %v940
  %v3975 = vunpack.c.h.b16 %v940
  %v3976 = vunpack.c.l.b16 %v941
  %v3977 = vunpack.c.h.b16 %v941
  %v3978 = vunpack.c.l.b16 %v942
  %v3979 = vunpack.c.h.b16 %v942
  %v3980 = vunpack.c.l.b16 %v943
  %v3981 = vunpack.c.h.b16 %v943
  %v3982 = vunpack.c.l.b16 %v944
  %v3983 = vunpack.c.h.b16 %v944
  %v3984 = vunpack.c.l.b16 %v945
  %v3985 = vunpack.c.h.b16 %v945
  %v3986 = vunpack.c.l.b16 %v946
  %v3987 = vunpack.c.h.b16 %v946
  %v3988 = vunpack.c.l.b16 %v947
  %v3989 = vunpack.c.h.b16 %v947
  %v3990 = vunpack.c.l.b16 %v948
  %v3991 = vunpack.c.h.b16 %v948
  %v3992 = vunpack.c.l.b16 %v949
  %v3993 = vunpack.c.h.b16 %v949
  %v3994 = vunpack.c.l.b16 %v950
  %v3995 = vunpack.c.h.b16 %v950
  %v3996 = vunpack.c.l.b16 %v951
  %v3997 = vunpack.c.h.b16 %v951
  %v3998 = vunpack.c.l.b16 %v952
  %v3999 = vunpack.c.h.b16 %v952
  %v4000 = vunpack.c.l.b16 %v953
  %v4001 = vunpack.c.h.b16 %v953
  %v4002 = vunpack.c.l.b16 %v954
  %v4003 = vunpack.c.h.b16 %v954
  %v4004 = vunpack.c.l.b16 %v955
  %v4005 = vunpack.c.h.b16 %v955
  %v4006 = vunpack.c.l.b16 %v956
  %v4007 = vunpack.c.h.b16 %v956
  %v4008 = vunpack.c.l.b16 %v957
  %v4009 = vunpack.c.h.b16 %v957
  %v4010 = vunpack.c.l.b16 %v958
  %v4011 = vunpack.c.h.b16 %v958
  %v4012 = vunpack.c.l.b16 %v959
  %v4013 = vunpack.c.h.b16 %v959
  %v4014 = vunpack.c.l.b16 %v960
  %v4015 = vunpack.c.h.b16 %v960
  %v4016 = vunpack.c.l.b16 %v961
  %v4017 = vunpack.c.h.b16 %v961
  %v4018 = vunpack.c.l.b16 %v962
  %v4019 = vunpack.c.h.b16 %v962
  %v4020 = vunpack.c.l.b16 %v963
  %v4021 = vunpack.c.h.b16 %v963
  %v4022 = vunpack.c.l.b16 %v964
  %v4023 = vunpack.c.h.b16 %v964
  %v4024 = vunpack.c.l.b16 %v965
  %v4025 = vunpack.c.h.b16 %v965
  %v4026 = vunpack.c.l.b16 %v966
  %v4027 = vunpack.c.h.b16 %v966
  %v4028 = vunpack.c.l.b16 %v967
  %v4029 = vunpack.c.h.b16 %v967
  %v4030 = vunpack.c.l.b16 %v968
  %v4031 = vunpack.c.h.b16 %v968
  %v4032 = vunpack.c.l.b16 %v969
  %v4033 = vunpack.c.h.b16 %v969
  %v4034 = vunpack.c.l.b16 %v970
  %v4035 = vunpack.c.h.b16 %v970
  %v4036 = vunpack.c.l.b16 %v971
  %v4037 = vunpack.c.h.b16 %v971
  %v4038 = vunpack.c.l.b16 %v972
  %v4039 = vunpack.c.h.b16 %v972
  %v4040 = vunpack.c.l.b16 %v973
  %v4041 = vunpack.c.h.b16 %v973
  %v4042 = vunpack.c.l.b16 %v974
  %v4043 = vunpack.c.h.b16 %v974
  %v4044 = vunpack.c.l.b16 %v975
  %v4045 = vunpack.c.h.b16 %v975
  %v4046 = vunpack.c.l.b16 %v976
  %v4047 = vunpack.c.h.b16 %v976
  %v4048 = vunpack.c.l.b16 %v977
  %v4049 = vunpack.c.h.b16 %v977
  %v4050 = vunpack.c.l.b16 %v978
  %v4051 = vunpack.c.h.b16 %v978
  %v4052 = vunpack.c.l.b16 %v979
  %v4053 = vunpack.c.h.b16 %v979
  %v4054 = vunpack.c.l.b16 %v980
  %v4055 = vunpack.c.h.b16 %v980
  %v4056 = vunpack.c.l.b16 %v981
  %v4057 = vunpack.c.h.b16 %v981
  %v4058 = vunpack.c.l.b16 %v982
  %v4059 = vunpack.c.h.b16 %v982
  %v4060 = vunpack.c.l.b16 %v983
  %v4061 = vunpack.c.h.b16 %v983
  %v4062 = vunpack.c.l.b16 %v984
  %v4063 = vunpack.c.h.b16 %v984
  %v4064 = vunpack.c.l.b16 %v985
  %v4065 = vunpack.c.h.b16 %v985
  %v4066 = vunpack.c.l.b16 %v986
  %v4067 = vunpack.c.h.b16 %v986
  %v4068 = vunpack.c.l.b16 %v987
  %v4069 = vunpack.c.h.b16 %v987
  %v4070 = vunpack.c.l.b16 %v988
  %v4071 = vunpack.c.h.b16 %v988
  %v4072 = vunpack.c.l.b16 %v989
  %v4073 = vunpack.c.h.b16 %v989
  %v4074 = vunpack.c.l.b16 %v990
  %v4075 = vunpack.c.h.b16 %v990
  %v4076 = vunpack.c.l.b16 %v991
  %v4077 = vunpack.c.h.b16 %v991
  %v4078 = vunpack.c.l.b16 %v992
  %v4079 = vunpack.c.h.b16 %v992
  %v4080 = vunpack.c.l.b16 %v993
  %v4081 = vunpack.c.h.b16 %v993
  %v4082 = vunpack.c.l.b16 %v994
  %v4083 = vunpack.c.h.b16 %v994
  %v4084 = vunpack.c.l.b16 %v995
  %v4085 = vunpack.c.h.b16 %v995
  %v4086 = vunpack.c.l.b16 %v996
  %v4087 = vunpack.c.h.b16 %v996
  %v4088 = vunpack.c.l.b16 %v997
  %v4089 = vunpack.c.h.b16 %v997
  %v4090 = vunpack.c.l.b16 %v998
  %v4091 = vunpack.c.h.b16 %v998
  %v4092 = vunpack.c.l.b16 %v999
  %v4093 = vunpack.c.h.b16 %v999
  %v4094 = vunpack.c.l.b16 %v1000
  %v4095 = vunpack.c.h.b16 %v1000
  %v4096 = vunpack.c.l.b16 %v1001
  %v4097 = vunpack.c.h.b16 %v1001
  %v4098 = vunpack.c.l.b16 %v1002
  %v4099 = vunpack.c.h.b16 %v1002
  %v4100 = vunpack.c.l.b16 %v1003
  %v4101 = vunpack.c.h.b16 %v1003
  %v4102 = vunpack.c.l.b16 %v1004
  %v4103 = vunpack.c.h.b16 %v1004
  %v4104 = vunpack.c.l.b16 %v1005
  %v4105 = vunpack.c.h.b16 %v1005
  %v4106 = vunpack.c.l.b16 %v1006
  %v4107 = vunpack.c.h.b16 %v1006
  %v4108 = vunpack.c.l.b16 %v1007
  %v4109 = vunpack.c.h.b16 %v1007
  %v4110 = vunpack.c.l.b16 %v1008
  %v4111 = vunpack.c.h.b16 %v1008
  %v4112 = vunpack.c.l.b16 %v1009
  %v4113 = vunpack.c.h.b16 %v1009
  %v4114 = vunpack.c.l.b16 %v1010
  %v4115 = vunpack.c.h.b16 %v1010
  %v4116 = vunpack.c.l.b16 %v1011
  %v4117 = vunpack.c.h.b16 %v1011
  %v4118 = vunpack.c.l.b16 %v1012
  %v4119 = vunpack.c.h.b16 %v1012
  %v4120 = vunpack.c.l.b16 %v1013
  %v4121 = vunpack.c.h.b16 %v1013
  %v4122 = vunpack.c.l.b16 %v1014
  %v4123 = vunpack.c.h.b16 %v1014
  %v4124 = vunpack.c.l.b16 %v1015
  %v4125 = vunpack.c.h.b16 %v1015
  %v4126 = vunpack.c.l.b16 %v1016
  %v4127 = vunpack.c.h.b16 %v1016
  %v4128 = vunpack.c.l.b16 %v1017
  %v4129 = vunpack.c.h.b16 %v1017
  %v4130 = vunpack.c.l.b16 %v1018
  %v4131 = vunpack.c.h.b16 %v1018
  %v4132 = vunpack.c.l.b16 %v1019
  %v4133 = vunpack.c.h.b16 %v1019
  %v4134 = vunpack.c.l.b16 %v1020
  %v4135 = vunpack.c.h.b16 %v1020
  %v4136 = vunpack.c.l.b16 %v1021
  %v4137 = vunpack.c.h.b16 %v1021
  %v4138 = vunpack.c.l.b16 %v1022
  %v4139 = vunpack.c.h.b16 %v1022
  %v4140 = vunpack.c.l.b16 %v1023
  %v4141 = vunpack.c.h.b16 %v1023
  %v4142 = vunpack.c.l.b16 %v1024
  %v4143 = vunpack.c.h.b16 %v1024
  %v4144 = vunpack.c.l.b16 %v1025
  %v4145 = vunpack.c.h.b16 %v1025
  %v4146 = vunpack.c.l.b16 %v1026
  %v4147 = vunpack.c.h.b16 %v1026
  %v4148 = vunpack.c.l.b16 %v1027
  %v4149 = vunpack.c.h.b16 %v1027
  %v4150 = vunpack.c.l.b16 %v1028
  %v4151 = vunpack.c.h.b16 %v1028
  %v4152 = vunpack.c.l.b16 %v1029
  %v4153 = vunpack.c.h.b16 %v1029
  %v4154 = vunpack.c.l.b16 %v1030
  %v4155 = vunpack.c.h.b16 %v1030
  %v4156 = vunpack.c.l.b16 %v1031
  %v4157 = vunpack.c.h.b16 %v1031
  %v4158 = vunpack.c.l.b16 %v1032
  %v4159 = vunpack.c.h.b16 %v1032
  %v4160 = vunpack.c.l.b16 %v1033
  %v4161 = vunpack.c.h.b16 %v1033
  %v4162 = vunpack.c.l.b16 %v1034
  %v4163 = vunpack.c.h.b16 %v1034
  %v4164 = vunpack.c.l.b16 %v1035
  %v4165 = vunpack.c.h.b16 %v1035
  %v4166 = vunpack.c.l.b16 %v1036
  %v4167 = vunpack.c.h.b16 %v1036
  %v4168 = vunpack.c.l.b16 %v1037
  %v4169 = vunpack.c.h.b16 %v1037
  %v4170 = vunpack.c.l.b16 %v1038
  %v4171 = vunpack.c.h.b16 %v1038
  %v4172 = vunpack.c.l.b16 %v1039
  %v4173 = vunpack.c.h.b16 %v1039
  %v4174 = vunpack.c.l.b16 %v1040
  %v4175 = vunpack.c.h.b16 %v1040
  %v4176 = vunpack.c.l.b16 %v1041
  %v4177 = vunpack.c.h.b16 %v1041
  %v4178 = vunpack.c.l.b16 %v1042
  %v4179 = vunpack.c.h.b16 %v1042
  %v4180 = vunpack.c.l.b16 %v1043
  %v4181 = vunpack.c.h.b16 %v1043
  %v4182 = vunpack.c.l.b16 %v1044
  %v4183 = vunpack.c.h.b16 %v1044
  %v4184 = vunpack.c.l.b16 %v1045
  %v4185 = vunpack.c.h.b16 %v1045
  %v4186 = vunpack.c.l.b16 %v1046
  %v4187 = vunpack.c.h.b16 %v1046
  %v4188 = vunpack.c.l.b16 %v1047
  %v4189 = vunpack.c.h.b16 %v1047
  %v4190 = vunpack.c.l.b16 %v1048
  %v4191 = vunpack.c.h.b16 %v1048
  %v4192 = vunpack.c.l.b16 %v1049
  %v4193 = vunpack.c.h.b16 %v1049
  %v4194 = vunpack.c.l.b16 %v1050
  %v4195 = vunpack.c.h.b16 %v1050
  %v4196 = vunpack.c.l.b16 %v1051
  %v4197 = vunpack.c.h.b16 %v1051
  %v4198 = vpack.c.b16 %v2158, %v2150
  %v4199 = vpack.c.b16 %v2159, %v2151
  %v4200 = vpack.c.b16 %v2160, %v2152
  %v4201 = vpack.c.b16 %v2161, %v2153
  %v4202 = vpack.c.b16 %v2162, %v2154
  %v4203 = vpack.c.b16 %v2163, %v2155
  %v4204 = vpack.c.b16 %v2164, %v2156
  %v4205 = vpack.c.b16 %v2165, %v2157
  %v4206 = vpack.c.b16 %v2174, %v2166
  %v4207 = vpack.c.b16 %v2175, %v2167
  %v4208 = vpack.c.b16 %v2176, %v2168
  %v4209 = vpack.c.b16 %v2177, %v2169
  %v4210 = vpack.c.b16 %v2178, %v2170
  %v4211 = vpack.c.b16 %v2179, %v2171
  %v4212 = vpack.c.b16 %v2180, %v2172
  %v4213 = vpack.c.b16 %v2181, %v2173
  %v4214 = vpack.c.b16 %v2190, %v2182
  %v4215 = vpack.c.b16 %v2191, %v2183
  %v4216 = vpack.c.b16 %v2192, %v2184
  %v4217 = vpack.c.b16 %v2193, %v2185
  %v4218 = vpack.c.b16 %v2194, %v2186
  %v4219 = vpack.c.b16 %v2195, %v2187
  %v4220 = vpack.c.b16 %v2196, %v2188
  %v4221 = vpack.c.b16 %v2197, %v2189
  %v4222 = vpack.c.b16 %v2206, %v2198
  %v4223 = vpack.c.b16 %v2207, %v2199
  %v4224 = vpack.c.b16 %v2208, %v2200
  %v4225 = vpack.c.b16 %v2209, %v2201
  %v4226 = vpack.c.b16 %v2210, %v2202
  %v4227 = vpack.c.b16 %v2211, %v2203
  %v4228 = vpack.c.b16 %v2212, %v2204
  %v4229 = vpack.c.b16 %v2213, %v2205
  %v4230 = vpack.c.b16 %v2222, %v2214
  %v4231 = vpack.c.b16 %v2223, %v2215
  %v4232 = vpack.c.b16 %v2224, %v2216
  %v4233 = vpack.c.b16 %v2225, %v2217
  %v4234 = vpack.c.b16 %v2226, %v2218
  %v4235 = vpack.c.b16 %v2227, %v2219
  %v4236 = vpack.c.b16 %v2228, %v2220
  %v4237 = vpack.c.b16 %v2229, %v2221
  %v4238 = vpack.c.b16 %v2238, %v2230
  %v4239 = vpack.c.b16 %v2239, %v2231
  %v4240 = vpack.c.b16 %v2240, %v2232
  %v4241 = vpack.c.b16 %v2241, %v2233
  %v4242 = vpack.c.b16 %v2242, %v2234
  %v4243 = vpack.c.b16 %v2243, %v2235
  %v4244 = vpack.c.b16 %v2244, %v2236
  %v4245 = vpack.c.b16 %v2245, %v2237
  %v4246 = vpack.c.b16 %v2254, %v2246
  %v4247 = vpack.c.b16 %v2255, %v2247
  %v4248 = vpack.c.b16 %v2256, %v2248
  %v4249 = vpack.c.b16 %v2257, %v2249
  %v4250 = vpack.c.b16 %v2258, %v2250
  %v4251 = vpack.c.b16 %v2259, %v2251
  %v4252 = vpack.c.b16 %v2260, %v2252
  %v4253 = vpack.c.b16 %v2261, %v2253
  %v4254 = vpack.c.b16 %v2270, %v2262
  %v4255 = vpack.c.b16 %v2271, %v2263
  %v4256 = vpack.c.b16 %v2272, %v2264
  %v4257 = vpack.c.b16 %v2273, %v2265
  %v4258 = vpack.c.b16 %v2274, %v2266
  %v4259 = vpack.c.b16 %v2275, %v2267
  %v4260 = vpack.c.b16 %v2276, %v2268
  %v4261 = vpack.c.b16 %v2277, %v2269
  %v4262 = vpack.c.b16 %v2286, %v2278
  %v4263 = vpack.c.b16 %v2287, %v2279
  %v4264 = vpack.c.b16 %v2288, %v2280
  %v4265 = vpack.c.b16 %v2289, %v2281
  %v4266 = vpack.c.b16 %v2290, %v2282
  %v4267 = vpack.c.b16 %v2291, %v2283
  %v4268 = vpack.c.b16 %v2292, %v2284
  %v4269 = vpack.c.b16 %v2293, %v2285
  %v4270 = vpack.c.b16 %v2302, %v2294
  %v4271 = vpack.c.b16 %v2303, %v2295
  %v4272 = vpack.c.b16 %v2304, %v2296
  %v4273 = vpack.c.b16 %v2305, %v2297
  %v4274 = vpack.c.b16 %v2306, %v2298
  %v4275 = vpack.c.b16 %v2307, %v2299
  %v4276 = vpack.c.b16 %v2308, %v2300
  %v4277 = vpack.c.b16 %v2309, %v2301
  %v4278 = vpack.c.b16 %v2318, %v2310
  %v4279 = vpack.c.b16 %v2319, %v2311
  %v4280 = vpack.c.b16 %v2320, %v2312
  %v4281 = vpack.c.b16 %v2321, %v2313
  %v4282 = vpack.c.b16 %v2322, %v2314
  %v4283 = vpack.c.b16 %v2323, %v2315
  %v4284 = vpack.c.b16 %v2324, %v2316
  %v4285 = vpack.c.b16 %v2325, %v2317
  %v4286 = vpack.c.b16 %v2334, %v2326
  %v4287 = vpack.c.b16 %v2335, %v2327
  %v4288 = vpack.c.b16 %v2336, %v2328
  %v4289 = vpack.c.b16 %v2337, %v2329
  %v4290 = vpack.c.b16 %v2338, %v2330
  %v4291 = vpack.c.b16 %v2339, %v2331
  %v4292 = vpack.c.b16 %v2340, %v2332
  %v4293 = vpack.c.b16 %v2341, %v2333
  %v4294 = vpack.c.b16 %v2350, %v2342
  %v4295 = vpack.c.b16 %v2351, %v2343
  %v4296 = vpack.c.b16 %v2352, %v2344
  %v4297 = vpack.c.b16 %v2353, %v2345
  %v4298 = vpack.c.b16 %v2354, %v2346
  %v4299 = vpack.c.b16 %v2355, %v2347
  %v4300 = vpack.c.b16 %v2356, %v2348
  %v4301 = vpack.c.b16 %v2357, %v2349
  %v4302 = vpack.c.b16 %v2366, %v2358
  %v4303 = vpack.c.b16 %v2367, %v2359
  %v4304 = vpack.c.b16 %v2368, %v2360
  %v4305 = vpack.c.b16 %v2369, %v2361
  %v4306 = vpack.c.b16 %v2370, %v2362
  %v4307 = vpack.c.b16 %v2371, %v2363
  %v4308 = vpack.c.b16 %v2372, %v2364
  %v4309 = vpack.c.b16 %v2373, %v2365
  %v4310 = vpack.c.b16 %v2382, %v2374
  %v4311 = vpack.c.b16 %v2383, %v2375
  %v4312 = vpack.c.b16 %v2384, %v2376
  %v4313 = vpack.c.b16 %v2385, %v2377
  %v4314 = vpack.c.b16 %v2386, %v2378
  %v4315 = vpack.c.b16 %v2387, %v2379
  %v4316 = vpack.c.b16 %v2388, %v2380
  %v4317 = vpack.c.b16 %v2389, %v2381
  %v4318 = vpack.c.b16 %v2398, %v2390
  %v4319 = vpack.c.b16 %v2399, %v2391
  %v4320 = vpack.c.b16 %v2400, %v2392
  %v4321 = vpack.c.b16 %v2401, %v2393
  %v4322 = vpack.c.b16 %v2402, %v2394
  %v4323 = vpack.c.b16 %v2403, %v2395
  %v4324 = vpack.c.b16 %v2404, %v2396
  %v4325 = vpack.c.b16 %v2405, %v2397
  %v4326 = vpack.c.b16 %v2414, %v2406
  %v4327 = vpack.c.b16 %v2415, %v2407
  %v4328 = vpack.c.b16 %v2416, %v2408
  %v4329 = vpack.c.b16 %v2417, %v2409
  %v4330 = vpack.c.b16 %v2418, %v2410
  %v4331 = vpack.c.b16 %v2419, %v2411
  %v4332 = vpack.c.b16 %v2420, %v2412
  %v4333 = vpack.c.b16 %v2421, %v2413
  %v4334 = vpack.c.b16 %v2430, %v2422
  %v4335 = vpack.c.b16 %v2431, %v2423
  %v4336 = vpack.c.b16 %v2432, %v2424
  %v4337 = vpack.c.b16 %v2433, %v2425
  %v4338 = vpack.c.b16 %v2434, %v2426
  %v4339 = vpack.c.b16 %v2435, %v2427
  %v4340 = vpack.c.b16 %v2436, %v2428
  %v4341 = vpack.c.b16 %v2437, %v2429
  %v4342 = vpack.c.b16 %v2446, %v2438
  %v4343 = vpack.c.b16 %v2447, %v2439
  %v4344 = vpack.c.b16 %v2448, %v2440
  %v4345 = vpack.c.b16 %v2449, %v2441
  %v4346 = vpack.c.b16 %v2450, %v2442
  %v4347 = vpack.c.b16 %v2451, %v2443
  %v4348 = vpack.c.b16 %v2452, %v2444
  %v4349 = vpack.c.b16 %v2453, %v2445
  %v4350 = vpack.c.b16 %v2462, %v2454
  %v4351 = vpack.c.b16 %v2463, %v2455
  %v4352 = vpack.c.b16 %v2464, %v2456
  %v4353 = vpack.c.b16 %v2465, %v2457
  %v4354 = vpack.c.b16 %v2466, %v2458
  %v4355 = vpack.c.b16 %v2467, %v2459
  %v4356 = vpack.c.b16 %v2468, %v2460
  %v4357 = vpack.c.b16 %v2469, %v2461
  %v4358 = vpack.c.b16 %v2478, %v2470
  %v4359 = vpack.c.b16 %v2479, %v2471
  %v4360 = vpack.c.b16 %v2480, %v2472
  %v4361 = vpack.c.b16 %v2481, %v2473
  %v4362 = vpack.c.b16 %v2482, %v2474
  %v4363 = vpack.c.b16 %v2483, %v2475
  %v4364 = vpack.c.b16 %v2484, %v2476
  %v4365 = vpack.c.b16 %v2485, %v2477
  %v4366 = vpack.c.b16 %v2494, %v2486
  %v4367 = vpack.c.b16 %v2495, %v2487
  %v4368 = vpack.c.b16 %v2496, %v2488
  %v4369 = vpack.c.b16 %v2497, %v2489
  %v4370 = vpack.c.b16 %v2498, %v2490
  %v4371 = vpack.c.b16 %v2499, %v2491
  %v4372 = vpack.c.b16 %v2500, %v2492
  %v4373 = vpack.c.b16 %v2501, %v2493
  %v4374 = vpack.c.b16 %v2510, %v2502
  %v4375 = vpack.c.b16 %v2511, %v2503
  %v4376 = vpack.c.b16 %v2512, %v2504
  %v4377 = vpack.c.b16 %v2513, %v2505
  %v4378 = vpack.c.b16 %v2514, %v2506
  %v4379 = vpack.c.b16 %v2515, %v2507
  %v4380 = vpack.c.b16 %v2516, %v2508
  %v4381 = vpack.c.b16 %v2517, %v2509
  %v4382 = vpack.c.b16 %v2526, %v2518
  %v4383 = vpack.c.b16 %v2527, %v2519
  %v4384 = vpack.c.b16 %v2528, %v2520
  %v4385 = vpack.c.b16 %v2529, %v2521
  %v4386 = vpack.c.b16 %v2530, %v2522
  %v4387 = vpack.c.b16 %v2531, %v2523
  %v4388 = vpack.c.b16 %v2532, %v2524
  %v4389 = vpack.c.b16 %v2533, %v2525
  %v4390 = vpack.c.b16 %v2542, %v2534
  %v4391 = vpack.c.b16 %v2543, %v2535
  %v4392 = vpack.c.b16 %v2544, %v2536
  %v4393 = vpack.c.b16 %v2545, %v2537
  %v4394 = vpack.c.b16 %v2546, %v2538
  %v4395 = vpack.c.b16 %v2547, %v2539
  %v4396 = vpack.c.b16 %v2548, %v2540
  %v4397 = vpack.c.b16 %v2549, %v2541
  %v4398 = vpack.c.b16 %v2558, %v2550
  %v4399 = vpack.c.b16 %v2559, %v2551
  %v4400 = vpack.c.b16 %v2560, %v2552
  %v4401 = vpack.c.b16 %v2561, %v2553
  %v4402 = vpack.c.b16 %v2562, %v2554
  %v4403 = vpack.c.b16 %v2563, %v2555
  %v4404 = vpack.c.b16 %v2564, %v2556
  %v4405 = vpack.c.b16 %v2565, %v2557
  %v4406 = vpack.c.b16 %v2574, %v2566
  %v4407 = vpack.c.b16 %v2575, %v2567
  %v4408 = vpack.c.b16 %v2576, %v2568
  %v4409 = vpack.c.b16 %v2577, %v2569
  %v4410 = vpack.c.b16 %v2578, %v2570
  %v4411 = vpack.c.b16 %v2579, %v2571
  %v4412 = vpack.c.b16 %v2580, %v2572
  %v4413 = vpack.c.b16 %v2581, %v2573
  %v4414 = vpack.c.b16 %v2590, %v2582
  %v4415 = vpack.c.b16 %v2591, %v2583
  %v4416 = vpack.c.b16 %v2592, %v2584
  %v4417 = vpack.c.b16 %v2593, %v2585
  %v4418 = vpack.c.b16 %v2594, %v2586
  %v4419 = vpack.c.b16 %v2595, %v2587
  %v4420 = vpack.c.b16 %v2596, %v2588
  %v4421 = vpack.c.b16 %v2597, %v2589
  %v4422 = vpack.c.b16 %v2606, %v2598
  %v4423 = vpack.c.b16 %v2607, %v2599
  %v4424 = vpack.c.b16 %v2608, %v2600
  %v4425 = vpack.c.b16 %v2609, %v2601
  %v4426 = vpack.c.b16 %v2610, %v2602
  %v4427 = vpack.c.b16 %v2611, %v2603
  %v4428 = vpack.c.b16 %v2612, %v2604
  %v4429 = vpack.c.b16 %v2613, %v2605
  %v4430 = vpack.c.b16 %v2622, %v2614
  %v4431 = vpack.c.b16 %v2623, %v2615
  %v4432 = vpack.c.b16 %v2624, %v2616
  %v4433 = vpack.c.b16 %v2625, %v2617
  %v4434 = vpack.c.b16 %v2626, %v2618
  %v4435 = vpack.c.b16 %v2627, %v2619
  %v4436 = vpack.c.b16 %v2628, %v2620
  %v4437 = vpack.c.b16 %v2629, %v2621
  %v4438 = vpack.c.b16 %v2638, %v2630
  %v4439 = vpack.c.b16 %v2639, %v2631
  %v4440 = vpack.c.b16 %v2640, %v2632
  %v4441 = vpack.c.b16 %v2641, %v2633
  %v4442 = vpack.c.b16 %v2642, %v2634
  %v4443 = vpack.c.b16 %v2643, %v2635
  %v4444 = vpack.c.b16 %v2644, %v2636
  %v4445 = vpack.c.b16 %v2645, %v2637
  %v4446 = vpack.c.b16 %v2654, %v2646
  %v4447 = vpack.c.b16 %v2655, %v2647
  %v4448 = vpack.c.b16 %v2656, %v2648
  %v4449 = vpack.c.b16 %v2657, %v2649
  %v4450 = vpack.c.b16 %v2658, %v2650
  %v4451 = vpack.c.b16 %v2659, %v2651
  %v4452 = vpack.c.b16 %v2660, %v2652
  %v4453 = vpack.c.b16 %v2661, %v2653
  %v4454 = vpack.c.b16 %v2670, %v2662
  %v4455 = vpack.c.b16 %v2671, %v2663
  %v4456 = vpack.c.b16 %v2672, %v2664
  %v4457 = vpack.c.b16 %v2673, %v2665
  %v4458 = vpack.c.b16 %v2674, %v2666
  %v4459 = vpack.c.b16 %v2675, %v2667
  %v4460 = vpack.c.b16 %v2676, %v2668
  %v4461 = vpack.c.b16 %v2677, %v2669
  %v4462 = vpack.c.b16 %v2686, %v2678
  %v4463 = vpack.c.b16 %v2687, %v2679
  %v4464 = vpack.c.b16 %v2688, %v2680
  %v4465 = vpack.c.b16 %v2689, %v2681
  %v4466 = vpack.c.b16 %v2690, %v2682
  %v4467 = vpack.c.b16 %v2691, %v2683
  %v4468 = vpack.c.b16 %v2692, %v2684
  %v4469 = vpack.c.b16 %v2693, %v2685
  %v4470 = vpack.c.b16 %v2702, %v2694
  %v4471 = vpack.c.b16 %v2703, %v2695
  %v4472 = vpack.c.b16 %v2704, %v2696
  %v4473 = vpack.c.b16 %v2705, %v2697
  %v4474 = vpack.c.b16 %v2706, %v2698
  %v4475 = vpack.c.b16 %v2707, %v2699
  %v4476 = vpack.c.b16 %v2708, %v2700
  %v4477 = vpack.c.b16 %v2709, %v2701
  %v4478 = vpack.c.b16 %v2718, %v2710
  %v4479 = vpack.c.b16 %v2719, %v2711
  %v4480 = vpack.c.b16 %v2720, %v2712
  %v4481 = vpack.c.b16 %v2721, %v2713
  %v4482 = vpack.c.b16 %v2722, %v2714
  %v4483 = vpack.c.b16 %v2723, %v2715
  %v4484 = vpack.c.b16 %v2724, %v2716
  %v4485 = vpack.c.b16 %v2725, %v2717
  %v4486 = vpack.c.b16 %v2734, %v2726
  %v4487 = vpack.c.b16 %v2735, %v2727
  %v4488 = vpack.c.b16 %v2736, %v2728
  %v4489 = vpack.c.b16 %v2737, %v2729
  %v4490 = vpack.c.b16 %v2738, %v2730
  %v4491 = vpack.c.b16 %v2739, %v2731
  %v4492 = vpack.c.b16 %v2740, %v2732
  %v4493 = vpack.c.b16 %v2741, %v2733
  %v4494 = vpack.c.b16 %v2750, %v2742
  %v4495 = vpack.c.b16 %v2751, %v2743
  %v4496 = vpack.c.b16 %v2752, %v2744
  %v4497 = vpack.c.b16 %v2753, %v2745
  %v4498 = vpack.c.b16 %v2754, %v2746
  %v4499 = vpack.c.b16 %v2755, %v2747
  %v4500 = vpack.c.b16 %v2756, %v2748
  %v4501 = vpack.c.b16 %v2757, %v2749
  %v4502 = vpack.c.b16 %v2766, %v2758
  %v4503 = vpack.c.b16 %v2767, %v2759
  %v4504 = vpack.c.b16 %v2768, %v2760
  %v4505 = vpack.c.b16 %v2769, %v2761
  %v4506 = vpack.c.b16 %v2770, %v2762
  %v4507 = vpack.c.b16 %v2771, %v2763
  %v4508 = vpack.c.b16 %v2772, %v2764
  %v4509 = vpack.c.b16 %v2773, %v2765
  %v4510 = vpack.c.b16 %v2782, %v2774
  %v4511 = vpack.c.b16 %v2783, %v2775
  %v4512 = vpack.c.b16 %v2784, %v2776
  %v4513 = vpack.c.b16 %v2785, %v2777
  %v4514 = vpack.c.b16 %v2786, %v2778
  %v4515 = vpack.c.b16 %v2787, %v2779
  %v4516 = vpack.c.b16 %v2788, %v2780
  %v4517 = vpack.c.b16 %v2789, %v2781
  %v4518 = vpack.c.b16 %v2798, %v2790
  %v4519 = vpack.c.b16 %v2799, %v2791
  %v4520 = vpack.c.b16 %v2800, %v2792
  %v4521 = vpack.c.b16 %v2801, %v2793
  %v4522 = vpack.c.b16 %v2802, %v2794
  %v4523 = vpack.c.b16 %v2803, %v2795
  %v4524 = vpack.c.b16 %v2804, %v2796
  %v4525 = vpack.c.b16 %v2805, %v2797
  %v4526 = vpack.c.b16 %v2814, %v2806
  %v4527 = vpack.c.b16 %v2815, %v2807
  %v4528 = vpack.c.b16 %v2816, %v2808
  %v4529 = vpack.c.b16 %v2817, %v2809
  %v4530 = vpack.c.b16 %v2818, %v2810
  %v4531 = vpack.c.b16 %v2819, %v2811
  %v4532 = vpack.c.b16 %v2820, %v2812
  %v4533 = vpack.c.b16 %v2821, %v2813
  %v4534 = vpack.c.b16 %v2830, %v2822
  %v4535 = vpack.c.b16 %v2831, %v2823
  %v4536 = vpack.c.b16 %v2832, %v2824
  %v4537 = vpack.c.b16 %v2833, %v2825
  %v4538 = vpack.c.b16 %v2834, %v2826
  %v4539 = vpack.c.b16 %v2835, %v2827
  %v4540 = vpack.c.b16 %v2836, %v2828
  %v4541 = vpack.c.b16 %v2837, %v2829
  %v4542 = vpack.c.b16 %v2846, %v2838
  %v4543 = vpack.c.b16 %v2847, %v2839
  %v4544 = vpack.c.b16 %v2848, %v2840
  %v4545 = vpack.c.b16 %v2849, %v2841
  %v4546 = vpack.c.b16 %v2850, %v2842
  %v4547 = vpack.c.b16 %v2851, %v2843
  %v4548 = vpack.c.b16 %v2852, %v2844
  %v4549 = vpack.c.b16 %v2853, %v2845
  %v4550 = vpack.c.b16 %v2862, %v2854
  %v4551 = vpack.c.b16 %v2863, %v2855
  %v4552 = vpack.c.b16 %v2864, %v2856
  %v4553 = vpack.c.b16 %v2865, %v2857
  %v4554 = vpack.c.b16 %v2866, %v2858
  %v4555 = vpack.c.b16 %v2867, %v2859
  %v4556 = vpack.c.b16 %v2868, %v2860
  %v4557 = vpack.c.b16 %v2869, %v2861
  %v4558 = vpack.c.b16 %v2878, %v2870
  %v4559 = vpack.c.b16 %v2879, %v2871
  %v4560 = vpack.c.b16 %v2880, %v2872
  %v4561 = vpack.c.b16 %v2881, %v2873
  %v4562 = vpack.c.b16 %v2882, %v2874
  %v4563 = vpack.c.b16 %v2883, %v2875
  %v4564 = vpack.c.b16 %v2884, %v2876
  %v4565 = vpack.c.b16 %v2885, %v2877
  %v4566 = vpack.c.b16 %v2894, %v2886
  %v4567 = vpack.c.b16 %v2895, %v2887
  %v4568 = vpack.c.b16 %v2896, %v2888
  %v4569 = vpack.c.b16 %v2897, %v2889
  %v4570 = vpack.c.b16 %v2898, %v2890
  %v4571 = vpack.c.b16 %v2899, %v2891
  %v4572 = vpack.c.b16 %v2900, %v2892
  %v4573 = vpack.c.b16 %v2901, %v2893
  %v4574 = vpack.c.b16 %v2910, %v2902
  %v4575 = vpack.c.b16 %v2911, %v2903
  %v4576 = vpack.c.b16 %v2912, %v2904
  %v4577 = vpack.c.b16 %v2913, %v2905
  %v4578 = vpack.c.b16 %v2914, %v2906
  %v4579 = vpack.c.b16 %v2915, %v2907
  %v4580 = vpack.c.b16 %v2916, %v2908
  %v4581 = vpack.c.b16 %v2917, %v2909
  %v4582 = vpack.c.b16 %v2926, %v2918
  %v4583 = vpack.c.b16 %v2927, %v2919
  %v4584 = vpack.c.b16 %v2928, %v2920
  %v4585 = vpack.c.b16 %v2929, %v2921
  %v4586 = vpack.c.b16 %v2930, %v2922
  %v4587 = vpack.c.b16 %v2931, %v2923
  %v4588 = vpack.c.b16 %v2932, %v2924
  %v4589 = vpack.c.b16 %v2933, %v2925
  %v4590 = vpack.c.b16 %v2942, %v2934
  %v4591 = vpack.c.b16 %v2943, %v2935
  %v4592 = vpack.c.b16 %v2944, %v2936
  %v4593 = vpack.c.b16 %v2945, %v2937
  %v4594 = vpack.c.b16 %v2946, %v2938
  %v4595 = vpack.c.b16 %v2947, %v2939
  %v4596 = vpack.c.b16 %v2948, %v2940
  %v4597 = vpack.c.b16 %v2949, %v2941
  %v4598 = vpack.c.b16 %v2958, %v2950
  %v4599 = vpack.c.b16 %v2959, %v2951
  %v4600 = vpack.c.b16 %v2960, %v2952
  %v4601 = vpack.c.b16 %v2961, %v2953
  %v4602 = vpack.c.b16 %v2962, %v2954
  %v4603 = vpack.c.b16 %v2963, %v2955
  %v4604 = vpack.c.b16 %v2964, %v2956
  %v4605 = vpack.c.b16 %v2965, %v2957
  %v4606 = vpack.c.b16 %v2974, %v2966
  %v4607 = vpack.c.b16 %v2975, %v2967
  %v4608 = vpack.c.b16 %v2976, %v2968
  %v4609 = vpack.c.b16 %v2977, %v2969
  %v4610 = vpack.c.b16 %v2978, %v2970
  %v4611 = vpack.c.b16 %v2979, %v2971
  %v4612 = vpack.c.b16 %v2980, %v2972
  %v4613 = vpack.c.b16 %v2981, %v2973
  %v4614 = vpack.c.b16 %v2990, %v2982
  %v4615 = vpack.c.b16 %v2991, %v2983
  %v4616 = vpack.c.b16 %v2992, %v2984
  %v4617 = vpack.c.b16 %v2993, %v2985
  %v4618 = vpack.c.b16 %v2994, %v2986
  %v4619 = vpack.c.b16 %v2995, %v2987
  %v4620 = vpack.c.b16 %v2996, %v2988
  %v4621 = vpack.c.b16 %v2997, %v2989
  %v4622 = vpack.c.b16 %v3006, %v2998
  %v4623 = vpack.c.b16 %v3007, %v2999
  %v4624 = vpack.c.b16 %v3008, %v3000
  %v4625 = vpack.c.b16 %v3009, %v3001
  %v4626 = vpack.c.b16 %v3010, %v3002
  %v4627 = vpack.c.b16 %v3011, %v3003
  %v4628 = vpack.c.b16 %v3012, %v3004
  %v4629 = vpack.c.b16 %v3013, %v3005
  %v4630 = vpack.c.b16 %v3022, %v3014
  %v4631 = vpack.c.b16 %v3023, %v3015
  %v4632 = vpack.c.b16 %v3024, %v3016
  %v4633 = vpack.c.b16 %v3025, %v3017
  %v4634 = vpack.c.b16 %v3026, %v3018
  %v4635 = vpack.c.b16 %v3027, %v3019
  %v4636 = vpack.c.b16 %v3028, %v3020
  %v4637 = vpack.c.b16 %v3029, %v3021
  %v4638 = vpack.c.b16 %v3038, %v3030
  %v4639 = vpack.c.b16 %v3039, %v3031
  %v4640 = vpack.c.b16 %v3040, %v3032
  %v4641 = vpack.c.b16 %v3041, %v3033
  %v4642 = vpack.c.b16 %v3042, %v3034
  %v4643 = vpack.c.b16 %v3043, %v3035
  %v4644 = vpack.c.b16 %v3044, %v3036
  %v4645 = vpack.c.b16 %v3045, %v3037
  %v4646 = vpack.c.b16 %v3054, %v3046
  %v4647 = vpack.c.b16 %v3055, %v3047
  %v4648 = vpack.c.b16 %v3056, %v3048
  %v4649 = vpack.c.b16 %v3057, %v3049
  %v4650 = vpack.c.b16 %v3058, %v3050
  %v4651 = vpack.c.b16 %v3059, %v3051
  %v4652 = vpack.c.b16 %v3060, %v3052
  %v4653 = vpack.c.b16 %v3061, %v3053
  %v4654 = vpack.c.b16 %v3070, %v3062
  %v4655 = vpack.c.b16 %v3071, %v3063
  %v4656 = vpack.c.b16 %v3072, %v3064
  %v4657 = vpack.c.b16 %v3073, %v3065
  %v4658 = vpack.c.b16 %v3074, %v3066
  %v4659 = vpack.c.b16 %v3075, %v3067
  %v4660 = vpack.c.b16 %v3076, %v3068
  %v4661 = vpack.c.b16 %v3077, %v3069
  %v4662 = vpack.c.b16 %v3086, %v3078
  %v4663 = vpack.c.b16 %v3087, %v3079
  %v4664 = vpack.c.b16 %v3088, %v3080
  %v4665 = vpack.c.b16 %v3089, %v3081
  %v4666 = vpack.c.b16 %v3090, %v3082
  %v4667 = vpack.c.b16 %v3091, %v3083
  %v4668 = vpack.c.b16 %v3092, %v3084
  %v4669 = vpack.c.b16 %v3093, %v3085
  %v4670 = vpack.c.b16 %v3102, %v3094
  %v4671 = vpack.c.b16 %v3103, %v3095
  %v4672 = vpack.c.b16 %v3104, %v3096
  %v4673 = vpack.c.b16 %v3105, %v3097
  %v4674 = vpack.c.b16 %v3106, %v3098
  %v4675 = vpack.c.b16 %v3107, %v3099
  %v4676 = vpack.c.b16 %v3108, %v3100
  %v4677 = vpack.c.b16 %v3109, %v3101
  %v4678 = vpack.c.b16 %v3118, %v3110
  %v4679 = vpack.c.b16 %v3119, %v3111
  %v4680 = vpack.c.b16 %v3120, %v3112
  %v4681 = vpack.c.b16 %v3121, %v3113
  %v4682 = vpack.c.b16 %v3122, %v3114
  %v4683 = vpack.c.b16 %v3123, %v3115
  %v4684 = vpack.c.b16 %v3124, %v3116
  %v4685 = vpack.c.b16 %v3125, %v3117
  %v4686 = vpack.c.b16 %v3134, %v3126
  %v4687 = vpack.c.b16 %v3135, %v3127
  %v4688 = vpack.c.b16 %v3136, %v3128
  %v4689 = vpack.c.b16 %v3137, %v3129
  %v4690 = vpack.c.b16 %v3138, %v3130
  %v4691 = vpack.c.b16 %v3139, %v3131
  %v4692 = vpack.c.b16 %v3140, %v3132
  %v4693 = vpack.c.b16 %v3141, %v3133
  %v4694 = vpack.c.b16 %v3150, %v3142
  %v4695 = vpack.c.b16 %v3151, %v3143
  %v4696 = vpack.c.b16 %v3152, %v3144
  %v4697 = vpack.c.b16 %v3153, %v3145
  %v4698 = vpack.c.b16 %v3154, %v3146
  %v4699 = vpack.c.b16 %v3155, %v3147
  %v4700 = vpack.c.b16 %v3156, %v3148
  %v4701 = vpack.c.b16 %v3157, %v3149
  %v4702 = vpack.c.b16 %v3166, %v3158
  %v4703 = vpack.c.b16 %v3167, %v3159
  %v4704 = vpack.c.b16 %v3168, %v3160
  %v4705 = vpack.c.b16 %v3169, %v3161
  %v4706 = vpack.c.b16 %v3170, %v3162
  %v4707 = vpack.c.b16 %v3171, %v3163
  %v4708 = vpack.c.b16 %v3172, %v3164
  %v4709 = vpack.c.b16 %v3173, %v3165
  %v4710 = vpack.c.b16 %v3182, %v3174
  %v4711 = vpack.c.b16 %v3183, %v3175
  %v4712 = vpack.c.b16 %v3184, %v3176
  %v4713 = vpack.c.b16 %v3185, %v3177
  %v4714 = vpack.c.b16 %v3186, %v3178
  %v4715 = vpack.c.b16 %v3187, %v3179
  %v4716 = vpack.c.b16 %v3188, %v3180
  %v4717 = vpack.c.b16 %v3189, %v3181
  %v4718 = vpack.c.b16 %v3198, %v3190
  %v4719 = vpack.c.b16 %v3199, %v3191
  %v4720 = vpack.c.b16 %v3200, %v3192
  %v4721 = vpack.c.b16 %v3201, %v3193
  %v4722 = vpack.c.b16 %v3202, %v3194
  %v4723 = vpack.c.b16 %v3203, %v3195
  %v4724 = vpack.c.b16 %v3204, %v3196
  %v4725 = vpack.c.b16 %v3205, %v3197
  %v4726 = vpack.c.b16 %v3214, %v3206
  %v4727 = vpack.c.b16 %v3215, %v3207
  %v4728 = vpack.c.b16 %v3216, %v3208
  %v4729 = vpack.c.b16 %v3217, %v3209
  %v4730 = vpack.c.b16 %v3218, %v3210
  %v4731 = vpack.c.b16 %v3219, %v3211
  %v4732 = vpack.c.b16 %v3220, %v3212
  %v4733 = vpack.c.b16 %v3221, %v3213
  %v4734 = vpack.c.b16 %v3230, %v3222
  %v4735 = vpack.c.b16 %v3231, %v3223
  %v4736 = vpack.c.b16 %v3232, %v3224
  %v4737 = vpack.c.b16 %v3233, %v3225
  %v4738 = vpack.c.b16 %v3234, %v3226
  %v4739 = vpack.c.b16 %v3235, %v3227
  %v4740 = vpack.c.b16 %v3236, %v3228
  %v4741 = vpack.c.b16 %v3237, %v3229
  %v4742 = vpack.c.b16 %v3246, %v3238
  %v4743 = vpack.c.b16 %v3247, %v3239
  %v4744 = vpack.c.b16 %v3248, %v3240
  %v4745 = vpack.c.b16 %v3249, %v3241
  %v4746 = vpack.c.b16 %v3250, %v3242
  %v4747 = vpack.c.b16 %v3251, %v3243
  %v4748 = vpack.c.b16 %v3252, %v3244
  %v4749 = vpack.c.b16 %v3253, %v3245
  %v4750 = vpack.c.b16 %v3262, %v3254
  %v4751 = vpack.c.b16 %v3263, %v3255
  %v4752 = vpack.c.b16 %v3264, %v3256
  %v4753 = vpack.c.b16 %v3265, %v3257
  %v4754 = vpack.c.b16 %v3266, %v3258
  %v4755 = vpack.c.b16 %v3267, %v3259
  %v4756 = vpack.c.b16 %v3268, %v3260
  %v4757 = vpack.c.b16 %v3269, %v3261
  %v4758 = vpack.c.b16 %v3278, %v3270
  %v4759 = vpack.c.b16 %v3279, %v3271
  %v4760 = vpack.c.b16 %v3280, %v3272
  %v4761 = vpack.c.b16 %v3281, %v3273
  %v4762 = vpack.c.b16 %v3282, %v3274
  %v4763 = vpack.c.b16 %v3283, %v3275
  %v4764 = vpack.c.b16 %v3284, %v3276
  %v4765 = vpack.c.b16 %v3285, %v3277
  %v4766 = vpack.c.b16 %v3294, %v3286
  %v4767 = vpack.c.b16 %v3295, %v3287
  %v4768 = vpack.c.b16 %v3296, %v3288
  %v4769 = vpack.c.b16 %v3297, %v3289
  %v4770 = vpack.c.b16 %v3298, %v3290
  %v4771 = vpack.c.b16 %v3299, %v3291
  %v4772 = vpack.c.b16 %v3300, %v3292
  %v4773 = vpack.c.b16 %v3301, %v3293
  %v4774 = vpack.c.b16 %v3310, %v3302
  %v4775 = vpack.c.b16 %v3311, %v3303
  %v4776 = vpack.c.b16 %v3312, %v3304
  %v4777 = vpack.c.b16 %v3313, %v3305
  %v4778 = vpack.c.b16 %v3314, %v3306
  %v4779 = vpack.c.b16 %v3315, %v3307
  %v4780 = vpack.c.b16 %v3316, %v3308
  %v4781 = vpack.c.b16 %v3317, %v3309
  %v4782 = vpack.c.b16 %v3326, %v3318
  %v4783 = vpack.c.b16 %v3327, %v3319
  %v4784 = vpack.c.b16 %v3328, %v3320
  %v4785 = vpack.c.b16 %v3329, %v3321
  %v4786 = vpack.c.b16 %v3330, %v3322
  %v4787 = vpack.c.b16 %v3331, %v3323
  %v4788 = vpack.c.b16 %v3332, %v3324
  %v4789 = vpack.c.b16 %v3333, %v3325
  %v4790 = vpack.c.b16 %v3342, %v3334
  %v4791 = vpack.c.b16 %v3343, %v3335
  %v4792 = vpack.c.b16 %v3344, %v3336
  %v4793 = vpack.c.b16 %v3345, %v3337
  %v4794 = vpack.c.b16 %v3346, %v3338
  %v4795 = vpack.c.b16 %v3347, %v3339
  %v4796 = vpack.c.b16 %v3348, %v3340
  %v4797 = vpack.c.b16 %v3349, %v3341
  %v4798 = vpack.c.b16 %v3358, %v3350
  %v4799 = vpack.c.b16 %v3359, %v3351
  %v4800 = vpack.c.b16 %v3360, %v3352
  %v4801 = vpack.c.b16 %v3361, %v3353
  %v4802 = vpack.c.b16 %v3362, %v3354
  %v4803 = vpack.c.b16 %v3363, %v3355
  %v4804 = vpack.c.b16 %v3364, %v3356
  %v4805 = vpack.c.b16 %v3365, %v3357
  %v4806 = vpack.c.b16 %v3374, %v3366
  %v4807 = vpack.c.b16 %v3375, %v3367
  %v4808 = vpack.c.b16 %v3376, %v3368
  %v4809 = vpack.c.b16 %v3377, %v3369
  %v4810 = vpack.c.b16 %v3378, %v3370
  %v4811 = vpack.c.b16 %v3379, %v3371
  %v4812 = vpack.c.b16 %v3380, %v3372
  %v4813 = vpack.c.b16 %v3381, %v3373
  %v4814 = vpack.c.b16 %v3390, %v3382
  %v4815 = vpack.c.b16 %v3391, %v3383
  %v4816 = vpack.c.b16 %v3392, %v3384
  %v4817 = vpack.c.b16 %v3393, %v3385
  %v4818 = vpack.c.b16 %v3394, %v3386
  %v4819 = vpack.c.b16 %v3395, %v3387
  %v4820 = vpack.c.b16 %v3396, %v3388
  %v4821 = vpack.c.b16 %v3397, %v3389
  %v4822 = vpack.c.b16 %v3406, %v3398
  %v4823 = vpack.c.b16 %v3407, %v3399
  %v4824 = vpack.c.b16 %v3408, %v3400
  %v4825 = vpack.c.b16 %v3409, %v3401
  %v4826 = vpack.c.b16 %v3410, %v3402
  %v4827 = vpack.c.b16 %v3411, %v3403
  %v4828 = vpack.c.b16 %v3412, %v3404
  %v4829 = vpack.c.b16 %v3413, %v3405
  %v4830 = vpack.c.b16 %v3422, %v3414
  %v4831 = vpack.c.b16 %v3423, %v3415
  %v4832 = vpack.c.b16 %v3424, %v3416
  %v4833 = vpack.c.b16 %v3425, %v3417
  %v4834 = vpack.c.b16 %v3426, %v3418
  %v4835 = vpack.c.b16 %v3427, %v3419
  %v4836 = vpack.c.b16 %v3428, %v3420
  %v4837 = vpack.c.b16 %v3429, %v3421
  %v4838 = vpack.c.b16 %v3438, %v3430
  %v4839 = vpack.c.b16 %v3439, %v3431
  %v4840 = vpack.c.b16 %v3440, %v3432
  %v4841 = vpack.c.b16 %v3441, %v3433
  %v4842 = vpack.c.b16 %v3442, %v3434
  %v4843 = vpack.c.b16 %v3443, %v3435
  %v4844 = vpack.c.b16 %v3444, %v3436
  %v4845 = vpack.c.b16 %v3445, %v3437
  %v4846 = vpack.c.b16 %v3454, %v3446
  %v4847 = vpack.c.b16 %v3455, %v3447
  %v4848 = vpack.c.b16 %v3456, %v3448
  %v4849 = vpack.c.b16 %v3457, %v3449
  %v4850 = vpack.c.b16 %v3458, %v3450
  %v4851 = vpack.c.b16 %v3459, %v3451
  %v4852 = vpack.c.b16 %v3460, %v3452
  %v4853 = vpack.c.b16 %v3461, %v3453
  %v4854 = vpack.c.b16 %v3470, %v3462
  %v4855 = vpack.c.b16 %v3471, %v3463
  %v4856 = vpack.c.b16 %v3472, %v3464
  %v4857 = vpack.c.b16 %v3473, %v3465
  %v4858 = vpack.c.b16 %v3474, %v3466
  %v4859 = vpack.c.b16 %v3475, %v3467
  %v4860 = vpack.c.b16 %v3476, %v3468
  %v4861 = vpack.c.b16 %v3477, %v3469
  %v4862 = vpack.c.b16 %v3486, %v3478
  %v4863 = vpack.c.b16 %v3487, %v3479
  %v4864 = vpack.c.b16 %v3488, %v3480
  %v4865 = vpack.c.b16 %v3489, %v3481
  %v4866 = vpack.c.b16 %v3490, %v3482
  %v4867 = vpack.c.b16 %v3491, %v3483
  %v4868 = vpack.c.b16 %v3492, %v3484
  %v4869 = vpack.c.b16 %v3493, %v3485
  %v4870 = vpack.c.b16 %v3502, %v3494
  %v4871 = vpack.c.b16 %v3503, %v3495
  %v4872 = vpack.c.b16 %v3504, %v3496
  %v4873 = vpack.c.b16 %v3505, %v3497
  %v4874 = vpack.c.b16 %v3506, %v3498
  %v4875 = vpack.c.b16 %v3507, %v3499
  %v4876 = vpack.c.b16 %v3508, %v3500
  %v4877 = vpack.c.b16 %v3509, %v3501
  %v4878 = vpack.c.b16 %v3518, %v3510
  %v4879 = vpack.c.b16 %v3519, %v3511
  %v4880 = vpack.c.b16 %v3520, %v3512
  %v4881 = vpack.c.b16 %v3521, %v3513
  %v4882 = vpack.c.b16 %v3522, %v3514
  %v4883 = vpack.c.b16 %v3523, %v3515
  %v4884 = vpack.c.b16 %v3524, %v3516
  %v4885 = vpack.c.b16 %v3525, %v3517
  %v4886 = vpack.c.b16 %v3534, %v3526
  %v4887 = vpack.c.b16 %v3535, %v3527
  %v4888 = vpack.c.b16 %v3536, %v3528
  %v4889 = vpack.c.b16 %v3537, %v3529
  %v4890 = vpack.c.b16 %v3538, %v3530
  %v4891 = vpack.c.b16 %v3539, %v3531
  %v4892 = vpack.c.b16 %v3540, %v3532
  %v4893 = vpack.c.b16 %v3541, %v3533
  %v4894 = vpack.c.b16 %v3550, %v3542
  %v4895 = vpack.c.b16 %v3551, %v3543
  %v4896 = vpack.c.b16 %v3552, %v3544
  %v4897 = vpack.c.b16 %v3553, %v3545
  %v4898 = vpack.c.b16 %v3554, %v3546
  %v4899 = vpack.c.b16 %v3555, %v3547
  %v4900 = vpack.c.b16 %v3556, %v3548
  %v4901 = vpack.c.b16 %v3557, %v3549
  %v4902 = vpack.c.b16 %v3566, %v3558
  %v4903 = vpack.c.b16 %v3567, %v3559
  %v4904 = vpack.c.b16 %v3568, %v3560
  %v4905 = vpack.c.b16 %v3569, %v3561
  %v4906 = vpack.c.b16 %v3570, %v3562
  %v4907 = vpack.c.b16 %v3571, %v3563
  %v4908 = vpack.c.b16 %v3572, %v3564
  %v4909 = vpack.c.b16 %v3573, %v3565
  %v4910 = vpack.c.b16 %v3582, %v3574
  %v4911 = vpack.c.b16 %v3583, %v3575
  %v4912 = vpack.c.b16 %v3584, %v3576
  %v4913 = vpack.c.b16 %v3585, %v3577
  %v4914 = vpack.c.b16 %v3586, %v3578
  %v4915 = vpack.c.b16 %v3587, %v3579
  %v4916 = vpack.c.b16 %v3588, %v3580
  %v4917 = vpack.c.b16 %v3589, %v3581
  %v4918 = vpack.c.b16 %v3598, %v3590
  %v4919 = vpack.c.b16 %v3599, %v3591
  %v4920 = vpack.c.b16 %v3600, %v3592
  %v4921 = vpack.c.b16 %v3601, %v3593
  %v4922 = vpack.c.b16 %v3602, %v3594
  %v4923 = vpack.c.b16 %v3603, %v3595
  %v4924 = vpack.c.b16 %v3604, %v3596
  %v4925 = vpack.c.b16 %v3605, %v3597
  %v4926 = vpack.c.b16 %v3614, %v3606
  %v4927 = vpack.c.b16 %v3615, %v3607
  %v4928 = vpack.c.b16 %v3616, %v3608
  %v4929 = vpack.c.b16 %v3617, %v3609
  %v4930 = vpack.c.b16 %v3618, %v3610
  %v4931 = vpack.c.b16 %v3619, %v3611
  %v4932 = vpack.c.b16 %v3620, %v3612
  %v4933 = vpack.c.b16 %v3621, %v3613
  %v4934 = vpack.c.b16 %v3630, %v3622
  %v4935 = vpack.c.b16 %v3631, %v3623
  %v4936 = vpack.c.b16 %v3632, %v3624
  %v4937 = vpack.c.b16 %v3633, %v3625
  %v4938 = vpack.c.b16 %v3634, %v3626
  %v4939 = vpack.c.b16 %v3635, %v3627
  %v4940 = vpack.c.b16 %v3636, %v3628
  %v4941 = vpack.c.b16 %v3637, %v3629
  %v4942 = vpack.c.b16 %v3646, %v3638
  %v4943 = vpack.c.b16 %v3647, %v3639
  %v4944 = vpack.c.b16 %v3648, %v3640
  %v4945 = vpack.c.b16 %v3649, %v3641
  %v4946 = vpack.c.b16 %v3650, %v3642
  %v4947 = vpack.c.b16 %v3651, %v3643
  %v4948 = vpack.c.b16 %v3652, %v3644
  %v4949 = vpack.c.b16 %v3653, %v3645
  %v4950 = vpack.c.b16 %v3662, %v3654
  %v4951 = vpack.c.b16 %v3663, %v3655
  %v4952 = vpack.c.b16 %v3664, %v3656
  %v4953 = vpack.c.b16 %v3665, %v3657
  %v4954 = vpack.c.b16 %v3666, %v3658
  %v4955 = vpack.c.b16 %v3667, %v3659
  %v4956 = vpack.c.b16 %v3668, %v3660
  %v4957 = vpack.c.b16 %v3669, %v3661
  %v4958 = vpack.c.b16 %v3678, %v3670
  %v4959 = vpack.c.b16 %v3679, %v3671
  %v4960 = vpack.c.b16 %v3680, %v3672
  %v4961 = vpack.c.b16 %v3681, %v3673
  %v4962 = vpack.c.b16 %v3682, %v3674
  %v4963 = vpack.c.b16 %v3683, %v3675
  %v4964 = vpack.c.b16 %v3684, %v3676
  %v4965 = vpack.c.b16 %v3685, %v3677
  %v4966 = vpack.c.b16 %v3694, %v3686
  %v4967 = vpack.c.b16 %v3695, %v3687
  %v4968 = vpack.c.b16 %v3696, %v3688
  %v4969 = vpack.c.b16 %v3697, %v3689
  %v4970 = vpack.c.b16 %v3698, %v3690
  %v4971 = vpack.c.b16 %v3699, %v3691
  %v4972 = vpack.c.b16 %v3700, %v3692
  %v4973 = vpack.c.b16 %v3701, %v3693
  %v4974 = vpack.c.b16 %v3710, %v3702
  %v4975 = vpack.c.b16 %v3711, %v3703
  %v4976 = vpack.c.b16 %v3712, %v3704
  %v4977 = vpack.c.b16 %v3713, %v3705
  %v4978 = vpack.c.b16 %v3714, %v3706
  %v4979 = vpack.c.b16 %v3715, %v3707
  %v4980 = vpack.c.b16 %v3716, %v3708
  %v4981 = vpack.c.b16 %v3717, %v3709
  %v4982 = vpack.c.b16 %v3726, %v3718
  %v4983 = vpack.c.b16 %v3727, %v3719
  %v4984 = vpack.c.b16 %v3728, %v3720
  %v4985 = vpack.c.b16 %v3729, %v3721
  %v4986 = vpack.c.b16 %v3730, %v3722
  %v4987 = vpack.c.b16 %v3731, %v3723
  %v4988 = vpack.c.b16 %v3732, %v3724
  %v4989 = vpack.c.b16 %v3733, %v3725
  %v4990 = vpack.c.b16 %v3742, %v3734
  %v4991 = vpack.c.b16 %v3743, %v3735
  %v4992 = vpack.c.b16 %v3744, %v3736
  %v4993 = vpack.c.b16 %v3745, %v3737
  %v4994 = vpack.c.b16 %v3746, %v3738
  %v4995 = vpack.c.b16 %v3747, %v3739
  %v4996 = vpack.c.b16 %v3748, %v3740
  %v4997 = vpack.c.b16 %v3749, %v3741
  %v4998 = vpack.c.b16 %v3758, %v3750
  %v4999 = vpack.c.b16 %v3759, %v3751
  %v5000 = vpack.c.b16 %v3760, %v3752
  %v5001 = vpack.c.b16 %v3761, %v3753
  %v5002 = vpack.c.b16 %v3762, %v3754
  %v5003 = vpack.c.b16 %v3763, %v3755
  %v5004 = vpack.c.b16 %v3764, %v3756
  %v5005 = vpack.c.b16 %v3765, %v3757
  %v5006 = vpack.c.b16 %v3774, %v3766
  %v5007 = vpack.c.b16 %v3775, %v3767
  %v5008 = vpack.c.b16 %v3776, %v3768
  %v5009 = vpack.c.b16 %v3777, %v3769
  %v5010 = vpack.c.b16 %v3778, %v3770
  %v5011 = vpack.c.b16 %v3779, %v3771
  %v5012 = vpack.c.b16 %v3780, %v3772
  %v5013 = vpack.c.b16 %v3781, %v3773
  %v5014 = vpack.c.b16 %v3790, %v3782
  %v5015 = vpack.c.b16 %v3791, %v3783
  %v5016 = vpack.c.b16 %v3792, %v3784
  %v5017 = vpack.c.b16 %v3793, %v3785
  %v5018 = vpack.c.b16 %v3794, %v3786
  %v5019 = vpack.c.b16 %v3795, %v3787
  %v5020 = vpack.c.b16 %v3796, %v3788
  %v5021 = vpack.c.b16 %v3797, %v3789
  %v5022 = vpack.c.b16 %v3806, %v3798
  %v5023 = vpack.c.b16 %v3807, %v3799
  %v5024 = vpack.c.b16 %v3808, %v3800
  %v5025 = vpack.c.b16 %v3809, %v3801
  %v5026 = vpack.c.b16 %v3810, %v3802
  %v5027 = vpack.c.b16 %v3811, %v3803
  %v5028 = vpack.c.b16 %v3812, %v3804
  %v5029 = vpack.c.b16 %v3813, %v3805
  %v5030 = vpack.c.b16 %v3822, %v3814
  %v5031 = vpack.c.b16 %v3823, %v3815
  %v5032 = vpack.c.b16 %v3824, %v3816
  %v5033 = vpack.c.b16 %v3825, %v3817
  %v5034 = vpack.c.b16 %v3826, %v3818
  %v5035 = vpack.c.b16 %v3827, %v3819
  %v5036 = vpack.c.b16 %v3828, %v3820
  %v5037 = vpack.c.b16 %v3829, %v3821
  %v5038 = vpack.c.b16 %v3838, %v3830
  %v5039 = vpack.c.b16 %v3839, %v3831
  %v5040 = vpack.c.b16 %v3840, %v3832
  %v5041 = vpack.c.b16 %v3841, %v3833
  %v5042 = vpack.c.b16 %v3842, %v3834
  %v5043 = vpack.c.b16 %v3843, %v3835
  %v5044 = vpack.c.b16 %v3844, %v3836
  %v5045 = vpack.c.b16 %v3845, %v3837
  %v5046 = vpack.c.b16 %v3854, %v3846
  %v5047 = vpack.c.b16 %v3855, %v3847
  %v5048 = vpack.c.b16 %v3856, %v3848
  %v5049 = vpack.c.b16 %v3857, %v3849
  %v5050 = vpack.c.b16 %v3858, %v3850
  %v5051 = vpack.c.b16 %v3859, %v3851
  %v5052 = vpack.c.b16 %v3860, %v3852
  %v5053 = vpack.c.b16 %v3861, %v3853
  %v5054 = vpack.c.b16 %v3870, %v3862
  %v5055 = vpack.c.b16 %v3871, %v3863
  %v5056 = vpack.c.b16 %v3872, %v3864
  %v5057 = vpack.c.b16 %v3873, %v3865
  %v5058 = vpack.c.b16 %v3874, %v3866
  %v5059 = vpack.c.b16 %v3875, %v3867
  %v5060 = vpack.c.b16 %v3876, %v3868
  %v5061 = vpack.c.b16 %v3877, %v3869
  %v5062 = vpack.c.b16 %v3886, %v3878
  %v5063 = vpack.c.b16 %v3887, %v3879
  %v5064 = vpack.c.b16 %v3888, %v3880
  %v5065 = vpack.c.b16 %v3889, %v3881
  %v5066 = vpack.c.b16 %v3890, %v3882
  %v5067 = vpack.c.b16 %v3891, %v3883
  %v5068 = vpack.c.b16 %v3892, %v3884
  %v5069 = vpack.c.b16 %v3893, %v3885
  %v5070 = vpack.c.b16 %v3902, %v3894
  %v5071 = vpack.c.b16 %v3903, %v3895
  %v5072 = vpack.c.b16 %v3904, %v3896
  %v5073 = vpack.c.b16 %v3905, %v3897
  %v5074 = vpack.c.b16 %v3906, %v3898
  %v5075 = vpack.c.b16 %v3907, %v3899
  %v5076 = vpack.c.b16 %v3908, %v3900
  %v5077 = vpack.c.b16 %v3909, %v3901
  %v5078 = vpack.c.b16 %v3918, %v3910
  %v5079 = vpack.c.b16 %v3919, %v3911
  %v5080 = vpack.c.b16 %v3920, %v3912
  %v5081 = vpack.c.b16 %v3921, %v3913
  %v5082 = vpack.c.b16 %v3922, %v3914
  %v5083 = vpack.c.b16 %v3923, %v3915
  %v5084 = vpack.c.b16 %v3924, %v3916
  %v5085 = vpack.c.b16 %v3925, %v3917
  %v5086 = vpack.c.b16 %v3934, %v3926
  %v5087 = vpack.c.b16 %v3935, %v3927
  %v5088 = vpack.c.b16 %v3936, %v3928
  %v5089 = vpack.c.b16 %v3937, %v3929
  %v5090 = vpack.c.b16 %v3938, %v3930
  %v5091 = vpack.c.b16 %v3939, %v3931
  %v5092 = vpack.c.b16 %v3940, %v3932
  %v5093 = vpack.c.b16 %v3941, %v3933
  %v5094 = vpack.c.b16 %v3950, %v3942
  %v5095 = vpack.c.b16 %v3951, %v3943
  %v5096 = vpack.c.b16 %v3952, %v3944
  %v5097 = vpack.c.b16 %v3953, %v3945
  %v5098 = vpack.c.b16 %v3954, %v3946
  %v5099 = vpack.c.b16 %v3955, %v3947
  %v5100 = vpack.c.b16 %v3956, %v3948
  %v5101 = vpack.c.b16 %v3957, %v3949
  %v5102 = vpack.c.b16 %v3966, %v3958
  %v5103 = vpack.c.b16 %v3967, %v3959
  %v5104 = vpack.c.b16 %v3968, %v3960
  %v5105 = vpack.c.b16 %v3969, %v3961
  %v5106 = vpack.c.b16 %v3970, %v3962
  %v5107 = vpack.c.b16 %v3971, %v3963
  %v5108 = vpack.c.b16 %v3972, %v3964
  %v5109 = vpack.c.b16 %v3973, %v3965
  %v5110 = vpack.c.b16 %v3982, %v3974
  %v5111 = vpack.c.b16 %v3983, %v3975
  %v5112 = vpack.c.b16 %v3984, %v3976
  %v5113 = vpack.c.b16 %v3985, %v3977
  %v5114 = vpack.c.b16 %v3986, %v3978
  %v5115 = vpack.c.b16 %v3987, %v3979
  %v5116 = vpack.c.b16 %v3988, %v3980
  %v5117 = vpack.c.b16 %v3989, %v3981
  %v5118 = vpack.c.b16 %v3998, %v3990
  %v5119 = vpack.c.b16 %v3999, %v3991
  %v5120 = vpack.c.b16 %v4000, %v3992
  %v5121 = vpack.c.b16 %v4001, %v3993
  %v5122 = vpack.c.b16 %v4002, %v3994
  %v5123 = vpack.c.b16 %v4003, %v3995
  %v5124 = vpack.c.b16 %v4004, %v3996
  %v5125 = vpack.c.b16 %v4005, %v3997
  %v5126 = vpack.c.b16 %v4014, %v4006
  %v5127 = vpack.c.b16 %v4015, %v4007
  %v5128 = vpack.c.b16 %v4016, %v4008
  %v5129 = vpack.c.b16 %v4017, %v4009
  %v5130 = vpack.c.b16 %v4018, %v4010
  %v5131 = vpack.c.b16 %v4019, %v4011
  %v5132 = vpack.c.b16 %v4020, %v4012
  %v5133 = vpack.c.b16 %v4021, %v4013
  %v5134 = vpack.c.b16 %v4030, %v4022
  %v5135 = vpack.c.b16 %v4031, %v4023
  %v5136 = vpack.c.b16 %v4032, %v4024
  %v5137 = vpack.c.b16 %v4033, %v4025
  %v5138 = vpack.c.b16 %v4034, %v4026
  %v5139 = vpack.c.b16 %v4035, %v4027
  %v5140 = vpack.c.b16 %v4036, %v4028
  %v5141 = vpack.c.b16 %v4037, %v4029
  %v5142 = vpack.c.b16 %v4046, %v4038
  %v5143 = vpack.c.b16 %v4047, %v4039
  %v5144 = vpack.c.b16 %v4048, %v4040
  %v5145 = vpack.c.b16 %v4049, %v4041
  %v5146 = vpack.c.b16 %v4050, %v4042
  %v5147 = vpack.c.b16 %v4051, %v4043
  %v5148 = vpack.c.b16 %v4052, %v4044
  %v5149 = vpack.c.b16 %v4053, %v4045
  %v5150 = vpack.c.b16 %v4062, %v4054
  %v5151 = vpack.c.b16 %v4063, %v4055
  %v5152 = vpack.c.b16 %v4064, %v4056
  %v5153 = vpack.c.b16 %v4065, %v4057
  %v5154 = vpack.c.b16 %v4066, %v4058
  %v5155 = vpack.c.b16 %v4067, %v4059
  %v5156 = vpack.c.b16 %v4068, %v4060
  %v5157 = vpack.c.b16 %v4069, %v4061
  %v5158 = vpack.c.b16 %v4078, %v4070
  %v5159 = vpack.c.b16 %v4079, %v4071
  %v5160 = vpack.c.b16 %v4080, %v4072
  %v5161 = vpack.c.b16 %v4081, %v4073
  %v5162 = vpack.c.b16 %v4082, %v4074
  %v5163 = vpack.c.b16 %v4083, %v4075
  %v5164 = vpack.c.b16 %v4084, %v4076
  %v5165 = vpack.c.b16 %v4085, %v4077
  %v5166 = vpack.c.b16 %v4094, %v4086
  %v5167 = vpack.c.b16 %v4095, %v4087
  %v5168 = vpack.c.b16 %v4096, %v4088
  %v5169 = vpack.c.b16 %v4097, %v4089
  %v5170 = vpack.c.b16 %v4098, %v4090
  %v5171 = vpack.c.b16 %v4099, %v4091
  %v5172 = vpack.c.b16 %v4100, %v4092
  %v5173 = vpack.c.b16 %v4101, %v4093
  %v5174 = vpack.c.b16 %v4110, %v4102
  %v5175 = vpack.c.b16 %v4111, %v4103
  %v5176 = vpack.c.b16 %v4112, %v4104
  %v5177 = vpack.c.b16 %v4113, %v4105
  %v5178 = vpack.c.b16 %v4114, %v4106
  %v5179 = vpack.c.b16 %v4115, %v4107
  %v5180 = vpack.c.b16 %v4116, %v4108
  %v5181 = vpack.c.b16 %v4117, %v4109
  %v5182 = vpack.c.b16 %v4126, %v4118
  %v5183 = vpack.c.b16 %v4127, %v4119
  %v5184 = vpack.c.b16 %v4128, %v4120
  %v5185 = vpack.c.b16 %v4129, %v4121
  %v5186 = vpack.c.b16 %v4130, %v4122
  %v5187 = vpack.c.b16 %v4131, %v4123
  %v5188 = vpack.c.b16 %v4132, %v4124
  %v5189 = vpack.c.b16 %v4133, %v4125
  %v5190 = vpack.c.b16 %v4142, %v4134
  %v5191 = vpack.c.b16 %v4143, %v4135
  %v5192 = vpack.c.b16 %v4144, %v4136
  %v5193 = vpack.c.b16 %v4145, %v4137
  %v5194 = vpack.c.b16 %v4146, %v4138
  %v5195 = vpack.c.b16 %v4147, %v4139
  %v5196 = vpack.c.b16 %v4148, %v4140
  %v5197 = vpack.c.b16 %v4149, %v4141
  %v5198 = vpack.c.b16 %v4158, %v4150
  %v5199 = vpack.c.b16 %v4159, %v4151
  %v5200 = vpack.c.b16 %v4160, %v4152
  %v5201 = vpack.c.b16 %v4161, %v4153
  %v5202 = vpack.c.b16 %v4162, %v4154
  %v5203 = vpack.c.b16 %v4163, %v4155
  %v5204 = vpack.c.b16 %v4164, %v4156
  %v5205 = vpack.c.b16 %v4165, %v4157
  %v5206 = vpack.c.b16 %v4174, %v4166
  %v5207 = vpack.c.b16 %v4175, %v4167
  %v5208 = vpack.c.b16 %v4176, %v4168
  %v5209 = vpack.c.b16 %v4177, %v4169
  %v5210 = vpack.c.b16 %v4178, %v4170
  %v5211 = vpack.c.b16 %v4179, %v4171
  %v5212 = vpack.c.b16 %v4180, %v4172
  %v5213 = vpack.c.b16 %v4181, %v4173
  %v5214 = vpack.c.b16 %v4190, %v4182
  %v5215 = vpack.c.b16 %v4191, %v4183
  %v5216 = vpack.c.b16 %v4192, %v4184
  %v5217 = vpack.c.b16 %v4193, %v4185
  %v5218 = vpack.c.b16 %v4194, %v4186
  %v5219 = vpack.c.b16 %v4195, %v4187
  %v5220 = vpack.c.b16 %v4196, %v4188
  %v5221 = vpack.c.b16 %v4197, %v4189
  %6246 = vmatpush.bf16.msra.mxu0 %v4254
  %6247 = vmatpush.bf16.msra.mxu0 %v4246
  %6248 = vmatpush.bf16.msra.mxu0 %v4238
  %6249 = vmatpush.bf16.msra.mxu0 %v4230
  %6250 = vmatpush.bf16.msra.mxu0 %v4222
  %6251 = vmatpush.bf16.msra.mxu0 %v4214
  %6252 = vmatpush.bf16.msra.mxu0 %v4206
  %6253 = vmatpush.bf16.msra.mxu0 %v4198
  %6254 = vmatmul.bf16.gmra.mxu0 %v1094
  %v6255 = vpop.f32.mrf.mxu0
  %v6256 = vadd.f32 %v1054, %v6255
  %v6257 = vpop.f32.mrf.mxu0
  %6258 = vdwg.mxu0
  %6259 = vmatpush.bf16.msra.mxu0 %v4318
  %6260 = vmatpush.bf16.msra.mxu0 %v4310
  %6261 = vmatpush.bf16.msra.mxu0 %v4302
  %6262 = vmatpush.bf16.msra.mxu0 %v4294
  %6263 = vmatpush.bf16.msra.mxu0 %v4286
  %6264 = vmatpush.bf16.msra.mxu0 %v4278
  %6265 = vmatpush.bf16.msra.mxu0 %v4270
  %6266 = vmatpush.bf16.msra.mxu0 %v4262
  %6267 = vmatmul.bf16.gmra.mxu0 %v1095
  %v6268 = vpop.f32.mrf.mxu0
  %v6269 = vadd.f32 %v6256, %v6268
  %v6270 = vpop.f32.mrf.mxu0
  %6271 = vdwg.mxu0
  %6272 = vmatpush.bf16.msra.mxu0 %v4382
  %6273 = vmatpush.bf16.msra.mxu0 %v4374
  %6274 = vmatpush.bf16.msra.mxu0 %v4366
  %6275 = vmatpush.bf16.msra.mxu0 %v4358
  %6276 = vmatpush.bf16.msra.mxu0 %v4350
  %6277 = vmatpush.bf16.msra.mxu0 %v4342
  %6278 = vmatpush.bf16.msra.mxu0 %v4334
  %6279 = vmatpush.bf16.msra.mxu0 %v4326
  %6280 = vmatmul.bf16.gmra.mxu0 %v1096
  %v6281 = vpop.f32.mrf.mxu0
  %v6282 = vadd.f32 %v6269, %v6281
  %v6283 = vpop.f32.mrf.mxu0
  %6284 = vdwg.mxu0
  %6285 = vmatpush.bf16.msra.mxu0 %v4446
  %6286 = vmatpush.bf16.msra.mxu0 %v4438
  %6287 = vmatpush.bf16.msra.mxu0 %v4430
  %6288 = vmatpush.bf16.msra.mxu0 %v4422
  %6289 = vmatpush.bf16.msra.mxu0 %v4414
  %6290 = vmatpush.bf16.msra.mxu0 %v4406
  %6291 = vmatpush.bf16.msra.mxu0 %v4398
  %6292 = vmatpush.bf16.msra.mxu0 %v4390
  %6293 = vmatmul.bf16.gmra.mxu0 %v1097
  %v6294 = vpop.f32.mrf.mxu0
  %v6295 = vadd.f32 %v6282, %v6294
  %v6296 = vpop.f32.mrf.mxu0
  %6297 = vdwg.mxu0
  %6298 = vmatpush.bf16.msra.mxu0 %v4510
  %6299 = vmatpush.bf16.msra.mxu0 %v4502
  %6300 = vmatpush.bf16.msra.mxu0 %v4494
  %6301 = vmatpush.bf16.msra.mxu0 %v4486
  %6302 = vmatpush.bf16.msra.mxu0 %v4478
  %6303 = vmatpush.bf16.msra.mxu0 %v4470
  %6304 = vmatpush.bf16.msra.mxu0 %v4462
  %6305 = vmatpush.bf16.msra.mxu0 %v4454
  %6306 = vmatmul.bf16.gmra.mxu0 %v1098
  %v6307 = vpop.f32.mrf.mxu0
  %v6308 = vadd.f32 %v6295, %v6307
  %v6309 = vpop.f32.mrf.mxu0
  %6310 = vdwg.mxu0
  %6311 = vmatpush.bf16.msra.mxu0 %v4574
  %6312 = vmatpush.bf16.msra.mxu0 %v4566
  %6313 = vmatpush.bf16.msra.mxu0 %v4558
  %6314 = vmatpush.bf16.msra.mxu0 %v4550
  %6315 = vmatpush.bf16.msra.mxu0 %v4542
  %6316 = vmatpush.bf16.msra.mxu0 %v4534
  %6317 = vmatpush.bf16.msra.mxu0 %v4526
  %6318 = vmatpush.bf16.msra.mxu0 %v4518
  %6319 = vmatmul.bf16.gmra.mxu0 %v1099
  %v6320 = vpop.f32.mrf.mxu0
  %v6321 = vadd.f32 %v6308, %v6320
  %v6322 = vpop.f32.mrf.mxu0
  %6323 = vdwg.mxu0
  %6324 = vmatpush.bf16.msra.mxu0 %v4638
  %6325 = vmatpush.bf16.msra.mxu0 %v4630
  %6326 = vmatpush.bf16.msra.mxu0 %v4622
  %6327 = vmatpush.bf16.msra.mxu0 %v4614
  %6328 = vmatpush.bf16.msra.mxu0 %v4606
  %6329 = vmatpush.bf16.msra.mxu0 %v4598
  %6330 = vmatpush.bf16.msra.mxu0 %v4590
  %6331 = vmatpush.bf16.msra.mxu0 %v4582
  %6332 = vmatmul.bf16.gmra.mxu0 %v1100
  %v6333 = vpop.f32.mrf.mxu0
  %v6334 = vadd.f32 %v6321, %v6333
  %v6335 = vpop.f32.mrf.mxu0
  %6336 = vdwg.mxu0
  %6337 = vmatpush.bf16.msra.mxu0 %v4702
  %6338 = vmatpush.bf16.msra.mxu0 %v4694
  %6339 = vmatpush.bf16.msra.mxu0 %v4686
  %6340 = vmatpush.bf16.msra.mxu0 %v4678
  %6341 = vmatpush.bf16.msra.mxu0 %v4670
  %6342 = vmatpush.bf16.msra.mxu0 %v4662
  %6343 = vmatpush.bf16.msra.mxu0 %v4654
  %6344 = vmatpush.bf16.msra.mxu0 %v4646
  %6345 = vmatmul.bf16.gmra.mxu0 %v1101
  %v6346 = vpop.f32.mrf.mxu0
  %v6347 = vadd.f32 %v6334, %v6346
  %v6348 = vpop.f32.mrf.mxu0
  %6349 = vdwg.mxu0
  %6350 = vmatpush.bf16.msra.mxu0 %v4766
  %6351 = vmatpush.bf16.msra.mxu0 %v4758
  %6352 = vmatpush.bf16.msra.mxu0 %v4750
  %6353 = vmatpush.bf16.msra.mxu0 %v4742
  %6354 = vmatpush.bf16.msra.mxu0 %v4734
  %6355 = vmatpush.bf16.msra.mxu0 %v4726
  %6356 = vmatpush.bf16.msra.mxu0 %v4718
  %6357 = vmatpush.bf16.msra.mxu0 %v4710
  %6358 = vmatmul.bf16.gmra.mxu0 %v1102
  %v6359 = vpop.f32.mrf.mxu0
  %v6360 = vadd.f32 %v6347, %v6359
  %v6361 = vpop.f32.mrf.mxu0
  %6362 = vdwg.mxu0
  %6363 = vmatpush.bf16.msra.mxu0 %v4830
  %6364 = vmatpush.bf16.msra.mxu0 %v4822
  %6365 = vmatpush.bf16.msra.mxu0 %v4814
  %6366 = vmatpush.bf16.msra.mxu0 %v4806
  %6367 = vmatpush.bf16.msra.mxu0 %v4798
  %6368 = vmatpush.bf16.msra.mxu0 %v4790
  %6369 = vmatpush.bf16.msra.mxu0 %v4782
  %6370 = vmatpush.bf16.msra.mxu0 %v4774
  %6371 = vmatmul.bf16.gmra.mxu0 %v1103
  %v6372 = vpop.f32.mrf.mxu0
  %v6373 = vadd.f32 %v6360, %v6372
  %v6374 = vpop.f32.mrf.mxu0
  %6375 = vdwg.mxu0
  %6376 = vmatpush.bf16.msra.mxu0 %v4894
  %6377 = vmatpush.bf16.msra.mxu0 %v4886
  %6378 = vmatpush.bf16.msra.mxu0 %v4878
  %6379 = vmatpush.bf16.msra.mxu0 %v4870
  %6380 = vmatpush.bf16.msra.mxu0 %v4862
  %6381 = vmatpush.bf16.msra.mxu0 %v4854
  %6382 = vmatpush.bf16.msra.mxu0 %v4846
  %6383 = vmatpush.bf16.msra.mxu0 %v4838
  %6384 = vmatmul.bf16.gmra.mxu0 %v1104
  %v6385 = vpop.f32.mrf.mxu0
  %v6386 = vadd.f32 %v6373, %v6385
  %v6387 = vpop.f32.mrf.mxu0
  %6388 = vdwg.mxu0
  %6389 = vmatpush.bf16.msra.mxu0 %v4958
  %6390 = vmatpush.bf16.msra.mxu0 %v4950
  %6391 = vmatpush.bf16.msra.mxu0 %v4942
  %6392 = vmatpush.bf16.msra.mxu0 %v4934
  %6393 = vmatpush.bf16.msra.mxu0 %v4926
  %6394 = vmatpush.bf16.msra.mxu0 %v4918
  %6395 = vmatpush.bf16.msra.mxu0 %v4910
  %6396 = vmatpush.bf16.msra.mxu0 %v4902
  %6397 = vmatmul.bf16.gmra.mxu0 %v1105
  %v6398 = vpop.f32.mrf.mxu0
  %v6399 = vadd.f32 %v6386, %v6398
  %v6400 = vpop.f32.mrf.mxu0
  %6401 = vdwg.mxu0
  %6402 = vmatpush.bf16.msra.mxu0 %v5022
  %6403 = vmatpush.bf16.msra.mxu0 %v5014
  %6404 = vmatpush.bf16.msra.mxu0 %v5006
  %6405 = vmatpush.bf16.msra.mxu0 %v4998
  %6406 = vmatpush.bf16.msra.mxu0 %v4990
  %6407 = vmatpush.bf16.msra.mxu0 %v4982
  %6408 = vmatpush.bf16.msra.mxu0 %v4974
  %6409 = vmatpush.bf16.msra.mxu0 %v4966
  %6410 = vmatmul.bf16.gmra.mxu0 %v1106
  %v6411 = vpop.f32.mrf.mxu0
  %v6412 = vadd.f32 %v6399, %v6411
  %v6413 = vpop.f32.mrf.mxu0
  %6414 = vdwg.mxu0
  %6415 = vmatpush.bf16.msra.mxu0 %v5086
  %6416 = vmatpush.bf16.msra.mxu0 %v5078
  %6417 = vmatpush.bf16.msra.mxu0 %v5070
  %6418 = vmatpush.bf16.msra.mxu0 %v5062
  %6419 = vmatpush.bf16.msra.mxu0 %v5054
  %6420 = vmatpush.bf16.msra.mxu0 %v5046
  %6421 = vmatpush.bf16.msra.mxu0 %v5038
  %6422 = vmatpush.bf16.msra.mxu0 %v5030
  %6423 = vmatmul.bf16.gmra.mxu0 %v1107
  %v6424 = vpop.f32.mrf.mxu0
  %v6425 = vadd.f32 %v6412, %v6424
  %v6426 = vpop.f32.mrf.mxu0
  %6427 = vdwg.mxu0
  %6428 = vmatpush.bf16.msra.mxu0 %v5150
  %6429 = vmatpush.bf16.msra.mxu0 %v5142
  %6430 = vmatpush.bf16.msra.mxu0 %v5134
  %6431 = vmatpush.bf16.msra.mxu0 %v5126
  %6432 = vmatpush.bf16.msra.mxu0 %v5118
  %6433 = vmatpush.bf16.msra.mxu0 %v5110
  %6434 = vmatpush.bf16.msra.mxu0 %v5102
  %6435 = vmatpush.bf16.msra.mxu0 %v5094
  %6436 = vmatmul.bf16.gmra.mxu0 %v1108
  %v6437 = vpop.f32.mrf.mxu0
  %v6438 = vadd.f32 %v6425, %v6437
  %v6439 = vpop.f32.mrf.mxu0
  %6440 = vdwg.mxu0
  %6441 = vmatpush.bf16.msra.mxu0 %v5214
  %6442 = vmatpush.bf16.msra.mxu0 %v5206
  %6443 = vmatpush.bf16.msra.mxu0 %v5198
  %6444 = vmatpush.bf16.msra.mxu0 %v5190
  %6445 = vmatpush.bf16.msra.mxu0 %v5182
  %6446 = vmatpush.bf16.msra.mxu0 %v5174
  %6447 = vmatpush.bf16.msra.mxu0 %v5166
  %6448 = vmatpush.bf16.msra.mxu0 %v5158
  %6449 = vmatmul.bf16.gmra.mxu0 %v1109
  %v6450 = vpop.f32.mrf.mxu0
  %v6451 = vadd.f32 %v6438, %v6450
  %v6452 = vpop.f32.mrf.mxu0
  %6453 = vdwg.mxu0
  %6454 = vmatpush.bf16.msra.mxu0 %v4255
  %6455 = vmatpush.bf16.msra.mxu0 %v4247
  %6456 = vmatpush.bf16.msra.mxu0 %v4239
  %6457 = vmatpush.bf16.msra.mxu0 %v4231
  %6458 = vmatpush.bf16.msra.mxu0 %v4223
  %6459 = vmatpush.bf16.msra.mxu0 %v4215
  %6460 = vmatpush.bf16.msra.mxu0 %v4207
  %6461 = vmatpush.bf16.msra.mxu0 %v4199
  %6462 = vmatmul.bf16.gmra.mxu0 %v1094
  %v6463 = vpop.f32.mrf.mxu0
  %v6464 = vadd.f32 %v1055, %v6463
  %v6465 = vpop.f32.mrf.mxu0
  %6466 = vdwg.mxu0
  %6467 = vmatpush.bf16.msra.mxu0 %v4319
  %6468 = vmatpush.bf16.msra.mxu0 %v4311
  %6469 = vmatpush.bf16.msra.mxu0 %v4303
  %6470 = vmatpush.bf16.msra.mxu0 %v4295
  %6471 = vmatpush.bf16.msra.mxu0 %v4287
  %6472 = vmatpush.bf16.msra.mxu0 %v4279
  %6473 = vmatpush.bf16.msra.mxu0 %v4271
  %6474 = vmatpush.bf16.msra.mxu0 %v4263
  %6475 = vmatmul.bf16.gmra.mxu0 %v1095
  %v6476 = vpop.f32.mrf.mxu0
  %v6477 = vadd.f32 %v6464, %v6476
  %v6478 = vpop.f32.mrf.mxu0
  %6479 = vdwg.mxu0
  %6480 = vmatpush.bf16.msra.mxu0 %v4383
  %6481 = vmatpush.bf16.msra.mxu0 %v4375
  %6482 = vmatpush.bf16.msra.mxu0 %v4367
  %6483 = vmatpush.bf16.msra.mxu0 %v4359
  %6484 = vmatpush.bf16.msra.mxu0 %v4351
  %6485 = vmatpush.bf16.msra.mxu0 %v4343
  %6486 = vmatpush.bf16.msra.mxu0 %v4335
  %6487 = vmatpush.bf16.msra.mxu0 %v4327
  %6488 = vmatmul.bf16.gmra.mxu0 %v1096
  %v6489 = vpop.f32.mrf.mxu0
  %v6490 = vadd.f32 %v6477, %v6489
  %v6491 = vpop.f32.mrf.mxu0
  %6492 = vdwg.mxu0
  %6493 = vmatpush.bf16.msra.mxu0 %v4447
  %6494 = vmatpush.bf16.msra.mxu0 %v4439
  %6495 = vmatpush.bf16.msra.mxu0 %v4431
  %6496 = vmatpush.bf16.msra.mxu0 %v4423
  %6497 = vmatpush.bf16.msra.mxu0 %v4415
  %6498 = vmatpush.bf16.msra.mxu0 %v4407
  %6499 = vmatpush.bf16.msra.mxu0 %v4399
  %6500 = vmatpush.bf16.msra.mxu0 %v4391
  %6501 = vmatmul.bf16.gmra.mxu0 %v1097
  %v6502 = vpop.f32.mrf.mxu0
  %v6503 = vadd.f32 %v6490, %v6502
  %v6504 = vpop.f32.mrf.mxu0
  %6505 = vdwg.mxu0
  %6506 = vmatpush.bf16.msra.mxu0 %v4511
  %6507 = vmatpush.bf16.msra.mxu0 %v4503
  %6508 = vmatpush.bf16.msra.mxu0 %v4495
  %6509 = vmatpush.bf16.msra.mxu0 %v4487
  %6510 = vmatpush.bf16.msra.mxu0 %v4479
  %6511 = vmatpush.bf16.msra.mxu0 %v4471
  %6512 = vmatpush.bf16.msra.mxu0 %v4463
  %6513 = vmatpush.bf16.msra.mxu0 %v4455
  %6514 = vmatmul.bf16.gmra.mxu0 %v1098
  %v6515 = vpop.f32.mrf.mxu0
  %v6516 = vadd.f32 %v6503, %v6515
  %v6517 = vpop.f32.mrf.mxu0
  %6518 = vdwg.mxu0
  %6519 = vmatpush.bf16.msra.mxu0 %v4575
  %6520 = vmatpush.bf16.msra.mxu0 %v4567
  %6521 = vmatpush.bf16.msra.mxu0 %v4559
  %6522 = vmatpush.bf16.msra.mxu0 %v4551
  %6523 = vmatpush.bf16.msra.mxu0 %v4543
  %6524 = vmatpush.bf16.msra.mxu0 %v4535
  %6525 = vmatpush.bf16.msra.mxu0 %v4527
  %6526 = vmatpush.bf16.msra.mxu0 %v4519
  %6527 = vmatmul.bf16.gmra.mxu0 %v1099
  %v6528 = vpop.f32.mrf.mxu0
  %v6529 = vadd.f32 %v6516, %v6528
  %v6530 = vpop.f32.mrf.mxu0
  %6531 = vdwg.mxu0
  %6532 = vmatpush.bf16.msra.mxu0 %v4639
  %6533 = vmatpush.bf16.msra.mxu0 %v4631
  %6534 = vmatpush.bf16.msra.mxu0 %v4623
  %6535 = vmatpush.bf16.msra.mxu0 %v4615
  %6536 = vmatpush.bf16.msra.mxu0 %v4607
  %6537 = vmatpush.bf16.msra.mxu0 %v4599
  %6538 = vmatpush.bf16.msra.mxu0 %v4591
  %6539 = vmatpush.bf16.msra.mxu0 %v4583
  %6540 = vmatmul.bf16.gmra.mxu0 %v1100
  %v6541 = vpop.f32.mrf.mxu0
  %v6542 = vadd.f32 %v6529, %v6541
  %v6543 = vpop.f32.mrf.mxu0
  %6544 = vdwg.mxu0
  %6545 = vmatpush.bf16.msra.mxu0 %v4703
  %6546 = vmatpush.bf16.msra.mxu0 %v4695
  %6547 = vmatpush.bf16.msra.mxu0 %v4687
  %6548 = vmatpush.bf16.msra.mxu0 %v4679
  %6549 = vmatpush.bf16.msra.mxu0 %v4671
  %6550 = vmatpush.bf16.msra.mxu0 %v4663
  %6551 = vmatpush.bf16.msra.mxu0 %v4655
  %6552 = vmatpush.bf16.msra.mxu0 %v4647
  %6553 = vmatmul.bf16.gmra.mxu0 %v1101
  %v6554 = vpop.f32.mrf.mxu0
  %v6555 = vadd.f32 %v6542, %v6554
  %v6556 = vpop.f32.mrf.mxu0
  %6557 = vdwg.mxu0
  %6558 = vmatpush.bf16.msra.mxu0 %v4767
  %6559 = vmatpush.bf16.msra.mxu0 %v4759
  %6560 = vmatpush.bf16.msra.mxu0 %v4751
  %6561 = vmatpush.bf16.msra.mxu0 %v4743
  %6562 = vmatpush.bf16.msra.mxu0 %v4735
  %6563 = vmatpush.bf16.msra.mxu0 %v4727
  %6564 = vmatpush.bf16.msra.mxu0 %v4719
  %6565 = vmatpush.bf16.msra.mxu0 %v4711
  %6566 = vmatmul.bf16.gmra.mxu0 %v1102
  %v6567 = vpop.f32.mrf.mxu0
  %v6568 = vadd.f32 %v6555, %v6567
  %v6569 = vpop.f32.mrf.mxu0
  %6570 = vdwg.mxu0
  %6571 = vmatpush.bf16.msra.mxu0 %v4831
  %6572 = vmatpush.bf16.msra.mxu0 %v4823
  %6573 = vmatpush.bf16.msra.mxu0 %v4815
  %6574 = vmatpush.bf16.msra.mxu0 %v4807
  %6575 = vmatpush.bf16.msra.mxu0 %v4799
  %6576 = vmatpush.bf16.msra.mxu0 %v4791
  %6577 = vmatpush.bf16.msra.mxu0 %v4783
  %6578 = vmatpush.bf16.msra.mxu0 %v4775
  %6579 = vmatmul.bf16.gmra.mxu0 %v1103
  %v6580 = vpop.f32.mrf.mxu0
  %v6581 = vadd.f32 %v6568, %v6580
  %v6582 = vpop.f32.mrf.mxu0
  %6583 = vdwg.mxu0
  %6584 = vmatpush.bf16.msra.mxu0 %v4895
  %6585 = vmatpush.bf16.msra.mxu0 %v4887
  %6586 = vmatpush.bf16.msra.mxu0 %v4879
  %6587 = vmatpush.bf16.msra.mxu0 %v4871
  %6588 = vmatpush.bf16.msra.mxu0 %v4863
  %6589 = vmatpush.bf16.msra.mxu0 %v4855
  %6590 = vmatpush.bf16.msra.mxu0 %v4847
  %6591 = vmatpush.bf16.msra.mxu0 %v4839
  %6592 = vmatmul.bf16.gmra.mxu0 %v1104
  %v6593 = vpop.f32.mrf.mxu0
  %v6594 = vadd.f32 %v6581, %v6593
  %v6595 = vpop.f32.mrf.mxu0
  %6596 = vdwg.mxu0
  %6597 = vmatpush.bf16.msra.mxu0 %v4959
  %6598 = vmatpush.bf16.msra.mxu0 %v4951
  %6599 = vmatpush.bf16.msra.mxu0 %v4943
  %6600 = vmatpush.bf16.msra.mxu0 %v4935
  %6601 = vmatpush.bf16.msra.mxu0 %v4927
  %6602 = vmatpush.bf16.msra.mxu0 %v4919
  %6603 = vmatpush.bf16.msra.mxu0 %v4911
  %6604 = vmatpush.bf16.msra.mxu0 %v4903
  %6605 = vmatmul.bf16.gmra.mxu0 %v1105
  %v6606 = vpop.f32.mrf.mxu0
  %v6607 = vadd.f32 %v6594, %v6606
  %v6608 = vpop.f32.mrf.mxu0
  %6609 = vdwg.mxu0
  %6610 = vmatpush.bf16.msra.mxu0 %v5023
  %6611 = vmatpush.bf16.msra.mxu0 %v5015
  %6612 = vmatpush.bf16.msra.mxu0 %v5007
  %6613 = vmatpush.bf16.msra.mxu0 %v4999
  %6614 = vmatpush.bf16.msra.mxu0 %v4991
  %6615 = vmatpush.bf16.msra.mxu0 %v4983
  %6616 = vmatpush.bf16.msra.mxu0 %v4975
  %6617 = vmatpush.bf16.msra.mxu0 %v4967
  %6618 = vmatmul.bf16.gmra.mxu0 %v1106
  %v6619 = vpop.f32.mrf.mxu0
  %v6620 = vadd.f32 %v6607, %v6619
  %v6621 = vpop.f32.mrf.mxu0
  %6622 = vdwg.mxu0
  %6623 = vmatpush.bf16.msra.mxu0 %v5087
  %6624 = vmatpush.bf16.msra.mxu0 %v5079
  %6625 = vmatpush.bf16.msra.mxu0 %v5071
  %6626 = vmatpush.bf16.msra.mxu0 %v5063
  %6627 = vmatpush.bf16.msra.mxu0 %v5055
  %6628 = vmatpush.bf16.msra.mxu0 %v5047
  %6629 = vmatpush.bf16.msra.mxu0 %v5039
  %6630 = vmatpush.bf16.msra.mxu0 %v5031
  %6631 = vmatmul.bf16.gmra.mxu0 %v1107
  %v6632 = vpop.f32.mrf.mxu0
  %v6633 = vadd.f32 %v6620, %v6632
  %v6634 = vpop.f32.mrf.mxu0
  %6635 = vdwg.mxu0
  %6636 = vmatpush.bf16.msra.mxu0 %v5151
  %6637 = vmatpush.bf16.msra.mxu0 %v5143
  %6638 = vmatpush.bf16.msra.mxu0 %v5135
  %6639 = vmatpush.bf16.msra.mxu0 %v5127
  %6640 = vmatpush.bf16.msra.mxu0 %v5119
  %6641 = vmatpush.bf16.msra.mxu0 %v5111
  %6642 = vmatpush.bf16.msra.mxu0 %v5103
  %6643 = vmatpush.bf16.msra.mxu0 %v5095
  %6644 = vmatmul.bf16.gmra.mxu0 %v1108
  %v6645 = vpop.f32.mrf.mxu0
  %v6646 = vadd.f32 %v6633, %v6645
  %v6647 = vpop.f32.mrf.mxu0
  %6648 = vdwg.mxu0
  %6649 = vmatpush.bf16.msra.mxu0 %v5215
  %6650 = vmatpush.bf16.msra.mxu0 %v5207
  %6651 = vmatpush.bf16.msra.mxu0 %v5199
  %6652 = vmatpush.bf16.msra.mxu0 %v5191
  %6653 = vmatpush.bf16.msra.mxu0 %v5183
  %6654 = vmatpush.bf16.msra.mxu0 %v5175
  %6655 = vmatpush.bf16.msra.mxu0 %v5167
  %6656 = vmatpush.bf16.msra.mxu0 %v5159
  %6657 = vmatmul.bf16.gmra.mxu0 %v1109
  %v6658 = vpop.f32.mrf.mxu0
  %v6659 = vadd.f32 %v6646, %v6658
  %v6660 = vpop.f32.mrf.mxu0
  %6661 = vdwg.mxu0
  %6662 = vmatpush.bf16.msra.mxu0 %v4256
  %6663 = vmatpush.bf16.msra.mxu0 %v4248
  %6664 = vmatpush.bf16.msra.mxu0 %v4240
  %6665 = vmatpush.bf16.msra.mxu0 %v4232
  %6666 = vmatpush.bf16.msra.mxu0 %v4224
  %6667 = vmatpush.bf16.msra.mxu0 %v4216
  %6668 = vmatpush.bf16.msra.mxu0 %v4208
  %6669 = vmatpush.bf16.msra.mxu0 %v4200
  %6670 = vmatmul.bf16.gmra.mxu0 %v1094
  %v6671 = vpop.f32.mrf.mxu0
  %v6672 = vadd.f32 %v1056, %v6671
  %v6673 = vpop.f32.mrf.mxu0
  %6674 = vdwg.mxu0
  %6675 = vmatpush.bf16.msra.mxu0 %v4320
  %6676 = vmatpush.bf16.msra.mxu0 %v4312
  %6677 = vmatpush.bf16.msra.mxu0 %v4304
  %6678 = vmatpush.bf16.msra.mxu0 %v4296
  %6679 = vmatpush.bf16.msra.mxu0 %v4288
  %6680 = vmatpush.bf16.msra.mxu0 %v4280
  %6681 = vmatpush.bf16.msra.mxu0 %v4272
  %6682 = vmatpush.bf16.msra.mxu0 %v4264
  %6683 = vmatmul.bf16.gmra.mxu0 %v1095
  %v6684 = vpop.f32.mrf.mxu0
  %v6685 = vadd.f32 %v6672, %v6684
  %v6686 = vpop.f32.mrf.mxu0
  %6687 = vdwg.mxu0
  %6688 = vmatpush.bf16.msra.mxu0 %v4384
  %6689 = vmatpush.bf16.msra.mxu0 %v4376
  %6690 = vmatpush.bf16.msra.mxu0 %v4368
  %6691 = vmatpush.bf16.msra.mxu0 %v4360
  %6692 = vmatpush.bf16.msra.mxu0 %v4352
  %6693 = vmatpush.bf16.msra.mxu0 %v4344
  %6694 = vmatpush.bf16.msra.mxu0 %v4336
  %6695 = vmatpush.bf16.msra.mxu0 %v4328
  %6696 = vmatmul.bf16.gmra.mxu0 %v1096
  %v6697 = vpop.f32.mrf.mxu0
  %v6698 = vadd.f32 %v6685, %v6697
  %v6699 = vpop.f32.mrf.mxu0
  %6700 = vdwg.mxu0
  %6701 = vmatpush.bf16.msra.mxu0 %v4448
  %6702 = vmatpush.bf16.msra.mxu0 %v4440
  %6703 = vmatpush.bf16.msra.mxu0 %v4432
  %6704 = vmatpush.bf16.msra.mxu0 %v4424
  %6705 = vmatpush.bf16.msra.mxu0 %v4416
  %6706 = vmatpush.bf16.msra.mxu0 %v4408
  %6707 = vmatpush.bf16.msra.mxu0 %v4400
  %6708 = vmatpush.bf16.msra.mxu0 %v4392
  %6709 = vmatmul.bf16.gmra.mxu0 %v1097
  %v6710 = vpop.f32.mrf.mxu0
  %v6711 = vadd.f32 %v6698, %v6710
  %v6712 = vpop.f32.mrf.mxu0
  %6713 = vdwg.mxu0
  %6714 = vmatpush.bf16.msra.mxu0 %v4512
  %6715 = vmatpush.bf16.msra.mxu0 %v4504
  %6716 = vmatpush.bf16.msra.mxu0 %v4496
  %6717 = vmatpush.bf16.msra.mxu0 %v4488
  %6718 = vmatpush.bf16.msra.mxu0 %v4480
  %6719 = vmatpush.bf16.msra.mxu0 %v4472
  %6720 = vmatpush.bf16.msra.mxu0 %v4464
  %6721 = vmatpush.bf16.msra.mxu0 %v4456
  %6722 = vmatmul.bf16.gmra.mxu0 %v1098
  %v6723 = vpop.f32.mrf.mxu0
  %v6724 = vadd.f32 %v6711, %v6723
  %v6725 = vpop.f32.mrf.mxu0
  %6726 = vdwg.mxu0
  %6727 = vmatpush.bf16.msra.mxu0 %v4576
  %6728 = vmatpush.bf16.msra.mxu0 %v4568
  %6729 = vmatpush.bf16.msra.mxu0 %v4560
  %6730 = vmatpush.bf16.msra.mxu0 %v4552
  %6731 = vmatpush.bf16.msra.mxu0 %v4544
  %6732 = vmatpush.bf16.msra.mxu0 %v4536
  %6733 = vmatpush.bf16.msra.mxu0 %v4528
  %6734 = vmatpush.bf16.msra.mxu0 %v4520
  %6735 = vmatmul.bf16.gmra.mxu0 %v1099
  %v6736 = vpop.f32.mrf.mxu0
  %v6737 = vadd.f32 %v6724, %v6736
  %v6738 = vpop.f32.mrf.mxu0
  %6739 = vdwg.mxu0
  %6740 = vmatpush.bf16.msra.mxu0 %v4640
  %6741 = vmatpush.bf16.msra.mxu0 %v4632
  %6742 = vmatpush.bf16.msra.mxu0 %v4624
  %6743 = vmatpush.bf16.msra.mxu0 %v4616
  %6744 = vmatpush.bf16.msra.mxu0 %v4608
  %6745 = vmatpush.bf16.msra.mxu0 %v4600
  %6746 = vmatpush.bf16.msra.mxu0 %v4592
  %6747 = vmatpush.bf16.msra.mxu0 %v4584
  %6748 = vmatmul.bf16.gmra.mxu0 %v1100
  %v6749 = vpop.f32.mrf.mxu0
  %v6750 = vadd.f32 %v6737, %v6749
  %v6751 = vpop.f32.mrf.mxu0
  %6752 = vdwg.mxu0
  %6753 = vmatpush.bf16.msra.mxu0 %v4704
  %6754 = vmatpush.bf16.msra.mxu0 %v4696
  %6755 = vmatpush.bf16.msra.mxu0 %v4688
  %6756 = vmatpush.bf16.msra.mxu0 %v4680
  %6757 = vmatpush.bf16.msra.mxu0 %v4672
  %6758 = vmatpush.bf16.msra.mxu0 %v4664
  %6759 = vmatpush.bf16.msra.mxu0 %v4656
  %6760 = vmatpush.bf16.msra.mxu0 %v4648
  %6761 = vmatmul.bf16.gmra.mxu0 %v1101
  %v6762 = vpop.f32.mrf.mxu0
  %v6763 = vadd.f32 %v6750, %v6762
  %v6764 = vpop.f32.mrf.mxu0
  %6765 = vdwg.mxu0
  %6766 = vmatpush.bf16.msra.mxu0 %v4768
  %6767 = vmatpush.bf16.msra.mxu0 %v4760
  %6768 = vmatpush.bf16.msra.mxu0 %v4752
  %6769 = vmatpush.bf16.msra.mxu0 %v4744
  %6770 = vmatpush.bf16.msra.mxu0 %v4736
  %6771 = vmatpush.bf16.msra.mxu0 %v4728
  %6772 = vmatpush.bf16.msra.mxu0 %v4720
  %6773 = vmatpush.bf16.msra.mxu0 %v4712
  %6774 = vmatmul.bf16.gmra.mxu0 %v1102
  %v6775 = vpop.f32.mrf.mxu0
  %v6776 = vadd.f32 %v6763, %v6775
  %v6777 = vpop.f32.mrf.mxu0
  %6778 = vdwg.mxu0
  %6779 = vmatpush.bf16.msra.mxu0 %v4832
  %6780 = vmatpush.bf16.msra.mxu0 %v4824
  %6781 = vmatpush.bf16.msra.mxu0 %v4816
  %6782 = vmatpush.bf16.msra.mxu0 %v4808
  %6783 = vmatpush.bf16.msra.mxu0 %v4800
  %6784 = vmatpush.bf16.msra.mxu0 %v4792
  %6785 = vmatpush.bf16.msra.mxu0 %v4784
  %6786 = vmatpush.bf16.msra.mxu0 %v4776
  %6787 = vmatmul.bf16.gmra.mxu0 %v1103
  %v6788 = vpop.f32.mrf.mxu0
  %v6789 = vadd.f32 %v6776, %v6788
  %v6790 = vpop.f32.mrf.mxu0
  %6791 = vdwg.mxu0
  %6792 = vmatpush.bf16.msra.mxu0 %v4896
  %6793 = vmatpush.bf16.msra.mxu0 %v4888
  %6794 = vmatpush.bf16.msra.mxu0 %v4880
  %6795 = vmatpush.bf16.msra.mxu0 %v4872
  %6796 = vmatpush.bf16.msra.mxu0 %v4864
  %6797 = vmatpush.bf16.msra.mxu0 %v4856
  %6798 = vmatpush.bf16.msra.mxu0 %v4848
  %6799 = vmatpush.bf16.msra.mxu0 %v4840
  %6800 = vmatmul.bf16.gmra.mxu0 %v1104
  %v6801 = vpop.f32.mrf.mxu0
  %v6802 = vadd.f32 %v6789, %v6801
  %v6803 = vpop.f32.mrf.mxu0
  %6804 = vdwg.mxu0
  %6805 = vmatpush.bf16.msra.mxu0 %v4960
  %6806 = vmatpush.bf16.msra.mxu0 %v4952
  %6807 = vmatpush.bf16.msra.mxu0 %v4944
  %6808 = vmatpush.bf16.msra.mxu0 %v4936
  %6809 = vmatpush.bf16.msra.mxu0 %v4928
  %6810 = vmatpush.bf16.msra.mxu0 %v4920
  %6811 = vmatpush.bf16.msra.mxu0 %v4912
  %6812 = vmatpush.bf16.msra.mxu0 %v4904
  %6813 = vmatmul.bf16.gmra.mxu0 %v1105
  %v6814 = vpop.f32.mrf.mxu0
  %v6815 = vadd.f32 %v6802, %v6814
  %v6816 = vpop.f32.mrf.mxu0
  %6817 = vdwg.mxu0
  %6818 = vmatpush.bf16.msra.mxu0 %v5024
  %6819 = vmatpush.bf16.msra.mxu0 %v5016
  %6820 = vmatpush.bf16.msra.mxu0 %v5008
  %6821 = vmatpush.bf16.msra.mxu0 %v5000
  %6822 = vmatpush.bf16.msra.mxu0 %v4992
  %6823 = vmatpush.bf16.msra.mxu0 %v4984
  %6824 = vmatpush.bf16.msra.mxu0 %v4976
  %6825 = vmatpush.bf16.msra.mxu0 %v4968
  %6826 = vmatmul.bf16.gmra.mxu0 %v1106
  %v6827 = vpop.f32.mrf.mxu0
  %v6828 = vadd.f32 %v6815, %v6827
  %v6829 = vpop.f32.mrf.mxu0
  %6830 = vdwg.mxu0
  %6831 = vmatpush.bf16.msra.mxu0 %v5088
  %6832 = vmatpush.bf16.msra.mxu0 %v5080
  %6833 = vmatpush.bf16.msra.mxu0 %v5072
  %6834 = vmatpush.bf16.msra.mxu0 %v5064
  %6835 = vmatpush.bf16.msra.mxu0 %v5056
  %6836 = vmatpush.bf16.msra.mxu0 %v5048
  %6837 = vmatpush.bf16.msra.mxu0 %v5040
  %6838 = vmatpush.bf16.msra.mxu0 %v5032
  %6839 = vmatmul.bf16.gmra.mxu0 %v1107
  %v6840 = vpop.f32.mrf.mxu0
  %v6841 = vadd.f32 %v6828, %v6840
  %v6842 = vpop.f32.mrf.mxu0
  %6843 = vdwg.mxu0
  %6844 = vmatpush.bf16.msra.mxu0 %v5152
  %6845 = vmatpush.bf16.msra.mxu0 %v5144
  %6846 = vmatpush.bf16.msra.mxu0 %v5136
  %6847 = vmatpush.bf16.msra.mxu0 %v5128
  %6848 = vmatpush.bf16.msra.mxu0 %v5120
  %6849 = vmatpush.bf16.msra.mxu0 %v5112
  %6850 = vmatpush.bf16.msra.mxu0 %v5104
  %6851 = vmatpush.bf16.msra.mxu0 %v5096
  %6852 = vmatmul.bf16.gmra.mxu0 %v1108
  %v6853 = vpop.f32.mrf.mxu0
  %v6854 = vadd.f32 %v6841, %v6853
  %v6855 = vpop.f32.mrf.mxu0
  %6856 = vdwg.mxu0
  %6857 = vmatpush.bf16.msra.mxu0 %v5216
  %6858 = vmatpush.bf16.msra.mxu0 %v5208
  %6859 = vmatpush.bf16.msra.mxu0 %v5200
  %6860 = vmatpush.bf16.msra.mxu0 %v5192
  %6861 = vmatpush.bf16.msra.mxu0 %v5184
  %6862 = vmatpush.bf16.msra.mxu0 %v5176
  %6863 = vmatpush.bf16.msra.mxu0 %v5168
  %6864 = vmatpush.bf16.msra.mxu0 %v5160
  %6865 = vmatmul.bf16.gmra.mxu0 %v1109
  %v6866 = vpop.f32.mrf.mxu0
  %v6867 = vadd.f32 %v6854, %v6866
  %v6868 = vpop.f32.mrf.mxu0
  %6869 = vdwg.mxu0
  %6870 = vmatpush.bf16.msra.mxu0 %v4257
  %6871 = vmatpush.bf16.msra.mxu0 %v4249
  %6872 = vmatpush.bf16.msra.mxu0 %v4241
  %6873 = vmatpush.bf16.msra.mxu0 %v4233
  %6874 = vmatpush.bf16.msra.mxu0 %v4225
  %6875 = vmatpush.bf16.msra.mxu0 %v4217
  %6876 = vmatpush.bf16.msra.mxu0 %v4209
  %6877 = vmatpush.bf16.msra.mxu0 %v4201
  %6878 = vmatmul.bf16.gmra.mxu0 %v1094
  %v6879 = vpop.f32.mrf.mxu0
  %v6880 = vadd.f32 %v1057, %v6879
  %v6881 = vpop.f32.mrf.mxu0
  %6882 = vdwg.mxu0
  %6883 = vmatpush.bf16.msra.mxu0 %v4321
  %6884 = vmatpush.bf16.msra.mxu0 %v4313
  %6885 = vmatpush.bf16.msra.mxu0 %v4305
  %6886 = vmatpush.bf16.msra.mxu0 %v4297
  %6887 = vmatpush.bf16.msra.mxu0 %v4289
  %6888 = vmatpush.bf16.msra.mxu0 %v4281
  %6889 = vmatpush.bf16.msra.mxu0 %v4273
  %6890 = vmatpush.bf16.msra.mxu0 %v4265
  %6891 = vmatmul.bf16.gmra.mxu0 %v1095
  %v6892 = vpop.f32.mrf.mxu0
  %v6893 = vadd.f32 %v6880, %v6892
  %v6894 = vpop.f32.mrf.mxu0
  %6895 = vdwg.mxu0
  %6896 = vmatpush.bf16.msra.mxu0 %v4385
  %6897 = vmatpush.bf16.msra.mxu0 %v4377
  %6898 = vmatpush.bf16.msra.mxu0 %v4369
  %6899 = vmatpush.bf16.msra.mxu0 %v4361
  %6900 = vmatpush.bf16.msra.mxu0 %v4353
  %6901 = vmatpush.bf16.msra.mxu0 %v4345
  %6902 = vmatpush.bf16.msra.mxu0 %v4337
  %6903 = vmatpush.bf16.msra.mxu0 %v4329
  %6904 = vmatmul.bf16.gmra.mxu0 %v1096
  %v6905 = vpop.f32.mrf.mxu0
  %v6906 = vadd.f32 %v6893, %v6905
  %v6907 = vpop.f32.mrf.mxu0
  %6908 = vdwg.mxu0
  %6909 = vmatpush.bf16.msra.mxu0 %v4449
  %6910 = vmatpush.bf16.msra.mxu0 %v4441
  %6911 = vmatpush.bf16.msra.mxu0 %v4433
  %6912 = vmatpush.bf16.msra.mxu0 %v4425
  %6913 = vmatpush.bf16.msra.mxu0 %v4417
  %6914 = vmatpush.bf16.msra.mxu0 %v4409
  %6915 = vmatpush.bf16.msra.mxu0 %v4401
  %6916 = vmatpush.bf16.msra.mxu0 %v4393
  %6917 = vmatmul.bf16.gmra.mxu0 %v1097
  %v6918 = vpop.f32.mrf.mxu0
  %v6919 = vadd.f32 %v6906, %v6918
  %v6920 = vpop.f32.mrf.mxu0
  %6921 = vdwg.mxu0
  %6922 = vmatpush.bf16.msra.mxu0 %v4513
  %6923 = vmatpush.bf16.msra.mxu0 %v4505
  %6924 = vmatpush.bf16.msra.mxu0 %v4497
  %6925 = vmatpush.bf16.msra.mxu0 %v4489
  %6926 = vmatpush.bf16.msra.mxu0 %v4481
  %6927 = vmatpush.bf16.msra.mxu0 %v4473
  %6928 = vmatpush.bf16.msra.mxu0 %v4465
  %6929 = vmatpush.bf16.msra.mxu0 %v4457
  %6930 = vmatmul.bf16.gmra.mxu0 %v1098
  %v6931 = vpop.f32.mrf.mxu0
  %v6932 = vadd.f32 %v6919, %v6931
  %v6933 = vpop.f32.mrf.mxu0
  %6934 = vdwg.mxu0
  %6935 = vmatpush.bf16.msra.mxu0 %v4577
  %6936 = vmatpush.bf16.msra.mxu0 %v4569
  %6937 = vmatpush.bf16.msra.mxu0 %v4561
  %6938 = vmatpush.bf16.msra.mxu0 %v4553
  %6939 = vmatpush.bf16.msra.mxu0 %v4545
  %6940 = vmatpush.bf16.msra.mxu0 %v4537
  %6941 = vmatpush.bf16.msra.mxu0 %v4529
  %6942 = vmatpush.bf16.msra.mxu0 %v4521
  %6943 = vmatmul.bf16.gmra.mxu0 %v1099
  %v6944 = vpop.f32.mrf.mxu0
  %v6945 = vadd.f32 %v6932, %v6944
  %v6946 = vpop.f32.mrf.mxu0
  %6947 = vdwg.mxu0
  %6948 = vmatpush.bf16.msra.mxu0 %v4641
  %6949 = vmatpush.bf16.msra.mxu0 %v4633
  %6950 = vmatpush.bf16.msra.mxu0 %v4625
  %6951 = vmatpush.bf16.msra.mxu0 %v4617
  %6952 = vmatpush.bf16.msra.mxu0 %v4609
  %6953 = vmatpush.bf16.msra.mxu0 %v4601
  %6954 = vmatpush.bf16.msra.mxu0 %v4593
  %6955 = vmatpush.bf16.msra.mxu0 %v4585
  %6956 = vmatmul.bf16.gmra.mxu0 %v1100
  %v6957 = vpop.f32.mrf.mxu0
  %v6958 = vadd.f32 %v6945, %v6957
  %v6959 = vpop.f32.mrf.mxu0
  %6960 = vdwg.mxu0
  %6961 = vmatpush.bf16.msra.mxu0 %v4705
  %6962 = vmatpush.bf16.msra.mxu0 %v4697
  %6963 = vmatpush.bf16.msra.mxu0 %v4689
  %6964 = vmatpush.bf16.msra.mxu0 %v4681
  %6965 = vmatpush.bf16.msra.mxu0 %v4673
  %6966 = vmatpush.bf16.msra.mxu0 %v4665
  %6967 = vmatpush.bf16.msra.mxu0 %v4657
  %6968 = vmatpush.bf16.msra.mxu0 %v4649
  %6969 = vmatmul.bf16.gmra.mxu0 %v1101
  %v6970 = vpop.f32.mrf.mxu0
  %v6971 = vadd.f32 %v6958, %v6970
  %v6972 = vpop.f32.mrf.mxu0
  %6973 = vdwg.mxu0
  %6974 = vmatpush.bf16.msra.mxu0 %v4769
  %6975 = vmatpush.bf16.msra.mxu0 %v4761
  %6976 = vmatpush.bf16.msra.mxu0 %v4753
  %6977 = vmatpush.bf16.msra.mxu0 %v4745
  %6978 = vmatpush.bf16.msra.mxu0 %v4737
  %6979 = vmatpush.bf16.msra.mxu0 %v4729
  %6980 = vmatpush.bf16.msra.mxu0 %v4721
  %6981 = vmatpush.bf16.msra.mxu0 %v4713
  %6982 = vmatmul.bf16.gmra.mxu0 %v1102
  %v6983 = vpop.f32.mrf.mxu0
  %v6984 = vadd.f32 %v6971, %v6983
  %v6985 = vpop.f32.mrf.mxu0
  %6986 = vdwg.mxu0
  %6987 = vmatpush.bf16.msra.mxu0 %v4833
  %6988 = vmatpush.bf16.msra.mxu0 %v4825
  %6989 = vmatpush.bf16.msra.mxu0 %v4817
  %6990 = vmatpush.bf16.msra.mxu0 %v4809
  %6991 = vmatpush.bf16.msra.mxu0 %v4801
  %6992 = vmatpush.bf16.msra.mxu0 %v4793
  %6993 = vmatpush.bf16.msra.mxu0 %v4785
  %6994 = vmatpush.bf16.msra.mxu0 %v4777
  %6995 = vmatmul.bf16.gmra.mxu0 %v1103
  %v6996 = vpop.f32.mrf.mxu0
  %v6997 = vadd.f32 %v6984, %v6996
  %v6998 = vpop.f32.mrf.mxu0
  %6999 = vdwg.mxu0
  %7000 = vmatpush.bf16.msra.mxu0 %v4897
  %7001 = vmatpush.bf16.msra.mxu0 %v4889
  %7002 = vmatpush.bf16.msra.mxu0 %v4881
  %7003 = vmatpush.bf16.msra.mxu0 %v4873
  %7004 = vmatpush.bf16.msra.mxu0 %v4865
  %7005 = vmatpush.bf16.msra.mxu0 %v4857
  %7006 = vmatpush.bf16.msra.mxu0 %v4849
  %7007 = vmatpush.bf16.msra.mxu0 %v4841
  %7008 = vmatmul.bf16.gmra.mxu0 %v1104
  %v7009 = vpop.f32.mrf.mxu0
  %v7010 = vadd.f32 %v6997, %v7009
  %v7011 = vpop.f32.mrf.mxu0
  %7012 = vdwg.mxu0
  %7013 = vmatpush.bf16.msra.mxu0 %v4961
  %7014 = vmatpush.bf16.msra.mxu0 %v4953
  %7015 = vmatpush.bf16.msra.mxu0 %v4945
  %7016 = vmatpush.bf16.msra.mxu0 %v4937
  %7017 = vmatpush.bf16.msra.mxu0 %v4929
  %7018 = vmatpush.bf16.msra.mxu0 %v4921
  %7019 = vmatpush.bf16.msra.mxu0 %v4913
  %7020 = vmatpush.bf16.msra.mxu0 %v4905
  %7021 = vmatmul.bf16.gmra.mxu0 %v1105
  %v7022 = vpop.f32.mrf.mxu0
  %v7023 = vadd.f32 %v7010, %v7022
  %v7024 = vpop.f32.mrf.mxu0
  %7025 = vdwg.mxu0
  %7026 = vmatpush.bf16.msra.mxu0 %v5025
  %7027 = vmatpush.bf16.msra.mxu0 %v5017
  %7028 = vmatpush.bf16.msra.mxu0 %v5009
  %7029 = vmatpush.bf16.msra.mxu0 %v5001
  %7030 = vmatpush.bf16.msra.mxu0 %v4993
  %7031 = vmatpush.bf16.msra.mxu0 %v4985
  %7032 = vmatpush.bf16.msra.mxu0 %v4977
  %7033 = vmatpush.bf16.msra.mxu0 %v4969
  %7034 = vmatmul.bf16.gmra.mxu0 %v1106
  %v7035 = vpop.f32.mrf.mxu0
  %v7036 = vadd.f32 %v7023, %v7035
  %v7037 = vpop.f32.mrf.mxu0
  %7038 = vdwg.mxu0
  %7039 = vmatpush.bf16.msra.mxu0 %v5089
  %7040 = vmatpush.bf16.msra.mxu0 %v5081
  %7041 = vmatpush.bf16.msra.mxu0 %v5073
  %7042 = vmatpush.bf16.msra.mxu0 %v5065
  %7043 = vmatpush.bf16.msra.mxu0 %v5057
  %7044 = vmatpush.bf16.msra.mxu0 %v5049
  %7045 = vmatpush.bf16.msra.mxu0 %v5041
  %7046 = vmatpush.bf16.msra.mxu0 %v5033
  %7047 = vmatmul.bf16.gmra.mxu0 %v1107
  %v7048 = vpop.f32.mrf.mxu0
  %v7049 = vadd.f32 %v7036, %v7048
  %v7050 = vpop.f32.mrf.mxu0
  %7051 = vdwg.mxu0
  %7052 = vmatpush.bf16.msra.mxu0 %v5153
  %7053 = vmatpush.bf16.msra.mxu0 %v5145
  %7054 = vmatpush.bf16.msra.mxu0 %v5137
  %7055 = vmatpush.bf16.msra.mxu0 %v5129
  %7056 = vmatpush.bf16.msra.mxu0 %v5121
  %7057 = vmatpush.bf16.msra.mxu0 %v5113
  %7058 = vmatpush.bf16.msra.mxu0 %v5105
  %7059 = vmatpush.bf16.msra.mxu0 %v5097
  %7060 = vmatmul.bf16.gmra.mxu0 %v1108
  %v7061 = vpop.f32.mrf.mxu0
  %v7062 = vadd.f32 %v7049, %v7061
  %v7063 = vpop.f32.mrf.mxu0
  %7064 = vdwg.mxu0
  %7065 = vmatpush.bf16.msra.mxu0 %v5217
  %7066 = vmatpush.bf16.msra.mxu0 %v5209
  %7067 = vmatpush.bf16.msra.mxu0 %v5201
  %7068 = vmatpush.bf16.msra.mxu0 %v5193
  %7069 = vmatpush.bf16.msra.mxu0 %v5185
  %7070 = vmatpush.bf16.msra.mxu0 %v5177
  %7071 = vmatpush.bf16.msra.mxu0 %v5169
  %7072 = vmatpush.bf16.msra.mxu0 %v5161
  %7073 = vmatmul.bf16.gmra.mxu0 %v1109
  %v7074 = vpop.f32.mrf.mxu0
  %v7075 = vadd.f32 %v7062, %v7074
  %v7076 = vpop.f32.mrf.mxu0
  %7077 = vdwg.mxu0
  %7078 = vmatpush.bf16.msra.mxu0 %v4258
  %7079 = vmatpush.bf16.msra.mxu0 %v4250
  %7080 = vmatpush.bf16.msra.mxu0 %v4242
  %7081 = vmatpush.bf16.msra.mxu0 %v4234
  %7082 = vmatpush.bf16.msra.mxu0 %v4226
  %7083 = vmatpush.bf16.msra.mxu0 %v4218
  %7084 = vmatpush.bf16.msra.mxu0 %v4210
  %7085 = vmatpush.bf16.msra.mxu0 %v4202
  %7086 = vmatmul.bf16.gmra.mxu0 %v1094
  %v7087 = vpop.f32.mrf.mxu0
  %v7088 = vadd.f32 %v1058, %v7087
  %v7089 = vpop.f32.mrf.mxu0
  %7090 = vdwg.mxu0
  %7091 = vmatpush.bf16.msra.mxu0 %v4322
  %7092 = vmatpush.bf16.msra.mxu0 %v4314
  %7093 = vmatpush.bf16.msra.mxu0 %v4306
  %7094 = vmatpush.bf16.msra.mxu0 %v4298
  %7095 = vmatpush.bf16.msra.mxu0 %v4290
  %7096 = vmatpush.bf16.msra.mxu0 %v4282
  %7097 = vmatpush.bf16.msra.mxu0 %v4274
  %7098 = vmatpush.bf16.msra.mxu0 %v4266
  %7099 = vmatmul.bf16.gmra.mxu0 %v1095
  %v7100 = vpop.f32.mrf.mxu0
  %v7101 = vadd.f32 %v7088, %v7100
  %v7102 = vpop.f32.mrf.mxu0
  %7103 = vdwg.mxu0
  %7104 = vmatpush.bf16.msra.mxu0 %v4386
  %7105 = vmatpush.bf16.msra.mxu0 %v4378
  %7106 = vmatpush.bf16.msra.mxu0 %v4370
  %7107 = vmatpush.bf16.msra.mxu0 %v4362
  %7108 = vmatpush.bf16.msra.mxu0 %v4354
  %7109 = vmatpush.bf16.msra.mxu0 %v4346
  %7110 = vmatpush.bf16.msra.mxu0 %v4338
  %7111 = vmatpush.bf16.msra.mxu0 %v4330
  %7112 = vmatmul.bf16.gmra.mxu0 %v1096
  %v7113 = vpop.f32.mrf.mxu0
  %v7114 = vadd.f32 %v7101, %v7113
  %v7115 = vpop.f32.mrf.mxu0
  %7116 = vdwg.mxu0
  %7117 = vmatpush.bf16.msra.mxu0 %v4450
  %7118 = vmatpush.bf16.msra.mxu0 %v4442
  %7119 = vmatpush.bf16.msra.mxu0 %v4434
  %7120 = vmatpush.bf16.msra.mxu0 %v4426
  %7121 = vmatpush.bf16.msra.mxu0 %v4418
  %7122 = vmatpush.bf16.msra.mxu0 %v4410
  %7123 = vmatpush.bf16.msra.mxu0 %v4402
  %7124 = vmatpush.bf16.msra.mxu0 %v4394
  %7125 = vmatmul.bf16.gmra.mxu0 %v1097
  %v7126 = vpop.f32.mrf.mxu0
  %v7127 = vadd.f32 %v7114, %v7126
  %v7128 = vpop.f32.mrf.mxu0
  %7129 = vdwg.mxu0
  %7130 = vmatpush.bf16.msra.mxu0 %v4514
  %7131 = vmatpush.bf16.msra.mxu0 %v4506
  %7132 = vmatpush.bf16.msra.mxu0 %v4498
  %7133 = vmatpush.bf16.msra.mxu0 %v4490
  %7134 = vmatpush.bf16.msra.mxu0 %v4482
  %7135 = vmatpush.bf16.msra.mxu0 %v4474
  %7136 = vmatpush.bf16.msra.mxu0 %v4466
  %7137 = vmatpush.bf16.msra.mxu0 %v4458
  %7138 = vmatmul.bf16.gmra.mxu0 %v1098
  %v7139 = vpop.f32.mrf.mxu0
  %v7140 = vadd.f32 %v7127, %v7139
  %v7141 = vpop.f32.mrf.mxu0
  %7142 = vdwg.mxu0
  %7143 = vmatpush.bf16.msra.mxu0 %v4578
  %7144 = vmatpush.bf16.msra.mxu0 %v4570
  %7145 = vmatpush.bf16.msra.mxu0 %v4562
  %7146 = vmatpush.bf16.msra.mxu0 %v4554
  %7147 = vmatpush.bf16.msra.mxu0 %v4546
  %7148 = vmatpush.bf16.msra.mxu0 %v4538
  %7149 = vmatpush.bf16.msra.mxu0 %v4530
  %7150 = vmatpush.bf16.msra.mxu0 %v4522
  %7151 = vmatmul.bf16.gmra.mxu0 %v1099
  %v7152 = vpop.f32.mrf.mxu0
  %v7153 = vadd.f32 %v7140, %v7152
  %v7154 = vpop.f32.mrf.mxu0
  %7155 = vdwg.mxu0
  %7156 = vmatpush.bf16.msra.mxu0 %v4642
  %7157 = vmatpush.bf16.msra.mxu0 %v4634
  %7158 = vmatpush.bf16.msra.mxu0 %v4626
  %7159 = vmatpush.bf16.msra.mxu0 %v4618
  %7160 = vmatpush.bf16.msra.mxu0 %v4610
  %7161 = vmatpush.bf16.msra.mxu0 %v4602
  %7162 = vmatpush.bf16.msra.mxu0 %v4594
  %7163 = vmatpush.bf16.msra.mxu0 %v4586
  %7164 = vmatmul.bf16.gmra.mxu0 %v1100
  %v7165 = vpop.f32.mrf.mxu0
  %v7166 = vadd.f32 %v7153, %v7165
  %v7167 = vpop.f32.mrf.mxu0
  %7168 = vdwg.mxu0
  %7169 = vmatpush.bf16.msra.mxu0 %v4706
  %7170 = vmatpush.bf16.msra.mxu0 %v4698
  %7171 = vmatpush.bf16.msra.mxu0 %v4690
  %7172 = vmatpush.bf16.msra.mxu0 %v4682
  %7173 = vmatpush.bf16.msra.mxu0 %v4674
  %7174 = vmatpush.bf16.msra.mxu0 %v4666
  %7175 = vmatpush.bf16.msra.mxu0 %v4658
  %7176 = vmatpush.bf16.msra.mxu0 %v4650
  %7177 = vmatmul.bf16.gmra.mxu0 %v1101
  %v7178 = vpop.f32.mrf.mxu0
  %v7179 = vadd.f32 %v7166, %v7178
  %v7180 = vpop.f32.mrf.mxu0
  %7181 = vdwg.mxu0
  %7182 = vmatpush.bf16.msra.mxu0 %v4770
  %7183 = vmatpush.bf16.msra.mxu0 %v4762
  %7184 = vmatpush.bf16.msra.mxu0 %v4754
  %7185 = vmatpush.bf16.msra.mxu0 %v4746
  %7186 = vmatpush.bf16.msra.mxu0 %v4738
  %7187 = vmatpush.bf16.msra.mxu0 %v4730
  %7188 = vmatpush.bf16.msra.mxu0 %v4722
  %7189 = vmatpush.bf16.msra.mxu0 %v4714
  %7190 = vmatmul.bf16.gmra.mxu0 %v1102
  %v7191 = vpop.f32.mrf.mxu0
  %v7192 = vadd.f32 %v7179, %v7191
  %v7193 = vpop.f32.mrf.mxu0
  %7194 = vdwg.mxu0
  %7195 = vmatpush.bf16.msra.mxu0 %v4834
  %7196 = vmatpush.bf16.msra.mxu0 %v4826
  %7197 = vmatpush.bf16.msra.mxu0 %v4818
  %7198 = vmatpush.bf16.msra.mxu0 %v4810
  %7199 = vmatpush.bf16.msra.mxu0 %v4802
  %7200 = vmatpush.bf16.msra.mxu0 %v4794
  %7201 = vmatpush.bf16.msra.mxu0 %v4786
  %7202 = vmatpush.bf16.msra.mxu0 %v4778
  %7203 = vmatmul.bf16.gmra.mxu0 %v1103
  %v7204 = vpop.f32.mrf.mxu0
  %v7205 = vadd.f32 %v7192, %v7204
  %v7206 = vpop.f32.mrf.mxu0
  %7207 = vdwg.mxu0
  %7208 = vmatpush.bf16.msra.mxu0 %v4898
  %7209 = vmatpush.bf16.msra.mxu0 %v4890
  %7210 = vmatpush.bf16.msra.mxu0 %v4882
  %7211 = vmatpush.bf16.msra.mxu0 %v4874
  %7212 = vmatpush.bf16.msra.mxu0 %v4866
  %7213 = vmatpush.bf16.msra.mxu0 %v4858
  %7214 = vmatpush.bf16.msra.mxu0 %v4850
  %7215 = vmatpush.bf16.msra.mxu0 %v4842
  %7216 = vmatmul.bf16.gmra.mxu0 %v1104
  %v7217 = vpop.f32.mrf.mxu0
  %v7218 = vadd.f32 %v7205, %v7217
  %v7219 = vpop.f32.mrf.mxu0
  %7220 = vdwg.mxu0
  %7221 = vmatpush.bf16.msra.mxu0 %v4962
  %7222 = vmatpush.bf16.msra.mxu0 %v4954
  %7223 = vmatpush.bf16.msra.mxu0 %v4946
  %7224 = vmatpush.bf16.msra.mxu0 %v4938
  %7225 = vmatpush.bf16.msra.mxu0 %v4930
  %7226 = vmatpush.bf16.msra.mxu0 %v4922
  %7227 = vmatpush.bf16.msra.mxu0 %v4914
  %7228 = vmatpush.bf16.msra.mxu0 %v4906
  %7229 = vmatmul.bf16.gmra.mxu0 %v1105
  %v7230 = vpop.f32.mrf.mxu0
  %v7231 = vadd.f32 %v7218, %v7230
  %v7232 = vpop.f32.mrf.mxu0
  %7233 = vdwg.mxu0
  %7234 = vmatpush.bf16.msra.mxu0 %v5026
  %7235 = vmatpush.bf16.msra.mxu0 %v5018
  %7236 = vmatpush.bf16.msra.mxu0 %v5010
  %7237 = vmatpush.bf16.msra.mxu0 %v5002
  %7238 = vmatpush.bf16.msra.mxu0 %v4994
  %7239 = vmatpush.bf16.msra.mxu0 %v4986
  %7240 = vmatpush.bf16.msra.mxu0 %v4978
  %7241 = vmatpush.bf16.msra.mxu0 %v4970
  %7242 = vmatmul.bf16.gmra.mxu0 %v1106
  %v7243 = vpop.f32.mrf.mxu0
  %v7244 = vadd.f32 %v7231, %v7243
  %v7245 = vpop.f32.mrf.mxu0
  %7246 = vdwg.mxu0
  %7247 = vmatpush.bf16.msra.mxu0 %v5090
  %7248 = vmatpush.bf16.msra.mxu0 %v5082
  %7249 = vmatpush.bf16.msra.mxu0 %v5074
  %7250 = vmatpush.bf16.msra.mxu0 %v5066
  %7251 = vmatpush.bf16.msra.mxu0 %v5058
  %7252 = vmatpush.bf16.msra.mxu0 %v5050
  %7253 = vmatpush.bf16.msra.mxu0 %v5042
  %7254 = vmatpush.bf16.msra.mxu0 %v5034
  %7255 = vmatmul.bf16.gmra.mxu0 %v1107
  %v7256 = vpop.f32.mrf.mxu0
  %v7257 = vadd.f32 %v7244, %v7256
  %v7258 = vpop.f32.mrf.mxu0
  %7259 = vdwg.mxu0
  %7260 = vmatpush.bf16.msra.mxu0 %v5154
  %7261 = vmatpush.bf16.msra.mxu0 %v5146
  %7262 = vmatpush.bf16.msra.mxu0 %v5138
  %7263 = vmatpush.bf16.msra.mxu0 %v5130
  %7264 = vmatpush.bf16.msra.mxu0 %v5122
  %7265 = vmatpush.bf16.msra.mxu0 %v5114
  %7266 = vmatpush.bf16.msra.mxu0 %v5106
  %7267 = vmatpush.bf16.msra.mxu0 %v5098
  %7268 = vmatmul.bf16.gmra.mxu0 %v1108
  %v7269 = vpop.f32.mrf.mxu0
  %v7270 = vadd.f32 %v7257, %v7269
  %v7271 = vpop.f32.mrf.mxu0
  %7272 = vdwg.mxu0
  %7273 = vmatpush.bf16.msra.mxu0 %v5218
  %7274 = vmatpush.bf16.msra.mxu0 %v5210
  %7275 = vmatpush.bf16.msra.mxu0 %v5202
  %7276 = vmatpush.bf16.msra.mxu0 %v5194
  %7277 = vmatpush.bf16.msra.mxu0 %v5186
  %7278 = vmatpush.bf16.msra.mxu0 %v5178
  %7279 = vmatpush.bf16.msra.mxu0 %v5170
  %7280 = vmatpush.bf16.msra.mxu0 %v5162
  %7281 = vmatmul.bf16.gmra.mxu0 %v1109
  %v7282 = vpop.f32.mrf.mxu0
  %v7283 = vadd.f32 %v7270, %v7282
  %v7284 = vpop.f32.mrf.mxu0
  %7285 = vdwg.mxu0
  %7286 = vmatpush.bf16.msra.mxu0 %v4259
  %7287 = vmatpush.bf16.msra.mxu0 %v4251
  %7288 = vmatpush.bf16.msra.mxu0 %v4243
  %7289 = vmatpush.bf16.msra.mxu0 %v4235
  %7290 = vmatpush.bf16.msra.mxu0 %v4227
  %7291 = vmatpush.bf16.msra.mxu0 %v4219
  %7292 = vmatpush.bf16.msra.mxu0 %v4211
  %7293 = vmatpush.bf16.msra.mxu0 %v4203
  %7294 = vmatmul.bf16.gmra.mxu0 %v1094
  %v7295 = vpop.f32.mrf.mxu0
  %v7296 = vadd.f32 %v1059, %v7295
  %v7297 = vpop.f32.mrf.mxu0
  %7298 = vdwg.mxu0
  %7299 = vmatpush.bf16.msra.mxu0 %v4323
  %7300 = vmatpush.bf16.msra.mxu0 %v4315
  %7301 = vmatpush.bf16.msra.mxu0 %v4307
  %7302 = vmatpush.bf16.msra.mxu0 %v4299
  %7303 = vmatpush.bf16.msra.mxu0 %v4291
  %7304 = vmatpush.bf16.msra.mxu0 %v4283
  %7305 = vmatpush.bf16.msra.mxu0 %v4275
  %7306 = vmatpush.bf16.msra.mxu0 %v4267
  %7307 = vmatmul.bf16.gmra.mxu0 %v1095
  %v7308 = vpop.f32.mrf.mxu0
  %v7309 = vadd.f32 %v7296, %v7308
  %v7310 = vpop.f32.mrf.mxu0
  %7311 = vdwg.mxu0
  %7312 = vmatpush.bf16.msra.mxu0 %v4387
  %7313 = vmatpush.bf16.msra.mxu0 %v4379
  %7314 = vmatpush.bf16.msra.mxu0 %v4371
  %7315 = vmatpush.bf16.msra.mxu0 %v4363
  %7316 = vmatpush.bf16.msra.mxu0 %v4355
  %7317 = vmatpush.bf16.msra.mxu0 %v4347
  %7318 = vmatpush.bf16.msra.mxu0 %v4339
  %7319 = vmatpush.bf16.msra.mxu0 %v4331
  %7320 = vmatmul.bf16.gmra.mxu0 %v1096
  %v7321 = vpop.f32.mrf.mxu0
  %v7322 = vadd.f32 %v7309, %v7321
  %v7323 = vpop.f32.mrf.mxu0
  %7324 = vdwg.mxu0
  %7325 = vmatpush.bf16.msra.mxu0 %v4451
  %7326 = vmatpush.bf16.msra.mxu0 %v4443
  %7327 = vmatpush.bf16.msra.mxu0 %v4435
  %7328 = vmatpush.bf16.msra.mxu0 %v4427
  %7329 = vmatpush.bf16.msra.mxu0 %v4419
  %7330 = vmatpush.bf16.msra.mxu0 %v4411
  %7331 = vmatpush.bf16.msra.mxu0 %v4403
  %7332 = vmatpush.bf16.msra.mxu0 %v4395
  %7333 = vmatmul.bf16.gmra.mxu0 %v1097
  %v7334 = vpop.f32.mrf.mxu0
  %v7335 = vadd.f32 %v7322, %v7334
  %v7336 = vpop.f32.mrf.mxu0
  %7337 = vdwg.mxu0
  %7338 = vmatpush.bf16.msra.mxu0 %v4515
  %7339 = vmatpush.bf16.msra.mxu0 %v4507
  %7340 = vmatpush.bf16.msra.mxu0 %v4499
  %7341 = vmatpush.bf16.msra.mxu0 %v4491
  %7342 = vmatpush.bf16.msra.mxu0 %v4483
  %7343 = vmatpush.bf16.msra.mxu0 %v4475
  %7344 = vmatpush.bf16.msra.mxu0 %v4467
  %7345 = vmatpush.bf16.msra.mxu0 %v4459
  %7346 = vmatmul.bf16.gmra.mxu0 %v1098
  %v7347 = vpop.f32.mrf.mxu0
  %v7348 = vadd.f32 %v7335, %v7347
  %v7349 = vpop.f32.mrf.mxu0
  %7350 = vdwg.mxu0
  %7351 = vmatpush.bf16.msra.mxu0 %v4579
  %7352 = vmatpush.bf16.msra.mxu0 %v4571
  %7353 = vmatpush.bf16.msra.mxu0 %v4563
  %7354 = vmatpush.bf16.msra.mxu0 %v4555
  %7355 = vmatpush.bf16.msra.mxu0 %v4547
  %7356 = vmatpush.bf16.msra.mxu0 %v4539
  %7357 = vmatpush.bf16.msra.mxu0 %v4531
  %7358 = vmatpush.bf16.msra.mxu0 %v4523
  %7359 = vmatmul.bf16.gmra.mxu0 %v1099
  %v7360 = vpop.f32.mrf.mxu0
  %v7361 = vadd.f32 %v7348, %v7360
  %v7362 = vpop.f32.mrf.mxu0
  %7363 = vdwg.mxu0
  %7364 = vmatpush.bf16.msra.mxu0 %v4643
  %7365 = vmatpush.bf16.msra.mxu0 %v4635
  %7366 = vmatpush.bf16.msra.mxu0 %v4627
  %7367 = vmatpush.bf16.msra.mxu0 %v4619
  %7368 = vmatpush.bf16.msra.mxu0 %v4611
  %7369 = vmatpush.bf16.msra.mxu0 %v4603
  %7370 = vmatpush.bf16.msra.mxu0 %v4595
  %7371 = vmatpush.bf16.msra.mxu0 %v4587
  %7372 = vmatmul.bf16.gmra.mxu0 %v1100
  %v7373 = vpop.f32.mrf.mxu0
  %v7374 = vadd.f32 %v7361, %v7373
  %v7375 = vpop.f32.mrf.mxu0
  %7376 = vdwg.mxu0
  %7377 = vmatpush.bf16.msra.mxu0 %v4707
  %7378 = vmatpush.bf16.msra.mxu0 %v4699
  %7379 = vmatpush.bf16.msra.mxu0 %v4691
  %7380 = vmatpush.bf16.msra.mxu0 %v4683
  %7381 = vmatpush.bf16.msra.mxu0 %v4675
  %7382 = vmatpush.bf16.msra.mxu0 %v4667
  %7383 = vmatpush.bf16.msra.mxu0 %v4659
  %7384 = vmatpush.bf16.msra.mxu0 %v4651
  %7385 = vmatmul.bf16.gmra.mxu0 %v1101
  %v7386 = vpop.f32.mrf.mxu0
  %v7387 = vadd.f32 %v7374, %v7386
  %v7388 = vpop.f32.mrf.mxu0
  %7389 = vdwg.mxu0
  %7390 = vmatpush.bf16.msra.mxu0 %v4771
  %7391 = vmatpush.bf16.msra.mxu0 %v4763
  %7392 = vmatpush.bf16.msra.mxu0 %v4755
  %7393 = vmatpush.bf16.msra.mxu0 %v4747
  %7394 = vmatpush.bf16.msra.mxu0 %v4739
  %7395 = vmatpush.bf16.msra.mxu0 %v4731
  %7396 = vmatpush.bf16.msra.mxu0 %v4723
  %7397 = vmatpush.bf16.msra.mxu0 %v4715
  %7398 = vmatmul.bf16.gmra.mxu0 %v1102
  %v7399 = vpop.f32.mrf.mxu0
  %v7400 = vadd.f32 %v7387, %v7399
  %v7401 = vpop.f32.mrf.mxu0
  %7402 = vdwg.mxu0
  %7403 = vmatpush.bf16.msra.mxu0 %v4835
  %7404 = vmatpush.bf16.msra.mxu0 %v4827
  %7405 = vmatpush.bf16.msra.mxu0 %v4819
  %7406 = vmatpush.bf16.msra.mxu0 %v4811
  %7407 = vmatpush.bf16.msra.mxu0 %v4803
  %7408 = vmatpush.bf16.msra.mxu0 %v4795
  %7409 = vmatpush.bf16.msra.mxu0 %v4787
  %7410 = vmatpush.bf16.msra.mxu0 %v4779
  %7411 = vmatmul.bf16.gmra.mxu0 %v1103
  %v7412 = vpop.f32.mrf.mxu0
  %v7413 = vadd.f32 %v7400, %v7412
  %v7414 = vpop.f32.mrf.mxu0
  %7415 = vdwg.mxu0
  %7416 = vmatpush.bf16.msra.mxu0 %v4899
  %7417 = vmatpush.bf16.msra.mxu0 %v4891
  %7418 = vmatpush.bf16.msra.mxu0 %v4883
  %7419 = vmatpush.bf16.msra.mxu0 %v4875
  %7420 = vmatpush.bf16.msra.mxu0 %v4867
  %7421 = vmatpush.bf16.msra.mxu0 %v4859
  %7422 = vmatpush.bf16.msra.mxu0 %v4851
  %7423 = vmatpush.bf16.msra.mxu0 %v4843
  %7424 = vmatmul.bf16.gmra.mxu0 %v1104
  %v7425 = vpop.f32.mrf.mxu0
  %v7426 = vadd.f32 %v7413, %v7425
  %v7427 = vpop.f32.mrf.mxu0
  %7428 = vdwg.mxu0
  %7429 = vmatpush.bf16.msra.mxu0 %v4963
  %7430 = vmatpush.bf16.msra.mxu0 %v4955
  %7431 = vmatpush.bf16.msra.mxu0 %v4947
  %7432 = vmatpush.bf16.msra.mxu0 %v4939
  %7433 = vmatpush.bf16.msra.mxu0 %v4931
  %7434 = vmatpush.bf16.msra.mxu0 %v4923
  %7435 = vmatpush.bf16.msra.mxu0 %v4915
  %7436 = vmatpush.bf16.msra.mxu0 %v4907
  %7437 = vmatmul.bf16.gmra.mxu0 %v1105
  %v7438 = vpop.f32.mrf.mxu0
  %v7439 = vadd.f32 %v7426, %v7438
  %v7440 = vpop.f32.mrf.mxu0
  %7441 = vdwg.mxu0
  %7442 = vmatpush.bf16.msra.mxu0 %v5027
  %7443 = vmatpush.bf16.msra.mxu0 %v5019
  %7444 = vmatpush.bf16.msra.mxu0 %v5011
  %7445 = vmatpush.bf16.msra.mxu0 %v5003
  %7446 = vmatpush.bf16.msra.mxu0 %v4995
  %7447 = vmatpush.bf16.msra.mxu0 %v4987
  %7448 = vmatpush.bf16.msra.mxu0 %v4979
  %7449 = vmatpush.bf16.msra.mxu0 %v4971
  %7450 = vmatmul.bf16.gmra.mxu0 %v1106
  %v7451 = vpop.f32.mrf.mxu0
  %v7452 = vadd.f32 %v7439, %v7451
  %v7453 = vpop.f32.mrf.mxu0
  %7454 = vdwg.mxu0
  %7455 = vmatpush.bf16.msra.mxu0 %v5091
  %7456 = vmatpush.bf16.msra.mxu0 %v5083
  %7457 = vmatpush.bf16.msra.mxu0 %v5075
  %7458 = vmatpush.bf16.msra.mxu0 %v5067
  %7459 = vmatpush.bf16.msra.mxu0 %v5059
  %7460 = vmatpush.bf16.msra.mxu0 %v5051
  %7461 = vmatpush.bf16.msra.mxu0 %v5043
  %7462 = vmatpush.bf16.msra.mxu0 %v5035
  %7463 = vmatmul.bf16.gmra.mxu0 %v1107
  %v7464 = vpop.f32.mrf.mxu0
  %v7465 = vadd.f32 %v7452, %v7464
  %v7466 = vpop.f32.mrf.mxu0
  %7467 = vdwg.mxu0
  %7468 = vmatpush.bf16.msra.mxu0 %v5155
  %7469 = vmatpush.bf16.msra.mxu0 %v5147
  %7470 = vmatpush.bf16.msra.mxu0 %v5139
  %7471 = vmatpush.bf16.msra.mxu0 %v5131
  %7472 = vmatpush.bf16.msra.mxu0 %v5123
  %7473 = vmatpush.bf16.msra.mxu0 %v5115
  %7474 = vmatpush.bf16.msra.mxu0 %v5107
  %7475 = vmatpush.bf16.msra.mxu0 %v5099
  %7476 = vmatmul.bf16.gmra.mxu0 %v1108
  %v7477 = vpop.f32.mrf.mxu0
  %v7478 = vadd.f32 %v7465, %v7477
  %v7479 = vpop.f32.mrf.mxu0
  %7480 = vdwg.mxu0
  %7481 = vmatpush.bf16.msra.mxu0 %v5219
  %7482 = vmatpush.bf16.msra.mxu0 %v5211
  %7483 = vmatpush.bf16.msra.mxu0 %v5203
  %7484 = vmatpush.bf16.msra.mxu0 %v5195
  %7485 = vmatpush.bf16.msra.mxu0 %v5187
  %7486 = vmatpush.bf16.msra.mxu0 %v5179
  %7487 = vmatpush.bf16.msra.mxu0 %v5171
  %7488 = vmatpush.bf16.msra.mxu0 %v5163
  %7489 = vmatmul.bf16.gmra.mxu0 %v1109
  %v7490 = vpop.f32.mrf.mxu0
  %v7491 = vadd.f32 %v7478, %v7490
  %v7492 = vpop.f32.mrf.mxu0
  %7493 = vdwg.mxu0
  %7494 = vmatpush.bf16.msra.mxu0 %v4260
  %7495 = vmatpush.bf16.msra.mxu0 %v4252
  %7496 = vmatpush.bf16.msra.mxu0 %v4244
  %7497 = vmatpush.bf16.msra.mxu0 %v4236
  %7498 = vmatpush.bf16.msra.mxu0 %v4228
  %7499 = vmatpush.bf16.msra.mxu0 %v4220
  %7500 = vmatpush.bf16.msra.mxu0 %v4212
  %7501 = vmatpush.bf16.msra.mxu0 %v4204
  %7502 = vmatmul.bf16.gmra.mxu0 %v1094
  %v7503 = vpop.f32.mrf.mxu0
  %v7504 = vadd.f32 %v1060, %v7503
  %v7505 = vpop.f32.mrf.mxu0
  %7506 = vdwg.mxu0
  %7507 = vmatpush.bf16.msra.mxu0 %v4324
  %7508 = vmatpush.bf16.msra.mxu0 %v4316
  %7509 = vmatpush.bf16.msra.mxu0 %v4308
  %7510 = vmatpush.bf16.msra.mxu0 %v4300
  %7511 = vmatpush.bf16.msra.mxu0 %v4292
  %7512 = vmatpush.bf16.msra.mxu0 %v4284
  %7513 = vmatpush.bf16.msra.mxu0 %v4276
  %7514 = vmatpush.bf16.msra.mxu0 %v4268
  %7515 = vmatmul.bf16.gmra.mxu0 %v1095
  %v7516 = vpop.f32.mrf.mxu0
  %v7517 = vadd.f32 %v7504, %v7516
  %v7518 = vpop.f32.mrf.mxu0
  %7519 = vdwg.mxu0
  %7520 = vmatpush.bf16.msra.mxu0 %v4388
  %7521 = vmatpush.bf16.msra.mxu0 %v4380
  %7522 = vmatpush.bf16.msra.mxu0 %v4372
  %7523 = vmatpush.bf16.msra.mxu0 %v4364
  %7524 = vmatpush.bf16.msra.mxu0 %v4356
  %7525 = vmatpush.bf16.msra.mxu0 %v4348
  %7526 = vmatpush.bf16.msra.mxu0 %v4340
  %7527 = vmatpush.bf16.msra.mxu0 %v4332
  %7528 = vmatmul.bf16.gmra.mxu0 %v1096
  %v7529 = vpop.f32.mrf.mxu0
  %v7530 = vadd.f32 %v7517, %v7529
  %v7531 = vpop.f32.mrf.mxu0
  %7532 = vdwg.mxu0
  %7533 = vmatpush.bf16.msra.mxu0 %v4452
  %7534 = vmatpush.bf16.msra.mxu0 %v4444
  %7535 = vmatpush.bf16.msra.mxu0 %v4436
  %7536 = vmatpush.bf16.msra.mxu0 %v4428
  %7537 = vmatpush.bf16.msra.mxu0 %v4420
  %7538 = vmatpush.bf16.msra.mxu0 %v4412
  %7539 = vmatpush.bf16.msra.mxu0 %v4404
  %7540 = vmatpush.bf16.msra.mxu0 %v4396
  %7541 = vmatmul.bf16.gmra.mxu0 %v1097
  %v7542 = vpop.f32.mrf.mxu0
  %v7543 = vadd.f32 %v7530, %v7542
  %v7544 = vpop.f32.mrf.mxu0
  %7545 = vdwg.mxu0
  %7546 = vmatpush.bf16.msra.mxu0 %v4516
  %7547 = vmatpush.bf16.msra.mxu0 %v4508
  %7548 = vmatpush.bf16.msra.mxu0 %v4500
  %7549 = vmatpush.bf16.msra.mxu0 %v4492
  %7550 = vmatpush.bf16.msra.mxu0 %v4484
  %7551 = vmatpush.bf16.msra.mxu0 %v4476
  %7552 = vmatpush.bf16.msra.mxu0 %v4468
  %7553 = vmatpush.bf16.msra.mxu0 %v4460
  %7554 = vmatmul.bf16.gmra.mxu0 %v1098
  %v7555 = vpop.f32.mrf.mxu0
  %v7556 = vadd.f32 %v7543, %v7555
  %v7557 = vpop.f32.mrf.mxu0
  %7558 = vdwg.mxu0
  %7559 = vmatpush.bf16.msra.mxu0 %v4580
  %7560 = vmatpush.bf16.msra.mxu0 %v4572
  %7561 = vmatpush.bf16.msra.mxu0 %v4564
  %7562 = vmatpush.bf16.msra.mxu0 %v4556
  %7563 = vmatpush.bf16.msra.mxu0 %v4548
  %7564 = vmatpush.bf16.msra.mxu0 %v4540
  %7565 = vmatpush.bf16.msra.mxu0 %v4532
  %7566 = vmatpush.bf16.msra.mxu0 %v4524
  %7567 = vmatmul.bf16.gmra.mxu0 %v1099
  %v7568 = vpop.f32.mrf.mxu0
  %v7569 = vadd.f32 %v7556, %v7568
  %v7570 = vpop.f32.mrf.mxu0
  %7571 = vdwg.mxu0
  %7572 = vmatpush.bf16.msra.mxu0 %v4644
  %7573 = vmatpush.bf16.msra.mxu0 %v4636
  %7574 = vmatpush.bf16.msra.mxu0 %v4628
  %7575 = vmatpush.bf16.msra.mxu0 %v4620
  %7576 = vmatpush.bf16.msra.mxu0 %v4612
  %7577 = vmatpush.bf16.msra.mxu0 %v4604
  %7578 = vmatpush.bf16.msra.mxu0 %v4596
  %7579 = vmatpush.bf16.msra.mxu0 %v4588
  %7580 = vmatmul.bf16.gmra.mxu0 %v1100
  %v7581 = vpop.f32.mrf.mxu0
  %v7582 = vadd.f32 %v7569, %v7581
  %v7583 = vpop.f32.mrf.mxu0
  %7584 = vdwg.mxu0
  %7585 = vmatpush.bf16.msra.mxu0 %v4708
  %7586 = vmatpush.bf16.msra.mxu0 %v4700
  %7587 = vmatpush.bf16.msra.mxu0 %v4692
  %7588 = vmatpush.bf16.msra.mxu0 %v4684
  %7589 = vmatpush.bf16.msra.mxu0 %v4676
  %7590 = vmatpush.bf16.msra.mxu0 %v4668
  %7591 = vmatpush.bf16.msra.mxu0 %v4660
  %7592 = vmatpush.bf16.msra.mxu0 %v4652
  %7593 = vmatmul.bf16.gmra.mxu0 %v1101
  %v7594 = vpop.f32.mrf.mxu0
  %v7595 = vadd.f32 %v7582, %v7594
  %v7596 = vpop.f32.mrf.mxu0
  %7597 = vdwg.mxu0
  %7598 = vmatpush.bf16.msra.mxu0 %v4772
  %7599 = vmatpush.bf16.msra.mxu0 %v4764
  %7600 = vmatpush.bf16.msra.mxu0 %v4756
  %7601 = vmatpush.bf16.msra.mxu0 %v4748
  %7602 = vmatpush.bf16.msra.mxu0 %v4740
  %7603 = vmatpush.bf16.msra.mxu0 %v4732
  %7604 = vmatpush.bf16.msra.mxu0 %v4724
  %7605 = vmatpush.bf16.msra.mxu0 %v4716
  %7606 = vmatmul.bf16.gmra.mxu0 %v1102
  %v7607 = vpop.f32.mrf.mxu0
  %v7608 = vadd.f32 %v7595, %v7607
  %v7609 = vpop.f32.mrf.mxu0
  %7610 = vdwg.mxu0
  %7611 = vmatpush.bf16.msra.mxu0 %v4836
  %7612 = vmatpush.bf16.msra.mxu0 %v4828
  %7613 = vmatpush.bf16.msra.mxu0 %v4820
  %7614 = vmatpush.bf16.msra.mxu0 %v4812
  %7615 = vmatpush.bf16.msra.mxu0 %v4804
  %7616 = vmatpush.bf16.msra.mxu0 %v4796
  %7617 = vmatpush.bf16.msra.mxu0 %v4788
  %7618 = vmatpush.bf16.msra.mxu0 %v4780
  %7619 = vmatmul.bf16.gmra.mxu0 %v1103
  %v7620 = vpop.f32.mrf.mxu0
  %v7621 = vadd.f32 %v7608, %v7620
  %v7622 = vpop.f32.mrf.mxu0
  %7623 = vdwg.mxu0
  %7624 = vmatpush.bf16.msra.mxu0 %v4900
  %7625 = vmatpush.bf16.msra.mxu0 %v4892
  %7626 = vmatpush.bf16.msra.mxu0 %v4884
  %7627 = vmatpush.bf16.msra.mxu0 %v4876
  %7628 = vmatpush.bf16.msra.mxu0 %v4868
  %7629 = vmatpush.bf16.msra.mxu0 %v4860
  %7630 = vmatpush.bf16.msra.mxu0 %v4852
  %7631 = vmatpush.bf16.msra.mxu0 %v4844
  %7632 = vmatmul.bf16.gmra.mxu0 %v1104
  %v7633 = vpop.f32.mrf.mxu0
  %v7634 = vadd.f32 %v7621, %v7633
  %v7635 = vpop.f32.mrf.mxu0
  %7636 = vdwg.mxu0
  %7637 = vmatpush.bf16.msra.mxu0 %v4964
  %7638 = vmatpush.bf16.msra.mxu0 %v4956
  %7639 = vmatpush.bf16.msra.mxu0 %v4948
  %7640 = vmatpush.bf16.msra.mxu0 %v4940
  %7641 = vmatpush.bf16.msra.mxu0 %v4932
  %7642 = vmatpush.bf16.msra.mxu0 %v4924
  %7643 = vmatpush.bf16.msra.mxu0 %v4916
  %7644 = vmatpush.bf16.msra.mxu0 %v4908
  %7645 = vmatmul.bf16.gmra.mxu0 %v1105
  %v7646 = vpop.f32.mrf.mxu0
  %v7647 = vadd.f32 %v7634, %v7646
  %v7648 = vpop.f32.mrf.mxu0
  %7649 = vdwg.mxu0
  %7650 = vmatpush.bf16.msra.mxu0 %v5028
  %7651 = vmatpush.bf16.msra.mxu0 %v5020
  %7652 = vmatpush.bf16.msra.mxu0 %v5012
  %7653 = vmatpush.bf16.msra.mxu0 %v5004
  %7654 = vmatpush.bf16.msra.mxu0 %v4996
  %7655 = vmatpush.bf16.msra.mxu0 %v4988
  %7656 = vmatpush.bf16.msra.mxu0 %v4980
  %7657 = vmatpush.bf16.msra.mxu0 %v4972
  %7658 = vmatmul.bf16.gmra.mxu0 %v1106
  %v7659 = vpop.f32.mrf.mxu0
  %v7660 = vadd.f32 %v7647, %v7659
  %v7661 = vpop.f32.mrf.mxu0
  %7662 = vdwg.mxu0
  %7663 = vmatpush.bf16.msra.mxu0 %v5092
  %7664 = vmatpush.bf16.msra.mxu0 %v5084
  %7665 = vmatpush.bf16.msra.mxu0 %v5076
  %7666 = vmatpush.bf16.msra.mxu0 %v5068
  %7667 = vmatpush.bf16.msra.mxu0 %v5060
  %7668 = vmatpush.bf16.msra.mxu0 %v5052
  %7669 = vmatpush.bf16.msra.mxu0 %v5044
  %7670 = vmatpush.bf16.msra.mxu0 %v5036
  %7671 = vmatmul.bf16.gmra.mxu0 %v1107
  %v7672 = vpop.f32.mrf.mxu0
  %v7673 = vadd.f32 %v7660, %v7672
  %v7674 = vpop.f32.mrf.mxu0
  %7675 = vdwg.mxu0
  %7676 = vmatpush.bf16.msra.mxu0 %v5156
  %7677 = vmatpush.bf16.msra.mxu0 %v5148
  %7678 = vmatpush.bf16.msra.mxu0 %v5140
  %7679 = vmatpush.bf16.msra.mxu0 %v5132
  %7680 = vmatpush.bf16.msra.mxu0 %v5124
  %7681 = vmatpush.bf16.msra.mxu0 %v5116
  %7682 = vmatpush.bf16.msra.mxu0 %v5108
  %7683 = vmatpush.bf16.msra.mxu0 %v5100
  %7684 = vmatmul.bf16.gmra.mxu0 %v1108
  %v7685 = vpop.f32.mrf.mxu0
  %v7686 = vadd.f32 %v7673, %v7685
  %v7687 = vpop.f32.mrf.mxu0
  %7688 = vdwg.mxu0
  %7689 = vmatpush.bf16.msra.mxu0 %v5220
  %7690 = vmatpush.bf16.msra.mxu0 %v5212
  %7691 = vmatpush.bf16.msra.mxu0 %v5204
  %7692 = vmatpush.bf16.msra.mxu0 %v5196
  %7693 = vmatpush.bf16.msra.mxu0 %v5188
  %7694 = vmatpush.bf16.msra.mxu0 %v5180
  %7695 = vmatpush.bf16.msra.mxu0 %v5172
  %7696 = vmatpush.bf16.msra.mxu0 %v5164
  %7697 = vmatmul.bf16.gmra.mxu0 %v1109
  %v7698 = vpop.f32.mrf.mxu0
  %v7699 = vadd.f32 %v7686, %v7698
  %v7700 = vpop.f32.mrf.mxu0
  %7701 = vdwg.mxu0
  %7702 = vmatpush.bf16.msra.mxu0 %v4261
  %7703 = vmatpush.bf16.msra.mxu0 %v4253
  %7704 = vmatpush.bf16.msra.mxu0 %v4245
  %7705 = vmatpush.bf16.msra.mxu0 %v4237
  %7706 = vmatpush.bf16.msra.mxu0 %v4229
  %7707 = vmatpush.bf16.msra.mxu0 %v4221
  %7708 = vmatpush.bf16.msra.mxu0 %v4213
  %7709 = vmatpush.bf16.msra.mxu0 %v4205
  %7710 = vmatmul.bf16.gmra.mxu0 %v1094
  %v7711 = vpop.f32.mrf.mxu0
  %v7712 = vadd.f32 %v1061, %v7711
  %v7713 = vpop.f32.mrf.mxu0
  %7714 = vdwg.mxu0
  %7715 = vmatpush.bf16.msra.mxu0 %v4325
  %7716 = vmatpush.bf16.msra.mxu0 %v4317
  %7717 = vmatpush.bf16.msra.mxu0 %v4309
  %7718 = vmatpush.bf16.msra.mxu0 %v4301
  %7719 = vmatpush.bf16.msra.mxu0 %v4293
  %7720 = vmatpush.bf16.msra.mxu0 %v4285
  %7721 = vmatpush.bf16.msra.mxu0 %v4277
  %7722 = vmatpush.bf16.msra.mxu0 %v4269
  %7723 = vmatmul.bf16.gmra.mxu0 %v1095
  %v7724 = vpop.f32.mrf.mxu0
  %v7725 = vadd.f32 %v7712, %v7724
  %v7726 = vpop.f32.mrf.mxu0
  %7727 = vdwg.mxu0
  %7728 = vmatpush.bf16.msra.mxu0 %v4389
  %7729 = vmatpush.bf16.msra.mxu0 %v4381
  %7730 = vmatpush.bf16.msra.mxu0 %v4373
  %7731 = vmatpush.bf16.msra.mxu0 %v4365
  %7732 = vmatpush.bf16.msra.mxu0 %v4357
  %7733 = vmatpush.bf16.msra.mxu0 %v4349
  %7734 = vmatpush.bf16.msra.mxu0 %v4341
  %7735 = vmatpush.bf16.msra.mxu0 %v4333
  %7736 = vmatmul.bf16.gmra.mxu0 %v1096
  %v7737 = vpop.f32.mrf.mxu0
  %v7738 = vadd.f32 %v7725, %v7737
  %v7739 = vpop.f32.mrf.mxu0
  %7740 = vdwg.mxu0
  %7741 = vmatpush.bf16.msra.mxu0 %v4453
  %7742 = vmatpush.bf16.msra.mxu0 %v4445
  %7743 = vmatpush.bf16.msra.mxu0 %v4437
  %7744 = vmatpush.bf16.msra.mxu0 %v4429
  %7745 = vmatpush.bf16.msra.mxu0 %v4421
  %7746 = vmatpush.bf16.msra.mxu0 %v4413
  %7747 = vmatpush.bf16.msra.mxu0 %v4405
  %7748 = vmatpush.bf16.msra.mxu0 %v4397
  %7749 = vmatmul.bf16.gmra.mxu0 %v1097
  %v7750 = vpop.f32.mrf.mxu0
  %v7751 = vadd.f32 %v7738, %v7750
  %v7752 = vpop.f32.mrf.mxu0
  %7753 = vdwg.mxu0
  %7754 = vmatpush.bf16.msra.mxu0 %v4517
  %7755 = vmatpush.bf16.msra.mxu0 %v4509
  %7756 = vmatpush.bf16.msra.mxu0 %v4501
  %7757 = vmatpush.bf16.msra.mxu0 %v4493
  %7758 = vmatpush.bf16.msra.mxu0 %v4485
  %7759 = vmatpush.bf16.msra.mxu0 %v4477
  %7760 = vmatpush.bf16.msra.mxu0 %v4469
  %7761 = vmatpush.bf16.msra.mxu0 %v4461
  %7762 = vmatmul.bf16.gmra.mxu0 %v1098
  %v7763 = vpop.f32.mrf.mxu0
  %v7764 = vadd.f32 %v7751, %v7763
  %v7765 = vpop.f32.mrf.mxu0
  %7766 = vdwg.mxu0
  %7767 = vmatpush.bf16.msra.mxu0 %v4581
  %7768 = vmatpush.bf16.msra.mxu0 %v4573
  %7769 = vmatpush.bf16.msra.mxu0 %v4565
  %7770 = vmatpush.bf16.msra.mxu0 %v4557
  %7771 = vmatpush.bf16.msra.mxu0 %v4549
  %7772 = vmatpush.bf16.msra.mxu0 %v4541
  %7773 = vmatpush.bf16.msra.mxu0 %v4533
  %7774 = vmatpush.bf16.msra.mxu0 %v4525
  %7775 = vmatmul.bf16.gmra.mxu0 %v1099
  %v7776 = vpop.f32.mrf.mxu0
  %v7777 = vadd.f32 %v7764, %v7776
  %v7778 = vpop.f32.mrf.mxu0
  %7779 = vdwg.mxu0
  %7780 = vmatpush.bf16.msra.mxu0 %v4645
  %7781 = vmatpush.bf16.msra.mxu0 %v4637
  %7782 = vmatpush.bf16.msra.mxu0 %v4629
  %7783 = vmatpush.bf16.msra.mxu0 %v4621
  %7784 = vmatpush.bf16.msra.mxu0 %v4613
  %7785 = vmatpush.bf16.msra.mxu0 %v4605
  %7786 = vmatpush.bf16.msra.mxu0 %v4597
  %7787 = vmatpush.bf16.msra.mxu0 %v4589
  %7788 = vmatmul.bf16.gmra.mxu0 %v1100
  %v7789 = vpop.f32.mrf.mxu0
  %v7790 = vadd.f32 %v7777, %v7789
  %v7791 = vpop.f32.mrf.mxu0
  %7792 = vdwg.mxu0
  %7793 = vmatpush.bf16.msra.mxu0 %v4709
  %7794 = vmatpush.bf16.msra.mxu0 %v4701
  %7795 = vmatpush.bf16.msra.mxu0 %v4693
  %7796 = vmatpush.bf16.msra.mxu0 %v4685
  %7797 = vmatpush.bf16.msra.mxu0 %v4677
  %7798 = vmatpush.bf16.msra.mxu0 %v4669
  %7799 = vmatpush.bf16.msra.mxu0 %v4661
  %7800 = vmatpush.bf16.msra.mxu0 %v4653
  %7801 = vmatmul.bf16.gmra.mxu0 %v1101
  %v7802 = vpop.f32.mrf.mxu0
  %v7803 = vadd.f32 %v7790, %v7802
  %v7804 = vpop.f32.mrf.mxu0
  %7805 = vdwg.mxu0
  %7806 = vmatpush.bf16.msra.mxu0 %v4773
  %7807 = vmatpush.bf16.msra.mxu0 %v4765
  %7808 = vmatpush.bf16.msra.mxu0 %v4757
  %7809 = vmatpush.bf16.msra.mxu0 %v4749
  %7810 = vmatpush.bf16.msra.mxu0 %v4741
  %7811 = vmatpush.bf16.msra.mxu0 %v4733
  %7812 = vmatpush.bf16.msra.mxu0 %v4725
  %7813 = vmatpush.bf16.msra.mxu0 %v4717
  %7814 = vmatmul.bf16.gmra.mxu0 %v1102
  %v7815 = vpop.f32.mrf.mxu0
  %v7816 = vadd.f32 %v7803, %v7815
  %v7817 = vpop.f32.mrf.mxu0
  %7818 = vdwg.mxu0
  %7819 = vmatpush.bf16.msra.mxu0 %v4837
  %7820 = vmatpush.bf16.msra.mxu0 %v4829
  %7821 = vmatpush.bf16.msra.mxu0 %v4821
  %7822 = vmatpush.bf16.msra.mxu0 %v4813
  %7823 = vmatpush.bf16.msra.mxu0 %v4805
  %7824 = vmatpush.bf16.msra.mxu0 %v4797
  %7825 = vmatpush.bf16.msra.mxu0 %v4789
  %7826 = vmatpush.bf16.msra.mxu0 %v4781
  %7827 = vmatmul.bf16.gmra.mxu0 %v1103
  %v7828 = vpop.f32.mrf.mxu0
  %v7829 = vadd.f32 %v7816, %v7828
  %v7830 = vpop.f32.mrf.mxu0
  %7831 = vdwg.mxu0
  %7832 = vmatpush.bf16.msra.mxu0 %v4901
  %7833 = vmatpush.bf16.msra.mxu0 %v4893
  %7834 = vmatpush.bf16.msra.mxu0 %v4885
  %7835 = vmatpush.bf16.msra.mxu0 %v4877
  %7836 = vmatpush.bf16.msra.mxu0 %v4869
  %7837 = vmatpush.bf16.msra.mxu0 %v4861
  %7838 = vmatpush.bf16.msra.mxu0 %v4853
  %7839 = vmatpush.bf16.msra.mxu0 %v4845
  %7840 = vmatmul.bf16.gmra.mxu0 %v1104
  %v7841 = vpop.f32.mrf.mxu0
  %v7842 = vadd.f32 %v7829, %v7841
  %v7843 = vpop.f32.mrf.mxu0
  %7844 = vdwg.mxu0
  %7845 = vmatpush.bf16.msra.mxu0 %v4965
  %7846 = vmatpush.bf16.msra.mxu0 %v4957
  %7847 = vmatpush.bf16.msra.mxu0 %v4949
  %7848 = vmatpush.bf16.msra.mxu0 %v4941
  %7849 = vmatpush.bf16.msra.mxu0 %v4933
  %7850 = vmatpush.bf16.msra.mxu0 %v4925
  %7851 = vmatpush.bf16.msra.mxu0 %v4917
  %7852 = vmatpush.bf16.msra.mxu0 %v4909
  %7853 = vmatmul.bf16.gmra.mxu0 %v1105
  %v7854 = vpop.f32.mrf.mxu0
  %v7855 = vadd.f32 %v7842, %v7854
  %v7856 = vpop.f32.mrf.mxu0
  %7857 = vdwg.mxu0
  %7858 = vmatpush.bf16.msra.mxu0 %v5029
  %7859 = vmatpush.bf16.msra.mxu0 %v5021
  %7860 = vmatpush.bf16.msra.mxu0 %v5013
  %7861 = vmatpush.bf16.msra.mxu0 %v5005
  %7862 = vmatpush.bf16.msra.mxu0 %v4997
  %7863 = vmatpush.bf16.msra.mxu0 %v4989
  %7864 = vmatpush.bf16.msra.mxu0 %v4981
  %7865 = vmatpush.bf16.msra.mxu0 %v4973
  %7866 = vmatmul.bf16.gmra.mxu0 %v1106
  %v7867 = vpop.f32.mrf.mxu0
  %v7868 = vadd.f32 %v7855, %v7867
  %v7869 = vpop.f32.mrf.mxu0
  %7870 = vdwg.mxu0
  %7871 = vmatpush.bf16.msra.mxu0 %v5093
  %7872 = vmatpush.bf16.msra.mxu0 %v5085
  %7873 = vmatpush.bf16.msra.mxu0 %v5077
  %7874 = vmatpush.bf16.msra.mxu0 %v5069
  %7875 = vmatpush.bf16.msra.mxu0 %v5061
  %7876 = vmatpush.bf16.msra.mxu0 %v5053
  %7877 = vmatpush.bf16.msra.mxu0 %v5045
  %7878 = vmatpush.bf16.msra.mxu0 %v5037
  %7879 = vmatmul.bf16.gmra.mxu0 %v1107
  %v7880 = vpop.f32.mrf.mxu0
  %v7881 = vadd.f32 %v7868, %v7880
  %v7882 = vpop.f32.mrf.mxu0
  %7883 = vdwg.mxu0
  %7884 = vmatpush.bf16.msra.mxu0 %v5157
  %7885 = vmatpush.bf16.msra.mxu0 %v5149
  %7886 = vmatpush.bf16.msra.mxu0 %v5141
  %7887 = vmatpush.bf16.msra.mxu0 %v5133
  %7888 = vmatpush.bf16.msra.mxu0 %v5125
  %7889 = vmatpush.bf16.msra.mxu0 %v5117
  %7890 = vmatpush.bf16.msra.mxu0 %v5109
  %7891 = vmatpush.bf16.msra.mxu0 %v5101
  %7892 = vmatmul.bf16.gmra.mxu0 %v1108
  %v7893 = vpop.f32.mrf.mxu0
  %v7894 = vadd.f32 %v7881, %v7893
  %v7895 = vpop.f32.mrf.mxu0
  %7896 = vdwg.mxu0
  %7897 = vmatpush.bf16.msra.mxu0 %v5221
  %7898 = vmatpush.bf16.msra.mxu0 %v5213
  %7899 = vmatpush.bf16.msra.mxu0 %v5205
  %7900 = vmatpush.bf16.msra.mxu0 %v5197
  %7901 = vmatpush.bf16.msra.mxu0 %v5189
  %7902 = vmatpush.bf16.msra.mxu0 %v5181
  %7903 = vmatpush.bf16.msra.mxu0 %v5173
  %7904 = vmatpush.bf16.msra.mxu0 %v5165
  %7905 = vmatmul.bf16.gmra.mxu0 %v1109
  %v7906 = vpop.f32.mrf.mxu0
  %v7907 = vadd.f32 %v7894, %v7906
  %v7908 = vpop.f32.mrf.mxu0
  %7909 = vdwg.mxu0
  %v7910 = vpack.c.bf16 %v6451, %v6451
  %v7911 = vpack.c.bf16 %v6659, %v6659
  %v7912 = vpack.c.bf16 %v6867, %v6867
  %v7913 = vpack.c.bf16 %v7075, %v7075
  %v7914 = vpack.c.bf16 %v7283, %v7283
  %v7915 = vpack.c.bf16 %v7491, %v7491
  %v7916 = vpack.c.bf16 %v7699, %v7699
  %v7917 = vpack.c.bf16 %v7907, %v7907
  %v7918 = vld [vmem:[%s3] sm:$0xf]
  %v7919 = vld [vmem:[%s3 + $0x4] sm:$0xf]
  %v7920 = vld [vmem:[%s3 + $0x8] sm:$0xf]
  %v7921 = vld [vmem:[%s3 + $0xc] sm:$0xf]
  %v7922 = vld [vmem:[%s3 + $0x10] sm:$0xf]
  %v7923 = vld [vmem:[%s3 + $0x14] sm:$0xf]
  %v7924 = vld [vmem:[%s3 + $0x18] sm:$0xf]
  %v7925 = vld [vmem:[%s3 + $0x1c] sm:$0xf]
  %v7926 = vld [vmem:[%s3 + $0x20] sm:$0xf]
  %v7927 = vld [vmem:[%s3 + $0x24] sm:$0xf]
  %v7928 = vld [vmem:[%s3 + $0x28] sm:$0xf]
  %v7929 = vld [vmem:[%s3 + $0x2c] sm:$0xf]
  %v7930 = vld [vmem:[%s3 + $0x30] sm:$0xf]
  %v7931 = vld [vmem:[%s3 + $0x34] sm:$0xf]
  %v7932 = vld [vmem:[%s3 + $0x38] sm:$0xf]
  %v7933 = vld [vmem:[%s3 + $0x3c] sm:$0xf]
  %v7934 = vld [vmem:[%s3 + $0x40] sm:$0xf]
  %v7935 = vld [vmem:[%s3 + $0x44] sm:$0xf]
  %v7936 = vld [vmem:[%s3 + $0x48] sm:$0xf]
  %v7937 = vld [vmem:[%s3 + $0x4c] sm:$0xf]
  %v7938 = vld [vmem:[%s3 + $0x50] sm:$0xf]
  %v7939 = vld [vmem:[%s3 + $0x54] sm:$0xf]
  %v7940 = vld [vmem:[%s3 + $0x58] sm:$0xf]
  %v7941 = vld [vmem:[%s3 + $0x5c] sm:$0xf]
  %v7942 = vld [vmem:[%s3 + $0x60] sm:$0xf]
  %v7943 = vld [vmem:[%s3 + $0x64] sm:$0xf]
  %v7944 = vld [vmem:[%s3 + $0x68] sm:$0xf]
  %v7945 = vld [vmem:[%s3 + $0x6c] sm:$0xf]
  %v7946 = vld [vmem:[%s3 + $0x70] sm:$0xf]
  %v7947 = vld [vmem:[%s3 + $0x74] sm:$0xf]
  %v7948 = vld [vmem:[%s3 + $0x78] sm:$0xf]
  %v7949 = vld [vmem:[%s3 + $0x7c] sm:$0xf]
  %v7950 = vld [vmem:[%s3 + $0x80] sm:$0xf]
  %v7951 = vld [vmem:[%s3 + $0x84] sm:$0xf]
  %v7952 = vld [vmem:[%s3 + $0x88] sm:$0xf]
  %v7953 = vld [vmem:[%s3 + $0x8c] sm:$0xf]
  %v7954 = vld [vmem:[%s3 + $0x90] sm:$0xf]
  %v7955 = vld [vmem:[%s3 + $0x94] sm:$0xf]
  %v7956 = vld [vmem:[%s3 + $0x98] sm:$0xf]
  %v7957 = vld [vmem:[%s3 + $0x9c] sm:$0xf]
  %v7958 = vld [vmem:[%s3 + $0xa0] sm:$0xf]
  %v7959 = vld [vmem:[%s3 + $0xa4] sm:$0xf]
  %v7960 = vld [vmem:[%s3 + $0xa8] sm:$0xf]
  %v7961 = vld [vmem:[%s3 + $0xac] sm:$0xf]
  %v7962 = vld [vmem:[%s3 + $0xb0] sm:$0xf]
  %v7963 = vld [vmem:[%s3 + $0xb4] sm:$0xf]
  %v7964 = vld [vmem:[%s3 + $0xb8] sm:$0xf]
  %v7965 = vld [vmem:[%s3 + $0xbc] sm:$0xf]
  %v7966 = vld [vmem:[%s3 + $0xc0] sm:$0xf]
  %v7967 = vld [vmem:[%s3 + $0xc4] sm:$0xf]
  %v7968 = vld [vmem:[%s3 + $0xc8] sm:$0xf]
  %v7969 = vld [vmem:[%s3 + $0xcc] sm:$0xf]
  %v7970 = vld [vmem:[%s3 + $0xd0] sm:$0xf]
  %v7971 = vld [vmem:[%s3 + $0xd4] sm:$0xf]
  %v7972 = vld [vmem:[%s3 + $0xd8] sm:$0xf]
  %v7973 = vld [vmem:[%s3 + $0xdc] sm:$0xf]
  %v7974 = vld [vmem:[%s3 + $0xe0] sm:$0xf]
  %v7975 = vld [vmem:[%s3 + $0xe4] sm:$0xf]
  %v7976 = vld [vmem:[%s3 + $0xe8] sm:$0xf]
  %v7977 = vld [vmem:[%s3 + $0xec] sm:$0xf]
  %v7978 = vld [vmem:[%s3 + $0xf0] sm:$0xf]
  %v7979 = vld [vmem:[%s3 + $0xf4] sm:$0xf]
  %v7980 = vld [vmem:[%s3 + $0xf8] sm:$0xf]
  %v7981 = vld [vmem:[%s3 + $0xfc] sm:$0xf]
  %v7982 = vld [vmem:[%s3 + $0x100] sm:$0xf]
  %v7983 = vld [vmem:[%s3 + $0x104] sm:$0xf]
  %v7984 = vld [vmem:[%s3 + $0x108] sm:$0xf]
  %v7985 = vld [vmem:[%s3 + $0x10c] sm:$0xf]
  %v7986 = vld [vmem:[%s3 + $0x110] sm:$0xf]
  %v7987 = vld [vmem:[%s3 + $0x114] sm:$0xf]
  %v7988 = vld [vmem:[%s3 + $0x118] sm:$0xf]
  %v7989 = vld [vmem:[%s3 + $0x11c] sm:$0xf]
  %v7990 = vld [vmem:[%s3 + $0x120] sm:$0xf]
  %v7991 = vld [vmem:[%s3 + $0x124] sm:$0xf]
  %v7992 = vld [vmem:[%s3 + $0x128] sm:$0xf]
  %v7993 = vld [vmem:[%s3 + $0x12c] sm:$0xf]
  %v7994 = vld [vmem:[%s3 + $0x130] sm:$0xf]
  %v7995 = vld [vmem:[%s3 + $0x134] sm:$0xf]
  %v7996 = vld [vmem:[%s3 + $0x138] sm:$0xf]
  %v7997 = vld [vmem:[%s3 + $0x13c] sm:$0xf]
  %v7998 = vld [vmem:[%s3 + $0x140] sm:$0xf]
  %v7999 = vld [vmem:[%s3 + $0x144] sm:$0xf]
  %v8000 = vld [vmem:[%s3 + $0x148] sm:$0xf]
  %v8001 = vld [vmem:[%s3 + $0x14c] sm:$0xf]
  %v8002 = vld [vmem:[%s3 + $0x150] sm:$0xf]
  %v8003 = vld [vmem:[%s3 + $0x154] sm:$0xf]
  %v8004 = vld [vmem:[%s3 + $0x158] sm:$0xf]
  %v8005 = vld [vmem:[%s3 + $0x15c] sm:$0xf]
  %v8006 = vld [vmem:[%s3 + $0x160] sm:$0xf]
  %v8007 = vld [vmem:[%s3 + $0x164] sm:$0xf]
  %v8008 = vld [vmem:[%s3 + $0x168] sm:$0xf]
  %v8009 = vld [vmem:[%s3 + $0x16c] sm:$0xf]
  %v8010 = vld [vmem:[%s3 + $0x170] sm:$0xf]
  %v8011 = vld [vmem:[%s3 + $0x174] sm:$0xf]
  %v8012 = vld [vmem:[%s3 + $0x178] sm:$0xf]
  %v8013 = vld [vmem:[%s3 + $0x17c] sm:$0xf]
  %v8014 = vld [vmem:[%s3 + $0x180] sm:$0xf]
  %v8015 = vld [vmem:[%s3 + $0x184] sm:$0xf]
  %v8016 = vld [vmem:[%s3 + $0x188] sm:$0xf]
  %v8017 = vld [vmem:[%s3 + $0x18c] sm:$0xf]
  %v8018 = vld [vmem:[%s3 + $0x190] sm:$0xf]
  %v8019 = vld [vmem:[%s3 + $0x194] sm:$0xf]
  %v8020 = vld [vmem:[%s3 + $0x198] sm:$0xf]
  %v8021 = vld [vmem:[%s3 + $0x19c] sm:$0xf]
  %v8022 = vld [vmem:[%s3 + $0x1a0] sm:$0xf]
  %v8023 = vld [vmem:[%s3 + $0x1a4] sm:$0xf]
  %v8024 = vld [vmem:[%s3 + $0x1a8] sm:$0xf]
  %v8025 = vld [vmem:[%s3 + $0x1ac] sm:$0xf]
  %v8026 = vld [vmem:[%s3 + $0x1b0] sm:$0xf]
  %v8027 = vld [vmem:[%s3 + $0x1b4] sm:$0xf]
  %v8028 = vld [vmem:[%s3 + $0x1b8] sm:$0xf]
  %v8029 = vld [vmem:[%s3 + $0x1bc] sm:$0xf]
  %v8030 = vld [vmem:[%s3 + $0x1c0] sm:$0xf]
  %v8031 = vld [vmem:[%s3 + $0x1c4] sm:$0xf]
  %v8032 = vld [vmem:[%s3 + $0x1c8] sm:$0xf]
  %v8033 = vld [vmem:[%s3 + $0x1cc] sm:$0xf]
  %v8034 = vld [vmem:[%s3 + $0x1d0] sm:$0xf]
  %v8035 = vld [vmem:[%s3 + $0x1d4] sm:$0xf]
  %v8036 = vld [vmem:[%s3 + $0x1d8] sm:$0xf]
  %v8037 = vld [vmem:[%s3 + $0x1dc] sm:$0xf]
  %v8038 = vld [vmem:[%s3 + $0x1e0] sm:$0xf]
  %v8039 = vld [vmem:[%s3 + $0x1e4] sm:$0xf]
  %v8040 = vld [vmem:[%s3 + $0x1e8] sm:$0xf]
  %v8041 = vld [vmem:[%s3 + $0x1ec] sm:$0xf]
  %v8042 = vld [vmem:[%s3 + $0x1f0] sm:$0xf]
  %v8043 = vld [vmem:[%s3 + $0x1f4] sm:$0xf]
  %v8044 = vld [vmem:[%s3 + $0x1f8] sm:$0xf]
  %v8045 = vld [vmem:[%s3 + $0x1fc] sm:$0xf]
  %v8046 = vld [vmem:[%s4] sm:$0x1]
  %v8048 = vperm.slane %v8046, 0
  %v8178 = vunpack.c.l.b16 %v7918
  %v8179 = vunpack.c.l.b16 %v7919
  %v8180 = vunpack.c.l.b16 %v7920
  %v8181 = vunpack.c.l.b16 %v7921
  %v8182 = vunpack.c.l.b16 %v7922
  %v8183 = vunpack.c.l.b16 %v7923
  %v8184 = vunpack.c.l.b16 %v7924
  %v8185 = vunpack.c.l.b16 %v7925
  %v8186 = vunpack.c.l.b16 %v7926
  %v8187 = vunpack.c.l.b16 %v7927
  %v8188 = vunpack.c.l.b16 %v7928
  %v8189 = vunpack.c.l.b16 %v7929
  %v8190 = vunpack.c.l.b16 %v7930
  %v8191 = vunpack.c.l.b16 %v7931
  %v8192 = vunpack.c.l.b16 %v7932
  %v8193 = vunpack.c.l.b16 %v7933
  %v8194 = vunpack.c.l.b16 %v7934
  %v8195 = vunpack.c.l.b16 %v7935
  %v8196 = vunpack.c.l.b16 %v7936
  %v8197 = vunpack.c.l.b16 %v7937
  %v8198 = vunpack.c.l.b16 %v7938
  %v8199 = vunpack.c.l.b16 %v7939
  %v8200 = vunpack.c.l.b16 %v7940
  %v8201 = vunpack.c.l.b16 %v7941
  %v8202 = vunpack.c.l.b16 %v7942
  %v8203 = vunpack.c.l.b16 %v7943
  %v8204 = vunpack.c.l.b16 %v7944
  %v8205 = vunpack.c.l.b16 %v7945
  %v8206 = vunpack.c.l.b16 %v7946
  %v8207 = vunpack.c.l.b16 %v7947
  %v8208 = vunpack.c.l.b16 %v7948
  %v8209 = vunpack.c.l.b16 %v7949
  %v8210 = vunpack.c.l.b16 %v7950
  %v8211 = vunpack.c.l.b16 %v7951
  %v8212 = vunpack.c.l.b16 %v7952
  %v8213 = vunpack.c.l.b16 %v7953
  %v8214 = vunpack.c.l.b16 %v7954
  %v8215 = vunpack.c.l.b16 %v7955
  %v8216 = vunpack.c.l.b16 %v7956
  %v8217 = vunpack.c.l.b16 %v7957
  %v8218 = vunpack.c.l.b16 %v7958
  %v8219 = vunpack.c.l.b16 %v7959
  %v8220 = vunpack.c.l.b16 %v7960
  %v8221 = vunpack.c.l.b16 %v7961
  %v8222 = vunpack.c.l.b16 %v7962
  %v8223 = vunpack.c.l.b16 %v7963
  %v8224 = vunpack.c.l.b16 %v7964
  %v8225 = vunpack.c.l.b16 %v7965
  %v8226 = vunpack.c.l.b16 %v7966
  %v8227 = vunpack.c.l.b16 %v7967
  %v8228 = vunpack.c.l.b16 %v7968
  %v8229 = vunpack.c.l.b16 %v7969
  %v8230 = vunpack.c.l.b16 %v7970
  %v8231 = vunpack.c.l.b16 %v7971
  %v8232 = vunpack.c.l.b16 %v7972
  %v8233 = vunpack.c.l.b16 %v7973
  %v8234 = vunpack.c.l.b16 %v7974
  %v8235 = vunpack.c.l.b16 %v7975
  %v8236 = vunpack.c.l.b16 %v7976
  %v8237 = vunpack.c.l.b16 %v7977
  %v8238 = vunpack.c.l.b16 %v7978
  %v8239 = vunpack.c.l.b16 %v7979
  %v8240 = vunpack.c.l.b16 %v7980
  %v8241 = vunpack.c.l.b16 %v7981
  %v8242 = vunpack.c.l.b16 %v7982
  %v8243 = vunpack.c.l.b16 %v7983
  %v8244 = vunpack.c.l.b16 %v7984
  %v8245 = vunpack.c.l.b16 %v7985
  %v8246 = vunpack.c.l.b16 %v7986
  %v8247 = vunpack.c.l.b16 %v7987
  %v8248 = vunpack.c.l.b16 %v7988
  %v8249 = vunpack.c.l.b16 %v7989
  %v8250 = vunpack.c.l.b16 %v7990
  %v8251 = vunpack.c.l.b16 %v7991
  %v8252 = vunpack.c.l.b16 %v7992
  %v8253 = vunpack.c.l.b16 %v7993
  %v8254 = vunpack.c.l.b16 %v7994
  %v8255 = vunpack.c.l.b16 %v7995
  %v8256 = vunpack.c.l.b16 %v7996
  %v8257 = vunpack.c.l.b16 %v7997
  %v8258 = vunpack.c.l.b16 %v7998
  %v8259 = vunpack.c.l.b16 %v7999
  %v8260 = vunpack.c.l.b16 %v8000
  %v8261 = vunpack.c.l.b16 %v8001
  %v8262 = vunpack.c.l.b16 %v8002
  %v8263 = vunpack.c.l.b16 %v8003
  %v8264 = vunpack.c.l.b16 %v8004
  %v8265 = vunpack.c.l.b16 %v8005
  %v8266 = vunpack.c.l.b16 %v8006
  %v8267 = vunpack.c.l.b16 %v8007
  %v8268 = vunpack.c.l.b16 %v8008
  %v8269 = vunpack.c.l.b16 %v8009
  %v8270 = vunpack.c.l.b16 %v8010
  %v8271 = vunpack.c.l.b16 %v8011
  %v8272 = vunpack.c.l.b16 %v8012
  %v8273 = vunpack.c.l.b16 %v8013
  %v8274 = vunpack.c.l.b16 %v8014
  %v8275 = vunpack.c.l.b16 %v8015
  %v8276 = vunpack.c.l.b16 %v8016
  %v8277 = vunpack.c.l.b16 %v8017
  %v8278 = vunpack.c.l.b16 %v8018
  %v8279 = vunpack.c.l.b16 %v8019
  %v8280 = vunpack.c.l.b16 %v8020
  %v8281 = vunpack.c.l.b16 %v8021
  %v8282 = vunpack.c.l.b16 %v8022
  %v8283 = vunpack.c.l.b16 %v8023
  %v8284 = vunpack.c.l.b16 %v8024
  %v8285 = vunpack.c.l.b16 %v8025
  %v8286 = vunpack.c.l.b16 %v8026
  %v8287 = vunpack.c.l.b16 %v8027
  %v8288 = vunpack.c.l.b16 %v8028
  %v8289 = vunpack.c.l.b16 %v8029
  %v8290 = vunpack.c.l.b16 %v8030
  %v8291 = vunpack.c.l.b16 %v8031
  %v8292 = vunpack.c.l.b16 %v8032
  %v8293 = vunpack.c.l.b16 %v8033
  %v8294 = vunpack.c.l.b16 %v8034
  %v8295 = vunpack.c.l.b16 %v8035
  %v8296 = vunpack.c.l.b16 %v8036
  %v8297 = vunpack.c.l.b16 %v8037
  %v8298 = vunpack.c.l.b16 %v8038
  %v8299 = vunpack.c.l.b16 %v8039
  %v8300 = vunpack.c.l.b16 %v8040
  %v8301 = vunpack.c.l.b16 %v8041
  %v8302 = vunpack.c.l.b16 %v8042
  %v8303 = vunpack.c.l.b16 %v8043
  %v8304 = vunpack.c.l.b16 %v8044
  %v8305 = vunpack.c.l.b16 %v8045
  %v8306 = vpack.c.b16 %v8179, %v8178
  %v8307 = vpack.c.b16 %v8181, %v8180
  %v8308 = vpack.c.b16 %v8183, %v8182
  %v8309 = vpack.c.b16 %v8185, %v8184
  %v8310 = vpack.c.b16 %v8187, %v8186
  %v8311 = vpack.c.b16 %v8189, %v8188
  %v8312 = vpack.c.b16 %v8191, %v8190
  %v8313 = vpack.c.b16 %v8193, %v8192
  %v8314 = vpack.c.b16 %v8195, %v8194
  %v8315 = vpack.c.b16 %v8197, %v8196
  %v8316 = vpack.c.b16 %v8199, %v8198
  %v8317 = vpack.c.b16 %v8201, %v8200
  %v8318 = vpack.c.b16 %v8203, %v8202
  %v8319 = vpack.c.b16 %v8205, %v8204
  %v8320 = vpack.c.b16 %v8207, %v8206
  %v8321 = vpack.c.b16 %v8209, %v8208
  %v8322 = vpack.c.b16 %v8211, %v8210
  %v8323 = vpack.c.b16 %v8213, %v8212
  %v8324 = vpack.c.b16 %v8215, %v8214
  %v8325 = vpack.c.b16 %v8217, %v8216
  %v8326 = vpack.c.b16 %v8219, %v8218
  %v8327 = vpack.c.b16 %v8221, %v8220
  %v8328 = vpack.c.b16 %v8223, %v8222
  %v8329 = vpack.c.b16 %v8225, %v8224
  %v8330 = vpack.c.b16 %v8227, %v8226
  %v8331 = vpack.c.b16 %v8229, %v8228
  %v8332 = vpack.c.b16 %v8231, %v8230
  %v8333 = vpack.c.b16 %v8233, %v8232
  %v8334 = vpack.c.b16 %v8235, %v8234
  %v8335 = vpack.c.b16 %v8237, %v8236
  %v8336 = vpack.c.b16 %v8239, %v8238
  %v8337 = vpack.c.b16 %v8241, %v8240
  %v8338 = vpack.c.b16 %v8243, %v8242
  %v8339 = vpack.c.b16 %v8245, %v8244
  %v8340 = vpack.c.b16 %v8247, %v8246
  %v8341 = vpack.c.b16 %v8249, %v8248
  %v8342 = vpack.c.b16 %v8251, %v8250
  %v8343 = vpack.c.b16 %v8253, %v8252
  %v8344 = vpack.c.b16 %v8255, %v8254
  %v8345 = vpack.c.b16 %v8257, %v8256
  %v8346 = vpack.c.b16 %v8259, %v8258
  %v8347 = vpack.c.b16 %v8261, %v8260
  %v8348 = vpack.c.b16 %v8263, %v8262
  %v8349 = vpack.c.b16 %v8265, %v8264
  %v8350 = vpack.c.b16 %v8267, %v8266
  %v8351 = vpack.c.b16 %v8269, %v8268
  %v8352 = vpack.c.b16 %v8271, %v8270
  %v8353 = vpack.c.b16 %v8273, %v8272
  %v8354 = vpack.c.b16 %v8275, %v8274
  %v8355 = vpack.c.b16 %v8277, %v8276
  %v8356 = vpack.c.b16 %v8279, %v8278
  %v8357 = vpack.c.b16 %v8281, %v8280
  %v8358 = vpack.c.b16 %v8283, %v8282
  %v8359 = vpack.c.b16 %v8285, %v8284
  %v8360 = vpack.c.b16 %v8287, %v8286
  %v8361 = vpack.c.b16 %v8289, %v8288
  %v8362 = vpack.c.b16 %v8291, %v8290
  %v8363 = vpack.c.b16 %v8293, %v8292
  %v8364 = vpack.c.b16 %v8295, %v8294
  %v8365 = vpack.c.b16 %v8297, %v8296
  %v8366 = vpack.c.b16 %v8299, %v8298
  %v8367 = vpack.c.b16 %v8301, %v8300
  %v8368 = vpack.c.b16 %v8303, %v8302
  %v8369 = vpack.c.b16 %v8305, %v8304
  %8434 = vmatpush.bf16.msra.mxu0 %v8313
  %8435 = vmatpush.bf16.msra.mxu0 %v8312
  %8436 = vmatpush.bf16.msra.mxu0 %v8311
  %8437 = vmatpush.bf16.msra.mxu0 %v8310
  %8438 = vmatpush.bf16.msra.mxu0 %v8309
  %8439 = vmatpush.bf16.msra.mxu0 %v8308
  %8440 = vmatpush.bf16.msra.mxu0 %v8307
  %8441 = vmatpush.bf16.msra.mxu0 %v8306
  %8442 = vmatmul.bf16.gmra.mxu0 %v7910
  %v8443 = vpop.f32.mrf.mxu0
  %v8444 = vadd.f32 %v8048, %v8443
  %v8445 = vpop.f32.mrf.mxu0
  %8446 = vdwg.mxu0
  %8447 = vmatpush.bf16.msra.mxu0 %v8321
  %8448 = vmatpush.bf16.msra.mxu0 %v8320
  %8449 = vmatpush.bf16.msra.mxu0 %v8319
  %8450 = vmatpush.bf16.msra.mxu0 %v8318
  %8451 = vmatpush.bf16.msra.mxu0 %v8317
  %8452 = vmatpush.bf16.msra.mxu0 %v8316
  %8453 = vmatpush.bf16.msra.mxu0 %v8315
  %8454 = vmatpush.bf16.msra.mxu0 %v8314
  %8455 = vmatmul.bf16.gmra.mxu0 %v7911
  %v8456 = vpop.f32.mrf.mxu0
  %v8457 = vadd.f32 %v8444, %v8456
  %v8458 = vpop.f32.mrf.mxu0
  %8459 = vdwg.mxu0
  %8460 = vmatpush.bf16.msra.mxu0 %v8329
  %8461 = vmatpush.bf16.msra.mxu0 %v8328
  %8462 = vmatpush.bf16.msra.mxu0 %v8327
  %8463 = vmatpush.bf16.msra.mxu0 %v8326
  %8464 = vmatpush.bf16.msra.mxu0 %v8325
  %8465 = vmatpush.bf16.msra.mxu0 %v8324
  %8466 = vmatpush.bf16.msra.mxu0 %v8323
  %8467 = vmatpush.bf16.msra.mxu0 %v8322
  %8468 = vmatmul.bf16.gmra.mxu0 %v7912
  %v8469 = vpop.f32.mrf.mxu0
  %v8470 = vadd.f32 %v8457, %v8469
  %v8471 = vpop.f32.mrf.mxu0
  %8472 = vdwg.mxu0
  %8473 = vmatpush.bf16.msra.mxu0 %v8337
  %8474 = vmatpush.bf16.msra.mxu0 %v8336
  %8475 = vmatpush.bf16.msra.mxu0 %v8335
  %8476 = vmatpush.bf16.msra.mxu0 %v8334
  %8477 = vmatpush.bf16.msra.mxu0 %v8333
  %8478 = vmatpush.bf16.msra.mxu0 %v8332
  %8479 = vmatpush.bf16.msra.mxu0 %v8331
  %8480 = vmatpush.bf16.msra.mxu0 %v8330
  %8481 = vmatmul.bf16.gmra.mxu0 %v7913
  %v8482 = vpop.f32.mrf.mxu0
  %v8483 = vadd.f32 %v8470, %v8482
  %v8484 = vpop.f32.mrf.mxu0
  %8485 = vdwg.mxu0
  %8486 = vmatpush.bf16.msra.mxu0 %v8345
  %8487 = vmatpush.bf16.msra.mxu0 %v8344
  %8488 = vmatpush.bf16.msra.mxu0 %v8343
  %8489 = vmatpush.bf16.msra.mxu0 %v8342
  %8490 = vmatpush.bf16.msra.mxu0 %v8341
  %8491 = vmatpush.bf16.msra.mxu0 %v8340
  %8492 = vmatpush.bf16.msra.mxu0 %v8339
  %8493 = vmatpush.bf16.msra.mxu0 %v8338
  %8494 = vmatmul.bf16.gmra.mxu0 %v7914
  %v8495 = vpop.f32.mrf.mxu0
  %v8496 = vadd.f32 %v8483, %v8495
  %v8497 = vpop.f32.mrf.mxu0
  %8498 = vdwg.mxu0
  %8499 = vmatpush.bf16.msra.mxu0 %v8353
  %8500 = vmatpush.bf16.msra.mxu0 %v8352
  %8501 = vmatpush.bf16.msra.mxu0 %v8351
  %8502 = vmatpush.bf16.msra.mxu0 %v8350
  %8503 = vmatpush.bf16.msra.mxu0 %v8349
  %8504 = vmatpush.bf16.msra.mxu0 %v8348
  %8505 = vmatpush.bf16.msra.mxu0 %v8347
  %8506 = vmatpush.bf16.msra.mxu0 %v8346
  %8507 = vmatmul.bf16.gmra.mxu0 %v7915
  %v8508 = vpop.f32.mrf.mxu0
  %v8509 = vadd.f32 %v8496, %v8508
  %v8510 = vpop.f32.mrf.mxu0
  %8511 = vdwg.mxu0
  %8512 = vmatpush.bf16.msra.mxu0 %v8361
  %8513 = vmatpush.bf16.msra.mxu0 %v8360
  %8514 = vmatpush.bf16.msra.mxu0 %v8359
  %8515 = vmatpush.bf16.msra.mxu0 %v8358
  %8516 = vmatpush.bf16.msra.mxu0 %v8357
  %8517 = vmatpush.bf16.msra.mxu0 %v8356
  %8518 = vmatpush.bf16.msra.mxu0 %v8355
  %8519 = vmatpush.bf16.msra.mxu0 %v8354
  %8520 = vmatmul.bf16.gmra.mxu0 %v7916
  %v8521 = vpop.f32.mrf.mxu0
  %v8522 = vadd.f32 %v8509, %v8521
  %v8523 = vpop.f32.mrf.mxu0
  %8524 = vdwg.mxu0
  %8525 = vmatpush.bf16.msra.mxu0 %v8369
  %8526 = vmatpush.bf16.msra.mxu0 %v8368
  %8527 = vmatpush.bf16.msra.mxu0 %v8367
  %8528 = vmatpush.bf16.msra.mxu0 %v8366
  %8529 = vmatpush.bf16.msra.mxu0 %v8365
  %8530 = vmatpush.bf16.msra.mxu0 %v8364
  %8531 = vmatpush.bf16.msra.mxu0 %v8363
  %8532 = vmatpush.bf16.msra.mxu0 %v8362
  %8533 = vmatmul.bf16.gmra.mxu0 %v7917
  %v8534 = vpop.f32.mrf.mxu0
  %v8535 = vadd.f32 %v8522, %v8534
  %v8536 = vpop.f32.mrf.mxu0
  %8537 = vdwg.mxu0
  %8538 = vst [vmem:[%s5] sm:$0xff] %v8535
  // Predicated region
  $region22: #{cnn_forward.9} parent=0 // pred_check
    _
  $region23: #{cnn_forward.9} parent=0 // pred_check_branch
    %8540 = sbr.rel (0) target = $region25
  $region24: #{cnn_forward.9} parent=0 // pred_region
    _
  $region25: #{cnn_forward.9} parent=0 // pred_fallthru
    _
  // Predicated region
  $region26: #{cnn_forward.9} parent=0 // pred_check
    _
  $region27: #{cnn_forward.9} parent=0 // pred_check_branch
    %8542 = sbr.rel (0) target = $region29
  $region28: #{cnn_forward.9} parent=0 // pred_region
    _
  $region29: #{cnn_forward.9} parent=0 // pred_fallthru
    _

</llo_original>
